<compile_context>
chip_gen: v6e
topology: v6e:2x2x1
jax: 0.10.0
libtpu: 0.0.40
codegen_flags: <defaults>
</compile_context>

<pallas_src>
import jax
import jax.numpy as jnp
from jax.experimental import pallas as pl
from jax.experimental.pallas import tpu as pltpu

# ---- small, lane-friendly config (mirrors DecoderWithAttention hyper-params) ----
B = 4            # real batch size
B_PAD = 8        # padded to the native 8-sublane tile
NP = 16          # num_pixels (enc_image_size ** 2)
ENC = 128        # encoder_dim
ATT = 128        # attention_dim
DEC = 128        # decoder_dim
EMB = 128        # embed_dim
V = 256          # vocab_size
L = 6            # max caption length (longest caption uses all L tokens)
MAXT = L - 1     # number of decode steps == max(decode_lengths)
HPROJ = ATT + ENC + 4 * DEC   # width of the fused h projection (768)

F32 = jnp.float32
BF16 = jnp.bfloat16


def _decoder_kernel(
    enc_ref,      # (B_PAD*NP, ENC)       bf16
    dlen_ref,     # (B_PAD, 1)            i32  decode lengths (padded rows = 0)
    dlenr_ref,    # (B_PAD*NP, 1)         i32  decode lengths repeated per pixel
    tok_ref,      # (MAXT*B_PAD, 1)       i32  step-major token ids
    seg_ref,      # (B_PAD, B_PAD*NP)     bf16 block-diag image<-rows selector
    segt_ref,     # (B_PAD*NP, B_PAD)     bf16 block-diag rows<-image selector
    emb_ref,      # (V, EMB)              bf16
    w_ea_ref,     # (ENC, ATT)            bf16
    b_ea_ref,     # (1, ATT)              f32
    wfa_ref,      # (B_PAD*NP, ATT)       f32  pre-broadcast full_att weight row
    w_init_ref,   # (ENC, 2*DEC)          bf16 fused [init_h | init_c]
    b_init_ref,   # (B_PAD, 2*DEC)        f32
    w_h_ref,      # (DEC, HPROJ)          bf16 fused [dec_att | f_beta | lstm_hh]
    b_h_ref,      # (B_PAD, HPROJ)        f32  fused biases (lstm part = b_ih+b_hh)
    w_x_ref,      # (EMB+ENC, 4*DEC)      bf16 fused [w_ih_emb ; w_ih_ctx]
    w_fc_ref,     # (DEC, V)              bf16
    b_fc_ref,     # (B_PAD, V)            f32
    pred_ref,     # out (MAXT, B_PAD, V)  f32
    alpha_ref,    # out (B_PAD*NP, MAXT)  f32
    att1_ref,     # scratch (B_PAD*NP, ATT) f32
):
    # ---------------- hoisted, h-independent work ----------------
    # Encoder-side attention projection (loop-invariant).  Stored in a VMEM
    # scratch so it is not held live in vregs across the unrolled loop.
    att1_ref[...] = jnp.dot(enc_ref[...], w_ea_ref[...],
                            preferred_element_type=F32) + b_ea_ref[...]

    # init_hidden_state: per-image pixel mean via the block-diag selector,
    # then one fused [init_h | init_c] projection.
    mean_enc = jnp.dot(seg_ref[...], enc_ref[...],
                       preferred_element_type=F32) * (1.0 / NP)      # (B_PAD, ENC)
    hc = jnp.dot(mean_enc.astype(BF16), w_init_ref[...],
                 preferred_element_type=F32) + b_init_ref[...]       # (B_PAD, 2*DEC)
    h = hc[:, :DEC]
    c = hc[:, DEC:]

    # Embedding lookup for every decode step at once (one-hot @ table -> no
    # gather, no loop-carried dependence): a single (MAXT*B, V)@(V, EMB).
    onehot = (tok_ref[...] == jax.lax.broadcasted_iota(
        jnp.int32, (MAXT * B_PAD, V), 1)).astype(BF16)
    emb_all = jnp.dot(onehot, emb_ref[...],
                      preferred_element_type=F32)                    # (MAXT*B_PAD, EMB)

    dlen = dlen_ref[...]                                             # (B_PAD, 1)
    dlen_rows = dlenr_ref[...]                                       # (B_PAD*NP, 1)

    for t in range(MAXT):                                            # static unroll
        active = dlen > t                                            # (B_PAD, 1)

        # ---- ONE fused h projection: [decoder_att | f_beta | lstm hh(+bias)] ----
        h_proj = jnp.dot(h.astype(BF16), w_h_ref[...],
                         preferred_element_type=F32) + b_h_ref[...]  # (B_PAD, HPROJ)
        att2 = h_proj[:, :ATT]
        gate = jax.nn.sigmoid(h_proj[:, ATT:ATT + ENC])              # f_beta gate
        lstm_h = h_proj[:, ATT + ENC:]                               # h-part of gates (+bias)

        # ---- attention: relu(att1 + att2 broadcast to pixel rows) . w_full_att ----
        att2_rows = jnp.dot(segt_ref[...], att2.astype(BF16),
                            preferred_element_type=F32)              # (B_PAD*NP, ATT)
        e = jnp.maximum(att1_ref[...] + att2_rows, 0.0)
        # full_att as VPU multiply + lane reduction (no 1-column MXU matmul);
        # full_att bias omitted: per-image-constant shift cancels in softmax.
        scores = jnp.sum(e * wfa_ref[...], axis=1, keepdims=True)    # (B_PAD*NP, 1)

        # ---- per-image softmax over the NP pixels (per-image max, exact recip) ----
        s3 = scores.reshape(B_PAD, NP, 1)
        m3 = jnp.max(s3, axis=1, keepdims=True)                      # (B_PAD, 1, 1)
        p3 = jnp.exp(s3 - m3)
        d3 = jnp.sum(p3, axis=1, keepdims=True)
        alpha = (p3 * pl.reciprocal(d3, approx=False)
                 ).reshape(B_PAD * NP, 1)                            # (B_PAD*NP, 1)

        # ---- gated attention-weighted encoding (bf16 MXU, f32 accumulate) ----
        awe = gate * jnp.dot(seg_ref[...],
                             enc_ref[...] * alpha.astype(BF16),
                             preferred_element_type=F32)             # (B_PAD, ENC)

        # ---- LSTMCell: fused [embedding, context] input matmul ----
        emb_t = emb_all[t * B_PAD:(t + 1) * B_PAD, :]                # (B_PAD, EMB)
        x = jnp.concatenate([emb_t.astype(BF16), awe.astype(BF16)], axis=1)
        gates = jnp.dot(x, w_x_ref[...],
                        preferred_element_type=F32) + lstm_h         # (B_PAD, 4*DEC)
        i_g = jax.nn.sigmoid(gates[:, 0 * DEC:1 * DEC])
        f_g = jax.nn.sigmoid(gates[:, 1 * DEC:2 * DEC])
        g_g = jnp.tanh(gates[:, 2 * DEC:3 * DEC])
        o_g = jax.nn.sigmoid(gates[:, 3 * DEC:4 * DEC])
        c_new = f_g * c + i_g * g_g
        h_new = o_g * jnp.tanh(c_new)

        # ---- vocabulary scores ----
        # TODO(synk): nn.Dropout(p=0.5) before fc is identity here (inference
        # semantics); training-mode dropout would need in-kernel PRNG.
        preds = jnp.dot(h_new.astype(BF16), w_fc_ref[...],
                        preferred_element_type=F32) + b_fc_ref[...]  # (B_PAD, V)

        # ---- masked writes reproduce PyTorch's shrinking "batch_size_t" ----
        pred_ref[t] = jnp.where(active, preds, 0.0)                  # dense (8, V) store
        alpha_ref[:, t:t + 1] = jnp.where(dlen_rows > t, alpha, 0.0)
        h = jnp.where(active, h_new, h)
        c = jnp.where(active, c_new, c)


def decoder_forward(params, encoder_out, encoded_captions, caption_lengths):
    """Mirrors DecoderWithAttention.forward.

    encoder_out:      (B, NP, ENC) float32
    encoded_captions: (B, L)       int32
    caption_lengths:  (B, 1)       int32, sorted descending, max == L
    returns (predictions, encoded_captions, decode_lengths, alphas)
    """
    decode_lengths = (caption_lengths - 1).astype(jnp.int32)          # (B, 1)
    pad = B_PAD - B

    # ---- batch padded to the native 8-sublane tile (dense stores / full vregs) ----
    enc2 = jnp.pad(encoder_out.reshape(B * NP, ENC),
                   ((0, pad * NP), (0, 0))).astype(BF16)              # (B_PAD*NP, ENC)
    caps_p = jnp.pad(encoded_captions.astype(jnp.int32), ((0, pad), (0, 0)))
    dlen_p = jnp.pad(decode_lengths, ((0, pad), (0, 0)))              # padded rows: len 0 -> inactive
    dlenr_p = jnp.repeat(dlen_p, NP, axis=0)                          # (B_PAD*NP, 1)
    tokens = caps_p[:, :MAXT].T.reshape(MAXT * B_PAD, 1)              # step-major token ids

    # ---- block-diagonal batch <-> (batch, pixel) selectors (exact 0/1 in bf16) ----
    row_img = jnp.arange(B_PAD * NP, dtype=jnp.int32) // NP
    img = jnp.arange(B_PAD, dtype=jnp.int32)
    seg = (img[:, None] == row_img[None, :]).astype(BF16)             # (B_PAD, B_PAD*NP)
    seg_t = (row_img[:, None] == img[None, :]).astype(BF16)           # (B_PAD*NP, B_PAD)

    # ---- fused / pre-broadcast parameters (done once, outside the kernel) ----
    w_h_fused = jnp.concatenate(
        [params["w_dec_att"], params["w_f_beta"], params["w_lstm_h"]], axis=1)
    b_h_fused = jnp.broadcast_to(
        jnp.concatenate([params["b_dec_att"], params["b_f_beta"],
                         params["b_lstm_x"] + params["b_lstm_h"]], axis=1),
        (B_PAD, HPROJ))
    w_x_fused = jnp.concatenate([params["w_lstm_xe"], params["w_lstm_xa"]], axis=0)
    w_init = jnp.concatenate([params["w_init_h"], params["w_init_c"]], axis=1)
    b_init = jnp.broadcast_to(
        jnp.concatenate([params["b_init_h"], params["b_init_c"]], axis=1),
        (B_PAD, 2 * DEC))
    b_fc = jnp.broadcast_to(params["b_fc"], (B_PAD, V))
    # full_att weight as a pre-broadcast row (applied on the VPU, kept f32);
    # full_att bias ("b_full_att") is dropped: it cancels in the softmax.
    wfa = jnp.broadcast_to(params["w_full_att"].reshape(1, ATT), (B_PAD * NP, ATT))

    preds_raw, alpha_raw = pl.pallas_call(
        _decoder_kernel,
        out_shape=(
            jax.ShapeDtypeStruct((MAXT, B_PAD, V), F32),   # store-friendly layout
            jax.ShapeDtypeStruct((B_PAD * NP, MAXT), F32),
        ),
        scratch_shapes=[pltpu.VMEM((B_PAD * NP, ATT), F32)],
    )(
        enc2, dlen_p, dlenr_p, tokens, seg, seg_t,
        params["embedding"], params["w_enc_att"], params["b_enc_att"], wfa,
        w_init, b_init, w_h_fused, b_h_fused, w_x_fused,
        params["w_fc"], b_fc,
    )

    predictions = jnp.transpose(preds_raw, (1, 0, 2))[:B]             # (B, MAXT, V)
    alphas = jnp.transpose(alpha_raw.reshape(B_PAD, NP, MAXT),
                           (0, 2, 1))[:B]                             # (B, MAXT, NP)
    return predictions, encoded_captions, decode_lengths, alphas


def init_params(key):
    ks = jax.random.split(key, 13)

    def unif(k, shape, a):
        return jax.random.uniform(k, shape, F32, -a, a)

    k_l = 1.0 / (DEC ** 0.5)  # torch LSTMCell default init range
    return {
        "embedding": unif(ks[0], (V, EMB), 0.1).astype(BF16),    # uniform(-0.1, 0.1)
        "w_enc_att": unif(ks[1], (ENC, ATT), 0.05).astype(BF16),
        "b_enc_att": jnp.zeros((1, ATT), F32),
        "w_dec_att": unif(ks[2], (DEC, ATT), 0.05).astype(BF16),
        "b_dec_att": jnp.zeros((1, ATT), F32),
        "w_full_att": unif(ks[3], (ATT, 1), 0.05),               # f32 (VPU path)
        "b_full_att": jnp.zeros((1, 1), F32),                    # unused: cancels in softmax
        "w_init_h": unif(ks[4], (ENC, DEC), 0.05).astype(BF16),
        "b_init_h": jnp.zeros((1, DEC), F32),
        "w_init_c": unif(ks[5], (ENC, DEC), 0.05).astype(BF16),
        "b_init_c": jnp.zeros((1, DEC), F32),
        "w_f_beta": unif(ks[6], (DEC, ENC), 0.05).astype(BF16),
        "b_f_beta": jnp.zeros((1, ENC), F32),
        "w_lstm_xe": unif(ks[7], (EMB, 4 * DEC), k_l).astype(BF16),
        "w_lstm_xa": unif(ks[8], (ENC, 4 * DEC), k_l).astype(BF16),
        "b_lstm_x": unif(ks[9], (1, 4 * DEC), k_l),
        "w_lstm_h": unif(ks[10], (DEC, 4 * DEC), k_l).astype(BF16),
        "b_lstm_h": unif(ks[11], (1, 4 * DEC), k_l),
        "w_fc": unif(ks[12], (DEC, V), 0.1).astype(BF16),        # uniform(-0.1, 0.1)
        "b_fc": jnp.zeros((1, V), F32),                           # fc bias = 0
    }


if __name__ == "__main__":
    key = jax.random.PRNGKey(0)
    k_enc, k_cap, k_par = jax.random.split(key, 3)

    encoder_out = jax.random.normal(k_enc, (B, NP, ENC), F32)
    encoded_captions = jax.random.randint(k_cap, (B, L), 1, V).astype(jnp.int32)
    caption_lengths = jnp.array([[6], [5], [4], [3]], jnp.int32)  # sorted desc, max == L
    params = init_params(k_par)

    fwd = jax.jit(decoder_forward)
    predictions, caps_out, dec_lens, alphas = fwd(
        params, encoder_out, encoded_captions, caption_lengths)
    predictions, alphas = jax.block_until_ready((predictions, alphas))

    assert predictions.shape == (B, MAXT, V)
    assert alphas.shape == (B, MAXT, NP)
    assert bool(jnp.all(jnp.isfinite(predictions)))
    assert bool(jnp.all(jnp.isfinite(alphas)))
    # attention weights on active steps sum to 1 per image; masked steps are zero
    assert bool(jnp.all(jnp.abs(jnp.sum(alphas[0], axis=-1) - 1.0) < 1e-3))
    assert bool(jnp.all(alphas[3, 2:] == 0.0))
    assert bool(jnp.all(predictions[3, 2:] == 0.0))
    print("KERNEL_OK")
</pallas_src>

<mosaic_0001>
module attributes {stable_mosaic.version = 11 : i64} {
  func.func @_decoder_kernel(%arg0: memref<128x128xbf16, #tpu.memory_space<vmem>>, %arg1: memref<8x1xi32, #tpu.memory_space<vmem>>, %arg2: memref<128x1xi32, #tpu.memory_space<vmem>>, %arg3: memref<40x1xi32, #tpu.memory_space<vmem>>, %arg4: memref<8x128xbf16, #tpu.memory_space<vmem>>, %arg5: memref<128x8xbf16, #tpu.memory_space<vmem>>, %arg6: memref<256x128xbf16, #tpu.memory_space<vmem>>, %arg7: memref<128x128xbf16, #tpu.memory_space<vmem>>, %arg8: memref<1x128xf32, #tpu.memory_space<vmem>>, %arg9: memref<128x128xf32, #tpu.memory_space<vmem>>, %arg10: memref<128x256xbf16, #tpu.memory_space<vmem>>, %arg11: memref<8x256xf32, #tpu.memory_space<vmem>>, %arg12: memref<128x768xbf16, #tpu.memory_space<vmem>>, %arg13: memref<8x768xf32, #tpu.memory_space<vmem>>, %arg14: memref<256x512xbf16, #tpu.memory_space<vmem>>, %arg15: memref<128x256xbf16, #tpu.memory_space<vmem>>, %arg16: memref<8x256xf32, #tpu.memory_space<vmem>>, %arg17: memref<5x8x256xf32, #tpu.memory_space<vmem>>, %arg18: memref<128x5xf32, #tpu.memory_space<vmem>>, %arg19: memref<128x128xf32, #tpu.memory_space<vmem>>) attributes {dimension_semantics = [], scalar_prefetch = 0 : i64, scratch_operands = 1 : i64, tpu.core_type = #tpu.core_type<tc>} {
    %c0 = arith.constant 0 : index
    %c0_0 = arith.constant 0 : index
    %0 = vector.load %arg0[%c0, %c0_0] : memref<128x128xbf16, #tpu.memory_space<vmem>>, vector<128x128xbf16>
    %c0_1 = arith.constant 0 : index
    %c0_2 = arith.constant 0 : index
    %1 = vector.load %arg7[%c0_1, %c0_2] : memref<128x128xbf16, #tpu.memory_space<vmem>>, vector<128x128xbf16>
    %cst = arith.constant dense<0.000000e+00> : vector<128x128xf32>
    %2 = tpu.matmul %0, %1, %cst {dimension_numbers = #tpu.dot_dimension_numbers<[1], [0], [0], [1], [0, 0, 1, 1], [], []>} : vector<128x128xbf16>, vector<128x128xbf16>, vector<128x128xf32> -> vector<128x128xf32>
    %c0_3 = arith.constant 0 : index
    %c0_4 = arith.constant 0 : index
    %3 = vector.load %arg8[%c0_3, %c0_4] : memref<1x128xf32, #tpu.memory_space<vmem>>, vector<1x128xf32>
    %4 = vector.broadcast %3 : vector<1x128xf32> to vector<128x128xf32>
    %5 = arith.addf %2, %4 : vector<128x128xf32>
    %c0_5 = arith.constant 0 : index
    %c0_6 = arith.constant 0 : index
    %6 = vector.load %arg19[%c0_5, %c0_6] : memref<128x128xf32, #tpu.memory_space<vmem>>, vector<128x128xf32>
    tpu.vector_store %arg19[%c0_5, %c0_6], %5 {strides = array<i32>} : memref<128x128xf32, #tpu.memory_space<vmem>>, vector<128x128xf32>,
    %c0_7 = arith.constant 0 : index
    %c0_8 = arith.constant 0 : index
    %7 = vector.load %arg4[%c0_7, %c0_8] : memref<8x128xbf16, #tpu.memory_space<vmem>>, vector<8x128xbf16>
    %c0_9 = arith.constant 0 : index
    %c0_10 = arith.constant 0 : index
    %8 = vector.load %arg0[%c0_9, %c0_10] : memref<128x128xbf16, #tpu.memory_space<vmem>>, vector<128x128xbf16>
    %cst_11 = arith.constant dense<0.000000e+00> : vector<8x128xf32>
    %9 = tpu.matmul %7, %8, %cst_11 {dimension_numbers = #tpu.dot_dimension_numbers<[1], [0], [0], [1], [0, 0, 1, 1], [], []>} : vector<8x128xbf16>, vector<128x128xbf16>, vector<8x128xf32> -> vector<8x128xf32>
    %cst_12 = arith.constant 6.250000e-02 : f32
    %10 = vector.broadcast %cst_12 : f32 to vector<8x128xf32>
    %11 = arith.mulf %9, %10 : vector<8x128xf32>
    %12 = arith.truncf %11 : vector<8x128xf32> to vector<8x128xbf16>
    %c0_13 = arith.constant 0 : index
    %c0_14 = arith.constant 0 : index
    %13 = vector.load %arg10[%c0_13, %c0_14] : memref<128x256xbf16, #tpu.memory_space<vmem>>, vector<128x256xbf16>
    %cst_15 = arith.constant dense<0.000000e+00> : vector<8x256xf32>
    %14 = tpu.matmul %12, %13, %cst_15 {dimension_numbers = #tpu.dot_dimension_numbers<[1], [0], [0], [1], [0, 0, 1, 1], [], []>} : vector<8x128xbf16>, vector<128x256xbf16>, vector<8x256xf32> -> vector<8x256xf32>
    %c0_16 = arith.constant 0 : index
    %c0_17 = arith.constant 0 : index
    %15 = vector.load %arg11[%c0_16, %c0_17] : memref<8x256xf32, #tpu.memory_space<vmem>>, vector<8x256xf32>
    %16 = arith.addf %14, %15 : vector<8x256xf32>
    %17 = vector.extract_strided_slice %16 {offsets = [0, 0], sizes = [8, 128], strides = [1, 1]} : vector<8x256xf32> to vector<8x128xf32>
    %18 = vector.extract_strided_slice %16 {offsets = [0, 128], sizes = [8, 128], strides = [1, 1]} : vector<8x256xf32> to vector<8x128xf32>
    %c0_18 = arith.constant 0 : index
    %c0_19 = arith.constant 0 : index
    %19 = vector.load %arg3[%c0_18, %c0_19] : memref<40x1xi32, #tpu.memory_space<vmem>>, vector<40x1xi32>
    %20 = tpu.iota {dimensions = array<i32: 1>} : vector<40x256xi32>
    %21 = vector.broadcast %19 : vector<40x1xi32> to vector<40x256xi32>
    %22 = arith.cmpi eq, %21, %20 : vector<40x256xi32>
    %23 = arith.extui %22 : vector<40x256xi1> to vector<40x256xi32>
    %24 = arith.sitofp %23 : vector<40x256xi32> to vector<40x256xf32>
    %25 = arith.truncf %24 : vector<40x256xf32> to vector<40x256xbf16>
    %c0_20 = arith.constant 0 : index
    %c0_21 = arith.constant 0 : index
    %26 = vector.load %arg6[%c0_20, %c0_21] : memref<256x128xbf16, #tpu.memory_space<vmem>>, vector<256x128xbf16>
    %cst_22 = arith.constant dense<0.000000e+00> : vector<40x128xf32>
    %27 = tpu.matmul %25, %26, %cst_22 {dimension_numbers = #tpu.dot_dimension_numbers<[1], [0], [0], [1], [0, 0, 1, 1], [], []>} : vector<40x256xbf16>, vector<256x128xbf16>, vector<40x128xf32> -> vector<40x128xf32>
    %c0_23 = arith.constant 0 : index
    %c0_24 = arith.constant 0 : index
    %28 = vector.load %arg1[%c0_23, %c0_24] : memref<8x1xi32, #tpu.memory_space<vmem>>, vector<8x1xi32>
    %c0_25 = arith.constant 0 : index
    %c0_26 = arith.constant 0 : index
    %29 = vector.load %arg2[%c0_25, %c0_26] : memref<128x1xi32, #tpu.memory_space<vmem>>, vector<128x1xi32>
    %c0_i32 = arith.constant 0 : i32
    %30 = vector.broadcast %c0_i32 : i32 to vector<8x1xi32>
    %31 = arith.cmpi sgt, %28, %30 : vector<8x1xi32>
    %32 = arith.truncf %17 : vector<8x128xf32> to vector<8x128xbf16>
    %c0_27 = arith.constant 0 : index
    %c0_28 = arith.constant 0 : index
    %33 = vector.load %arg12[%c0_27, %c0_28] : memref<128x768xbf16, #tpu.memory_space<vmem>>, vector<128x768xbf16>
    %cst_29 = arith.constant dense<0.000000e+00> : vector<8x768xf32>
    %34 = tpu.matmul %32, %33, %cst_29 {dimension_numbers = #tpu.dot_dimension_numbers<[1], [0], [0], [1], [0, 0, 1, 1], [], []>} : vector<8x128xbf16>, vector<128x768xbf16>, vector<8x768xf32> -> vector<8x768xf32>
    %c0_30 = arith.constant 0 : index
    %c0_31 = arith.constant 0 : index
    %35 = vector.load %arg13[%c0_30, %c0_31] : memref<8x768xf32, #tpu.memory_space<vmem>>, vector<8x768xf32>
    %36 = arith.addf %34, %35 : vector<8x768xf32>
    %37 = vector.extract_strided_slice %36 {offsets = [0, 0], sizes = [8, 128], strides = [1, 1]} : vector<8x768xf32> to vector<8x128xf32>
    %38 = vector.extract_strided_slice %36 {offsets = [0, 128], sizes = [8, 128], strides = [1, 1]} : vector<8x768xf32> to vector<8x128xf32>
    %39 = arith.negf %38 : vector<8x128xf32>
    %40 = math.exp %39 : vector<8x128xf32>
    %cst_32 = arith.constant 1.000000e+00 : f32
    %41 = vector.broadcast %cst_32 : f32 to vector<8x128xf32>
    %42 = arith.addf %41, %40 : vector<8x128xf32>
    %43 = arith.divf %41, %42 : vector<8x128xf32>
    %44 = vector.extract_strided_slice %36 {offsets = [0, 256], sizes = [8, 512], strides = [1, 1]} : vector<8x768xf32> to vector<8x512xf32>
    %c0_33 = arith.constant 0 : index
    %c0_34 = arith.constant 0 : index
    %45 = vector.load %arg5[%c0_33, %c0_34] : memref<128x8xbf16, #tpu.memory_space<vmem>>, vector<128x8xbf16>
    %46 = arith.truncf %37 : vector<8x128xf32> to vector<8x128xbf16>
    %cst_35 = arith.constant dense<0.000000e+00> : vector<128x128xf32>
    %47 = tpu.matmul %45, %46, %cst_35 {dimension_numbers = #tpu.dot_dimension_numbers<[1], [0], [0], [1], [0, 0, 1, 1], [], []>} : vector<128x8xbf16>, vector<8x128xbf16>, vector<128x128xf32> -> vector<128x128xf32>
    %c0_36 = arith.constant 0 : index
    %c0_37 = arith.constant 0 : index
    %48 = vector.load %arg19[%c0_36, %c0_37] : memref<128x128xf32, #tpu.memory_space<vmem>>, vector<128x128xf32>
    %49 = arith.addf %48, %47 : vector<128x128xf32>
    %cst_38 = arith.constant 0.000000e+00 : f32
    %50 = vector.broadcast %cst_38 : f32 to vector<128x128xf32>
    %51 = arith.maximumf %49, %50 : vector<128x128xf32>
    %c0_39 = arith.constant 0 : index
    %c0_40 = arith.constant 0 : index
    %52 = vector.load %arg9[%c0_39, %c0_40] : memref<128x128xf32, #tpu.memory_space<vmem>>, vector<128x128xf32>
    %53 = arith.mulf %51, %52 : vector<128x128xf32>
    %cst_41 = arith.constant dense<0.000000e+00> : vector<128xf32>
    %54 = vector.multi_reduction <add>, %53, %cst_41 [1] : vector<128x128xf32> to vector<128xf32>
    %55 = vector.shape_cast %54 : vector<128xf32> to vector<128x1xf32>
    %56 = vector.shape_cast %55 : vector<128x1xf32> to vector<8x16x1xf32>
    %cst_42 = arith.constant dense<0xFF800000> : vector<8x1xf32>
    %57 = vector.multi_reduction <maximumf>, %56, %cst_42 [1] : vector<8x16x1xf32> to vector<8x1xf32>
    %58 = vector.shape_cast %57 : vector<8x1xf32> to vector<8x1x1xf32>
    %59 = vector.broadcast %58 : vector<8x1x1xf32> to vector<8x16x1xf32>
    %60 = arith.subf %56, %59 : vector<8x16x1xf32>
    %61 = math.exp %60 : vector<8x16x1xf32>
    %cst_43 = arith.constant dense<0.000000e+00> : vector<8x1xf32>
    %62 = vector.multi_reduction <add>, %61, %cst_43 [1] : vector<8x16x1xf32> to vector<8x1xf32>
    %63 = vector.shape_cast %62 : vector<8x1xf32> to vector<8x1x1xf32>
    %64 = tpu.reciprocal %63 : vector<8x1x1xf32> -> vector<8x1x1xf32>
    %65 = vector.broadcast %64 : vector<8x1x1xf32> to vector<8x16x1xf32>
    %66 = arith.mulf %61, %65 : vector<8x16x1xf32>
    %67 = vector.shape_cast %66 : vector<8x16x1xf32> to vector<128x1xf32>
    %c0_44 = arith.constant 0 : index
    %c0_45 = arith.constant 0 : index
    %68 = vector.load %arg4[%c0_44, %c0_45] : memref<8x128xbf16, #tpu.memory_space<vmem>>, vector<8x128xbf16>
    %c0_46 = arith.constant 0 : index
    %c0_47 = arith.constant 0 : index
    %69 = vector.load %arg0[%c0_46, %c0_47] : memref<128x128xbf16, #tpu.memory_space<vmem>>, vector<128x128xbf16>
    %70 = arith.truncf %67 : vector<128x1xf32> to vector<128x1xbf16>
    %71 = vector.broadcast %70 : vector<128x1xbf16> to vector<128x128xbf16>
    %72 = arith.mulf %69, %71 : vector<128x128xbf16>
    %cst_48 = arith.constant dense<0.000000e+00> : vector<8x128xf32>
    %73 = tpu.matmul %68, %72, %cst_48 {dimension_numbers = #tpu.dot_dimension_numbers<[1], [0], [0], [1], [0, 0, 1, 1], [], []>} : vector<8x128xbf16>, vector<128x128xbf16>, vector<8x128xf32> -> vector<8x128xf32>
    %74 = arith.mulf %43, %73 : vector<8x128xf32>
    %75 = vector.extract_strided_slice %27 {offsets = [0, 0], sizes = [8, 128], strides = [1, 1]} : vector<40x128xf32> to vector<8x128xf32>
    %76 = arith.truncf %75 : vector<8x128xf32> to vector<8x128xbf16>
    %77 = arith.truncf %74 : vector<8x128xf32> to vector<8x128xbf16>
    %78 = tpu.concatenate %76, %77 in 1 : vector<8x128xbf16>, vector<8x128xbf16> -> vector<8x256xbf16>
    %c0_49 = arith.constant 0 : index
    %c0_50 = arith.constant 0 : index
    %79 = vector.load %arg14[%c0_49, %c0_50] : memref<256x512xbf16, #tpu.memory_space<vmem>>, vector<256x512xbf16>
    %cst_51 = arith.constant dense<0.000000e+00> : vector<8x512xf32>
    %80 = tpu.matmul %78, %79, %cst_51 {dimension_numbers = #tpu.dot_dimension_numbers<[1], [0], [0], [1], [0, 0, 1, 1], [], []>} : vector<8x256xbf16>, vector<256x512xbf16>, vector<8x512xf32> -> vector<8x512xf32>
    %81 = arith.addf %80, %44 : vector<8x512xf32>
    %82 = vector.extract_strided_slice %81 {offsets = [0, 0], sizes = [8, 128], strides = [1, 1]} : vector<8x512xf32> to vector<8x128xf32>
    %83 = arith.negf %82 : vector<8x128xf32>
    %84 = math.exp %83 : vector<8x128xf32>
    %cst_52 = arith.constant 1.000000e+00 : f32
    %85 = vector.broadcast %cst_52 : f32 to vector<8x128xf32>
    %86 = arith.addf %85, %84 : vector<8x128xf32>
    %87 = arith.divf %85, %86 : vector<8x128xf32>
    %88 = vector.extract_strided_slice %81 {offsets = [0, 128], sizes = [8, 128], strides = [1, 1]} : vector<8x512xf32> to vector<8x128xf32>
    %89 = arith.negf %88 : vector<8x128xf32>
    %90 = math.exp %89 : vector<8x128xf32>
    %cst_53 = arith.constant 1.000000e+00 : f32
    %91 = vector.broadcast %cst_53 : f32 to vector<8x128xf32>
    %92 = arith.addf %91, %90 : vector<8x128xf32>
    %93 = arith.divf %91, %92 : vector<8x128xf32>
    %94 = vector.extract_strided_slice %81 {offsets = [0, 256], sizes = [8, 128], strides = [1, 1]} : vector<8x512xf32> to vector<8x128xf32>
    %95 = math.tanh %94 : vector<8x128xf32>
    %96 = vector.extract_strided_slice %81 {offsets = [0, 384], sizes = [8, 128], strides = [1, 1]} : vector<8x512xf32> to vector<8x128xf32>
    %97 = arith.negf %96 : vector<8x128xf32>
    %98 = math.exp %97 : vector<8x128xf32>
    %cst_54 = arith.constant 1.000000e+00 : f32
    %99 = vector.broadcast %cst_54 : f32 to vector<8x128xf32>
    %100 = arith.addf %99, %98 : vector<8x128xf32>
    %101 = arith.divf %99, %100 : vector<8x128xf32>
    %102 = arith.mulf %93, %18 : vector<8x128xf32>
    %103 = arith.mulf %87, %95 : vector<8x128xf32>
    %104 = arith.addf %102, %103 : vector<8x128xf32>
    %105 = math.tanh %104 : vector<8x128xf32>
    %106 = arith.mulf %101, %105 : vector<8x128xf32>
    %107 = arith.truncf %106 : vector<8x128xf32> to vector<8x128xbf16>
    %c0_55 = arith.constant 0 : index
    %c0_56 = arith.constant 0 : index
    %108 = vector.load %arg15[%c0_55, %c0_56] : memref<128x256xbf16, #tpu.memory_space<vmem>>, vector<128x256xbf16>
    %cst_57 = arith.constant dense<0.000000e+00> : vector<8x256xf32>
    %109 = tpu.matmul %107, %108, %cst_57 {dimension_numbers = #tpu.dot_dimension_numbers<[1], [0], [0], [1], [0, 0, 1, 1], [], []>} : vector<8x128xbf16>, vector<128x256xbf16>, vector<8x256xf32> -> vector<8x256xf32>
    %c0_58 = arith.constant 0 : index
    %c0_59 = arith.constant 0 : index
    %110 = vector.load %arg16[%c0_58, %c0_59] : memref<8x256xf32, #tpu.memory_space<vmem>>, vector<8x256xf32>
    %111 = arith.addf %109, %110 : vector<8x256xf32>
    %cst_60 = arith.constant 0.000000e+00 : f32
    %112 = vector.shape_cast %31 : vector<8x1xi1> to vector<8x1xi1>
    %113 = vector.broadcast %112 : vector<8x1xi1> to vector<8x256xi1>
    %114 = vector.broadcast %cst_60 : f32 to vector<8x256xf32>
    %115 = arith.select %113, %111, %114 : vector<8x256xi1>, vector<8x256xf32>
    %c0_61 = arith.constant 0 : index
    %c0_62 = arith.constant 0 : index
    %c0_63 = arith.constant 0 : index
    %116 = vector.load %arg17[%c0_61, %c0_62, %c0_63] : memref<5x8x256xf32, #tpu.memory_space<vmem>>, vector<1x8x256xf32>
    %117 = vector.shape_cast %116 : vector<1x8x256xf32> to vector<8x256xf32>
    %118 = vector.shape_cast %115 : vector<8x256xf32> to vector<1x8x256xf32>
    tpu.vector_store %arg17[%c0_61, %c0_62, %c0_63], %118 {strides = array<i32>} : memref<5x8x256xf32, #tpu.memory_space<vmem>>, vector<1x8x256xf32>,
    %c0_i32_64 = arith.constant 0 : i32
    %119 = vector.broadcast %c0_i32_64 : i32 to vector<128x1xi32>
    %120 = arith.cmpi sgt, %29, %119 : vector<128x1xi32>
    %cst_65 = arith.constant 0.000000e+00 : f32
    %121 = vector.broadcast %cst_65 : f32 to vector<128x1xf32>
    %122 = arith.select %120, %67, %121 : vector<128x1xi1>, vector<128x1xf32>
    %c0_66 = arith.constant 0 : index
    %c0_67 = arith.constant 0 : index
    %123 = vector.load %arg18[%c0_66, %c0_67] : memref<128x5xf32, #tpu.memory_space<vmem>>, vector<128x1xf32>
    tpu.vector_store %arg18[%c0_66, %c0_67], %122 {strides = array<i32>} : memref<128x5xf32, #tpu.memory_space<vmem>>, vector<128x1xf32>,
    %124 = vector.shape_cast %31 : vector<8x1xi1> to vector<8x1xi1>
    %125 = vector.broadcast %124 : vector<8x1xi1> to vector<8x128xi1>
    %126 = arith.select %125, %106, %17 : vector<8x128xi1>, vector<8x128xf32>
    %127 = vector.shape_cast %31 : vector<8x1xi1> to vector<8x1xi1>
    %128 = vector.broadcast %127 : vector<8x1xi1> to vector<8x128xi1>
    %129 = arith.select %128, %104, %18 : vector<8x128xi1>, vector<8x128xf32>
    %c1_i32 = arith.constant 1 : i32
    %130 = vector.broadcast %c1_i32 : i32 to vector<8x1xi32>
    %131 = arith.cmpi sgt, %28, %130 : vector<8x1xi32>
    %132 = arith.truncf %126 : vector<8x128xf32> to vector<8x128xbf16>
    %c0_68 = arith.constant 0 : index
    %c0_69 = arith.constant 0 : index
    %133 = vector.load %arg12[%c0_68, %c0_69] : memref<128x768xbf16, #tpu.memory_space<vmem>>, vector<128x768xbf16>
    %cst_70 = arith.constant dense<0.000000e+00> : vector<8x768xf32>
    %134 = tpu.matmul %132, %133, %cst_70 {dimension_numbers = #tpu.dot_dimension_numbers<[1], [0], [0], [1], [0, 0, 1, 1], [], []>} : vector<8x128xbf16>, vector<128x768xbf16>, vector<8x768xf32> -> vector<8x768xf32>
    %c0_71 = arith.constant 0 : index
    %c0_72 = arith.constant 0 : index
    %135 = vector.load %arg13[%c0_71, %c0_72] : memref<8x768xf32, #tpu.memory_space<vmem>>, vector<8x768xf32>
    %136 = arith.addf %134, %135 : vector<8x768xf32>
    %137 = vector.extract_strided_slice %136 {offsets = [0, 0], sizes = [8, 128], strides = [1, 1]} : vector<8x768xf32> to vector<8x128xf32>
    %138 = vector.extract_strided_slice %136 {offsets = [0, 128], sizes = [8, 128], strides = [1, 1]} : vector<8x768xf32> to vector<8x128xf32>
    %139 = arith.negf %138 : vector<8x128xf32>
    %140 = math.exp %139 : vector<8x128xf32>
    %cst_73 = arith.constant 1.000000e+00 : f32
    %141 = vector.broadcast %cst_73 : f32 to vector<8x128xf32>
    %142 = arith.addf %141, %140 : vector<8x128xf32>
    %143 = arith.divf %141, %142 : vector<8x128xf32>
    %144 = vector.extract_strided_slice %136 {offsets = [0, 256], sizes = [8, 512], strides = [1, 1]} : vector<8x768xf32> to vector<8x512xf32>
    %c0_74 = arith.constant 0 : index
    %c0_75 = arith.constant 0 : index
    %145 = vector.load %arg5[%c0_74, %c0_75] : memref<128x8xbf16, #tpu.memory_space<vmem>>, vector<128x8xbf16>
    %146 = arith.truncf %137 : vector<8x128xf32> to vector<8x128xbf16>
    %cst_76 = arith.constant dense<0.000000e+00> : vector<128x128xf32>
    %147 = tpu.matmul %145, %146, %cst_76 {dimension_numbers = #tpu.dot_dimension_numbers<[1], [0], [0], [1], [0, 0, 1, 1], [], []>} : vector<128x8xbf16>, vector<8x128xbf16>, vector<128x128xf32> -> vector<128x128xf32>
    %c0_77 = arith.constant 0 : index
    %c0_78 = arith.constant 0 : index
    %148 = vector.load %arg19[%c0_77, %c0_78] : memref<128x128xf32, #tpu.memory_space<vmem>>, vector<128x128xf32>
    %149 = arith.addf %148, %147 : vector<128x128xf32>
    %cst_79 = arith.constant 0.000000e+00 : f32
    %150 = vector.broadcast %cst_79 : f32 to vector<128x128xf32>
    %151 = arith.maximumf %149, %150 : vector<128x128xf32>
    %c0_80 = arith.constant 0 : index
    %c0_81 = arith.constant 0 : index
    %152 = vector.load %arg9[%c0_80, %c0_81] : memref<128x128xf32, #tpu.memory_space<vmem>>, vector<128x128xf32>
    %153 = arith.mulf %151, %152 : vector<128x128xf32>
    %cst_82 = arith.constant dense<0.000000e+00> : vector<128xf32>
    %154 = vector.multi_reduction <add>, %153, %cst_82 [1] : vector<128x128xf32> to vector<128xf32>
    %155 = vector.shape_cast %154 : vector<128xf32> to vector<128x1xf32>
    %156 = vector.shape_cast %155 : vector<128x1xf32> to vector<8x16x1xf32>
    %cst_83 = arith.constant dense<0xFF800000> : vector<8x1xf32>
    %157 = vector.multi_reduction <maximumf>, %156, %cst_83 [1] : vector<8x16x1xf32> to vector<8x1xf32>
    %158 = vector.shape_cast %157 : vector<8x1xf32> to vector<8x1x1xf32>
    %159 = vector.broadcast %158 : vector<8x1x1xf32> to vector<8x16x1xf32>
    %160 = arith.subf %156, %159 : vector<8x16x1xf32>
    %161 = math.exp %160 : vector<8x16x1xf32>
    %cst_84 = arith.constant dense<0.000000e+00> : vector<8x1xf32>
    %162 = vector.multi_reduction <add>, %161, %cst_84 [1] : vector<8x16x1xf32> to vector<8x1xf32>
    %163 = vector.shape_cast %162 : vector<8x1xf32> to vector<8x1x1xf32>
    %164 = tpu.reciprocal %163 : vector<8x1x1xf32> -> vector<8x1x1xf32>
    %165 = vector.broadcast %164 : vector<8x1x1xf32> to vector<8x16x1xf32>
    %166 = arith.mulf %161, %165 : vector<8x16x1xf32>
    %167 = vector.shape_cast %166 : vector<8x16x1xf32> to vector<128x1xf32>
    %c0_85 = arith.constant 0 : index
    %c0_86 = arith.constant 0 : index
    %168 = vector.load %arg4[%c0_85, %c0_86] : memref<8x128xbf16, #tpu.memory_space<vmem>>, vector<8x128xbf16>
    %c0_87 = arith.constant 0 : index
    %c0_88 = arith.constant 0 : index
    %169 = vector.load %arg0[%c0_87, %c0_88] : memref<128x128xbf16, #tpu.memory_space<vmem>>, vector<128x128xbf16>
    %170 = arith.truncf %167 : vector<128x1xf32> to vector<128x1xbf16>
    %171 = vector.broadcast %170 : vector<128x1xbf16> to vector<128x128xbf16>
    %172 = arith.mulf %169, %171 : vector<128x128xbf16>
    %cst_89 = arith.constant dense<0.000000e+00> : vector<8x128xf32>
    %173 = tpu.matmul %168, %172, %cst_89 {dimension_numbers = #tpu.dot_dimension_numbers<[1], [0], [0], [1], [0, 0, 1, 1], [], []>} : vector<8x128xbf16>, vector<128x128xbf16>, vector<8x128xf32> -> vector<8x128xf32>
    %174 = arith.mulf %143, %173 : vector<8x128xf32>
    %175 = vector.extract_strided_slice %27 {offsets = [8, 0], sizes = [8, 128], strides = [1, 1]} : vector<40x128xf32> to vector<8x128xf32>
    %176 = arith.truncf %175 : vector<8x128xf32> to vector<8x128xbf16>
    %177 = arith.truncf %174 : vector<8x128xf32> to vector<8x128xbf16>
    %178 = tpu.concatenate %176, %177 in 1 : vector<8x128xbf16>, vector<8x128xbf16> -> vector<8x256xbf16>
    %c0_90 = arith.constant 0 : index
    %c0_91 = arith.constant 0 : index
    %179 = vector.load %arg14[%c0_90, %c0_91] : memref<256x512xbf16, #tpu.memory_space<vmem>>, vector<256x512xbf16>
    %cst_92 = arith.constant dense<0.000000e+00> : vector<8x512xf32>
    %180 = tpu.matmul %178, %179, %cst_92 {dimension_numbers = #tpu.dot_dimension_numbers<[1], [0], [0], [1], [0, 0, 1, 1], [], []>} : vector<8x256xbf16>, vector<256x512xbf16>, vector<8x512xf32> -> vector<8x512xf32>
    %181 = arith.addf %180, %144 : vector<8x512xf32>
    %182 = vector.extract_strided_slice %181 {offsets = [0, 0], sizes = [8, 128], strides = [1, 1]} : vector<8x512xf32> to vector<8x128xf32>
    %183 = arith.negf %182 : vector<8x128xf32>
    %184 = math.exp %183 : vector<8x128xf32>
    %cst_93 = arith.constant 1.000000e+00 : f32
    %185 = vector.broadcast %cst_93 : f32 to vector<8x128xf32>
    %186 = arith.addf %185, %184 : vector<8x128xf32>
    %187 = arith.divf %185, %186 : vector<8x128xf32>
    %188 = vector.extract_strided_slice %181 {offsets = [0, 128], sizes = [8, 128], strides = [1, 1]} : vector<8x512xf32> to vector<8x128xf32>
    %189 = arith.negf %188 : vector<8x128xf32>
    %190 = math.exp %189 : vector<8x128xf32>
    %cst_94 = arith.constant 1.000000e+00 : f32
    %191 = vector.broadcast %cst_94 : f32 to vector<8x128xf32>
    %192 = arith.addf %191, %190 : vector<8x128xf32>
    %193 = arith.divf %191, %192 : vector<8x128xf32>
    %194 = vector.extract_strided_slice %181 {offsets = [0, 256], sizes = [8, 128], strides = [1, 1]} : vector<8x512xf32> to vector<8x128xf32>
    %195 = math.tanh %194 : vector<8x128xf32>
    %196 = vector.extract_strided_slice %181 {offsets = [0, 384], sizes = [8, 128], strides = [1, 1]} : vector<8x512xf32> to vector<8x128xf32>
    %197 = arith.negf %196 : vector<8x128xf32>
    %198 = math.exp %197 : vector<8x128xf32>
    %cst_95 = arith.constant 1.000000e+00 : f32
    %199 = vector.broadcast %cst_95 : f32 to vector<8x128xf32>
    %200 = arith.addf %199, %198 : vector<8x128xf32>
    %201 = arith.divf %199, %200 : vector<8x128xf32>
    %202 = arith.mulf %193, %129 : vector<8x128xf32>
    %203 = arith.mulf %187, %195 : vector<8x128xf32>
    %204 = arith.addf %202, %203 : vector<8x128xf32>
    %205 = math.tanh %204 : vector<8x128xf32>
    %206 = arith.mulf %201, %205 : vector<8x128xf32>
    %207 = arith.truncf %206 : vector<8x128xf32> to vector<8x128xbf16>
    %c0_96 = arith.constant 0 : index
    %c0_97 = arith.constant 0 : index
    %208 = vector.load %arg15[%c0_96, %c0_97] : memref<128x256xbf16, #tpu.memory_space<vmem>>, vector<128x256xbf16>
    %cst_98 = arith.constant dense<0.000000e+00> : vector<8x256xf32>
    %209 = tpu.matmul %207, %208, %cst_98 {dimension_numbers = #tpu.dot_dimension_numbers<[1], [0], [0], [1], [0, 0, 1, 1], [], []>} : vector<8x128xbf16>, vector<128x256xbf16>, vector<8x256xf32> -> vector<8x256xf32>
    %c0_99 = arith.constant 0 : index
    %c0_100 = arith.constant 0 : index
    %210 = vector.load %arg16[%c0_99, %c0_100] : memref<8x256xf32, #tpu.memory_space<vmem>>, vector<8x256xf32>
    %211 = arith.addf %209, %210 : vector<8x256xf32>
    %cst_101 = arith.constant 0.000000e+00 : f32
    %212 = vector.shape_cast %131 : vector<8x1xi1> to vector<8x1xi1>
    %213 = vector.broadcast %212 : vector<8x1xi1> to vector<8x256xi1>
    %214 = vector.broadcast %cst_101 : f32 to vector<8x256xf32>
    %215 = arith.select %213, %211, %214 : vector<8x256xi1>, vector<8x256xf32>
    %c1 = arith.constant 1 : index
    %c0_102 = arith.constant 0 : index
    %c0_103 = arith.constant 0 : index
    %216 = vector.load %arg17[%c1, %c0_102, %c0_103] : memref<5x8x256xf32, #tpu.memory_space<vmem>>, vector<1x8x256xf32>
    %217 = vector.shape_cast %216 : vector<1x8x256xf32> to vector<8x256xf32>
    %218 = vector.shape_cast %215 : vector<8x256xf32> to vector<1x8x256xf32>
    tpu.vector_store %arg17[%c1, %c0_102, %c0_103], %218 {strides = array<i32>} : memref<5x8x256xf32, #tpu.memory_space<vmem>>, vector<1x8x256xf32>,
    %c1_i32_104 = arith.constant 1 : i32
    %219 = vector.broadcast %c1_i32_104 : i32 to vector<128x1xi32>
    %220 = arith.cmpi sgt, %29, %219 : vector<128x1xi32>
    %cst_105 = arith.constant 0.000000e+00 : f32
    %221 = vector.broadcast %cst_105 : f32 to vector<128x1xf32>
    %222 = arith.select %220, %167, %221 : vector<128x1xi1>, vector<128x1xf32>
    %c0_106 = arith.constant 0 : index
    %c1_107 = arith.constant 1 : index
    %223 = vector.load %arg18[%c0_106, %c1_107] : memref<128x5xf32, #tpu.memory_space<vmem>>, vector<128x1xf32>
    tpu.vector_store %arg18[%c0_106, %c1_107], %222 {strides = array<i32>} : memref<128x5xf32, #tpu.memory_space<vmem>>, vector<128x1xf32>,
    %224 = vector.shape_cast %131 : vector<8x1xi1> to vector<8x1xi1>
    %225 = vector.broadcast %224 : vector<8x1xi1> to vector<8x128xi1>
    %226 = arith.select %225, %206, %126 : vector<8x128xi1>, vector<8x128xf32>
    %227 = vector.shape_cast %131 : vector<8x1xi1> to vector<8x1xi1>
    %228 = vector.broadcast %227 : vector<8x1xi1> to vector<8x128xi1>
    %229 = arith.select %228, %204, %129 : vector<8x128xi1>, vector<8x128xf32>
    %c2_i32 = arith.constant 2 : i32
    %230 = vector.broadcast %c2_i32 : i32 to vector<8x1xi32>
    %231 = arith.cmpi sgt, %28, %230 : vector<8x1xi32>
    %232 = arith.truncf %226 : vector<8x128xf32> to vector<8x128xbf16>
    %c0_108 = arith.constant 0 : index
    %c0_109 = arith.constant 0 : index
    %233 = vector.load %arg12[%c0_108, %c0_109] : memref<128x768xbf16, #tpu.memory_space<vmem>>, vector<128x768xbf16>
    %cst_110 = arith.constant dense<0.000000e+00> : vector<8x768xf32>
    %234 = tpu.matmul %232, %233, %cst_110 {dimension_numbers = #tpu.dot_dimension_numbers<[1], [0], [0], [1], [0, 0, 1, 1], [], []>} : vector<8x128xbf16>, vector<128x768xbf16>, vector<8x768xf32> -> vector<8x768xf32>
    %c0_111 = arith.constant 0 : index
    %c0_112 = arith.constant 0 : index
    %235 = vector.load %arg13[%c0_111, %c0_112] : memref<8x768xf32, #tpu.memory_space<vmem>>, vector<8x768xf32>
    %236 = arith.addf %234, %235 : vector<8x768xf32>
    %237 = vector.extract_strided_slice %236 {offsets = [0, 0], sizes = [8, 128], strides = [1, 1]} : vector<8x768xf32> to vector<8x128xf32>
    %238 = vector.extract_strided_slice %236 {offsets = [0, 128], sizes = [8, 128], strides = [1, 1]} : vector<8x768xf32> to vector<8x128xf32>
    %239 = arith.negf %238 : vector<8x128xf32>
    %240 = math.exp %239 : vector<8x128xf32>
    %cst_113 = arith.constant 1.000000e+00 : f32
    %241 = vector.broadcast %cst_113 : f32 to vector<8x128xf32>
    %242 = arith.addf %241, %240 : vector<8x128xf32>
    %243 = arith.divf %241, %242 : vector<8x128xf32>
    %244 = vector.extract_strided_slice %236 {offsets = [0, 256], sizes = [8, 512], strides = [1, 1]} : vector<8x768xf32> to vector<8x512xf32>
    %c0_114 = arith.constant 0 : index
    %c0_115 = arith.constant 0 : index
    %245 = vector.load %arg5[%c0_114, %c0_115] : memref<128x8xbf16, #tpu.memory_space<vmem>>, vector<128x8xbf16>
    %246 = arith.truncf %237 : vector<8x128xf32> to vector<8x128xbf16>
    %cst_116 = arith.constant dense<0.000000e+00> : vector<128x128xf32>
    %247 = tpu.matmul %245, %246, %cst_116 {dimension_numbers = #tpu.dot_dimension_numbers<[1], [0], [0], [1], [0, 0, 1, 1], [], []>} : vector<128x8xbf16>, vector<8x128xbf16>, vector<128x128xf32> -> vector<128x128xf32>
    %c0_117 = arith.constant 0 : index
    %c0_118 = arith.constant 0 : index
    %248 = vector.load %arg19[%c0_117, %c0_118] : memref<128x128xf32, #tpu.memory_space<vmem>>, vector<128x128xf32>
    %249 = arith.addf %248, %247 : vector<128x128xf32>
    %cst_119 = arith.constant 0.000000e+00 : f32
    %250 = vector.broadcast %cst_119 : f32 to vector<128x128xf32>
    %251 = arith.maximumf %249, %250 : vector<128x128xf32>
    %c0_120 = arith.constant 0 : index
    %c0_121 = arith.constant 0 : index
    %252 = vector.load %arg9[%c0_120, %c0_121] : memref<128x128xf32, #tpu.memory_space<vmem>>, vector<128x128xf32>
    %253 = arith.mulf %251, %252 : vector<128x128xf32>
    %cst_122 = arith.constant dense<0.000000e+00> : vector<128xf32>
    %254 = vector.multi_reduction <add>, %253, %cst_122 [1] : vector<128x128xf32> to vector<128xf32>
    %255 = vector.shape_cast %254 : vector<128xf32> to vector<128x1xf32>
    %256 = vector.shape_cast %255 : vector<128x1xf32> to vector<8x16x1xf32>
    %cst_123 = arith.constant dense<0xFF800000> : vector<8x1xf32>
    %257 = vector.multi_reduction <maximumf>, %256, %cst_123 [1] : vector<8x16x1xf32> to vector<8x1xf32>
    %258 = vector.shape_cast %257 : vector<8x1xf32> to vector<8x1x1xf32>
    %259 = vector.broadcast %258 : vector<8x1x1xf32> to vector<8x16x1xf32>
    %260 = arith.subf %256, %259 : vector<8x16x1xf32>
    %261 = math.exp %260 : vector<8x16x1xf32>
    %cst_124 = arith.constant dense<0.000000e+00> : vector<8x1xf32>
    %262 = vector.multi_reduction <add>, %261, %cst_124 [1] : vector<8x16x1xf32> to vector<8x1xf32>
    %263 = vector.shape_cast %262 : vector<8x1xf32> to vector<8x1x1xf32>
    %264 = tpu.reciprocal %263 : vector<8x1x1xf32> -> vector<8x1x1xf32>
    %265 = vector.broadcast %264 : vector<8x1x1xf32> to vector<8x16x1xf32>
    %266 = arith.mulf %261, %265 : vector<8x16x1xf32>
    %267 = vector.shape_cast %266 : vector<8x16x1xf32> to vector<128x1xf32>
    %c0_125 = arith.constant 0 : index
    %c0_126 = arith.constant 0 : index
    %268 = vector.load %arg4[%c0_125, %c0_126] : memref<8x128xbf16, #tpu.memory_space<vmem>>, vector<8x128xbf16>
    %c0_127 = arith.constant 0 : index
    %c0_128 = arith.constant 0 : index
    %269 = vector.load %arg0[%c0_127, %c0_128] : memref<128x128xbf16, #tpu.memory_space<vmem>>, vector<128x128xbf16>
    %270 = arith.truncf %267 : vector<128x1xf32> to vector<128x1xbf16>
    %271 = vector.broadcast %270 : vector<128x1xbf16> to vector<128x128xbf16>
    %272 = arith.mulf %269, %271 : vector<128x128xbf16>
    %cst_129 = arith.constant dense<0.000000e+00> : vector<8x128xf32>
    %273 = tpu.matmul %268, %272, %cst_129 {dimension_numbers = #tpu.dot_dimension_numbers<[1], [0], [0], [1], [0, 0, 1, 1], [], []>} : vector<8x128xbf16>, vector<128x128xbf16>, vector<8x128xf32> -> vector<8x128xf32>
    %274 = arith.mulf %243, %273 : vector<8x128xf32>
    %275 = vector.extract_strided_slice %27 {offsets = [16, 0], sizes = [8, 128], strides = [1, 1]} : vector<40x128xf32> to vector<8x128xf32>
    %276 = arith.truncf %275 : vector<8x128xf32> to vector<8x128xbf16>
    %277 = arith.truncf %274 : vector<8x128xf32> to vector<8x128xbf16>
    %278 = tpu.concatenate %276, %277 in 1 : vector<8x128xbf16>, vector<8x128xbf16> -> vector<8x256xbf16>
    %c0_130 = arith.constant 0 : index
    %c0_131 = arith.constant 0 : index
    %279 = vector.load %arg14[%c0_130, %c0_131] : memref<256x512xbf16, #tpu.memory_space<vmem>>, vector<256x512xbf16>
    %cst_132 = arith.constant dense<0.000000e+00> : vector<8x512xf32>
    %280 = tpu.matmul %278, %279, %cst_132 {dimension_numbers = #tpu.dot_dimension_numbers<[1], [0], [0], [1], [0, 0, 1, 1], [], []>} : vector<8x256xbf16>, vector<256x512xbf16>, vector<8x512xf32> -> vector<8x512xf32>
    %281 = arith.addf %280, %244 : vector<8x512xf32>
    %282 = vector.extract_strided_slice %281 {offsets = [0, 0], sizes = [8, 128], strides = [1, 1]} : vector<8x512xf32> to vector<8x128xf32>
    %283 = arith.negf %282 : vector<8x128xf32>
    %284 = math.exp %283 : vector<8x128xf32>
    %cst_133 = arith.constant 1.000000e+00 : f32
    %285 = vector.broadcast %cst_133 : f32 to vector<8x128xf32>
    %286 = arith.addf %285, %284 : vector<8x128xf32>
    %287 = arith.divf %285, %286 : vector<8x128xf32>
    %288 = vector.extract_strided_slice %281 {offsets = [0, 128], sizes = [8, 128], strides = [1, 1]} : vector<8x512xf32> to vector<8x128xf32>
    %289 = arith.negf %288 : vector<8x128xf32>
    %290 = math.exp %289 : vector<8x128xf32>
    %cst_134 = arith.constant 1.000000e+00 : f32
    %291 = vector.broadcast %cst_134 : f32 to vector<8x128xf32>
    %292 = arith.addf %291, %290 : vector<8x128xf32>
    %293 = arith.divf %291, %292 : vector<8x128xf32>
    %294 = vector.extract_strided_slice %281 {offsets = [0, 256], sizes = [8, 128], strides = [1, 1]} : vector<8x512xf32> to vector<8x128xf32>
    %295 = math.tanh %294 : vector<8x128xf32>
    %296 = vector.extract_strided_slice %281 {offsets = [0, 384], sizes = [8, 128], strides = [1, 1]} : vector<8x512xf32> to vector<8x128xf32>
    %297 = arith.negf %296 : vector<8x128xf32>
    %298 = math.exp %297 : vector<8x128xf32>
    %cst_135 = arith.constant 1.000000e+00 : f32
    %299 = vector.broadcast %cst_135 : f32 to vector<8x128xf32>
    %300 = arith.addf %299, %298 : vector<8x128xf32>
    %301 = arith.divf %299, %300 : vector<8x128xf32>
    %302 = arith.mulf %293, %229 : vector<8x128xf32>
    %303 = arith.mulf %287, %295 : vector<8x128xf32>
    %304 = arith.addf %302, %303 : vector<8x128xf32>
    %305 = math.tanh %304 : vector<8x128xf32>
    %306 = arith.mulf %301, %305 : vector<8x128xf32>
    %307 = arith.truncf %306 : vector<8x128xf32> to vector<8x128xbf16>
    %c0_136 = arith.constant 0 : index
    %c0_137 = arith.constant 0 : index
    %308 = vector.load %arg15[%c0_136, %c0_137] : memref<128x256xbf16, #tpu.memory_space<vmem>>, vector<128x256xbf16>
    %cst_138 = arith.constant dense<0.000000e+00> : vector<8x256xf32>
    %309 = tpu.matmul %307, %308, %cst_138 {dimension_numbers = #tpu.dot_dimension_numbers<[1], [0], [0], [1], [0, 0, 1, 1], [], []>} : vector<8x128xbf16>, vector<128x256xbf16>, vector<8x256xf32> -> vector<8x256xf32>
    %c0_139 = arith.constant 0 : index
    %c0_140 = arith.constant 0 : index
    %310 = vector.load %arg16[%c0_139, %c0_140] : memref<8x256xf32, #tpu.memory_space<vmem>>, vector<8x256xf32>
    %311 = arith.addf %309, %310 : vector<8x256xf32>
    %cst_141 = arith.constant 0.000000e+00 : f32
    %312 = vector.shape_cast %231 : vector<8x1xi1> to vector<8x1xi1>
    %313 = vector.broadcast %312 : vector<8x1xi1> to vector<8x256xi1>
    %314 = vector.broadcast %cst_141 : f32 to vector<8x256xf32>
    %315 = arith.select %313, %311, %314 : vector<8x256xi1>, vector<8x256xf32>
    %c2 = arith.constant 2 : index
    %c0_142 = arith.constant 0 : index
    %c0_143 = arith.constant 0 : index
    %316 = vector.load %arg17[%c2, %c0_142, %c0_143] : memref<5x8x256xf32, #tpu.memory_space<vmem>>, vector<1x8x256xf32>
    %317 = vector.shape_cast %316 : vector<1x8x256xf32> to vector<8x256xf32>
    %318 = vector.shape_cast %315 : vector<8x256xf32> to vector<1x8x256xf32>
    tpu.vector_store %arg17[%c2, %c0_142, %c0_143], %318 {strides = array<i32>} : memref<5x8x256xf32, #tpu.memory_space<vmem>>, vector<1x8x256xf32>,
    %c2_i32_144 = arith.constant 2 : i32
    %319 = vector.broadcast %c2_i32_144 : i32 to vector<128x1xi32>
    %320 = arith.cmpi sgt, %29, %319 : vector<128x1xi32>
    %cst_145 = arith.constant 0.000000e+00 : f32
    %321 = vector.broadcast %cst_145 : f32 to vector<128x1xf32>
    %322 = arith.select %320, %267, %321 : vector<128x1xi1>, vector<128x1xf32>
    %c0_146 = arith.constant 0 : index
    %c2_147 = arith.constant 2 : index
    %323 = vector.load %arg18[%c0_146, %c2_147] : memref<128x5xf32, #tpu.memory_space<vmem>>, vector<128x1xf32>
    tpu.vector_store %arg18[%c0_146, %c2_147], %322 {strides = array<i32>} : memref<128x5xf32, #tpu.memory_space<vmem>>, vector<128x1xf32>,
    %324 = vector.shape_cast %231 : vector<8x1xi1> to vector<8x1xi1>
    %325 = vector.broadcast %324 : vector<8x1xi1> to vector<8x128xi1>
    %326 = arith.select %325, %306, %226 : vector<8x128xi1>, vector<8x128xf32>
    %327 = vector.shape_cast %231 : vector<8x1xi1> to vector<8x1xi1>
    %328 = vector.broadcast %327 : vector<8x1xi1> to vector<8x128xi1>
    %329 = arith.select %328, %304, %229 : vector<8x128xi1>, vector<8x128xf32>
    %c3_i32 = arith.constant 3 : i32
    %330 = vector.broadcast %c3_i32 : i32 to vector<8x1xi32>
    %331 = arith.cmpi sgt, %28, %330 : vector<8x1xi32>
    %332 = arith.truncf %326 : vector<8x128xf32> to vector<8x128xbf16>
    %c0_148 = arith.constant 0 : index
    %c0_149 = arith.constant 0 : index
    %333 = vector.load %arg12[%c0_148, %c0_149] : memref<128x768xbf16, #tpu.memory_space<vmem>>, vector<128x768xbf16>
    %cst_150 = arith.constant dense<0.000000e+00> : vector<8x768xf32>
    %334 = tpu.matmul %332, %333, %cst_150 {dimension_numbers = #tpu.dot_dimension_numbers<[1], [0], [0], [1], [0, 0, 1, 1], [], []>} : vector<8x128xbf16>, vector<128x768xbf16>, vector<8x768xf32> -> vector<8x768xf32>
    %c0_151 = arith.constant 0 : index
    %c0_152 = arith.constant 0 : index
    %335 = vector.load %arg13[%c0_151, %c0_152] : memref<8x768xf32, #tpu.memory_space<vmem>>, vector<8x768xf32>
    %336 = arith.addf %334, %335 : vector<8x768xf32>
    %337 = vector.extract_strided_slice %336 {offsets = [0, 0], sizes = [8, 128], strides = [1, 1]} : vector<8x768xf32> to vector<8x128xf32>
    %338 = vector.extract_strided_slice %336 {offsets = [0, 128], sizes = [8, 128], strides = [1, 1]} : vector<8x768xf32> to vector<8x128xf32>
    %339 = arith.negf %338 : vector<8x128xf32>
    %340 = math.exp %339 : vector<8x128xf32>
    %cst_153 = arith.constant 1.000000e+00 : f32
    %341 = vector.broadcast %cst_153 : f32 to vector<8x128xf32>
    %342 = arith.addf %341, %340 : vector<8x128xf32>
    %343 = arith.divf %341, %342 : vector<8x128xf32>
    %344 = vector.extract_strided_slice %336 {offsets = [0, 256], sizes = [8, 512], strides = [1, 1]} : vector<8x768xf32> to vector<8x512xf32>
    %c0_154 = arith.constant 0 : index
    %c0_155 = arith.constant 0 : index
    %345 = vector.load %arg5[%c0_154, %c0_155] : memref<128x8xbf16, #tpu.memory_space<vmem>>, vector<128x8xbf16>
    %346 = arith.truncf %337 : vector<8x128xf32> to vector<8x128xbf16>
    %cst_156 = arith.constant dense<0.000000e+00> : vector<128x128xf32>
    %347 = tpu.matmul %345, %346, %cst_156 {dimension_numbers = #tpu.dot_dimension_numbers<[1], [0], [0], [1], [0, 0, 1, 1], [], []>} : vector<128x8xbf16>, vector<8x128xbf16>, vector<128x128xf32> -> vector<128x128xf32>
    %c0_157 = arith.constant 0 : index
    %c0_158 = arith.constant 0 : index
    %348 = vector.load %arg19[%c0_157, %c0_158] : memref<128x128xf32, #tpu.memory_space<vmem>>, vector<128x128xf32>
    %349 = arith.addf %348, %347 : vector<128x128xf32>
    %cst_159 = arith.constant 0.000000e+00 : f32
    %350 = vector.broadcast %cst_159 : f32 to vector<128x128xf32>
    %351 = arith.maximumf %349, %350 : vector<128x128xf32>
    %c0_160 = arith.constant 0 : index
    %c0_161 = arith.constant 0 : index
    %352 = vector.load %arg9[%c0_160, %c0_161] : memref<128x128xf32, #tpu.memory_space<vmem>>, vector<128x128xf32>
    %353 = arith.mulf %351, %352 : vector<128x128xf32>
    %cst_162 = arith.constant dense<0.000000e+00> : vector<128xf32>
    %354 = vector.multi_reduction <add>, %353, %cst_162 [1] : vector<128x128xf32> to vector<128xf32>
    %355 = vector.shape_cast %354 : vector<128xf32> to vector<128x1xf32>
    %356 = vector.shape_cast %355 : vector<128x1xf32> to vector<8x16x1xf32>
    %cst_163 = arith.constant dense<0xFF800000> : vector<8x1xf32>
    %357 = vector.multi_reduction <maximumf>, %356, %cst_163 [1] : vector<8x16x1xf32> to vector<8x1xf32>
    %358 = vector.shape_cast %357 : vector<8x1xf32> to vector<8x1x1xf32>
    %359 = vector.broadcast %358 : vector<8x1x1xf32> to vector<8x16x1xf32>
    %360 = arith.subf %356, %359 : vector<8x16x1xf32>
    %361 = math.exp %360 : vector<8x16x1xf32>
    %cst_164 = arith.constant dense<0.000000e+00> : vector<8x1xf32>
    %362 = vector.multi_reduction <add>, %361, %cst_164 [1] : vector<8x16x1xf32> to vector<8x1xf32>
    %363 = vector.shape_cast %362 : vector<8x1xf32> to vector<8x1x1xf32>
    %364 = tpu.reciprocal %363 : vector<8x1x1xf32> -> vector<8x1x1xf32>
    %365 = vector.broadcast %364 : vector<8x1x1xf32> to vector<8x16x1xf32>
    %366 = arith.mulf %361, %365 : vector<8x16x1xf32>
    %367 = vector.shape_cast %366 : vector<8x16x1xf32> to vector<128x1xf32>
    %c0_165 = arith.constant 0 : index
    %c0_166 = arith.constant 0 : index
    %368 = vector.load %arg4[%c0_165, %c0_166] : memref<8x128xbf16, #tpu.memory_space<vmem>>, vector<8x128xbf16>
    %c0_167 = arith.constant 0 : index
    %c0_168 = arith.constant 0 : index
    %369 = vector.load %arg0[%c0_167, %c0_168] : memref<128x128xbf16, #tpu.memory_space<vmem>>, vector<128x128xbf16>
    %370 = arith.truncf %367 : vector<128x1xf32> to vector<128x1xbf16>
    %371 = vector.broadcast %370 : vector<128x1xbf16> to vector<128x128xbf16>
    %372 = arith.mulf %369, %371 : vector<128x128xbf16>
    %cst_169 = arith.constant dense<0.000000e+00> : vector<8x128xf32>
    %373 = tpu.matmul %368, %372, %cst_169 {dimension_numbers = #tpu.dot_dimension_numbers<[1], [0], [0], [1], [0, 0, 1, 1], [], []>} : vector<8x128xbf16>, vector<128x128xbf16>, vector<8x128xf32> -> vector<8x128xf32>
    %374 = arith.mulf %343, %373 : vector<8x128xf32>
    %375 = vector.extract_strided_slice %27 {offsets = [24, 0], sizes = [8, 128], strides = [1, 1]} : vector<40x128xf32> to vector<8x128xf32>
    %376 = arith.truncf %375 : vector<8x128xf32> to vector<8x128xbf16>
    %377 = arith.truncf %374 : vector<8x128xf32> to vector<8x128xbf16>
    %378 = tpu.concatenate %376, %377 in 1 : vector<8x128xbf16>, vector<8x128xbf16> -> vector<8x256xbf16>
    %c0_170 = arith.constant 0 : index
    %c0_171 = arith.constant 0 : index
    %379 = vector.load %arg14[%c0_170, %c0_171] : memref<256x512xbf16, #tpu.memory_space<vmem>>, vector<256x512xbf16>
    %cst_172 = arith.constant dense<0.000000e+00> : vector<8x512xf32>
    %380 = tpu.matmul %378, %379, %cst_172 {dimension_numbers = #tpu.dot_dimension_numbers<[1], [0], [0], [1], [0, 0, 1, 1], [], []>} : vector<8x256xbf16>, vector<256x512xbf16>, vector<8x512xf32> -> vector<8x512xf32>
    %381 = arith.addf %380, %344 : vector<8x512xf32>
    %382 = vector.extract_strided_slice %381 {offsets = [0, 0], sizes = [8, 128], strides = [1, 1]} : vector<8x512xf32> to vector<8x128xf32>
    %383 = arith.negf %382 : vector<8x128xf32>
    %384 = math.exp %383 : vector<8x128xf32>
    %cst_173 = arith.constant 1.000000e+00 : f32
    %385 = vector.broadcast %cst_173 : f32 to vector<8x128xf32>
    %386 = arith.addf %385, %384 : vector<8x128xf32>
    %387 = arith.divf %385, %386 : vector<8x128xf32>
    %388 = vector.extract_strided_slice %381 {offsets = [0, 128], sizes = [8, 128], strides = [1, 1]} : vector<8x512xf32> to vector<8x128xf32>
    %389 = arith.negf %388 : vector<8x128xf32>
    %390 = math.exp %389 : vector<8x128xf32>
    %cst_174 = arith.constant 1.000000e+00 : f32
    %391 = vector.broadcast %cst_174 : f32 to vector<8x128xf32>
    %392 = arith.addf %391, %390 : vector<8x128xf32>
    %393 = arith.divf %391, %392 : vector<8x128xf32>
    %394 = vector.extract_strided_slice %381 {offsets = [0, 256], sizes = [8, 128], strides = [1, 1]} : vector<8x512xf32> to vector<8x128xf32>
    %395 = math.tanh %394 : vector<8x128xf32>
    %396 = vector.extract_strided_slice %381 {offsets = [0, 384], sizes = [8, 128], strides = [1, 1]} : vector<8x512xf32> to vector<8x128xf32>
    %397 = arith.negf %396 : vector<8x128xf32>
    %398 = math.exp %397 : vector<8x128xf32>
    %cst_175 = arith.constant 1.000000e+00 : f32
    %399 = vector.broadcast %cst_175 : f32 to vector<8x128xf32>
    %400 = arith.addf %399, %398 : vector<8x128xf32>
    %401 = arith.divf %399, %400 : vector<8x128xf32>
    %402 = arith.mulf %393, %329 : vector<8x128xf32>
    %403 = arith.mulf %387, %395 : vector<8x128xf32>
    %404 = arith.addf %402, %403 : vector<8x128xf32>
    %405 = math.tanh %404 : vector<8x128xf32>
    %406 = arith.mulf %401, %405 : vector<8x128xf32>
    %407 = arith.truncf %406 : vector<8x128xf32> to vector<8x128xbf16>
    %c0_176 = arith.constant 0 : index
    %c0_177 = arith.constant 0 : index
    %408 = vector.load %arg15[%c0_176, %c0_177] : memref<128x256xbf16, #tpu.memory_space<vmem>>, vector<128x256xbf16>
    %cst_178 = arith.constant dense<0.000000e+00> : vector<8x256xf32>
    %409 = tpu.matmul %407, %408, %cst_178 {dimension_numbers = #tpu.dot_dimension_numbers<[1], [0], [0], [1], [0, 0, 1, 1], [], []>} : vector<8x128xbf16>, vector<128x256xbf16>, vector<8x256xf32> -> vector<8x256xf32>
    %c0_179 = arith.constant 0 : index
    %c0_180 = arith.constant 0 : index
    %410 = vector.load %arg16[%c0_179, %c0_180] : memref<8x256xf32, #tpu.memory_space<vmem>>, vector<8x256xf32>
    %411 = arith.addf %409, %410 : vector<8x256xf32>
    %cst_181 = arith.constant 0.000000e+00 : f32
    %412 = vector.shape_cast %331 : vector<8x1xi1> to vector<8x1xi1>
    %413 = vector.broadcast %412 : vector<8x1xi1> to vector<8x256xi1>
    %414 = vector.broadcast %cst_181 : f32 to vector<8x256xf32>
    %415 = arith.select %413, %411, %414 : vector<8x256xi1>, vector<8x256xf32>
    %c3 = arith.constant 3 : index
    %c0_182 = arith.constant 0 : index
    %c0_183 = arith.constant 0 : index
    %416 = vector.load %arg17[%c3, %c0_182, %c0_183] : memref<5x8x256xf32, #tpu.memory_space<vmem>>, vector<1x8x256xf32>
    %417 = vector.shape_cast %416 : vector<1x8x256xf32> to vector<8x256xf32>
    %418 = vector.shape_cast %415 : vector<8x256xf32> to vector<1x8x256xf32>
    tpu.vector_store %arg17[%c3, %c0_182, %c0_183], %418 {strides = array<i32>} : memref<5x8x256xf32, #tpu.memory_space<vmem>>, vector<1x8x256xf32>,
    %c3_i32_184 = arith.constant 3 : i32
    %419 = vector.broadcast %c3_i32_184 : i32 to vector<128x1xi32>
    %420 = arith.cmpi sgt, %29, %419 : vector<128x1xi32>
    %cst_185 = arith.constant 0.000000e+00 : f32
    %421 = vector.broadcast %cst_185 : f32 to vector<128x1xf32>
    %422 = arith.select %420, %367, %421 : vector<128x1xi1>, vector<128x1xf32>
    %c0_186 = arith.constant 0 : index
    %c3_187 = arith.constant 3 : index
    %423 = vector.load %arg18[%c0_186, %c3_187] : memref<128x5xf32, #tpu.memory_space<vmem>>, vector<128x1xf32>
    tpu.vector_store %arg18[%c0_186, %c3_187], %422 {strides = array<i32>} : memref<128x5xf32, #tpu.memory_space<vmem>>, vector<128x1xf32>,
    %424 = vector.shape_cast %331 : vector<8x1xi1> to vector<8x1xi1>
    %425 = vector.broadcast %424 : vector<8x1xi1> to vector<8x128xi1>
    %426 = arith.select %425, %406, %326 : vector<8x128xi1>, vector<8x128xf32>
    %427 = vector.shape_cast %331 : vector<8x1xi1> to vector<8x1xi1>
    %428 = vector.broadcast %427 : vector<8x1xi1> to vector<8x128xi1>
    %429 = arith.select %428, %404, %329 : vector<8x128xi1>, vector<8x128xf32>
    %c4_i32 = arith.constant 4 : i32
    %430 = vector.broadcast %c4_i32 : i32 to vector<8x1xi32>
    %431 = arith.cmpi sgt, %28, %430 : vector<8x1xi32>
    %432 = arith.truncf %426 : vector<8x128xf32> to vector<8x128xbf16>
    %c0_188 = arith.constant 0 : index
    %c0_189 = arith.constant 0 : index
    %433 = vector.load %arg12[%c0_188, %c0_189] : memref<128x768xbf16, #tpu.memory_space<vmem>>, vector<128x768xbf16>
    %cst_190 = arith.constant dense<0.000000e+00> : vector<8x768xf32>
    %434 = tpu.matmul %432, %433, %cst_190 {dimension_numbers = #tpu.dot_dimension_numbers<[1], [0], [0], [1], [0, 0, 1, 1], [], []>} : vector<8x128xbf16>, vector<128x768xbf16>, vector<8x768xf32> -> vector<8x768xf32>
    %c0_191 = arith.constant 0 : index
    %c0_192 = arith.constant 0 : index
    %435 = vector.load %arg13[%c0_191, %c0_192] : memref<8x768xf32, #tpu.memory_space<vmem>>, vector<8x768xf32>
    %436 = arith.addf %434, %435 : vector<8x768xf32>
    %437 = vector.extract_strided_slice %436 {offsets = [0, 0], sizes = [8, 128], strides = [1, 1]} : vector<8x768xf32> to vector<8x128xf32>
    %438 = vector.extract_strided_slice %436 {offsets = [0, 128], sizes = [8, 128], strides = [1, 1]} : vector<8x768xf32> to vector<8x128xf32>
    %439 = arith.negf %438 : vector<8x128xf32>
    %440 = math.exp %439 : vector<8x128xf32>
    %cst_193 = arith.constant 1.000000e+00 : f32
    %441 = vector.broadcast %cst_193 : f32 to vector<8x128xf32>
    %442 = arith.addf %441, %440 : vector<8x128xf32>
    %443 = arith.divf %441, %442 : vector<8x128xf32>
    %444 = vector.extract_strided_slice %436 {offsets = [0, 256], sizes = [8, 512], strides = [1, 1]} : vector<8x768xf32> to vector<8x512xf32>
    %c0_194 = arith.constant 0 : index
    %c0_195 = arith.constant 0 : index
    %445 = vector.load %arg5[%c0_194, %c0_195] : memref<128x8xbf16, #tpu.memory_space<vmem>>, vector<128x8xbf16>
    %446 = arith.truncf %437 : vector<8x128xf32> to vector<8x128xbf16>
    %cst_196 = arith.constant dense<0.000000e+00> : vector<128x128xf32>
    %447 = tpu.matmul %445, %446, %cst_196 {dimension_numbers = #tpu.dot_dimension_numbers<[1], [0], [0], [1], [0, 0, 1, 1], [], []>} : vector<128x8xbf16>, vector<8x128xbf16>, vector<128x128xf32> -> vector<128x128xf32>
    %c0_197 = arith.constant 0 : index
    %c0_198 = arith.constant 0 : index
    %448 = vector.load %arg19[%c0_197, %c0_198] : memref<128x128xf32, #tpu.memory_space<vmem>>, vector<128x128xf32>
    %449 = arith.addf %448, %447 : vector<128x128xf32>
    %cst_199 = arith.constant 0.000000e+00 : f32
    %450 = vector.broadcast %cst_199 : f32 to vector<128x128xf32>
    %451 = arith.maximumf %449, %450 : vector<128x128xf32>
    %c0_200 = arith.constant 0 : index
    %c0_201 = arith.constant 0 : index
    %452 = vector.load %arg9[%c0_200, %c0_201] : memref<128x128xf32, #tpu.memory_space<vmem>>, vector<128x128xf32>
    %453 = arith.mulf %451, %452 : vector<128x128xf32>
    %cst_202 = arith.constant dense<0.000000e+00> : vector<128xf32>
    %454 = vector.multi_reduction <add>, %453, %cst_202 [1] : vector<128x128xf32> to vector<128xf32>
    %455 = vector.shape_cast %454 : vector<128xf32> to vector<128x1xf32>
    %456 = vector.shape_cast %455 : vector<128x1xf32> to vector<8x16x1xf32>
    %cst_203 = arith.constant dense<0xFF800000> : vector<8x1xf32>
    %457 = vector.multi_reduction <maximumf>, %456, %cst_203 [1] : vector<8x16x1xf32> to vector<8x1xf32>
    %458 = vector.shape_cast %457 : vector<8x1xf32> to vector<8x1x1xf32>
    %459 = vector.broadcast %458 : vector<8x1x1xf32> to vector<8x16x1xf32>
    %460 = arith.subf %456, %459 : vector<8x16x1xf32>
    %461 = math.exp %460 : vector<8x16x1xf32>
    %cst_204 = arith.constant dense<0.000000e+00> : vector<8x1xf32>
    %462 = vector.multi_reduction <add>, %461, %cst_204 [1] : vector<8x16x1xf32> to vector<8x1xf32>
    %463 = vector.shape_cast %462 : vector<8x1xf32> to vector<8x1x1xf32>
    %464 = tpu.reciprocal %463 : vector<8x1x1xf32> -> vector<8x1x1xf32>
    %465 = vector.broadcast %464 : vector<8x1x1xf32> to vector<8x16x1xf32>
    %466 = arith.mulf %461, %465 : vector<8x16x1xf32>
    %467 = vector.shape_cast %466 : vector<8x16x1xf32> to vector<128x1xf32>
    %c0_205 = arith.constant 0 : index
    %c0_206 = arith.constant 0 : index
    %468 = vector.load %arg4[%c0_205, %c0_206] : memref<8x128xbf16, #tpu.memory_space<vmem>>, vector<8x128xbf16>
    %c0_207 = arith.constant 0 : index
    %c0_208 = arith.constant 0 : index
    %469 = vector.load %arg0[%c0_207, %c0_208] : memref<128x128xbf16, #tpu.memory_space<vmem>>, vector<128x128xbf16>
    %470 = arith.truncf %467 : vector<128x1xf32> to vector<128x1xbf16>
    %471 = vector.broadcast %470 : vector<128x1xbf16> to vector<128x128xbf16>
    %472 = arith.mulf %469, %471 : vector<128x128xbf16>
    %cst_209 = arith.constant dense<0.000000e+00> : vector<8x128xf32>
    %473 = tpu.matmul %468, %472, %cst_209 {dimension_numbers = #tpu.dot_dimension_numbers<[1], [0], [0], [1], [0, 0, 1, 1], [], []>} : vector<8x128xbf16>, vector<128x128xbf16>, vector<8x128xf32> -> vector<8x128xf32>
    %474 = arith.mulf %443, %473 : vector<8x128xf32>
    %475 = vector.extract_strided_slice %27 {offsets = [32, 0], sizes = [8, 128], strides = [1, 1]} : vector<40x128xf32> to vector<8x128xf32>
    %476 = arith.truncf %475 : vector<8x128xf32> to vector<8x128xbf16>
    %477 = arith.truncf %474 : vector<8x128xf32> to vector<8x128xbf16>
    %478 = tpu.concatenate %476, %477 in 1 : vector<8x128xbf16>, vector<8x128xbf16> -> vector<8x256xbf16>
    %c0_210 = arith.constant 0 : index
    %c0_211 = arith.constant 0 : index
    %479 = vector.load %arg14[%c0_210, %c0_211] : memref<256x512xbf16, #tpu.memory_space<vmem>>, vector<256x512xbf16>
    %cst_212 = arith.constant dense<0.000000e+00> : vector<8x512xf32>
    %480 = tpu.matmul %478, %479, %cst_212 {dimension_numbers = #tpu.dot_dimension_numbers<[1], [0], [0], [1], [0, 0, 1, 1], [], []>} : vector<8x256xbf16>, vector<256x512xbf16>, vector<8x512xf32> -> vector<8x512xf32>
    %481 = arith.addf %480, %444 : vector<8x512xf32>
    %482 = vector.extract_strided_slice %481 {offsets = [0, 0], sizes = [8, 128], strides = [1, 1]} : vector<8x512xf32> to vector<8x128xf32>
    %483 = arith.negf %482 : vector<8x128xf32>
    %484 = math.exp %483 : vector<8x128xf32>
    %cst_213 = arith.constant 1.000000e+00 : f32
    %485 = vector.broadcast %cst_213 : f32 to vector<8x128xf32>
    %486 = arith.addf %485, %484 : vector<8x128xf32>
    %487 = arith.divf %485, %486 : vector<8x128xf32>
    %488 = vector.extract_strided_slice %481 {offsets = [0, 128], sizes = [8, 128], strides = [1, 1]} : vector<8x512xf32> to vector<8x128xf32>
    %489 = arith.negf %488 : vector<8x128xf32>
    %490 = math.exp %489 : vector<8x128xf32>
    %cst_214 = arith.constant 1.000000e+00 : f32
    %491 = vector.broadcast %cst_214 : f32 to vector<8x128xf32>
    %492 = arith.addf %491, %490 : vector<8x128xf32>
    %493 = arith.divf %491, %492 : vector<8x128xf32>
    %494 = vector.extract_strided_slice %481 {offsets = [0, 256], sizes = [8, 128], strides = [1, 1]} : vector<8x512xf32> to vector<8x128xf32>
    %495 = math.tanh %494 : vector<8x128xf32>
    %496 = vector.extract_strided_slice %481 {offsets = [0, 384], sizes = [8, 128], strides = [1, 1]} : vector<8x512xf32> to vector<8x128xf32>
    %497 = arith.negf %496 : vector<8x128xf32>
    %498 = math.exp %497 : vector<8x128xf32>
    %cst_215 = arith.constant 1.000000e+00 : f32
    %499 = vector.broadcast %cst_215 : f32 to vector<8x128xf32>
    %500 = arith.addf %499, %498 : vector<8x128xf32>
    %501 = arith.divf %499, %500 : vector<8x128xf32>
    %502 = arith.mulf %493, %429 : vector<8x128xf32>
    %503 = arith.mulf %487, %495 : vector<8x128xf32>
    %504 = arith.addf %502, %503 : vector<8x128xf32>
    %505 = math.tanh %504 : vector<8x128xf32>
    %506 = arith.mulf %501, %505 : vector<8x128xf32>
    %507 = arith.truncf %506 : vector<8x128xf32> to vector<8x128xbf16>
    %c0_216 = arith.constant 0 : index
    %c0_217 = arith.constant 0 : index
    %508 = vector.load %arg15[%c0_216, %c0_217] : memref<128x256xbf16, #tpu.memory_space<vmem>>, vector<128x256xbf16>
    %cst_218 = arith.constant dense<0.000000e+00> : vector<8x256xf32>
    %509 = tpu.matmul %507, %508, %cst_218 {dimension_numbers = #tpu.dot_dimension_numbers<[1], [0], [0], [1], [0, 0, 1, 1], [], []>} : vector<8x128xbf16>, vector<128x256xbf16>, vector<8x256xf32> -> vector<8x256xf32>
    %c0_219 = arith.constant 0 : index
    %c0_220 = arith.constant 0 : index
    %510 = vector.load %arg16[%c0_219, %c0_220] : memref<8x256xf32, #tpu.memory_space<vmem>>, vector<8x256xf32>
    %511 = arith.addf %509, %510 : vector<8x256xf32>
    %cst_221 = arith.constant 0.000000e+00 : f32
    %512 = vector.shape_cast %431 : vector<8x1xi1> to vector<8x1xi1>
    %513 = vector.broadcast %512 : vector<8x1xi1> to vector<8x256xi1>
    %514 = vector.broadcast %cst_221 : f32 to vector<8x256xf32>
    %515 = arith.select %513, %511, %514 : vector<8x256xi1>, vector<8x256xf32>
    %c4 = arith.constant 4 : index
    %c0_222 = arith.constant 0 : index
    %c0_223 = arith.constant 0 : index
    %516 = vector.load %arg17[%c4, %c0_222, %c0_223] : memref<5x8x256xf32, #tpu.memory_space<vmem>>, vector<1x8x256xf32>
    %517 = vector.shape_cast %516 : vector<1x8x256xf32> to vector<8x256xf32>
    %518 = vector.shape_cast %515 : vector<8x256xf32> to vector<1x8x256xf32>
    tpu.vector_store %arg17[%c4, %c0_222, %c0_223], %518 {strides = array<i32>} : memref<5x8x256xf32, #tpu.memory_space<vmem>>, vector<1x8x256xf32>,
    %c4_i32_224 = arith.constant 4 : i32
    %519 = vector.broadcast %c4_i32_224 : i32 to vector<128x1xi32>
    %520 = arith.cmpi sgt, %29, %519 : vector<128x1xi32>
    %cst_225 = arith.constant 0.000000e+00 : f32
    %521 = vector.broadcast %cst_225 : f32 to vector<128x1xf32>
    %522 = arith.select %520, %467, %521 : vector<128x1xi1>, vector<128x1xf32>
    %c0_226 = arith.constant 0 : index
    %c4_227 = arith.constant 4 : index
    %523 = vector.load %arg18[%c0_226, %c4_227] : memref<128x5xf32, #tpu.memory_space<vmem>>, vector<128x1xf32>
    tpu.vector_store %arg18[%c0_226, %c4_227], %522 {strides = array<i32>} : memref<128x5xf32, #tpu.memory_space<vmem>>, vector<128x1xf32>,
    return
  }
}

</mosaic_0001>

<llo_original>
// kernel: decoder_forward.1
$region0: #{decoder_forward.1}
  #allocation0 [shape = 'u32[]', space=smem, size = 0x4, offset = 0x4, fixed_abs, tag = 'smem constant byte address 0x4 - core index']
  #allocation1 [shape = 'u32[144,128]{1,0:T(1,128)}', space=vmem, size = 0x12000, scoped, tag = 'internal scratch']
  #allocation2 [shape = 'f32[128,128]{1,0:T(8,128)}', space=vmem, size = 0x10000, scoped, tag = 'scratch operand']
  %s0 = inlined_call_operand.vmem [shape: bf16[128,128], index: 0, kind: input, shape index: {}]
  %s1 = inlined_call_operand.vmem [shape: s32[8,1], index: 1, kind: input, shape index: {}]
  %s2 = inlined_call_operand.vmem [shape: s32[128,1], index: 2, kind: input, shape index: {}]
  %s3 = inlined_call_operand.vmem [shape: s32[40,1], index: 3, kind: input, shape index: {}]
  %s4 = inlined_call_operand.vmem [shape: bf16[8,128], index: 4, kind: input, shape index: {}]
  %s5 = inlined_call_operand.vmem [shape: bf16[128,8], index: 5, kind: input, shape index: {}]
  %s6 = inlined_call_operand.vmem [shape: bf16[256,128], index: 6, kind: input, shape index: {}]
  %s7 = inlined_call_operand.vmem [shape: bf16[128,128], index: 7, kind: input, shape index: {}]
  %s8 = inlined_call_operand.vmem [shape: f32[1,128], index: 8, kind: input, shape index: {}]
  %s9 = inlined_call_operand.vmem [shape: f32[128,128], index: 9, kind: input, shape index: {}]
  %s10 = inlined_call_operand.vmem [shape: bf16[128,256], index: 10, kind: input, shape index: {}]
  %s11 = inlined_call_operand.vmem [shape: f32[8,256], index: 11, kind: input, shape index: {}]
  %s12 = inlined_call_operand.vmem [shape: bf16[128,768], index: 12, kind: input, shape index: {}]
  %s13 = inlined_call_operand.vmem [shape: f32[8,768], index: 13, kind: input, shape index: {}]
  %s14 = inlined_call_operand.vmem [shape: bf16[256,512], index: 14, kind: input, shape index: {}]
  %s15 = inlined_call_operand.vmem [shape: bf16[128,256], index: 15, kind: input, shape index: {}]
  %s16 = inlined_call_operand.vmem [shape: f32[8,256], index: 16, kind: input, shape index: {}]
  %s17 = inlined_call_operand.vmem [shape: f32[5,8,256], index: 17, kind: output, shape index: {0}]
  %s18 = inlined_call_operand.vmem [shape: f32[128,5], index: 18, kind: output, shape index: {1}]
  %19 = xla_tuple %s17, %s18
  %s20 = sld [smem:[#allocation0]]
  $region86: #{decoder_forward.1} parent=0
    _
  %s22 = ssub.s32 1, %s20
  %s23 = scalar_select 0, %s22, %s20
  // Predicated region
  $region2: #{decoder_forward.1} parent=0 // pred_check
    _
  $region3: #{decoder_forward.1} parent=0 // pred_check_branch
    %25 = sbr.rel (0) target = $region5
  $region4: #{decoder_forward.1} parent=0 // pred_region
    _
  $region5: #{decoder_forward.1} parent=0 // pred_fallthru
    _
  // Predicated region
  $region6: #{decoder_forward.1} parent=0 // pred_check
    _
  $region7: #{decoder_forward.1} parent=0 // pred_check_branch
    %27 = sbr.rel (0) target = $region9
  $region8: #{decoder_forward.1} parent=0 // pred_region
    _
  $region9: #{decoder_forward.1} parent=0 // pred_fallthru
    _
  // Predicated region
  $region10: #{decoder_forward.1} parent=0 // pred_check
    _
  $region11: #{decoder_forward.1} parent=0 // pred_check_branch
    %29 = sbr.rel (0) target = $region13
  $region12: #{decoder_forward.1} parent=0 // pred_region
    _
  $region13: #{decoder_forward.1} parent=0 // pred_fallthru
    _
  // Predicated region
  $region14: #{decoder_forward.1} parent=0 // pred_check
    _
  $region15: #{decoder_forward.1} parent=0 // pred_check_branch
    %31 = sbr.rel (0) target = $region17
  $region16: #{decoder_forward.1} parent=0 // pred_region
    _
  $region17: #{decoder_forward.1} parent=0 // pred_fallthru
    _
  // Predicated region
  $region18: #{decoder_forward.1} parent=0 // pred_check
    _
  $region19: #{decoder_forward.1} parent=0 // pred_check_branch
    %33 = sbr.rel (0) target = $region21
  $region20: #{decoder_forward.1} parent=0 // pred_region
    _
  $region21: #{decoder_forward.1} parent=0 // pred_fallthru
    _
  // Predicated region
  $region22: #{decoder_forward.1} parent=0 // pred_check
    _
  $region23: #{decoder_forward.1} parent=0 // pred_check_branch
    %35 = sbr.rel (0) target = $region25
  $region24: #{decoder_forward.1} parent=0 // pred_region
    _
  $region25: #{decoder_forward.1} parent=0 // pred_fallthru
    _
  // Predicated region
  $region26: #{decoder_forward.1} parent=0 // pred_check
    _
  $region27: #{decoder_forward.1} parent=0 // pred_check_branch
    %37 = sbr.rel (0) target = $region29
  $region28: #{decoder_forward.1} parent=0 // pred_region
    _
  $region29: #{decoder_forward.1} parent=0 // pred_fallthru
    _
  // Predicated region
  $region30: #{decoder_forward.1} parent=0 // pred_check
    _
  $region31: #{decoder_forward.1} parent=0 // pred_check_branch
    %39 = sbr.rel (0) target = $region33
  $region32: #{decoder_forward.1} parent=0 // pred_region
    _
  $region33: #{decoder_forward.1} parent=0 // pred_fallthru
    _
  // Predicated region
  $region34: #{decoder_forward.1} parent=0 // pred_check
    _
  $region35: #{decoder_forward.1} parent=0 // pred_check_branch
    %41 = sbr.rel (0) target = $region37
  $region36: #{decoder_forward.1} parent=0 // pred_region
    _
  $region37: #{decoder_forward.1} parent=0 // pred_fallthru
    _
  // Predicated region
  $region38: #{decoder_forward.1} parent=0 // pred_check
    _
  $region39: #{decoder_forward.1} parent=0 // pred_check_branch
    %43 = sbr.rel (0) target = $region41
  $region40: #{decoder_forward.1} parent=0 // pred_region
    _
  $region41: #{decoder_forward.1} parent=0 // pred_fallthru
    _
  // Predicated region
  $region42: #{decoder_forward.1} parent=0 // pred_check
    _
  $region43: #{decoder_forward.1} parent=0 // pred_check_branch
    %45 = sbr.rel (0) target = $region45
  $region44: #{decoder_forward.1} parent=0 // pred_region
    _
  $region45: #{decoder_forward.1} parent=0 // pred_fallthru
    _
  // Predicated region
  $region46: #{decoder_forward.1} parent=0 // pred_check
    _
  $region47: #{decoder_forward.1} parent=0 // pred_check_branch
    %47 = sbr.rel (0) target = $region49
  $region48: #{decoder_forward.1} parent=0 // pred_region
    _
  $region49: #{decoder_forward.1} parent=0 // pred_fallthru
    _
  // Predicated region
  $region50: #{decoder_forward.1} parent=0 // pred_check
    _
  $region51: #{decoder_forward.1} parent=0 // pred_check_branch
    %49 = sbr.rel (0) target = $region53
  $region52: #{decoder_forward.1} parent=0 // pred_region
    _
  $region53: #{decoder_forward.1} parent=0 // pred_fallthru
    _
  // Predicated region
  $region54: #{decoder_forward.1} parent=0 // pred_check
    _
  $region55: #{decoder_forward.1} parent=0 // pred_check_branch
    %51 = sbr.rel (0) target = $region57
  $region56: #{decoder_forward.1} parent=0 // pred_region
    _
  $region57: #{decoder_forward.1} parent=0 // pred_fallthru
    _
  // Predicated region
  $region58: #{decoder_forward.1} parent=0 // pred_check
    _
  $region59: #{decoder_forward.1} parent=0 // pred_check_branch
    %53 = sbr.rel (0) target = $region61
  $region60: #{decoder_forward.1} parent=0 // pred_region
    _
  $region61: #{decoder_forward.1} parent=0 // pred_fallthru
    _
  // Predicated region
  $region62: #{decoder_forward.1} parent=0 // pred_check
    _
  $region63: #{decoder_forward.1} parent=0 // pred_check_branch
    %55 = sbr.rel (0) target = $region65
  $region64: #{decoder_forward.1} parent=0 // pred_region
    _
  $region65: #{decoder_forward.1} parent=0 // pred_fallthru
    _
  // Predicated region
  $region66: #{decoder_forward.1} parent=0 // pred_check
    _
  $region67: #{decoder_forward.1} parent=0 // pred_check_branch
    %57 = sbr.rel (0) target = $region69
  $region68: #{decoder_forward.1} parent=0 // pred_region
    _
  $region69: #{decoder_forward.1} parent=0 // pred_fallthru
    _
  %v59 = vld [vmem:[%s0] sm:$0xf]
  %v60 = vld [vmem:[%s0 + $0x4] sm:$0xf]
  %v61 = vld [vmem:[%s0 + $0x8] sm:$0xf]
  %v62 = vld [vmem:[%s0 + $0xc] sm:$0xf]
  %v63 = vld [vmem:[%s0 + $0x10] sm:$0xf]
  %v64 = vld [vmem:[%s0 + $0x14] sm:$0xf]
  %v65 = vld [vmem:[%s0 + $0x18] sm:$0xf]
  %v66 = vld [vmem:[%s0 + $0x1c] sm:$0xf]
  %v67 = vld [vmem:[%s0 + $0x20] sm:$0xf]
  %v68 = vld [vmem:[%s0 + $0x24] sm:$0xf]
  %v69 = vld [vmem:[%s0 + $0x28] sm:$0xf]
  %v70 = vld [vmem:[%s0 + $0x2c] sm:$0xf]
  %v71 = vld [vmem:[%s0 + $0x30] sm:$0xf]
  %v72 = vld [vmem:[%s0 + $0x34] sm:$0xf]
  %v73 = vld [vmem:[%s0 + $0x38] sm:$0xf]
  %v74 = vld [vmem:[%s0 + $0x3c] sm:$0xf]
  %v75 = vld [vmem:[%s7] sm:$0xf]
  %v76 = vld [vmem:[%s7 + $0x4] sm:$0xf]
  %v77 = vld [vmem:[%s7 + $0x8] sm:$0xf]
  %v78 = vld [vmem:[%s7 + $0xc] sm:$0xf]
  %v79 = vld [vmem:[%s7 + $0x10] sm:$0xf]
  %v80 = vld [vmem:[%s7 + $0x14] sm:$0xf]
  %v81 = vld [vmem:[%s7 + $0x18] sm:$0xf]
  %v82 = vld [vmem:[%s7 + $0x1c] sm:$0xf]
  %v83 = vld [vmem:[%s7 + $0x20] sm:$0xf]
  %v84 = vld [vmem:[%s7 + $0x24] sm:$0xf]
  %v85 = vld [vmem:[%s7 + $0x28] sm:$0xf]
  %v86 = vld [vmem:[%s7 + $0x2c] sm:$0xf]
  %v87 = vld [vmem:[%s7 + $0x30] sm:$0xf]
  %v88 = vld [vmem:[%s7 + $0x34] sm:$0xf]
  %v89 = vld [vmem:[%s7 + $0x38] sm:$0xf]
  %v90 = vld [vmem:[%s7 + $0x3c] sm:$0xf]
  %v91 = vld [vmem:[%s8] sm:$0x1]
  %v93 = vlaneseq
  %v94 = vshrl.u32 %v93, 7
  %v95 = vsub.s32 0, %v94
  %v96 = vrot.slane %v91, %v95
  %v114 = vunpack.c.l.b16 %v59
  %v115 = vunpack.c.l.b16 %v60
  %v116 = vunpack.c.l.b16 %v61
  %v117 = vunpack.c.l.b16 %v62
  %v118 = vunpack.c.l.b16 %v63
  %v119 = vunpack.c.l.b16 %v64
  %v120 = vunpack.c.l.b16 %v65
  %v121 = vunpack.c.l.b16 %v66
  %v122 = vunpack.c.l.b16 %v67
  %v123 = vunpack.c.l.b16 %v68
  %v124 = vunpack.c.l.b16 %v69
  %v125 = vunpack.c.l.b16 %v70
  %v126 = vunpack.c.l.b16 %v71
  %v127 = vunpack.c.l.b16 %v72
  %v128 = vunpack.c.l.b16 %v73
  %v129 = vunpack.c.l.b16 %v74
  %v130 = vpack.c.b16 %v115, %v114
  %v131 = vpack.c.b16 %v117, %v116
  %v132 = vpack.c.b16 %v119, %v118
  %v133 = vpack.c.b16 %v121, %v120
  %v134 = vpack.c.b16 %v123, %v122
  %v135 = vpack.c.b16 %v125, %v124
  %v136 = vpack.c.b16 %v127, %v126
  %v137 = vpack.c.b16 %v129, %v128
  %v162 = vunpack.c.l.b16 %v75
  %v163 = vunpack.c.l.b16 %v76
  %v164 = vunpack.c.l.b16 %v77
  %v165 = vunpack.c.l.b16 %v78
  %v166 = vunpack.c.l.b16 %v79
  %v167 = vunpack.c.l.b16 %v80
  %v168 = vunpack.c.l.b16 %v81
  %v169 = vunpack.c.l.b16 %v82
  %v170 = vunpack.c.l.b16 %v83
  %v171 = vunpack.c.l.b16 %v84
  %v172 = vunpack.c.l.b16 %v85
  %v173 = vunpack.c.l.b16 %v86
  %v174 = vunpack.c.l.b16 %v87
  %v175 = vunpack.c.l.b16 %v88
  %v176 = vunpack.c.l.b16 %v89
  %v177 = vunpack.c.l.b16 %v90
  %v178 = vpack.c.b16 %v163, %v162
  %v179 = vpack.c.b16 %v165, %v164
  %v180 = vpack.c.b16 %v167, %v166
  %v181 = vpack.c.b16 %v169, %v168
  %v182 = vpack.c.b16 %v171, %v170
  %v183 = vpack.c.b16 %v173, %v172
  %v184 = vpack.c.b16 %v175, %v174
  %v185 = vpack.c.b16 %v177, %v176
  %194 = vmatprep.subr.bf16.mxu0 0
  %195 = vmatpush1.bf16.msra.mxu0 %v185
  %196 = vmatprep.subr.bf16.mxu0 0
  %197 = vmatpush1.bf16.msra.mxu0 %v184
  %198 = vmatprep.subr.bf16.mxu0 0
  %199 = vmatpush1.bf16.msra.mxu0 %v183
  %200 = vmatprep.subr.bf16.mxu0 0
  %201 = vmatpush1.bf16.msra.mxu0 %v182
  %202 = vmatprep.subr.bf16.mxu0 0
  %203 = vmatpush1.bf16.msra.mxu0 %v181
  %204 = vmatprep.subr.bf16.mxu0 0
  %205 = vmatpush1.bf16.msra.mxu0 %v180
  %206 = vmatprep.subr.bf16.mxu0 0
  %207 = vmatpush1.bf16.msra.mxu0 %v179
  %208 = vmatprep.subr.bf16.mxu0 0
  %209 = vmatpush1.bf16.msra.mxu0 %v178
  %210 = vmatprep.subr.bf16.mxu0 0
  %211 = vmatpush2.bf16.msra.mxu0 0
  %212 = vmatprep.subr.bf16.mxu0 0
  %213 = vmatpush2.bf16.msra.mxu0 0
  %214 = vmatprep.subr.bf16.mxu0 0
  %215 = vmatpush2.bf16.msra.mxu0 0
  %216 = vmatprep.subr.bf16.mxu0 0
  %217 = vmatpush2.bf16.msra.mxu0 0
  %218 = vmatprep.subr.bf16.mxu0 0
  %219 = vmatpush2.bf16.msra.mxu0 0
  %220 = vmatprep.subr.bf16.mxu0 0
  %221 = vmatpush2.bf16.msra.mxu0 0
  %222 = vmatprep.subr.bf16.mxu0 0
  %223 = vmatpush2.bf16.msra.mxu0 0
  %224 = vmatprep.subr.bf16.mxu0 0
  %225 = vmatpush2.bf16.msra.mxu0 0
  %226 = vmatprep.mubr.bf16.mxu0 0
  %227 = vmatmul.mubr.bf16.gmra.mxu0 %v130
  %v228 = vpop.f32.mrf.mxu0
  %v229 = vadd.f32 %v96, %v228
  %v230 = vpop.f32.mrf.mxu0
  %v231 = vpop.f32.mrf.mxu0
  %v232 = vadd.f32 %v96, %v231
  %v233 = vpop.f32.mrf.mxu0
  %234 = vmatprep.mubr.bf16.mxu0 0
  %235 = vmatmul.mubr.bf16.gmra.mxu0 %v131
  %v236 = vpop.f32.mrf.mxu0
  %v237 = vadd.f32 %v96, %v236
  %v238 = vpop.f32.mrf.mxu0
  %v239 = vpop.f32.mrf.mxu0
  %v240 = vadd.f32 %v96, %v239
  %v241 = vpop.f32.mrf.mxu0
  %242 = vmatprep.mubr.bf16.mxu0 0
  %243 = vmatmul.mubr.bf16.gmra.mxu0 %v132
  %v244 = vpop.f32.mrf.mxu0
  %v245 = vadd.f32 %v96, %v244
  %v246 = vpop.f32.mrf.mxu0
  %v247 = vpop.f32.mrf.mxu0
  %v248 = vadd.f32 %v96, %v247
  %v249 = vpop.f32.mrf.mxu0
  %250 = vmatprep.mubr.bf16.mxu0 0
  %251 = vmatmul.mubr.bf16.gmra.mxu0 %v133
  %v252 = vpop.f32.mrf.mxu0
  %v253 = vadd.f32 %v96, %v252
  %v254 = vpop.f32.mrf.mxu0
  %v255 = vpop.f32.mrf.mxu0
  %v256 = vadd.f32 %v96, %v255
  %v257 = vpop.f32.mrf.mxu0
  %258 = vmatprep.mubr.bf16.mxu0 0
  %259 = vmatmul.mubr.bf16.gmra.mxu0 %v134
  %v260 = vpop.f32.mrf.mxu0
  %v261 = vadd.f32 %v96, %v260
  %v262 = vpop.f32.mrf.mxu0
  %v263 = vpop.f32.mrf.mxu0
  %v264 = vadd.f32 %v96, %v263
  %v265 = vpop.f32.mrf.mxu0
  %266 = vmatprep.mubr.bf16.mxu0 0
  %267 = vmatmul.mubr.bf16.gmra.mxu0 %v135
  %v268 = vpop.f32.mrf.mxu0
  %v269 = vadd.f32 %v96, %v268
  %v270 = vpop.f32.mrf.mxu0
  %v271 = vpop.f32.mrf.mxu0
  %v272 = vadd.f32 %v96, %v271
  %v273 = vpop.f32.mrf.mxu0
  %274 = vmatprep.mubr.bf16.mxu0 0
  %275 = vmatmul.mubr.bf16.gmra.mxu0 %v136
  %v276 = vpop.f32.mrf.mxu0
  %v277 = vadd.f32 %v96, %v276
  %v278 = vpop.f32.mrf.mxu0
  %v279 = vpop.f32.mrf.mxu0
  %v280 = vadd.f32 %v96, %v279
  %v281 = vpop.f32.mrf.mxu0
  %282 = vmatprep.mubr.bf16.mxu0 0
  %283 = vmatmul.mubr.bf16.gmra.mxu0 %v137
  %v284 = vpop.f32.mrf.mxu0
  %v285 = vadd.f32 %v96, %v284
  %v286 = vpop.f32.mrf.mxu0
  %v287 = vpop.f32.mrf.mxu0
  %v288 = vadd.f32 %v96, %v287
  %v289 = vpop.f32.mrf.mxu0
  %290 = vdwg.mxu0
  %291 = vst [vmem:[#allocation2] sm:$0xff] %v229
  %292 = vst [vmem:[#allocation2 + $0x8] sm:$0xff] %v232
  %293 = vst [vmem:[#allocation2 + $0x10] sm:$0xff] %v237
  %294 = vst [vmem:[#allocation2 + $0x18] sm:$0xff] %v240
  %295 = vst [vmem:[#allocation2 + $0x20] sm:$0xff] %v245
  %296 = vst [vmem:[#allocation2 + $0x28] sm:$0xff] %v248
  %297 = vst [vmem:[#allocation2 + $0x30] sm:$0xff] %v253
  %298 = vst [vmem:[#allocation2 + $0x38] sm:$0xff] %v256
  %299 = vst [vmem:[#allocation2 + $0x40] sm:$0xff] %v261
  %300 = vst [vmem:[#allocation2 + $0x48] sm:$0xff] %v264
  %301 = vst [vmem:[#allocation2 + $0x50] sm:$0xff] %v269
  %302 = vst [vmem:[#allocation2 + $0x58] sm:$0xff] %v272
  %303 = vst [vmem:[#allocation2 + $0x60] sm:$0xff] %v277
  %304 = vst [vmem:[#allocation2 + $0x68] sm:$0xff] %v280
  %305 = vst [vmem:[#allocation2 + $0x70] sm:$0xff] %v285
  %306 = vst [vmem:[#allocation2 + $0x78] sm:$0xff] %v288
  %v307 = vld [vmem:[%s4] sm:$0xf]
  %v308 = vld [vmem:[%s0] sm:$0xf]
  %v309 = vld [vmem:[%s0 + $0x4] sm:$0xf]
  %v310 = vld [vmem:[%s0 + $0x8] sm:$0xf]
  %v311 = vld [vmem:[%s0 + $0xc] sm:$0xf]
  %v312 = vld [vmem:[%s0 + $0x10] sm:$0xf]
  %v313 = vld [vmem:[%s0 + $0x14] sm:$0xf]
  %v314 = vld [vmem:[%s0 + $0x18] sm:$0xf]
  %v315 = vld [vmem:[%s0 + $0x1c] sm:$0xf]
  %v316 = vld [vmem:[%s0 + $0x20] sm:$0xf]
  %v317 = vld [vmem:[%s0 + $0x24] sm:$0xf]
  %v318 = vld [vmem:[%s0 + $0x28] sm:$0xf]
  %v319 = vld [vmem:[%s0 + $0x2c] sm:$0xf]
  %v320 = vld [vmem:[%s0 + $0x30] sm:$0xf]
  %v321 = vld [vmem:[%s0 + $0x34] sm:$0xf]
  %v322 = vld [vmem:[%s0 + $0x38] sm:$0xf]
  %v323 = vld [vmem:[%s0 + $0x3c] sm:$0xf]
  %v340 = vunpack.c.l.b16 %v308
  %v341 = vunpack.c.l.b16 %v309
  %v342 = vunpack.c.l.b16 %v310
  %v343 = vunpack.c.l.b16 %v311
  %v344 = vunpack.c.l.b16 %v312
  %v345 = vunpack.c.l.b16 %v313
  %v346 = vunpack.c.l.b16 %v314
  %v347 = vunpack.c.l.b16 %v315
  %v348 = vunpack.c.l.b16 %v316
  %v349 = vunpack.c.l.b16 %v317
  %v350 = vunpack.c.l.b16 %v318
  %v351 = vunpack.c.l.b16 %v319
  %v352 = vunpack.c.l.b16 %v320
  %v353 = vunpack.c.l.b16 %v321
  %v354 = vunpack.c.l.b16 %v322
  %v355 = vunpack.c.l.b16 %v323
  %v356 = vpack.c.b16 %v341, %v340
  %v357 = vpack.c.b16 %v343, %v342
  %v358 = vpack.c.b16 %v345, %v344
  %v359 = vpack.c.b16 %v347, %v346
  %v360 = vpack.c.b16 %v349, %v348
  %v361 = vpack.c.b16 %v351, %v350
  %v362 = vpack.c.b16 %v353, %v352
  %v363 = vpack.c.b16 %v355, %v354
  %372 = vmatprep.subr.bf16.mxu0 0
  %373 = vmatpush1.bf16.msra.mxu0 %v363
  %374 = vmatprep.subr.bf16.mxu0 0
  %375 = vmatpush1.bf16.msra.mxu0 %v362
  %376 = vmatprep.subr.bf16.mxu0 0
  %377 = vmatpush1.bf16.msra.mxu0 %v361
  %378 = vmatprep.subr.bf16.mxu0 0
  %379 = vmatpush1.bf16.msra.mxu0 %v360
  %380 = vmatprep.subr.bf16.mxu0 0
  %381 = vmatpush1.bf16.msra.mxu0 %v359
  %382 = vmatprep.subr.bf16.mxu0 0
  %383 = vmatpush1.bf16.msra.mxu0 %v358
  %384 = vmatprep.subr.bf16.mxu0 0
  %385 = vmatpush1.bf16.msra.mxu0 %v357
  %386 = vmatprep.subr.bf16.mxu0 0
  %387 = vmatpush1.bf16.msra.mxu0 %v356
  %388 = vmatprep.subr.bf16.mxu0 0
  %389 = vmatpush2.bf16.msra.mxu0 0
  %390 = vmatprep.subr.bf16.mxu0 0
  %391 = vmatpush2.bf16.msra.mxu0 0
  %392 = vmatprep.subr.bf16.mxu0 0
  %393 = vmatpush2.bf16.msra.mxu0 0
  %394 = vmatprep.subr.bf16.mxu0 0
  %395 = vmatpush2.bf16.msra.mxu0 0
  %396 = vmatprep.subr.bf16.mxu0 0
  %397 = vmatpush2.bf16.msra.mxu0 0
  %398 = vmatprep.subr.bf16.mxu0 0
  %399 = vmatpush2.bf16.msra.mxu0 0
  %400 = vmatprep.subr.bf16.mxu0 0
  %401 = vmatpush2.bf16.msra.mxu0 0
  %402 = vmatprep.subr.bf16.mxu0 0
  %403 = vmatpush2.bf16.msra.mxu0 0
  %404 = vmatprep.mubr.bf16.mxu0 0
  %405 = vmatmul.mubr.bf16.gmra.mxu0 %v307
  %v406 = vpop.f32.mrf.mxu0
  %v407 = vadd.f32 0.0, %v406
  %v408 = vpop.f32.mrf.mxu0
  %v409 = vpop.f32.mrf.mxu0
  %v410 = vpop.f32.mrf.mxu0
  %411 = vdwg.mxu0
  %v412 = vmul.f32 %v407, 0.0625
  %v413 = vpack.c.bf16 %v412, %v412
  %v414 = vld [vmem:[%s10] sm:$0xff]
  %v415 = vld [vmem:[%s10 + $0x8] sm:$0xff]
  %v416 = vld [vmem:[%s10 + $0x10] sm:$0xff]
  %v417 = vld [vmem:[%s10 + $0x18] sm:$0xff]
  %v418 = vld [vmem:[%s10 + $0x20] sm:$0xff]
  %v419 = vld [vmem:[%s10 + $0x28] sm:$0xff]
  %v420 = vld [vmem:[%s10 + $0x30] sm:$0xff]
  %v421 = vld [vmem:[%s10 + $0x38] sm:$0xff]
  %v422 = vld [vmem:[%s10 + $0x40] sm:$0xff]
  %v423 = vld [vmem:[%s10 + $0x48] sm:$0xff]
  %v424 = vld [vmem:[%s10 + $0x50] sm:$0xff]
  %v425 = vld [vmem:[%s10 + $0x58] sm:$0xff]
  %v426 = vld [vmem:[%s10 + $0x60] sm:$0xff]
  %v427 = vld [vmem:[%s10 + $0x68] sm:$0xff]
  %v428 = vld [vmem:[%s10 + $0x70] sm:$0xff]
  %v429 = vld [vmem:[%s10 + $0x78] sm:$0xff]
  %v430 = vld [vmem:[%s11] sm:$0xff]
  %v431 = vld [vmem:[%s11 + $0x8] sm:$0xff]
  %v448 = vunpack.c.l.b16 %v414
  %v449 = vunpack.c.h.b16 %v414
  %v450 = vunpack.c.l.b16 %v415
  %v451 = vunpack.c.h.b16 %v415
  %v452 = vunpack.c.l.b16 %v416
  %v453 = vunpack.c.h.b16 %v416
  %v454 = vunpack.c.l.b16 %v417
  %v455 = vunpack.c.h.b16 %v417
  %v456 = vunpack.c.l.b16 %v418
  %v457 = vunpack.c.h.b16 %v418
  %v458 = vunpack.c.l.b16 %v419
  %v459 = vunpack.c.h.b16 %v419
  %v460 = vunpack.c.l.b16 %v420
  %v461 = vunpack.c.h.b16 %v420
  %v462 = vunpack.c.l.b16 %v421
  %v463 = vunpack.c.h.b16 %v421
  %v464 = vunpack.c.l.b16 %v422
  %v465 = vunpack.c.h.b16 %v422
  %v466 = vunpack.c.l.b16 %v423
  %v467 = vunpack.c.h.b16 %v423
  %v468 = vunpack.c.l.b16 %v424
  %v469 = vunpack.c.h.b16 %v424
  %v470 = vunpack.c.l.b16 %v425
  %v471 = vunpack.c.h.b16 %v425
  %v472 = vunpack.c.l.b16 %v426
  %v473 = vunpack.c.h.b16 %v426
  %v474 = vunpack.c.l.b16 %v427
  %v475 = vunpack.c.h.b16 %v427
  %v476 = vunpack.c.l.b16 %v428
  %v477 = vunpack.c.h.b16 %v428
  %v478 = vunpack.c.l.b16 %v429
  %v479 = vunpack.c.h.b16 %v429
  %v480 = vpack.c.b16 %v450, %v448
  %v481 = vpack.c.b16 %v451, %v449
  %v482 = vpack.c.b16 %v454, %v452
  %v483 = vpack.c.b16 %v455, %v453
  %v484 = vpack.c.b16 %v458, %v456
  %v485 = vpack.c.b16 %v459, %v457
  %v486 = vpack.c.b16 %v462, %v460
  %v487 = vpack.c.b16 %v463, %v461
  %v488 = vpack.c.b16 %v466, %v464
  %v489 = vpack.c.b16 %v467, %v465
  %v490 = vpack.c.b16 %v470, %v468
  %v491 = vpack.c.b16 %v471, %v469
  %v492 = vpack.c.b16 %v474, %v472
  %v493 = vpack.c.b16 %v475, %v473
  %v494 = vpack.c.b16 %v478, %v476
  %v495 = vpack.c.b16 %v479, %v477
  %512 = vmatprep.subr.bf16.mxu0 %v495
  %513 = vmatpush1.bf16.msra.mxu0 %v494
  %514 = vmatprep.subr.bf16.mxu0 %v493
  %515 = vmatpush1.bf16.msra.mxu0 %v492
  %516 = vmatprep.subr.bf16.mxu0 %v491
  %517 = vmatpush1.bf16.msra.mxu0 %v490
  %518 = vmatprep.subr.bf16.mxu0 %v489
  %519 = vmatpush1.bf16.msra.mxu0 %v488
  %520 = vmatprep.subr.bf16.mxu0 %v487
  %521 = vmatpush1.bf16.msra.mxu0 %v486
  %522 = vmatprep.subr.bf16.mxu0 %v485
  %523 = vmatpush1.bf16.msra.mxu0 %v484
  %524 = vmatprep.subr.bf16.mxu0 %v483
  %525 = vmatpush1.bf16.msra.mxu0 %v482
  %526 = vmatprep.subr.bf16.mxu0 %v481
  %527 = vmatpush1.bf16.msra.mxu0 %v480
  %528 = vmatprep.subr.bf16.mxu0 0
  %529 = vmatpush2.bf16.msra.mxu0 0
  %530 = vmatprep.subr.bf16.mxu0 0
  %531 = vmatpush2.bf16.msra.mxu0 0
  %532 = vmatprep.subr.bf16.mxu0 0
  %533 = vmatpush2.bf16.msra.mxu0 0
  %534 = vmatprep.subr.bf16.mxu0 0
  %535 = vmatpush2.bf16.msra.mxu0 0
  %536 = vmatprep.subr.bf16.mxu0 0
  %537 = vmatpush2.bf16.msra.mxu0 0
  %538 = vmatprep.subr.bf16.mxu0 0
  %539 = vmatpush2.bf16.msra.mxu0 0
  %540 = vmatprep.subr.bf16.mxu0 0
  %541 = vmatpush2.bf16.msra.mxu0 0
  %542 = vmatprep.subr.bf16.mxu0 0
  %543 = vmatpush2.bf16.msra.mxu0 0
  %544 = vmatprep.mubr.bf16.mxu0 0
  %545 = vmatmul.mubr.bf16.gmra.mxu0 %v413
  %v546 = vpop.f32.mrf.mxu0
  %v547 = vadd.f32 %v430, %v546
  %v548 = vpop.f32.mrf.mxu0
  %v549 = vadd.f32 %v431, %v548
  %v550 = vpop.f32.mrf.mxu0
  %v551 = vpop.f32.mrf.mxu0
  %552 = vdwg.mxu0
  %v553 = vld [vmem:[%s3] sm:$0xff]
  %v554 = vld [vmem:[%s3 + $0x8] sm:$0xff]
  %v555 = vld [vmem:[%s3 + $0x10] sm:$0xff]
  %v556 = vld [vmem:[%s3 + $0x18] sm:$0xff]
  %v557 = vld [vmem:[%s3 + $0x20] sm:$0xff]
  %v558 = vlaneseq
  %v559 = vand.u32 %v558, 127
  %v560 = vadd.s32 %v559, 128
  %561 = vset.pattern.permute.xlu0 0
  %562 = vperm.xlu0 %561, %v553
  %v563 = vpop.permute.xlu0 %562
  %564 = vset.pattern.permute.xlu0 0
  %565 = vperm.xlu0 %564, %v554
  %v566 = vpop.permute.xlu0 %565
  %567 = vset.pattern.permute.xlu0 0
  %568 = vperm.xlu0 %567, %v555
  %v569 = vpop.permute.xlu0 %568
  %570 = vset.pattern.permute.xlu0 0
  %571 = vperm.xlu0 %570, %v556
  %v572 = vpop.permute.xlu0 %571
  %573 = vset.pattern.permute.xlu0 0
  %574 = vperm.xlu0 %573, %v557
  %v575 = vpop.permute.xlu0 %574
  %vm576 = vcmp.eq.s32.totalorder %v563, %v559
  %vm577 = vcmp.eq.s32.totalorder %v563, %v560
  %vm578 = vcmp.eq.s32.totalorder %v566, %v559
  %vm579 = vcmp.eq.s32.totalorder %v566, %v560
  %vm580 = vcmp.eq.s32.totalorder %v569, %v559
  %vm581 = vcmp.eq.s32.totalorder %v569, %v560
  %vm582 = vcmp.eq.s32.totalorder %v572, %v559
  %vm583 = vcmp.eq.s32.totalorder %v572, %v560
  %vm584 = vcmp.eq.s32.totalorder %v575, %v559
  %vm585 = vcmp.eq.s32.totalorder %v575, %v560
  %v586 = vsel %vm576, 1, 0
  %v587 = vsel %vm577, 1, 0
  %v588 = vsel %vm578, 1, 0
  %v589 = vsel %vm579, 1, 0
  %v590 = vsel %vm580, 1, 0
  %v591 = vsel %vm581, 1, 0
  %v592 = vsel %vm582, 1, 0
  %v593 = vsel %vm583, 1, 0
  %v594 = vsel %vm584, 1, 0
  %v595 = vsel %vm585, 1, 0
  %v596 = vcvt.s32.f32 %v586
  %v597 = vcvt.s32.f32 %v587
  %v598 = vcvt.s32.f32 %v588
  %v599 = vcvt.s32.f32 %v589
  %v600 = vcvt.s32.f32 %v590
  %v601 = vcvt.s32.f32 %v591
  %v602 = vcvt.s32.f32 %v592
  %v603 = vcvt.s32.f32 %v593
  %v604 = vcvt.s32.f32 %v594
  %v605 = vcvt.s32.f32 %v595
  %v606 = vpack.c.bf16 %v598, %v596
  %v607 = vpack.c.bf16 %v599, %v597
  %v608 = vpack.c.bf16 %v602, %v600
  %v609 = vpack.c.bf16 %v603, %v601
  %v610 = vpack.c.bf16 %v604, %v604
  %v611 = vpack.c.bf16 %v605, %v605
  %v612 = vld [vmem:[%s6] sm:$0xf]
  %v613 = vld [vmem:[%s6 + $0x4] sm:$0xf]
  %v614 = vld [vmem:[%s6 + $0x8] sm:$0xf]
  %v615 = vld [vmem:[%s6 + $0xc] sm:$0xf]
  %v616 = vld [vmem:[%s6 + $0x10] sm:$0xf]
  %v617 = vld [vmem:[%s6 + $0x14] sm:$0xf]
  %v618 = vld [vmem:[%s6 + $0x18] sm:$0xf]
  %v619 = vld [vmem:[%s6 + $0x1c] sm:$0xf]
  %v620 = vld [vmem:[%s6 + $0x20] sm:$0xf]
  %v621 = vld [vmem:[%s6 + $0x24] sm:$0xf]
  %v622 = vld [vmem:[%s6 + $0x28] sm:$0xf]
  %v623 = vld [vmem:[%s6 + $0x2c] sm:$0xf]
  %v624 = vld [vmem:[%s6 + $0x30] sm:$0xf]
  %v625 = vld [vmem:[%s6 + $0x34] sm:$0xf]
  %v626 = vld [vmem:[%s6 + $0x38] sm:$0xf]
  %v627 = vld [vmem:[%s6 + $0x3c] sm:$0xf]
  %v628 = vld [vmem:[%s6 + $0x40] sm:$0xf]
  %v629 = vld [vmem:[%s6 + $0x44] sm:$0xf]
  %v630 = vld [vmem:[%s6 + $0x48] sm:$0xf]
  %v631 = vld [vmem:[%s6 + $0x4c] sm:$0xf]
  %v632 = vld [vmem:[%s6 + $0x50] sm:$0xf]
  %v633 = vld [vmem:[%s6 + $0x54] sm:$0xf]
  %v634 = vld [vmem:[%s6 + $0x58] sm:$0xf]
  %v635 = vld [vmem:[%s6 + $0x5c] sm:$0xf]
  %v636 = vld [vmem:[%s6 + $0x60] sm:$0xf]
  %v637 = vld [vmem:[%s6 + $0x64] sm:$0xf]
  %v638 = vld [vmem:[%s6 + $0x68] sm:$0xf]
  %v639 = vld [vmem:[%s6 + $0x6c] sm:$0xf]
  %v640 = vld [vmem:[%s6 + $0x70] sm:$0xf]
  %v641 = vld [vmem:[%s6 + $0x74] sm:$0xf]
  %v642 = vld [vmem:[%s6 + $0x78] sm:$0xf]
  %v643 = vld [vmem:[%s6 + $0x7c] sm:$0xf]
  %v676 = vunpack.c.l.b16 %v612
  %v677 = vunpack.c.l.b16 %v613
  %v678 = vunpack.c.l.b16 %v614
  %v679 = vunpack.c.l.b16 %v615
  %v680 = vunpack.c.l.b16 %v616
  %v681 = vunpack.c.l.b16 %v617
  %v682 = vunpack.c.l.b16 %v618
  %v683 = vunpack.c.l.b16 %v619
  %v684 = vunpack.c.l.b16 %v620
  %v685 = vunpack.c.l.b16 %v621
  %v686 = vunpack.c.l.b16 %v622
  %v687 = vunpack.c.l.b16 %v623
  %v688 = vunpack.c.l.b16 %v624
  %v689 = vunpack.c.l.b16 %v625
  %v690 = vunpack.c.l.b16 %v626
  %v691 = vunpack.c.l.b16 %v627
  %v692 = vunpack.c.l.b16 %v628
  %v693 = vunpack.c.l.b16 %v629
  %v694 = vunpack.c.l.b16 %v630
  %v695 = vunpack.c.l.b16 %v631
  %v696 = vunpack.c.l.b16 %v632
  %v697 = vunpack.c.l.b16 %v633
  %v698 = vunpack.c.l.b16 %v634
  %v699 = vunpack.c.l.b16 %v635
  %v700 = vunpack.c.l.b16 %v636
  %v701 = vunpack.c.l.b16 %v637
  %v702 = vunpack.c.l.b16 %v638
  %v703 = vunpack.c.l.b16 %v639
  %v704 = vunpack.c.l.b16 %v640
  %v705 = vunpack.c.l.b16 %v641
  %v706 = vunpack.c.l.b16 %v642
  %v707 = vunpack.c.l.b16 %v643
  %v708 = vpack.c.b16 %v677, %v676
  %v709 = vpack.c.b16 %v679, %v678
  %v710 = vpack.c.b16 %v681, %v680
  %v711 = vpack.c.b16 %v683, %v682
  %v712 = vpack.c.b16 %v685, %v684
  %v713 = vpack.c.b16 %v687, %v686
  %v714 = vpack.c.b16 %v689, %v688
  %v715 = vpack.c.b16 %v691, %v690
  %v716 = vpack.c.b16 %v693, %v692
  %v717 = vpack.c.b16 %v695, %v694
  %v718 = vpack.c.b16 %v697, %v696
  %v719 = vpack.c.b16 %v699, %v698
  %v720 = vpack.c.b16 %v701, %v700
  %v721 = vpack.c.b16 %v703, %v702
  %v722 = vpack.c.b16 %v705, %v704
  %v723 = vpack.c.b16 %v707, %v706
  %740 = vmatprep.subr.bf16.mxu0 0
  %741 = vmatpush1.bf16.msra.mxu0 %v715
  %742 = vmatprep.subr.bf16.mxu0 0
  %743 = vmatpush1.bf16.msra.mxu0 %v714
  %744 = vmatprep.subr.bf16.mxu0 0
  %745 = vmatpush1.bf16.msra.mxu0 %v713
  %746 = vmatprep.subr.bf16.mxu0 0
  %747 = vmatpush1.bf16.msra.mxu0 %v712
  %748 = vmatprep.subr.bf16.mxu0 0
  %749 = vmatpush1.bf16.msra.mxu0 %v711
  %750 = vmatprep.subr.bf16.mxu0 0
  %751 = vmatpush1.bf16.msra.mxu0 %v710
  %752 = vmatprep.subr.bf16.mxu0 0
  %753 = vmatpush1.bf16.msra.mxu0 %v709
  %754 = vmatprep.subr.bf16.mxu0 0
  %755 = vmatpush1.bf16.msra.mxu0 %v708
  %756 = vmatprep.subr.bf16.mxu0 0
  %757 = vmatpush2.bf16.msra.mxu0 %v723
  %758 = vmatprep.subr.bf16.mxu0 0
  %759 = vmatpush2.bf16.msra.mxu0 %v722
  %760 = vmatprep.subr.bf16.mxu0 0
  %761 = vmatpush2.bf16.msra.mxu0 %v721
  %762 = vmatprep.subr.bf16.mxu0 0
  %763 = vmatpush2.bf16.msra.mxu0 %v720
  %764 = vmatprep.subr.bf16.mxu0 0
  %765 = vmatpush2.bf16.msra.mxu0 %v719
  %766 = vmatprep.subr.bf16.mxu0 0
  %767 = vmatpush2.bf16.msra.mxu0 %v718
  %768 = vmatprep.subr.bf16.mxu0 0
  %769 = vmatpush2.bf16.msra.mxu0 %v717
  %770 = vmatprep.subr.bf16.mxu0 0
  %771 = vmatpush2.bf16.msra.mxu0 %v716
  %772 = vmatprep.mubr.bf16.mxu0 %v607
  %773 = vmatmul.mubr.bf16.gmra.mxu0 %v606
  %v774 = vpop.f32.mrf.mxu0
  %v775 = vadd.f32 0.0, %v774
  %v776 = vpop.f32.mrf.mxu0
  %v777 = vpop.f32.mrf.mxu0
  %v778 = vadd.f32 0.0, %v777
  %v779 = vpop.f32.mrf.mxu0
  %780 = vmatprep.mubr.bf16.mxu0 %v609
  %781 = vmatmul.mubr.bf16.gmra.mxu0 %v608
  %v782 = vpop.f32.mrf.mxu0
  %v783 = vadd.f32 0.0, %v782
  %v784 = vpop.f32.mrf.mxu0
  %v785 = vpop.f32.mrf.mxu0
  %v786 = vadd.f32 0.0, %v785
  %v787 = vpop.f32.mrf.mxu0
  %788 = vmatprep.mubr.bf16.mxu0 %v611
  %789 = vmatmul.mubr.bf16.gmra.mxu0 %v610
  %v790 = vpop.f32.mrf.mxu0
  %v791 = vadd.f32 0.0, %v790
  %v792 = vpop.f32.mrf.mxu0
  %v793 = vpop.f32.mrf.mxu0
  %v794 = vpop.f32.mrf.mxu0
  %795 = vdwg.mxu0
  %v796 = vld [vmem:[%s1] sm:$0xff]
  %v797 = vld [vmem:[%s2] sm:$0xff]
  %v798 = vld [vmem:[%s2 + $0x8] sm:$0xff]
  %v799 = vld [vmem:[%s2 + $0x10] sm:$0xff]
  %v800 = vld [vmem:[%s2 + $0x18] sm:$0xff]
  %v801 = vld [vmem:[%s2 + $0x20] sm:$0xff]
  %v802 = vld [vmem:[%s2 + $0x28] sm:$0xff]
  %v803 = vld [vmem:[%s2 + $0x30] sm:$0xff]
  %v804 = vld [vmem:[%s2 + $0x38] sm:$0xff]
  %v805 = vld [vmem:[%s2 + $0x40] sm:$0xff]
  %v806 = vld [vmem:[%s2 + $0x48] sm:$0xff]
  %v807 = vld [vmem:[%s2 + $0x50] sm:$0xff]
  %v808 = vld [vmem:[%s2 + $0x58] sm:$0xff]
  %v809 = vld [vmem:[%s2 + $0x60] sm:$0xff]
  %v810 = vld [vmem:[%s2 + $0x68] sm:$0xff]
  %v811 = vld [vmem:[%s2 + $0x70] sm:$0xff]
  %v812 = vld [vmem:[%s2 + $0x78] sm:$0xff]
  %vm813 = vcmp.gt.s32.totalorder %v796, 0
  %v814 = vpack.c.bf16 %v547, %v547
  %v815 = vld [vmem:[%s12] sm:$0xff]
  %v816 = vld [vmem:[%s12 + $0x8] sm:$0xff]
  %v817 = vld [vmem:[%s12 + $0x10] sm:$0xff]
  %v818 = vld [vmem:[%s12 + $0x18] sm:$0xff]
  %v819 = vld [vmem:[%s12 + $0x20] sm:$0xff]
  %v820 = vld [vmem:[%s12 + $0x28] sm:$0xff]
  %v821 = vld [vmem:[%s12 + $0x30] sm:$0xff]
  %v822 = vld [vmem:[%s12 + $0x38] sm:$0xff]
  %v823 = vld [vmem:[%s12 + $0x40] sm:$0xff]
  %v824 = vld [vmem:[%s12 + $0x48] sm:$0xff]
  %v825 = vld [vmem:[%s12 + $0x50] sm:$0xff]
  %v826 = vld [vmem:[%s12 + $0x58] sm:$0xff]
  %v827 = vld [vmem:[%s12 + $0x60] sm:$0xff]
  %v828 = vld [vmem:[%s12 + $0x68] sm:$0xff]
  %v829 = vld [vmem:[%s12 + $0x70] sm:$0xff]
  %v830 = vld [vmem:[%s12 + $0x78] sm:$0xff]
  %v831 = vld [vmem:[%s12 + $0x80] sm:$0xff]
  %v832 = vld [vmem:[%s12 + $0x88] sm:$0xff]
  %v833 = vld [vmem:[%s12 + $0x90] sm:$0xff]
  %v834 = vld [vmem:[%s12 + $0x98] sm:$0xff]
  %v835 = vld [vmem:[%s12 + $0xa0] sm:$0xff]
  %v836 = vld [vmem:[%s12 + $0xa8] sm:$0xff]
  %v837 = vld [vmem:[%s12 + $0xb0] sm:$0xff]
  %v838 = vld [vmem:[%s12 + $0xb8] sm:$0xff]
  %v839 = vld [vmem:[%s12 + $0xc0] sm:$0xff]
  %v840 = vld [vmem:[%s12 + $0xc8] sm:$0xff]
  %v841 = vld [vmem:[%s12 + $0xd0] sm:$0xff]
  %v842 = vld [vmem:[%s12 + $0xd8] sm:$0xff]
  %v843 = vld [vmem:[%s12 + $0xe0] sm:$0xff]
  %v844 = vld [vmem:[%s12 + $0xe8] sm:$0xff]
  %v845 = vld [vmem:[%s12 + $0xf0] sm:$0xff]
  %v846 = vld [vmem:[%s12 + $0xf8] sm:$0xff]
  %v847 = vld [vmem:[%s12 + $0x100] sm:$0xff]
  %v848 = vld [vmem:[%s12 + $0x108] sm:$0xff]
  %v849 = vld [vmem:[%s12 + $0x110] sm:$0xff]
  %v850 = vld [vmem:[%s12 + $0x118] sm:$0xff]
  %v851 = vld [vmem:[%s12 + $0x120] sm:$0xff]
  %v852 = vld [vmem:[%s12 + $0x128] sm:$0xff]
  %v853 = vld [vmem:[%s12 + $0x130] sm:$0xff]
  %v854 = vld [vmem:[%s12 + $0x138] sm:$0xff]
  %v855 = vld [vmem:[%s12 + $0x140] sm:$0xff]
  %v856 = vld [vmem:[%s12 + $0x148] sm:$0xff]
  %v857 = vld [vmem:[%s12 + $0x150] sm:$0xff]
  %v858 = vld [vmem:[%s12 + $0x158] sm:$0xff]
  %v859 = vld [vmem:[%s12 + $0x160] sm:$0xff]
  %v860 = vld [vmem:[%s12 + $0x168] sm:$0xff]
  %v861 = vld [vmem:[%s12 + $0x170] sm:$0xff]
  %v862 = vld [vmem:[%s12 + $0x178] sm:$0xff]
  %v863 = vld [vmem:[%s13] sm:$0xff]
  %v864 = vld [vmem:[%s13 + $0x8] sm:$0xff]
  %v865 = vld [vmem:[%s13 + $0x10] sm:$0xff]
  %v866 = vld [vmem:[%s13 + $0x18] sm:$0xff]
  %v867 = vld [vmem:[%s13 + $0x20] sm:$0xff]
  %v868 = vld [vmem:[%s13 + $0x28] sm:$0xff]
  %v917 = vunpack.c.l.b16 %v815
  %v918 = vunpack.c.h.b16 %v815
  %v919 = vunpack.c.l.b16 %v816
  %v920 = vunpack.c.h.b16 %v816
  %v921 = vunpack.c.l.b16 %v817
  %v922 = vunpack.c.h.b16 %v817
  %v923 = vunpack.c.l.b16 %v818
  %v924 = vunpack.c.h.b16 %v818
  %v925 = vunpack.c.l.b16 %v819
  %v926 = vunpack.c.h.b16 %v819
  %v927 = vunpack.c.l.b16 %v820
  %v928 = vunpack.c.h.b16 %v820
  %v929 = vunpack.c.l.b16 %v821
  %v930 = vunpack.c.h.b16 %v821
  %v931 = vunpack.c.l.b16 %v822
  %v932 = vunpack.c.h.b16 %v822
  %v933 = vunpack.c.l.b16 %v823
  %v934 = vunpack.c.h.b16 %v823
  %v935 = vunpack.c.l.b16 %v824
  %v936 = vunpack.c.h.b16 %v824
  %v937 = vunpack.c.l.b16 %v825
  %v938 = vunpack.c.h.b16 %v825
  %v939 = vunpack.c.l.b16 %v826
  %v940 = vunpack.c.h.b16 %v826
  %v941 = vunpack.c.l.b16 %v827
  %v942 = vunpack.c.h.b16 %v827
  %v943 = vunpack.c.l.b16 %v828
  %v944 = vunpack.c.h.b16 %v828
  %v945 = vunpack.c.l.b16 %v829
  %v946 = vunpack.c.h.b16 %v829
  %v947 = vunpack.c.l.b16 %v830
  %v948 = vunpack.c.h.b16 %v830
  %v949 = vunpack.c.l.b16 %v831
  %v950 = vunpack.c.h.b16 %v831
  %v951 = vunpack.c.l.b16 %v832
  %v952 = vunpack.c.h.b16 %v832
  %v953 = vunpack.c.l.b16 %v833
  %v954 = vunpack.c.h.b16 %v833
  %v955 = vunpack.c.l.b16 %v834
  %v956 = vunpack.c.h.b16 %v834
  %v957 = vunpack.c.l.b16 %v835
  %v958 = vunpack.c.h.b16 %v835
  %v959 = vunpack.c.l.b16 %v836
  %v960 = vunpack.c.h.b16 %v836
  %v961 = vunpack.c.l.b16 %v837
  %v962 = vunpack.c.h.b16 %v837
  %v963 = vunpack.c.l.b16 %v838
  %v964 = vunpack.c.h.b16 %v838
  %v965 = vunpack.c.l.b16 %v839
  %v966 = vunpack.c.h.b16 %v839
  %v967 = vunpack.c.l.b16 %v840
  %v968 = vunpack.c.h.b16 %v840
  %v969 = vunpack.c.l.b16 %v841
  %v970 = vunpack.c.h.b16 %v841
  %v971 = vunpack.c.l.b16 %v842
  %v972 = vunpack.c.h.b16 %v842
  %v973 = vunpack.c.l.b16 %v843
  %v974 = vunpack.c.h.b16 %v843
  %v975 = vunpack.c.l.b16 %v844
  %v976 = vunpack.c.h.b16 %v844
  %v977 = vunpack.c.l.b16 %v845
  %v978 = vunpack.c.h.b16 %v845
  %v979 = vunpack.c.l.b16 %v846
  %v980 = vunpack.c.h.b16 %v846
  %v981 = vunpack.c.l.b16 %v847
  %v982 = vunpack.c.h.b16 %v847
  %v983 = vunpack.c.l.b16 %v848
  %v984 = vunpack.c.h.b16 %v848
  %v985 = vunpack.c.l.b16 %v849
  %v986 = vunpack.c.h.b16 %v849
  %v987 = vunpack.c.l.b16 %v850
  %v988 = vunpack.c.h.b16 %v850
  %v989 = vunpack.c.l.b16 %v851
  %v990 = vunpack.c.h.b16 %v851
  %v991 = vunpack.c.l.b16 %v852
  %v992 = vunpack.c.h.b16 %v852
  %v993 = vunpack.c.l.b16 %v853
  %v994 = vunpack.c.h.b16 %v853
  %v995 = vunpack.c.l.b16 %v854
  %v996 = vunpack.c.h.b16 %v854
  %v997 = vunpack.c.l.b16 %v855
  %v998 = vunpack.c.h.b16 %v855
  %v999 = vunpack.c.l.b16 %v856
  %v1000 = vunpack.c.h.b16 %v856
  %v1001 = vunpack.c.l.b16 %v857
  %v1002 = vunpack.c.h.b16 %v857
  %v1003 = vunpack.c.l.b16 %v858
  %v1004 = vunpack.c.h.b16 %v858
  %v1005 = vunpack.c.l.b16 %v859
  %v1006 = vunpack.c.h.b16 %v859
  %v1007 = vunpack.c.l.b16 %v860
  %v1008 = vunpack.c.h.b16 %v860
  %v1009 = vunpack.c.l.b16 %v861
  %v1010 = vunpack.c.h.b16 %v861
  %v1011 = vunpack.c.l.b16 %v862
  %v1012 = vunpack.c.h.b16 %v862
  %v1013 = vpack.c.b16 %v923, %v917
  %v1014 = vpack.c.b16 %v924, %v918
  %v1015 = vpack.c.b16 %v925, %v919
  %v1016 = vpack.c.b16 %v926, %v920
  %v1017 = vpack.c.b16 %v927, %v921
  %v1018 = vpack.c.b16 %v928, %v922
  %v1019 = vpack.c.b16 %v935, %v929
  %v1020 = vpack.c.b16 %v936, %v930
  %v1021 = vpack.c.b16 %v937, %v931
  %v1022 = vpack.c.b16 %v938, %v932
  %v1023 = vpack.c.b16 %v939, %v933
  %v1024 = vpack.c.b16 %v940, %v934
  %v1025 = vpack.c.b16 %v947, %v941
  %v1026 = vpack.c.b16 %v948, %v942
  %v1027 = vpack.c.b16 %v949, %v943
  %v1028 = vpack.c.b16 %v950, %v944
  %v1029 = vpack.c.b16 %v951, %v945
  %v1030 = vpack.c.b16 %v952, %v946
  %v1031 = vpack.c.b16 %v959, %v953
  %v1032 = vpack.c.b16 %v960, %v954
  %v1033 = vpack.c.b16 %v961, %v955
  %v1034 = vpack.c.b16 %v962, %v956
  %v1035 = vpack.c.b16 %v963, %v957
  %v1036 = vpack.c.b16 %v964, %v958
  %v1037 = vpack.c.b16 %v971, %v965
  %v1038 = vpack.c.b16 %v972, %v966
  %v1039 = vpack.c.b16 %v973, %v967
  %v1040 = vpack.c.b16 %v974, %v968
  %v1041 = vpack.c.b16 %v975, %v969
  %v1042 = vpack.c.b16 %v976, %v970
  %v1043 = vpack.c.b16 %v983, %v977
  %v1044 = vpack.c.b16 %v984, %v978
  %v1045 = vpack.c.b16 %v985, %v979
  %v1046 = vpack.c.b16 %v986, %v980
  %v1047 = vpack.c.b16 %v987, %v981
  %v1048 = vpack.c.b16 %v988, %v982
  %v1049 = vpack.c.b16 %v995, %v989
  %v1050 = vpack.c.b16 %v996, %v990
  %v1051 = vpack.c.b16 %v997, %v991
  %v1052 = vpack.c.b16 %v998, %v992
  %v1053 = vpack.c.b16 %v999, %v993
  %v1054 = vpack.c.b16 %v1000, %v994
  %v1055 = vpack.c.b16 %v1007, %v1001
  %v1056 = vpack.c.b16 %v1008, %v1002
  %v1057 = vpack.c.b16 %v1009, %v1003
  %v1058 = vpack.c.b16 %v1010, %v1004
  %v1059 = vpack.c.b16 %v1011, %v1005
  %v1060 = vpack.c.b16 %v1012, %v1006
  %1109 = vmatprep.subr.bf16.mxu0 %v1056
  %1110 = vmatpush1.bf16.msra.mxu0 %v1055
  %1111 = vmatprep.subr.bf16.mxu0 %v1050
  %1112 = vmatpush1.bf16.msra.mxu0 %v1049
  %1113 = vmatprep.subr.bf16.mxu0 %v1044
  %1114 = vmatpush1.bf16.msra.mxu0 %v1043
  %1115 = vmatprep.subr.bf16.mxu0 %v1038
  %1116 = vmatpush1.bf16.msra.mxu0 %v1037
  %1117 = vmatprep.subr.bf16.mxu0 %v1032
  %1118 = vmatpush1.bf16.msra.mxu0 %v1031
  %1119 = vmatprep.subr.bf16.mxu0 %v1026
  %1120 = vmatpush1.bf16.msra.mxu0 %v1025
  %1121 = vmatprep.subr.bf16.mxu0 %v1020
  %1122 = vmatpush1.bf16.msra.mxu0 %v1019
  %1123 = vmatprep.subr.bf16.mxu0 %v1014
  %1124 = vmatpush1.bf16.msra.mxu0 %v1013
  %1125 = vmatprep.subr.bf16.mxu0 0
  %1126 = vmatpush2.bf16.msra.mxu0 0
  %1127 = vmatprep.subr.bf16.mxu0 0
  %1128 = vmatpush2.bf16.msra.mxu0 0
  %1129 = vmatprep.subr.bf16.mxu0 0
  %1130 = vmatpush2.bf16.msra.mxu0 0
  %1131 = vmatprep.subr.bf16.mxu0 0
  %1132 = vmatpush2.bf16.msra.mxu0 0
  %1133 = vmatprep.subr.bf16.mxu0 0
  %1134 = vmatpush2.bf16.msra.mxu0 0
  %1135 = vmatprep.subr.bf16.mxu0 0
  %1136 = vmatpush2.bf16.msra.mxu0 0
  %1137 = vmatprep.subr.bf16.mxu0 0
  %1138 = vmatpush2.bf16.msra.mxu0 0
  %1139 = vmatprep.subr.bf16.mxu0 0
  %1140 = vmatpush2.bf16.msra.mxu0 0
  %1141 = vmatprep.mubr.bf16.mxu0 0
  %1142 = vmatmul.mubr.bf16.gmra.mxu0 %v814
  %v1143 = vpop.f32.mrf.mxu0
  %v1144 = vadd.f32 %v863, %v1143
  %v1145 = vpop.f32.mrf.mxu0
  %v1146 = vadd.f32 %v864, %v1145
  %v1147 = vpop.f32.mrf.mxu0
  %v1148 = vpop.f32.mrf.mxu0
  %1149 = vdwg.mxu0
  %1150 = vmatprep.subr.bf16.mxu0 %v1058
  %1151 = vmatpush1.bf16.msra.mxu0 %v1057
  %1152 = vmatprep.subr.bf16.mxu0 %v1052
  %1153 = vmatpush1.bf16.msra.mxu0 %v1051
  %1154 = vmatprep.subr.bf16.mxu0 %v1046
  %1155 = vmatpush1.bf16.msra.mxu0 %v1045
  %1156 = vmatprep.subr.bf16.mxu0 %v1040
  %1157 = vmatpush1.bf16.msra.mxu0 %v1039
  %1158 = vmatprep.subr.bf16.mxu0 %v1034
  %1159 = vmatpush1.bf16.msra.mxu0 %v1033
  %1160 = vmatprep.subr.bf16.mxu0 %v1028
  %1161 = vmatpush1.bf16.msra.mxu0 %v1027
  %1162 = vmatprep.subr.bf16.mxu0 %v1022
  %1163 = vmatpush1.bf16.msra.mxu0 %v1021
  %1164 = vmatprep.subr.bf16.mxu0 %v1016
  %1165 = vmatpush1.bf16.msra.mxu0 %v1015
  %1166 = vmatprep.subr.bf16.mxu0 0
  %1167 = vmatpush2.bf16.msra.mxu0 0
  %1168 = vmatprep.subr.bf16.mxu0 0
  %1169 = vmatpush2.bf16.msra.mxu0 0
  %1170 = vmatprep.subr.bf16.mxu0 0
  %1171 = vmatpush2.bf16.msra.mxu0 0
  %1172 = vmatprep.subr.bf16.mxu0 0
  %1173 = vmatpush2.bf16.msra.mxu0 0
  %1174 = vmatprep.subr.bf16.mxu0 0
  %1175 = vmatpush2.bf16.msra.mxu0 0
  %1176 = vmatprep.subr.bf16.mxu0 0
  %1177 = vmatpush2.bf16.msra.mxu0 0
  %1178 = vmatprep.subr.bf16.mxu0 0
  %1179 = vmatpush2.bf16.msra.mxu0 0
  %1180 = vmatprep.subr.bf16.mxu0 0
  %1181 = vmatpush2.bf16.msra.mxu0 0
  %1182 = vmatprep.mubr.bf16.mxu0 0
  %1183 = vmatmul.mubr.bf16.gmra.mxu0 %v814
  %v1184 = vpop.f32.mrf.mxu0
  %v1185 = vadd.f32 %v865, %v1184
  %v1186 = vpop.f32.mrf.mxu0
  %v1187 = vadd.f32 %v866, %v1186
  %v1188 = vpop.f32.mrf.mxu0
  %v1189 = vpop.f32.mrf.mxu0
  %1190 = vdwg.mxu0
  %1191 = vmatprep.subr.bf16.mxu0 %v1060
  %1192 = vmatpush1.bf16.msra.mxu0 %v1059
  %1193 = vmatprep.subr.bf16.mxu0 %v1054
  %1194 = vmatpush1.bf16.msra.mxu0 %v1053
  %1195 = vmatprep.subr.bf16.mxu0 %v1048
  %1196 = vmatpush1.bf16.msra.mxu0 %v1047
  %1197 = vmatprep.subr.bf16.mxu0 %v1042
  %1198 = vmatpush1.bf16.msra.mxu0 %v1041
  %1199 = vmatprep.subr.bf16.mxu0 %v1036
  %1200 = vmatpush1.bf16.msra.mxu0 %v1035
  %1201 = vmatprep.subr.bf16.mxu0 %v1030
  %1202 = vmatpush1.bf16.msra.mxu0 %v1029
  %1203 = vmatprep.subr.bf16.mxu0 %v1024
  %1204 = vmatpush1.bf16.msra.mxu0 %v1023
  %1205 = vmatprep.subr.bf16.mxu0 %v1018
  %1206 = vmatpush1.bf16.msra.mxu0 %v1017
  %1207 = vmatprep.subr.bf16.mxu0 0
  %1208 = vmatpush2.bf16.msra.mxu0 0
  %1209 = vmatprep.subr.bf16.mxu0 0
  %1210 = vmatpush2.bf16.msra.mxu0 0
  %1211 = vmatprep.subr.bf16.mxu0 0
  %1212 = vmatpush2.bf16.msra.mxu0 0
  %1213 = vmatprep.subr.bf16.mxu0 0
  %1214 = vmatpush2.bf16.msra.mxu0 0
  %1215 = vmatprep.subr.bf16.mxu0 0
  %1216 = vmatpush2.bf16.msra.mxu0 0
  %1217 = vmatprep.subr.bf16.mxu0 0
  %1218 = vmatpush2.bf16.msra.mxu0 0
  %1219 = vmatprep.subr.bf16.mxu0 0
  %1220 = vmatpush2.bf16.msra.mxu0 0
  %1221 = vmatprep.subr.bf16.mxu0 0
  %1222 = vmatpush2.bf16.msra.mxu0 0
  %1223 = vmatprep.mubr.bf16.mxu0 0
  %1224 = vmatmul.mubr.bf16.gmra.mxu0 %v814
  %v1225 = vpop.f32.mrf.mxu0
  %v1226 = vadd.f32 %v867, %v1225
  %v1227 = vpop.f32.mrf.mxu0
  %v1228 = vadd.f32 %v868, %v1227
  %v1229 = vpop.f32.mrf.mxu0
  %v1230 = vpop.f32.mrf.mxu0
  %1231 = vdwg.mxu0
  %v1232 = vxor.u32 %v1146, 2147483648
  %v1233 = vmul.f32 %v1232, 1.442695
  %v1234 = vpow.pop %v1233
  %v1235 = vadd.f32 %v1234, 1.0
  %v1236 = vrcp.pop %v1235
  %v1237 = vmul.f32 1.0, %v1236
  %v1238 = vld [vmem:[%s5] sm:$0xf]
  %v1239 = vld [vmem:[%s5 + $0x4] sm:$0xf]
  %v1240 = vld [vmem:[%s5 + $0x8] sm:$0xf]
  %v1241 = vld [vmem:[%s5 + $0xc] sm:$0xf]
  %v1242 = vld [vmem:[%s5 + $0x10] sm:$0xf]
  %v1243 = vld [vmem:[%s5 + $0x14] sm:$0xf]
  %v1244 = vld [vmem:[%s5 + $0x18] sm:$0xf]
  %v1245 = vld [vmem:[%s5 + $0x1c] sm:$0xf]
  %v1246 = vld [vmem:[%s5 + $0x20] sm:$0xf]
  %v1247 = vld [vmem:[%s5 + $0x24] sm:$0xf]
  %v1248 = vld [vmem:[%s5 + $0x28] sm:$0xf]
  %v1249 = vld [vmem:[%s5 + $0x2c] sm:$0xf]
  %v1250 = vld [vmem:[%s5 + $0x30] sm:$0xf]
  %v1251 = vld [vmem:[%s5 + $0x34] sm:$0xf]
  %v1252 = vld [vmem:[%s5 + $0x38] sm:$0xf]
  %v1253 = vld [vmem:[%s5 + $0x3c] sm:$0xf]
  %v1254 = vpack.c.bf16 %v1144, %v1144
  %v1271 = vunpack.c.l.b16 %v1238
  %v1272 = vunpack.c.l.b16 %v1239
  %v1273 = vunpack.c.l.b16 %v1240
  %v1274 = vunpack.c.l.b16 %v1241
  %v1275 = vunpack.c.l.b16 %v1242
  %v1276 = vunpack.c.l.b16 %v1243
  %v1277 = vunpack.c.l.b16 %v1244
  %v1278 = vunpack.c.l.b16 %v1245
  %v1279 = vunpack.c.l.b16 %v1246
  %v1280 = vunpack.c.l.b16 %v1247
  %v1281 = vunpack.c.l.b16 %v1248
  %v1282 = vunpack.c.l.b16 %v1249
  %v1283 = vunpack.c.l.b16 %v1250
  %v1284 = vunpack.c.l.b16 %v1251
  %v1285 = vunpack.c.l.b16 %v1252
  %v1286 = vunpack.c.l.b16 %v1253
  %v1287 = vpack.c.b16 %v1272, %v1271
  %v1288 = vpack.c.b16 %v1274, %v1273
  %v1289 = vpack.c.b16 %v1276, %v1275
  %v1290 = vpack.c.b16 %v1278, %v1277
  %v1291 = vpack.c.b16 %v1280, %v1279
  %v1292 = vpack.c.b16 %v1282, %v1281
  %v1293 = vpack.c.b16 %v1284, %v1283
  %v1294 = vpack.c.b16 %v1286, %v1285
  %vm1295 = vcmask 64512
  %v1297 = vsel %vm1295, %v1287, 0
  %v1300 = vsel %vm1295, %v1288, 0
  %v1303 = vsel %vm1295, %v1289, 0
  %v1306 = vsel %vm1295, %v1290, 0
  %v1309 = vsel %vm1295, %v1291, 0
  %v1312 = vsel %vm1295, %v1292, 0
  %v1315 = vsel %vm1295, %v1293, 0
  %v1318 = vsel %vm1295, %v1294, 0
  %vm1320 = vcmask 1043456
  %v1322 = vsel %vm1320, %v1254, 0
  %1324 = vmatprep.subr.bf16.mxu0 0
  %1325 = vmatpush1.bf16.msra.mxu0 0
  %1326 = vmatprep.subr.bf16.mxu0 0
  %1327 = vmatpush1.bf16.msra.mxu0 0
  %1328 = vmatprep.subr.bf16.mxu0 0
  %1329 = vmatpush1.bf16.msra.mxu0 0
  %1330 = vmatprep.subr.bf16.mxu0 0
  %1331 = vmatpush1.bf16.msra.mxu0 0
  %1332 = vmatprep.subr.bf16.mxu0 0
  %1333 = vmatpush1.bf16.msra.mxu0 0
  %1334 = vmatprep.subr.bf16.mxu0 0
  %1335 = vmatpush1.bf16.msra.mxu0 0
  %1336 = vmatprep.subr.bf16.mxu0 0
  %1337 = vmatpush1.bf16.msra.mxu0 0
  %1338 = vmatprep.subr.bf16.mxu0 0
  %1339 = vmatpush1.bf16.msra.mxu0 %v1322
  %1340 = vmatprep.subr.bf16.mxu0 0
  %1341 = vmatpush2.bf16.msra.mxu0 0
  %1342 = vmatprep.subr.bf16.mxu0 0
  %1343 = vmatpush2.bf16.msra.mxu0 0
  %1344 = vmatprep.subr.bf16.mxu0 0
  %1345 = vmatpush2.bf16.msra.mxu0 0
  %1346 = vmatprep.subr.bf16.mxu0 0
  %1347 = vmatpush2.bf16.msra.mxu0 0
  %1348 = vmatprep.subr.bf16.mxu0 0
  %1349 = vmatpush2.bf16.msra.mxu0 0
  %1350 = vmatprep.subr.bf16.mxu0 0
  %1351 = vmatpush2.bf16.msra.mxu0 0
  %1352 = vmatprep.subr.bf16.mxu0 0
  %1353 = vmatpush2.bf16.msra.mxu0 0
  %1354 = vmatprep.subr.bf16.mxu0 0
  %1355 = vmatpush2.bf16.msra.mxu0 0
  %1356 = vmatprep.mubr.bf16.mxu0 0
  %1357 = vmatmul.mubr.bf16.gmra.mxu0 %v1297
  %v1358 = vpop.f32.mrf.mxu0
  %v1359 = vadd.f32 0.0, %v1358
  %v1360 = vpop.f32.mrf.mxu0
  %v1361 = vpop.f32.mrf.mxu0
  %v1362 = vadd.f32 0.0, %v1361
  %v1363 = vpop.f32.mrf.mxu0
  %1364 = vmatprep.mubr.bf16.mxu0 0
  %1365 = vmatmul.mubr.bf16.gmra.mxu0 %v1300
  %v1366 = vpop.f32.mrf.mxu0
  %v1367 = vadd.f32 0.0, %v1366
  %v1368 = vpop.f32.mrf.mxu0
  %v1369 = vpop.f32.mrf.mxu0
  %v1370 = vadd.f32 0.0, %v1369
  %v1371 = vpop.f32.mrf.mxu0
  %1372 = vmatprep.mubr.bf16.mxu0 0
  %1373 = vmatmul.mubr.bf16.gmra.mxu0 %v1303
  %v1374 = vpop.f32.mrf.mxu0
  %v1375 = vadd.f32 0.0, %v1374
  %v1376 = vpop.f32.mrf.mxu0
  %v1377 = vpop.f32.mrf.mxu0
  %v1378 = vadd.f32 0.0, %v1377
  %v1379 = vpop.f32.mrf.mxu0
  %1380 = vmatprep.mubr.bf16.mxu0 0
  %1381 = vmatmul.mubr.bf16.gmra.mxu0 %v1306
  %v1382 = vpop.f32.mrf.mxu0
  %v1383 = vadd.f32 0.0, %v1382
  %v1384 = vpop.f32.mrf.mxu0
  %v1385 = vpop.f32.mrf.mxu0
  %v1386 = vadd.f32 0.0, %v1385
  %v1387 = vpop.f32.mrf.mxu0
  %1388 = vmatprep.mubr.bf16.mxu0 0
  %1389 = vmatmul.mubr.bf16.gmra.mxu0 %v1309
  %v1390 = vpop.f32.mrf.mxu0
  %v1391 = vadd.f32 0.0, %v1390
  %v1392 = vpop.f32.mrf.mxu0
  %v1393 = vpop.f32.mrf.mxu0
  %v1394 = vadd.f32 0.0, %v1393
  %v1395 = vpop.f32.mrf.mxu0
  %1396 = vmatprep.mubr.bf16.mxu0 0
  %1397 = vmatmul.mubr.bf16.gmra.mxu0 %v1312
  %v1398 = vpop.f32.mrf.mxu0
  %v1399 = vadd.f32 0.0, %v1398
  %v1400 = vpop.f32.mrf.mxu0
  %v1401 = vpop.f32.mrf.mxu0
  %v1402 = vadd.f32 0.0, %v1401
  %v1403 = vpop.f32.mrf.mxu0
  %1404 = vmatprep.mubr.bf16.mxu0 0
  %1405 = vmatmul.mubr.bf16.gmra.mxu0 %v1315
  %v1406 = vpop.f32.mrf.mxu0
  %v1407 = vadd.f32 0.0, %v1406
  %v1408 = vpop.f32.mrf.mxu0
  %v1409 = vpop.f32.mrf.mxu0
  %v1410 = vadd.f32 0.0, %v1409
  %v1411 = vpop.f32.mrf.mxu0
  %1412 = vmatprep.mubr.bf16.mxu0 0
  %1413 = vmatmul.mubr.bf16.gmra.mxu0 %v1318
  %v1414 = vpop.f32.mrf.mxu0
  %v1415 = vadd.f32 0.0, %v1414
  %v1416 = vpop.f32.mrf.mxu0
  %v1417 = vpop.f32.mrf.mxu0
  %v1418 = vadd.f32 0.0, %v1417
  %v1419 = vpop.f32.mrf.mxu0
  %1420 = vdwg.mxu0
  %v1421 = vld [vmem:[#allocation2] sm:$0xff]
  %v1422 = vld [vmem:[#allocation2 + $0x8] sm:$0xff]
  %v1423 = vld [vmem:[#allocation2 + $0x10] sm:$0xff]
  %v1424 = vld [vmem:[#allocation2 + $0x18] sm:$0xff]
  %v1425 = vld [vmem:[#allocation2 + $0x20] sm:$0xff]
  %v1426 = vld [vmem:[#allocation2 + $0x28] sm:$0xff]
  %v1427 = vld [vmem:[#allocation2 + $0x30] sm:$0xff]
  %v1428 = vld [vmem:[#allocation2 + $0x38] sm:$0xff]
  %v1429 = vld [vmem:[#allocation2 + $0x40] sm:$0xff]
  %v1430 = vld [vmem:[#allocation2 + $0x48] sm:$0xff]
  %v1431 = vld [vmem:[#allocation2 + $0x50] sm:$0xff]
  %v1432 = vld [vmem:[#allocation2 + $0x58] sm:$0xff]
  %v1433 = vld [vmem:[#allocation2 + $0x60] sm:$0xff]
  %v1434 = vld [vmem:[#allocation2 + $0x68] sm:$0xff]
  %v1435 = vld [vmem:[#allocation2 + $0x70] sm:$0xff]
  %v1436 = vld [vmem:[#allocation2 + $0x78] sm:$0xff]
  %v1437 = vadd.f32 %v1421, %v1359
  %v1438 = vadd.f32 %v1422, %v1362
  %v1439 = vadd.f32 %v1423, %v1367
  %v1440 = vadd.f32 %v1424, %v1370
  %v1441 = vadd.f32 %v1425, %v1375
  %v1442 = vadd.f32 %v1426, %v1378
  %v1443 = vadd.f32 %v1427, %v1383
  %v1444 = vadd.f32 %v1428, %v1386
  %v1445 = vadd.f32 %v1429, %v1391
  %v1446 = vadd.f32 %v1430, %v1394
  %v1447 = vadd.f32 %v1431, %v1399
  %v1448 = vadd.f32 %v1432, %v1402
  %v1449 = vadd.f32 %v1433, %v1407
  %v1450 = vadd.f32 %v1434, %v1410
  %v1451 = vadd.f32 %v1435, %v1415
  %v1452 = vadd.f32 %v1436, %v1418
  %v1453 = vmax.f32 %v1437, 0.0
  %v1454 = vmax.f32 %v1438, 0.0
  %v1455 = vmax.f32 %v1439, 0.0
  %v1456 = vmax.f32 %v1440, 0.0
  %v1457 = vmax.f32 %v1441, 0.0
  %v1458 = vmax.f32 %v1442, 0.0
  %v1459 = vmax.f32 %v1443, 0.0
  %v1460 = vmax.f32 %v1444, 0.0
  %v1461 = vmax.f32 %v1445, 0.0
  %v1462 = vmax.f32 %v1446, 0.0
  %v1463 = vmax.f32 %v1447, 0.0
  %v1464 = vmax.f32 %v1448, 0.0
  %v1465 = vmax.f32 %v1449, 0.0
  %v1466 = vmax.f32 %v1450, 0.0
  %v1467 = vmax.f32 %v1451, 0.0
  %v1468 = vmax.f32 %v1452, 0.0
  %v1469 = vld [vmem:[%s9] sm:$0xff]
  %v1470 = vld [vmem:[%s9 + $0x8] sm:$0xff]
  %v1471 = vld [vmem:[%s9 + $0x10] sm:$0xff]
  %v1472 = vld [vmem:[%s9 + $0x18] sm:$0xff]
  %v1473 = vld [vmem:[%s9 + $0x20] sm:$0xff]
  %v1474 = vld [vmem:[%s9 + $0x28] sm:$0xff]
  %v1475 = vld [vmem:[%s9 + $0x30] sm:$0xff]
  %v1476 = vld [vmem:[%s9 + $0x38] sm:$0xff]
  %v1477 = vld [vmem:[%s9 + $0x40] sm:$0xff]
  %v1478 = vld [vmem:[%s9 + $0x48] sm:$0xff]
  %v1479 = vld [vmem:[%s9 + $0x50] sm:$0xff]
  %v1480 = vld [vmem:[%s9 + $0x58] sm:$0xff]
  %v1481 = vld [vmem:[%s9 + $0x60] sm:$0xff]
  %v1482 = vld [vmem:[%s9 + $0x68] sm:$0xff]
  %v1483 = vld [vmem:[%s9 + $0x70] sm:$0xff]
  %v1484 = vld [vmem:[%s9 + $0x78] sm:$0xff]
  %v1485 = vmul.f32 %v1453, %v1469
  %v1486 = vmul.f32 %v1454, %v1470
  %v1487 = vmul.f32 %v1455, %v1471
  %v1488 = vmul.f32 %v1456, %v1472
  %v1489 = vmul.f32 %v1457, %v1473
  %v1490 = vmul.f32 %v1458, %v1474
  %v1491 = vmul.f32 %v1459, %v1475
  %v1492 = vmul.f32 %v1460, %v1476
  %v1493 = vmul.f32 %v1461, %v1477
  %v1494 = vmul.f32 %v1462, %v1478
  %v1495 = vmul.f32 %v1463, %v1479
  %v1496 = vmul.f32 %v1464, %v1480
  %v1497 = vmul.f32 %v1465, %v1481
  %v1498 = vmul.f32 %v1466, %v1482
  %v1499 = vmul.f32 %v1467, %v1483
  %v1500 = vmul.f32 %v1468, %v1484
  %1501 = vadd.xlane.f32.xlu0 %v1485
  %v1502 = vpop.xlane.xlu0 %1501
  %1503 = vadd.xlane.f32.xlu0 %v1486
  %v1504 = vpop.xlane.xlu0 %1503
  %1505 = vadd.xlane.f32.xlu0 %v1487
  %v1506 = vpop.xlane.xlu0 %1505
  %1507 = vadd.xlane.f32.xlu0 %v1488
  %v1508 = vpop.xlane.xlu0 %1507
  %1509 = vadd.xlane.f32.xlu0 %v1489
  %v1510 = vpop.xlane.xlu0 %1509
  %1511 = vadd.xlane.f32.xlu0 %v1490
  %v1512 = vpop.xlane.xlu0 %1511
  %1513 = vadd.xlane.f32.xlu0 %v1491
  %v1514 = vpop.xlane.xlu0 %1513
  %1515 = vadd.xlane.f32.xlu0 %v1492
  %v1516 = vpop.xlane.xlu0 %1515
  %1517 = vadd.xlane.f32.xlu0 %v1493
  %v1518 = vpop.xlane.xlu0 %1517
  %1519 = vadd.xlane.f32.xlu0 %v1494
  %v1520 = vpop.xlane.xlu0 %1519
  %1521 = vadd.xlane.f32.xlu0 %v1495
  %v1522 = vpop.xlane.xlu0 %1521
  %1523 = vadd.xlane.f32.xlu0 %v1496
  %v1524 = vpop.xlane.xlu0 %1523
  %1525 = vadd.xlane.f32.xlu0 %v1497
  %v1526 = vpop.xlane.xlu0 %1525
  %1527 = vadd.xlane.f32.xlu0 %v1498
  %v1528 = vpop.xlane.xlu0 %1527
  %1529 = vadd.xlane.f32.xlu0 %v1499
  %v1530 = vpop.xlane.xlu0 %1529
  %1531 = vadd.xlane.f32.xlu0 %v1500
  %v1532 = vpop.xlane.xlu0 %1531
  %v1533 = vmax.f32 %v1502, %v1504
  %v1534 = vrot.slane %v1533, 4
  %v1535 = vmax.f32 %v1533, %v1534
  %v1536 = vrot.slane %v1535, 2
  %v1537 = vmax.f32 %v1535, %v1536
  %v1538 = vrot.slane %v1537, 1
  %v1539 = vmax.f32 %v1537, %v1538
  %v1540 = vmax.f32 %v1506, %v1508
  %v1541 = vrot.slane %v1540, 4
  %v1542 = vmax.f32 %v1540, %v1541
  %v1543 = vrot.slane %v1542, 2
  %v1544 = vmax.f32 %v1542, %v1543
  %v1545 = vrot.slane %v1544, 1
  %v1546 = vmax.f32 %v1544, %v1545
  %v1547 = vmax.f32 %v1510, %v1512
  %v1548 = vrot.slane %v1547, 4
  %v1549 = vmax.f32 %v1547, %v1548
  %v1550 = vrot.slane %v1549, 2
  %v1551 = vmax.f32 %v1549, %v1550
  %v1552 = vrot.slane %v1551, 1
  %v1553 = vmax.f32 %v1551, %v1552
  %v1554 = vmax.f32 %v1514, %v1516
  %v1555 = vrot.slane %v1554, 4
  %v1556 = vmax.f32 %v1554, %v1555
  %v1557 = vrot.slane %v1556, 2
  %v1558 = vmax.f32 %v1556, %v1557
  %v1559 = vrot.slane %v1558, 1
  %v1560 = vmax.f32 %v1558, %v1559
  %v1561 = vmax.f32 %v1518, %v1520
  %v1562 = vrot.slane %v1561, 4
  %v1563 = vmax.f32 %v1561, %v1562
  %v1564 = vrot.slane %v1563, 2
  %v1565 = vmax.f32 %v1563, %v1564
  %v1566 = vrot.slane %v1565, 1
  %v1567 = vmax.f32 %v1565, %v1566
  %v1568 = vmax.f32 %v1522, %v1524
  %v1569 = vrot.slane %v1568, 4
  %v1570 = vmax.f32 %v1568, %v1569
  %v1571 = vrot.slane %v1570, 2
  %v1572 = vmax.f32 %v1570, %v1571
  %v1573 = vrot.slane %v1572, 1
  %v1574 = vmax.f32 %v1572, %v1573
  %v1575 = vmax.f32 %v1526, %v1528
  %v1576 = vrot.slane %v1575, 4
  %v1577 = vmax.f32 %v1575, %v1576
  %v1578 = vrot.slane %v1577, 2
  %v1579 = vmax.f32 %v1577, %v1578
  %v1580 = vrot.slane %v1579, 1
  %v1581 = vmax.f32 %v1579, %v1580
  %v1582 = vmax.f32 %v1530, %v1532
  %v1583 = vrot.slane %v1582, 4
  %v1584 = vmax.f32 %v1582, %v1583
  %v1585 = vrot.slane %v1584, 2
  %v1586 = vmax.f32 %v1584, %v1585
  %v1587 = vrot.slane %v1586, 1
  %v1588 = vmax.f32 %v1586, %v1587
  %v1589 = vsub.f32 %v1502, %v1539
  %v1590 = vsub.f32 %v1504, %v1539
  %v1591 = vsub.f32 %v1506, %v1546
  %v1592 = vsub.f32 %v1508, %v1546
  %v1593 = vsub.f32 %v1510, %v1553
  %v1594 = vsub.f32 %v1512, %v1553
  %v1595 = vsub.f32 %v1514, %v1560
  %v1596 = vsub.f32 %v1516, %v1560
  %v1597 = vsub.f32 %v1518, %v1567
  %v1598 = vsub.f32 %v1520, %v1567
  %v1599 = vsub.f32 %v1522, %v1574
  %v1600 = vsub.f32 %v1524, %v1574
  %v1601 = vsub.f32 %v1526, %v1581
  %v1602 = vsub.f32 %v1528, %v1581
  %v1603 = vsub.f32 %v1530, %v1588
  %v1604 = vsub.f32 %v1532, %v1588
  %v1605 = vmul.f32 %v1589, 1.442695
  %v1606 = vpow.pop %v1605
  %v1607 = vmul.f32 %v1590, 1.442695
  %v1608 = vpow.pop %v1607
  %v1609 = vmul.f32 %v1591, 1.442695
  %v1610 = vpow.pop %v1609
  %v1611 = vmul.f32 %v1592, 1.442695
  %v1612 = vpow.pop %v1611
  %v1613 = vmul.f32 %v1593, 1.442695
  %v1614 = vpow.pop %v1613
  %v1615 = vmul.f32 %v1594, 1.442695
  %v1616 = vpow.pop %v1615
  %v1617 = vmul.f32 %v1595, 1.442695
  %v1618 = vpow.pop %v1617
  %v1619 = vmul.f32 %v1596, 1.442695
  %v1620 = vpow.pop %v1619
  %v1621 = vmul.f32 %v1597, 1.442695
  %v1622 = vpow.pop %v1621
  %v1623 = vmul.f32 %v1598, 1.442695
  %v1624 = vpow.pop %v1623
  %v1625 = vmul.f32 %v1599, 1.442695
  %v1626 = vpow.pop %v1625
  %v1627 = vmul.f32 %v1600, 1.442695
  %v1628 = vpow.pop %v1627
  %v1629 = vmul.f32 %v1601, 1.442695
  %v1630 = vpow.pop %v1629
  %v1631 = vmul.f32 %v1602, 1.442695
  %v1632 = vpow.pop %v1631
  %v1633 = vmul.f32 %v1603, 1.442695
  %v1634 = vpow.pop %v1633
  %v1635 = vmul.f32 %v1604, 1.442695
  %v1636 = vpow.pop %v1635
  %v1637 = vadd.f32 %v1606, %v1608
  %v1638 = vrot.slane %v1637, 4
  %v1639 = vadd.f32 %v1637, %v1638
  %v1640 = vrot.slane %v1639, 2
  %v1641 = vadd.f32 %v1639, %v1640
  %v1642 = vrot.slane %v1641, 1
  %v1643 = vadd.f32 %v1641, %v1642
  %v1644 = vadd.f32 %v1610, %v1612
  %v1645 = vrot.slane %v1644, 4
  %v1646 = vadd.f32 %v1644, %v1645
  %v1647 = vrot.slane %v1646, 2
  %v1648 = vadd.f32 %v1646, %v1647
  %v1649 = vrot.slane %v1648, 1
  %v1650 = vadd.f32 %v1648, %v1649
  %v1651 = vadd.f32 %v1614, %v1616
  %v1652 = vrot.slane %v1651, 4
  %v1653 = vadd.f32 %v1651, %v1652
  %v1654 = vrot.slane %v1653, 2
  %v1655 = vadd.f32 %v1653, %v1654
  %v1656 = vrot.slane %v1655, 1
  %v1657 = vadd.f32 %v1655, %v1656
  %v1658 = vadd.f32 %v1618, %v1620
  %v1659 = vrot.slane %v1658, 4
  %v1660 = vadd.f32 %v1658, %v1659
  %v1661 = vrot.slane %v1660, 2
  %v1662 = vadd.f32 %v1660, %v1661
  %v1663 = vrot.slane %v1662, 1
  %v1664 = vadd.f32 %v1662, %v1663
  %v1665 = vadd.f32 %v1622, %v1624
  %v1666 = vrot.slane %v1665, 4
  %v1667 = vadd.f32 %v1665, %v1666
  %v1668 = vrot.slane %v1667, 2
  %v1669 = vadd.f32 %v1667, %v1668
  %v1670 = vrot.slane %v1669, 1
  %v1671 = vadd.f32 %v1669, %v1670
  %v1672 = vadd.f32 %v1626, %v1628
  %v1673 = vrot.slane %v1672, 4
  %v1674 = vadd.f32 %v1672, %v1673
  %v1675 = vrot.slane %v1674, 2
  %v1676 = vadd.f32 %v1674, %v1675
  %v1677 = vrot.slane %v1676, 1
  %v1678 = vadd.f32 %v1676, %v1677
  %v1679 = vadd.f32 %v1630, %v1632
  %v1680 = vrot.slane %v1679, 4
  %v1681 = vadd.f32 %v1679, %v1680
  %v1682 = vrot.slane %v1681, 2
  %v1683 = vadd.f32 %v1681, %v1682
  %v1684 = vrot.slane %v1683, 1
  %v1685 = vadd.f32 %v1683, %v1684
  %v1686 = vadd.f32 %v1634, %v1636
  %v1687 = vrot.slane %v1686, 4
  %v1688 = vadd.f32 %v1686, %v1687
  %v1689 = vrot.slane %v1688, 2
  %v1690 = vadd.f32 %v1688, %v1689
  %v1691 = vrot.slane %v1690, 1
  %v1692 = vadd.f32 %v1690, %v1691
  %v1693 = vrcp.pop %v1643
  %v1694 = vrcp.pop %v1650
  %v1695 = vrcp.pop %v1657
  %v1696 = vrcp.pop %v1664
  %v1697 = vrcp.pop %v1671
  %v1698 = vrcp.pop %v1678
  %v1699 = vrcp.pop %v1685
  %v1700 = vrcp.pop %v1692
  %v1701 = vmul.f32 %v1606, %v1693
  %v1702 = vmul.f32 %v1608, %v1693
  %v1703 = vmul.f32 %v1610, %v1694
  %v1704 = vmul.f32 %v1612, %v1694
  %v1705 = vmul.f32 %v1614, %v1695
  %v1706 = vmul.f32 %v1616, %v1695
  %v1707 = vmul.f32 %v1618, %v1696
  %v1708 = vmul.f32 %v1620, %v1696
  %v1709 = vmul.f32 %v1622, %v1697
  %v1710 = vmul.f32 %v1624, %v1697
  %v1711 = vmul.f32 %v1626, %v1698
  %v1712 = vmul.f32 %v1628, %v1698
  %v1713 = vmul.f32 %v1630, %v1699
  %v1714 = vmul.f32 %v1632, %v1699
  %v1715 = vmul.f32 %v1634, %v1700
  %v1716 = vmul.f32 %v1636, %v1700
  %v1717 = vpack.c.bf16 %v1702, %v1701
  %v1718 = vpack.c.bf16 %v1704, %v1703
  %v1719 = vpack.c.bf16 %v1706, %v1705
  %v1720 = vpack.c.bf16 %v1708, %v1707
  %v1721 = vpack.c.bf16 %v1710, %v1709
  %v1722 = vpack.c.bf16 %v1712, %v1711
  %v1723 = vpack.c.bf16 %v1714, %v1713
  %v1724 = vpack.c.bf16 %v1716, %v1715
  %v1734 = vunpack.c.l.s4 839922192
  %v1735 = vunpack.c.0.s8 %v1734
  %v1736 = vlaneseq
  %v1737 = vshrl.u32 %v1736, 7
  %v1738 = vsub.s32 %v1735, %v1737
  %v1739 = vrot.slane %v1717, %v1738
  %v1741 = vunpack.c.l.s4 1985246804
  %v1742 = vunpack.c.0.s8 %v1741
  %v1743 = vlaneseq
  %v1744 = vshrl.u32 %v1743, 7
  %v1745 = vsub.s32 %v1742, %v1744
  %v1746 = vrot.slane %v1717, %v1745
  %v1748 = vunpack.c.l.s4 839922192
  %v1749 = vunpack.c.0.s8 %v1748
  %v1750 = vlaneseq
  %v1751 = vshrl.u32 %v1750, 7
  %v1752 = vsub.s32 %v1749, %v1751
  %v1753 = vrot.slane %v1718, %v1752
  %v1755 = vunpack.c.l.s4 1985246804
  %v1756 = vunpack.c.0.s8 %v1755
  %v1757 = vlaneseq
  %v1758 = vshrl.u32 %v1757, 7
  %v1759 = vsub.s32 %v1756, %v1758
  %v1760 = vrot.slane %v1718, %v1759
  %v1762 = vunpack.c.l.s4 839922192
  %v1763 = vunpack.c.0.s8 %v1762
  %v1764 = vlaneseq
  %v1765 = vshrl.u32 %v1764, 7
  %v1766 = vsub.s32 %v1763, %v1765
  %v1767 = vrot.slane %v1719, %v1766
  %v1769 = vunpack.c.l.s4 1985246804
  %v1770 = vunpack.c.0.s8 %v1769
  %v1771 = vlaneseq
  %v1772 = vshrl.u32 %v1771, 7
  %v1773 = vsub.s32 %v1770, %v1772
  %v1774 = vrot.slane %v1719, %v1773
  %v1776 = vunpack.c.l.s4 839922192
  %v1777 = vunpack.c.0.s8 %v1776
  %v1778 = vlaneseq
  %v1779 = vshrl.u32 %v1778, 7
  %v1780 = vsub.s32 %v1777, %v1779
  %v1781 = vrot.slane %v1720, %v1780
  %v1783 = vunpack.c.l.s4 1985246804
  %v1784 = vunpack.c.0.s8 %v1783
  %v1785 = vlaneseq
  %v1786 = vshrl.u32 %v1785, 7
  %v1787 = vsub.s32 %v1784, %v1786
  %v1788 = vrot.slane %v1720, %v1787
  %v1790 = vunpack.c.l.s4 839922192
  %v1791 = vunpack.c.0.s8 %v1790
  %v1792 = vlaneseq
  %v1793 = vshrl.u32 %v1792, 7
  %v1794 = vsub.s32 %v1791, %v1793
  %v1795 = vrot.slane %v1721, %v1794
  %v1797 = vunpack.c.l.s4 1985246804
  %v1798 = vunpack.c.0.s8 %v1797
  %v1799 = vlaneseq
  %v1800 = vshrl.u32 %v1799, 7
  %v1801 = vsub.s32 %v1798, %v1800
  %v1802 = vrot.slane %v1721, %v1801
  %v1804 = vunpack.c.l.s4 839922192
  %v1805 = vunpack.c.0.s8 %v1804
  %v1806 = vlaneseq
  %v1807 = vshrl.u32 %v1806, 7
  %v1808 = vsub.s32 %v1805, %v1807
  %v1809 = vrot.slane %v1722, %v1808
  %v1811 = vunpack.c.l.s4 1985246804
  %v1812 = vunpack.c.0.s8 %v1811
  %v1813 = vlaneseq
  %v1814 = vshrl.u32 %v1813, 7
  %v1815 = vsub.s32 %v1812, %v1814
  %v1816 = vrot.slane %v1722, %v1815
  %v1818 = vunpack.c.l.s4 839922192
  %v1819 = vunpack.c.0.s8 %v1818
  %v1820 = vlaneseq
  %v1821 = vshrl.u32 %v1820, 7
  %v1822 = vsub.s32 %v1819, %v1821
  %v1823 = vrot.slane %v1723, %v1822
  %v1825 = vunpack.c.l.s4 1985246804
  %v1826 = vunpack.c.0.s8 %v1825
  %v1827 = vlaneseq
  %v1828 = vshrl.u32 %v1827, 7
  %v1829 = vsub.s32 %v1826, %v1828
  %v1830 = vrot.slane %v1723, %v1829
  %v1832 = vunpack.c.l.s4 839922192
  %v1833 = vunpack.c.0.s8 %v1832
  %v1834 = vlaneseq
  %v1835 = vshrl.u32 %v1834, 7
  %v1836 = vsub.s32 %v1833, %v1835
  %v1837 = vrot.slane %v1724, %v1836
  %v1839 = vunpack.c.l.s4 1985246804
  %v1840 = vunpack.c.0.s8 %v1839
  %v1841 = vlaneseq
  %v1842 = vshrl.u32 %v1841, 7
  %v1843 = vsub.s32 %v1840, %v1842
  %v1844 = vrot.slane %v1724, %v1843
  %v1861 = vmul.bf16 %v308, %v1739
  %v1862 = vmul.bf16 %v309, %v1746
  %v1863 = vmul.bf16 %v310, %v1753
  %v1864 = vmul.bf16 %v311, %v1760
  %v1865 = vmul.bf16 %v312, %v1767
  %v1866 = vmul.bf16 %v313, %v1774
  %v1867 = vmul.bf16 %v314, %v1781
  %v1868 = vmul.bf16 %v315, %v1788
  %v1869 = vmul.bf16 %v316, %v1795
  %v1870 = vmul.bf16 %v317, %v1802
  %v1871 = vmul.bf16 %v318, %v1809
  %v1872 = vmul.bf16 %v319, %v1816
  %v1873 = vmul.bf16 %v320, %v1823
  %v1874 = vmul.bf16 %v321, %v1830
  %v1875 = vmul.bf16 %v322, %v1837
  %v1876 = vmul.bf16 %v323, %v1844
  %v1893 = vunpack.c.l.b16 %v1861
  %v1894 = vunpack.c.l.b16 %v1862
  %v1895 = vunpack.c.l.b16 %v1863
  %v1896 = vunpack.c.l.b16 %v1864
  %v1897 = vunpack.c.l.b16 %v1865
  %v1898 = vunpack.c.l.b16 %v1866
  %v1899 = vunpack.c.l.b16 %v1867
  %v1900 = vunpack.c.l.b16 %v1868
  %v1901 = vunpack.c.l.b16 %v1869
  %v1902 = vunpack.c.l.b16 %v1870
  %v1903 = vunpack.c.l.b16 %v1871
  %v1904 = vunpack.c.l.b16 %v1872
  %v1905 = vunpack.c.l.b16 %v1873
  %v1906 = vunpack.c.l.b16 %v1874
  %v1907 = vunpack.c.l.b16 %v1875
  %v1908 = vunpack.c.l.b16 %v1876
  %v1909 = vpack.c.b16 %v1894, %v1893
  %v1910 = vpack.c.b16 %v1896, %v1895
  %v1911 = vpack.c.b16 %v1898, %v1897
  %v1912 = vpack.c.b16 %v1900, %v1899
  %v1913 = vpack.c.b16 %v1902, %v1901
  %v1914 = vpack.c.b16 %v1904, %v1903
  %v1915 = vpack.c.b16 %v1906, %v1905
  %v1916 = vpack.c.b16 %v1908, %v1907
  %1925 = vmatprep.subr.bf16.mxu0 0
  %1926 = vmatpush1.bf16.msra.mxu0 %v1916
  %1927 = vmatprep.subr.bf16.mxu0 0
  %1928 = vmatpush1.bf16.msra.mxu0 %v1915
  %1929 = vmatprep.subr.bf16.mxu0 0
  %1930 = vmatpush1.bf16.msra.mxu0 %v1914
  %1931 = vmatprep.subr.bf16.mxu0 0
  %1932 = vmatpush1.bf16.msra.mxu0 %v1913
  %1933 = vmatprep.subr.bf16.mxu0 0
  %1934 = vmatpush1.bf16.msra.mxu0 %v1912
  %1935 = vmatprep.subr.bf16.mxu0 0
  %1936 = vmatpush1.bf16.msra.mxu0 %v1911
  %1937 = vmatprep.subr.bf16.mxu0 0
  %1938 = vmatpush1.bf16.msra.mxu0 %v1910
  %1939 = vmatprep.subr.bf16.mxu0 0
  %1940 = vmatpush1.bf16.msra.mxu0 %v1909
  %1941 = vmatprep.subr.bf16.mxu0 0
  %1942 = vmatpush2.bf16.msra.mxu0 0
  %1943 = vmatprep.subr.bf16.mxu0 0
  %1944 = vmatpush2.bf16.msra.mxu0 0
  %1945 = vmatprep.subr.bf16.mxu0 0
  %1946 = vmatpush2.bf16.msra.mxu0 0
  %1947 = vmatprep.subr.bf16.mxu0 0
  %1948 = vmatpush2.bf16.msra.mxu0 0
  %1949 = vmatprep.subr.bf16.mxu0 0
  %1950 = vmatpush2.bf16.msra.mxu0 0
  %1951 = vmatprep.subr.bf16.mxu0 0
  %1952 = vmatpush2.bf16.msra.mxu0 0
  %1953 = vmatprep.subr.bf16.mxu0 0
  %1954 = vmatpush2.bf16.msra.mxu0 0
  %1955 = vmatprep.subr.bf16.mxu0 0
  %1956 = vmatpush2.bf16.msra.mxu0 0
  %1957 = vmatprep.mubr.bf16.mxu0 0
  %1958 = vmatmul.mubr.bf16.gmra.mxu0 %v307
  %v1959 = vpop.f32.mrf.mxu0
  %v1960 = vadd.f32 0.0, %v1959
  %v1961 = vpop.f32.mrf.mxu0
  %v1962 = vpop.f32.mrf.mxu0
  %v1963 = vpop.f32.mrf.mxu0
  %1964 = vdwg.mxu0
  %v1965 = vmul.f32 %v1237, %v1960
  %v1966 = vpack.c.bf16 %v775, %v775
  %v1967 = vpack.c.bf16 %v1965, %v1965
  %v1968 = vld [vmem:[%s14] sm:$0xff]
  %v1969 = vld [vmem:[%s14 + $0x8] sm:$0xff]
  %v1970 = vld [vmem:[%s14 + $0x10] sm:$0xff]
  %v1971 = vld [vmem:[%s14 + $0x18] sm:$0xff]
  %v1972 = vld [vmem:[%s14 + $0x20] sm:$0xff]
  %v1973 = vld [vmem:[%s14 + $0x28] sm:$0xff]
  %v1974 = vld [vmem:[%s14 + $0x30] sm:$0xff]
  %v1975 = vld [vmem:[%s14 + $0x38] sm:$0xff]
  %v1976 = vld [vmem:[%s14 + $0x40] sm:$0xff]
  %v1977 = vld [vmem:[%s14 + $0x48] sm:$0xff]
  %v1978 = vld [vmem:[%s14 + $0x50] sm:$0xff]
  %v1979 = vld [vmem:[%s14 + $0x58] sm:$0xff]
  %v1980 = vld [vmem:[%s14 + $0x60] sm:$0xff]
  %v1981 = vld [vmem:[%s14 + $0x68] sm:$0xff]
  %v1982 = vld [vmem:[%s14 + $0x70] sm:$0xff]
  %v1983 = vld [vmem:[%s14 + $0x78] sm:$0xff]
  %v1984 = vld [vmem:[%s14 + $0x80] sm:$0xff]
  %v1985 = vld [vmem:[%s14 + $0x88] sm:$0xff]
  %v1986 = vld [vmem:[%s14 + $0x90] sm:$0xff]
  %v1987 = vld [vmem:[%s14 + $0x98] sm:$0xff]
  %v1988 = vld [vmem:[%s14 + $0xa0] sm:$0xff]
  %v1989 = vld [vmem:[%s14 + $0xa8] sm:$0xff]
  %v1990 = vld [vmem:[%s14 + $0xb0] sm:$0xff]
  %v1991 = vld [vmem:[%s14 + $0xb8] sm:$0xff]
  %v1992 = vld [vmem:[%s14 + $0xc0] sm:$0xff]
  %v1993 = vld [vmem:[%s14 + $0xc8] sm:$0xff]
  %v1994 = vld [vmem:[%s14 + $0xd0] sm:$0xff]
  %v1995 = vld [vmem:[%s14 + $0xd8] sm:$0xff]
  %v1996 = vld [vmem:[%s14 + $0xe0] sm:$0xff]
  %v1997 = vld [vmem:[%s14 + $0xe8] sm:$0xff]
  %v1998 = vld [vmem:[%s14 + $0xf0] sm:$0xff]
  %v1999 = vld [vmem:[%s14 + $0xf8] sm:$0xff]
  %v2000 = vld [vmem:[%s14 + $0x100] sm:$0xff]
  %v2001 = vld [vmem:[%s14 + $0x108] sm:$0xff]
  %v2002 = vld [vmem:[%s14 + $0x110] sm:$0xff]
  %v2003 = vld [vmem:[%s14 + $0x118] sm:$0xff]
  %v2004 = vld [vmem:[%s14 + $0x120] sm:$0xff]
  %v2005 = vld [vmem:[%s14 + $0x128] sm:$0xff]
  %v2006 = vld [vmem:[%s14 + $0x130] sm:$0xff]
  %v2007 = vld [vmem:[%s14 + $0x138] sm:$0xff]
  %v2008 = vld [vmem:[%s14 + $0x140] sm:$0xff]
  %v2009 = vld [vmem:[%s14 + $0x148] sm:$0xff]
  %v2010 = vld [vmem:[%s14 + $0x150] sm:$0xff]
  %v2011 = vld [vmem:[%s14 + $0x158] sm:$0xff]
  %v2012 = vld [vmem:[%s14 + $0x160] sm:$0xff]
  %v2013 = vld [vmem:[%s14 + $0x168] sm:$0xff]
  %v2014 = vld [vmem:[%s14 + $0x170] sm:$0xff]
  %v2015 = vld [vmem:[%s14 + $0x178] sm:$0xff]
  %v2016 = vld [vmem:[%s14 + $0x180] sm:$0xff]
  %v2017 = vld [vmem:[%s14 + $0x188] sm:$0xff]
  %v2018 = vld [vmem:[%s14 + $0x190] sm:$0xff]
  %v2019 = vld [vmem:[%s14 + $0x198] sm:$0xff]
  %v2020 = vld [vmem:[%s14 + $0x1a0] sm:$0xff]
  %v2021 = vld [vmem:[%s14 + $0x1a8] sm:$0xff]
  %v2022 = vld [vmem:[%s14 + $0x1b0] sm:$0xff]
  %v2023 = vld [vmem:[%s14 + $0x1b8] sm:$0xff]
  %v2024 = vld [vmem:[%s14 + $0x1c0] sm:$0xff]
  %v2025 = vld [vmem:[%s14 + $0x1c8] sm:$0xff]
  %v2026 = vld [vmem:[%s14 + $0x1d0] sm:$0xff]
  %v2027 = vld [vmem:[%s14 + $0x1d8] sm:$0xff]
  %v2028 = vld [vmem:[%s14 + $0x1e0] sm:$0xff]
  %v2029 = vld [vmem:[%s14 + $0x1e8] sm:$0xff]
  %v2030 = vld [vmem:[%s14 + $0x1f0] sm:$0xff]
  %v2031 = vld [vmem:[%s14 + $0x1f8] sm:$0xff]
  %v2096 = vunpack.c.l.b16 %v1968
  %v2097 = vunpack.c.h.b16 %v1968
  %v2098 = vunpack.c.l.b16 %v1969
  %v2099 = vunpack.c.h.b16 %v1969
  %v2100 = vunpack.c.l.b16 %v1970
  %v2101 = vunpack.c.h.b16 %v1970
  %v2102 = vunpack.c.l.b16 %v1971
  %v2103 = vunpack.c.h.b16 %v1971
  %v2104 = vunpack.c.l.b16 %v1972
  %v2105 = vunpack.c.h.b16 %v1972
  %v2106 = vunpack.c.l.b16 %v1973
  %v2107 = vunpack.c.h.b16 %v1973
  %v2108 = vunpack.c.l.b16 %v1974
  %v2109 = vunpack.c.h.b16 %v1974
  %v2110 = vunpack.c.l.b16 %v1975
  %v2111 = vunpack.c.h.b16 %v1975
  %v2112 = vunpack.c.l.b16 %v1976
  %v2113 = vunpack.c.h.b16 %v1976
  %v2114 = vunpack.c.l.b16 %v1977
  %v2115 = vunpack.c.h.b16 %v1977
  %v2116 = vunpack.c.l.b16 %v1978
  %v2117 = vunpack.c.h.b16 %v1978
  %v2118 = vunpack.c.l.b16 %v1979
  %v2119 = vunpack.c.h.b16 %v1979
  %v2120 = vunpack.c.l.b16 %v1980
  %v2121 = vunpack.c.h.b16 %v1980
  %v2122 = vunpack.c.l.b16 %v1981
  %v2123 = vunpack.c.h.b16 %v1981
  %v2124 = vunpack.c.l.b16 %v1982
  %v2125 = vunpack.c.h.b16 %v1982
  %v2126 = vunpack.c.l.b16 %v1983
  %v2127 = vunpack.c.h.b16 %v1983
  %v2128 = vunpack.c.l.b16 %v1984
  %v2129 = vunpack.c.h.b16 %v1984
  %v2130 = vunpack.c.l.b16 %v1985
  %v2131 = vunpack.c.h.b16 %v1985
  %v2132 = vunpack.c.l.b16 %v1986
  %v2133 = vunpack.c.h.b16 %v1986
  %v2134 = vunpack.c.l.b16 %v1987
  %v2135 = vunpack.c.h.b16 %v1987
  %v2136 = vunpack.c.l.b16 %v1988
  %v2137 = vunpack.c.h.b16 %v1988
  %v2138 = vunpack.c.l.b16 %v1989
  %v2139 = vunpack.c.h.b16 %v1989
  %v2140 = vunpack.c.l.b16 %v1990
  %v2141 = vunpack.c.h.b16 %v1990
  %v2142 = vunpack.c.l.b16 %v1991
  %v2143 = vunpack.c.h.b16 %v1991
  %v2144 = vunpack.c.l.b16 %v1992
  %v2145 = vunpack.c.h.b16 %v1992
  %v2146 = vunpack.c.l.b16 %v1993
  %v2147 = vunpack.c.h.b16 %v1993
  %v2148 = vunpack.c.l.b16 %v1994
  %v2149 = vunpack.c.h.b16 %v1994
  %v2150 = vunpack.c.l.b16 %v1995
  %v2151 = vunpack.c.h.b16 %v1995
  %v2152 = vunpack.c.l.b16 %v1996
  %v2153 = vunpack.c.h.b16 %v1996
  %v2154 = vunpack.c.l.b16 %v1997
  %v2155 = vunpack.c.h.b16 %v1997
  %v2156 = vunpack.c.l.b16 %v1998
  %v2157 = vunpack.c.h.b16 %v1998
  %v2158 = vunpack.c.l.b16 %v1999
  %v2159 = vunpack.c.h.b16 %v1999
  %v2160 = vunpack.c.l.b16 %v2000
  %v2161 = vunpack.c.h.b16 %v2000
  %v2162 = vunpack.c.l.b16 %v2001
  %v2163 = vunpack.c.h.b16 %v2001
  %v2164 = vunpack.c.l.b16 %v2002
  %v2165 = vunpack.c.h.b16 %v2002
  %v2166 = vunpack.c.l.b16 %v2003
  %v2167 = vunpack.c.h.b16 %v2003
  %v2168 = vunpack.c.l.b16 %v2004
  %v2169 = vunpack.c.h.b16 %v2004
  %v2170 = vunpack.c.l.b16 %v2005
  %v2171 = vunpack.c.h.b16 %v2005
  %v2172 = vunpack.c.l.b16 %v2006
  %v2173 = vunpack.c.h.b16 %v2006
  %v2174 = vunpack.c.l.b16 %v2007
  %v2175 = vunpack.c.h.b16 %v2007
  %v2176 = vunpack.c.l.b16 %v2008
  %v2177 = vunpack.c.h.b16 %v2008
  %v2178 = vunpack.c.l.b16 %v2009
  %v2179 = vunpack.c.h.b16 %v2009
  %v2180 = vunpack.c.l.b16 %v2010
  %v2181 = vunpack.c.h.b16 %v2010
  %v2182 = vunpack.c.l.b16 %v2011
  %v2183 = vunpack.c.h.b16 %v2011
  %v2184 = vunpack.c.l.b16 %v2012
  %v2185 = vunpack.c.h.b16 %v2012
  %v2186 = vunpack.c.l.b16 %v2013
  %v2187 = vunpack.c.h.b16 %v2013
  %v2188 = vunpack.c.l.b16 %v2014
  %v2189 = vunpack.c.h.b16 %v2014
  %v2190 = vunpack.c.l.b16 %v2015
  %v2191 = vunpack.c.h.b16 %v2015
  %v2192 = vunpack.c.l.b16 %v2016
  %v2193 = vunpack.c.h.b16 %v2016
  %v2194 = vunpack.c.l.b16 %v2017
  %v2195 = vunpack.c.h.b16 %v2017
  %v2196 = vunpack.c.l.b16 %v2018
  %v2197 = vunpack.c.h.b16 %v2018
  %v2198 = vunpack.c.l.b16 %v2019
  %v2199 = vunpack.c.h.b16 %v2019
  %v2200 = vunpack.c.l.b16 %v2020
  %v2201 = vunpack.c.h.b16 %v2020
  %v2202 = vunpack.c.l.b16 %v2021
  %v2203 = vunpack.c.h.b16 %v2021
  %v2204 = vunpack.c.l.b16 %v2022
  %v2205 = vunpack.c.h.b16 %v2022
  %v2206 = vunpack.c.l.b16 %v2023
  %v2207 = vunpack.c.h.b16 %v2023
  %v2208 = vunpack.c.l.b16 %v2024
  %v2209 = vunpack.c.h.b16 %v2024
  %v2210 = vunpack.c.l.b16 %v2025
  %v2211 = vunpack.c.h.b16 %v2025
  %v2212 = vunpack.c.l.b16 %v2026
  %v2213 = vunpack.c.h.b16 %v2026
  %v2214 = vunpack.c.l.b16 %v2027
  %v2215 = vunpack.c.h.b16 %v2027
  %v2216 = vunpack.c.l.b16 %v2028
  %v2217 = vunpack.c.h.b16 %v2028
  %v2218 = vunpack.c.l.b16 %v2029
  %v2219 = vunpack.c.h.b16 %v2029
  %v2220 = vunpack.c.l.b16 %v2030
  %v2221 = vunpack.c.h.b16 %v2030
  %v2222 = vunpack.c.l.b16 %v2031
  %v2223 = vunpack.c.h.b16 %v2031
  %v2224 = vpack.c.b16 %v2100, %v2096
  %v2225 = vpack.c.b16 %v2101, %v2097
  %v2226 = vpack.c.b16 %v2102, %v2098
  %v2227 = vpack.c.b16 %v2103, %v2099
  %v2228 = vpack.c.b16 %v2108, %v2104
  %v2229 = vpack.c.b16 %v2109, %v2105
  %v2230 = vpack.c.b16 %v2110, %v2106
  %v2231 = vpack.c.b16 %v2111, %v2107
  %v2232 = vpack.c.b16 %v2116, %v2112
  %v2233 = vpack.c.b16 %v2117, %v2113
  %v2234 = vpack.c.b16 %v2118, %v2114
  %v2235 = vpack.c.b16 %v2119, %v2115
  %v2236 = vpack.c.b16 %v2124, %v2120
  %v2237 = vpack.c.b16 %v2125, %v2121
  %v2238 = vpack.c.b16 %v2126, %v2122
  %v2239 = vpack.c.b16 %v2127, %v2123
  %v2240 = vpack.c.b16 %v2132, %v2128
  %v2241 = vpack.c.b16 %v2133, %v2129
  %v2242 = vpack.c.b16 %v2134, %v2130
  %v2243 = vpack.c.b16 %v2135, %v2131
  %v2244 = vpack.c.b16 %v2140, %v2136
  %v2245 = vpack.c.b16 %v2141, %v2137
  %v2246 = vpack.c.b16 %v2142, %v2138
  %v2247 = vpack.c.b16 %v2143, %v2139
  %v2248 = vpack.c.b16 %v2148, %v2144
  %v2249 = vpack.c.b16 %v2149, %v2145
  %v2250 = vpack.c.b16 %v2150, %v2146
  %v2251 = vpack.c.b16 %v2151, %v2147
  %v2252 = vpack.c.b16 %v2156, %v2152
  %v2253 = vpack.c.b16 %v2157, %v2153
  %v2254 = vpack.c.b16 %v2158, %v2154
  %v2255 = vpack.c.b16 %v2159, %v2155
  %v2256 = vpack.c.b16 %v2164, %v2160
  %v2257 = vpack.c.b16 %v2165, %v2161
  %v2258 = vpack.c.b16 %v2166, %v2162
  %v2259 = vpack.c.b16 %v2167, %v2163
  %v2260 = vpack.c.b16 %v2172, %v2168
  %v2261 = vpack.c.b16 %v2173, %v2169
  %v2262 = vpack.c.b16 %v2174, %v2170
  %v2263 = vpack.c.b16 %v2175, %v2171
  %v2264 = vpack.c.b16 %v2180, %v2176
  %v2265 = vpack.c.b16 %v2181, %v2177
  %v2266 = vpack.c.b16 %v2182, %v2178
  %v2267 = vpack.c.b16 %v2183, %v2179
  %v2268 = vpack.c.b16 %v2188, %v2184
  %v2269 = vpack.c.b16 %v2189, %v2185
  %v2270 = vpack.c.b16 %v2190, %v2186
  %v2271 = vpack.c.b16 %v2191, %v2187
  %v2272 = vpack.c.b16 %v2196, %v2192
  %v2273 = vpack.c.b16 %v2197, %v2193
  %v2274 = vpack.c.b16 %v2198, %v2194
  %v2275 = vpack.c.b16 %v2199, %v2195
  %v2276 = vpack.c.b16 %v2204, %v2200
  %v2277 = vpack.c.b16 %v2205, %v2201
  %v2278 = vpack.c.b16 %v2206, %v2202
  %v2279 = vpack.c.b16 %v2207, %v2203
  %v2280 = vpack.c.b16 %v2212, %v2208
  %v2281 = vpack.c.b16 %v2213, %v2209
  %v2282 = vpack.c.b16 %v2214, %v2210
  %v2283 = vpack.c.b16 %v2215, %v2211
  %v2284 = vpack.c.b16 %v2220, %v2216
  %v2285 = vpack.c.b16 %v2221, %v2217
  %v2286 = vpack.c.b16 %v2222, %v2218
  %v2287 = vpack.c.b16 %v2223, %v2219
  %2352 = vmatprep.subr.bf16.mxu0 %v2253
  %2353 = vmatpush1.bf16.msra.mxu0 %v2252
  %2354 = vmatprep.subr.bf16.mxu0 %v2249
  %2355 = vmatpush1.bf16.msra.mxu0 %v2248
  %2356 = vmatprep.subr.bf16.mxu0 %v2245
  %2357 = vmatpush1.bf16.msra.mxu0 %v2244
  %2358 = vmatprep.subr.bf16.mxu0 %v2241
  %2359 = vmatpush1.bf16.msra.mxu0 %v2240
  %2360 = vmatprep.subr.bf16.mxu0 %v2237
  %2361 = vmatpush1.bf16.msra.mxu0 %v2236
  %2362 = vmatprep.subr.bf16.mxu0 %v2233
  %2363 = vmatpush1.bf16.msra.mxu0 %v2232
  %2364 = vmatprep.subr.bf16.mxu0 %v2229
  %2365 = vmatpush1.bf16.msra.mxu0 %v2228
  %2366 = vmatprep.subr.bf16.mxu0 %v2225
  %2367 = vmatpush1.bf16.msra.mxu0 %v2224
  %2368 = vmatprep.subr.bf16.mxu0 %v2285
  %2369 = vmatpush2.bf16.msra.mxu0 %v2284
  %2370 = vmatprep.subr.bf16.mxu0 %v2281
  %2371 = vmatpush2.bf16.msra.mxu0 %v2280
  %2372 = vmatprep.subr.bf16.mxu0 %v2277
  %2373 = vmatpush2.bf16.msra.mxu0 %v2276
  %2374 = vmatprep.subr.bf16.mxu0 %v2273
  %2375 = vmatpush2.bf16.msra.mxu0 %v2272
  %2376 = vmatprep.subr.bf16.mxu0 %v2269
  %2377 = vmatpush2.bf16.msra.mxu0 %v2268
  %2378 = vmatprep.subr.bf16.mxu0 %v2265
  %2379 = vmatpush2.bf16.msra.mxu0 %v2264
  %2380 = vmatprep.subr.bf16.mxu0 %v2261
  %2381 = vmatpush2.bf16.msra.mxu0 %v2260
  %2382 = vmatprep.subr.bf16.mxu0 %v2257
  %2383 = vmatpush2.bf16.msra.mxu0 %v2256
  %2384 = vmatprep.mubr.bf16.mxu0 %v1967
  %2385 = vmatmul.mubr.bf16.gmra.mxu0 %v1966
  %v2386 = vpop.f32.mrf.mxu0
  %v2387 = vadd.f32 %v1185, %v2386
  %v2388 = vpop.f32.mrf.mxu0
  %v2389 = vadd.f32 %v1187, %v2388
  %v2390 = vpop.f32.mrf.mxu0
  %v2391 = vpop.f32.mrf.mxu0
  %2392 = vdwg.mxu0
  %2393 = vmatprep.subr.bf16.mxu0 %v2255
  %2394 = vmatpush1.bf16.msra.mxu0 %v2254
  %2395 = vmatprep.subr.bf16.mxu0 %v2251
  %2396 = vmatpush1.bf16.msra.mxu0 %v2250
  %2397 = vmatprep.subr.bf16.mxu0 %v2247
  %2398 = vmatpush1.bf16.msra.mxu0 %v2246
  %2399 = vmatprep.subr.bf16.mxu0 %v2243
  %2400 = vmatpush1.bf16.msra.mxu0 %v2242
  %2401 = vmatprep.subr.bf16.mxu0 %v2239
  %2402 = vmatpush1.bf16.msra.mxu0 %v2238
  %2403 = vmatprep.subr.bf16.mxu0 %v2235
  %2404 = vmatpush1.bf16.msra.mxu0 %v2234
  %2405 = vmatprep.subr.bf16.mxu0 %v2231
  %2406 = vmatpush1.bf16.msra.mxu0 %v2230
  %2407 = vmatprep.subr.bf16.mxu0 %v2227
  %2408 = vmatpush1.bf16.msra.mxu0 %v2226
  %2409 = vmatprep.subr.bf16.mxu0 %v2287
  %2410 = vmatpush2.bf16.msra.mxu0 %v2286
  %2411 = vmatprep.subr.bf16.mxu0 %v2283
  %2412 = vmatpush2.bf16.msra.mxu0 %v2282
  %2413 = vmatprep.subr.bf16.mxu0 %v2279
  %2414 = vmatpush2.bf16.msra.mxu0 %v2278
  %2415 = vmatprep.subr.bf16.mxu0 %v2275
  %2416 = vmatpush2.bf16.msra.mxu0 %v2274
  %2417 = vmatprep.subr.bf16.mxu0 %v2271
  %2418 = vmatpush2.bf16.msra.mxu0 %v2270
  %2419 = vmatprep.subr.bf16.mxu0 %v2267
  %2420 = vmatpush2.bf16.msra.mxu0 %v2266
  %2421 = vmatprep.subr.bf16.mxu0 %v2263
  %2422 = vmatpush2.bf16.msra.mxu0 %v2262
  %2423 = vmatprep.subr.bf16.mxu0 %v2259
  %2424 = vmatpush2.bf16.msra.mxu0 %v2258
  %2425 = vmatprep.mubr.bf16.mxu0 %v1967
  %2426 = vmatmul.mubr.bf16.gmra.mxu0 %v1966
  %v2427 = vpop.f32.mrf.mxu0
  %v2428 = vadd.f32 %v1226, %v2427
  %v2429 = vpop.f32.mrf.mxu0
  %v2430 = vadd.f32 %v1228, %v2429
  %v2431 = vpop.f32.mrf.mxu0
  %v2432 = vpop.f32.mrf.mxu0
  %2433 = vdwg.mxu0
  %v2434 = vxor.u32 %v2387, 2147483648
  %v2435 = vmul.f32 %v2434, 1.442695
  %v2436 = vpow.pop %v2435
  %v2437 = vadd.f32 %v2436, 1.0
  %v2438 = vrcp.pop %v2437
  %v2439 = vmul.f32 1.0, %v2438
  %v2440 = vxor.u32 %v2389, 2147483648
  %v2441 = vmul.f32 %v2440, 1.442695
  %v2442 = vpow.pop %v2441
  %v2443 = vadd.f32 %v2442, 1.0
  %v2444 = vrcp.pop %v2443
  %v2445 = vmul.f32 1.0, %v2444
  %v2446 = vtanh.pop %v2428
  %v2447 = vxor.u32 %v2430, 2147483648
  %v2448 = vmul.f32 %v2447, 1.442695
  %v2449 = vpow.pop %v2448
  %v2450 = vadd.f32 %v2449, 1.0
  %v2451 = vrcp.pop %v2450
  %v2452 = vmul.f32 1.0, %v2451
  %v2453 = vmul.f32 %v2445, %v549
  %v2454 = vmul.f32 %v2439, %v2446
  %v2455 = vadd.f32 %v2453, %v2454
  %v2456 = vtanh.pop %v2455
  %v2457 = vmul.f32 %v2452, %v2456
  %v2458 = vpack.c.bf16 %v2457, %v2457
  %v2459 = vld [vmem:[%s15] sm:$0xff]
  %v2460 = vld [vmem:[%s15 + $0x8] sm:$0xff]
  %v2461 = vld [vmem:[%s15 + $0x10] sm:$0xff]
  %v2462 = vld [vmem:[%s15 + $0x18] sm:$0xff]
  %v2463 = vld [vmem:[%s15 + $0x20] sm:$0xff]
  %v2464 = vld [vmem:[%s15 + $0x28] sm:$0xff]
  %v2465 = vld [vmem:[%s15 + $0x30] sm:$0xff]
  %v2466 = vld [vmem:[%s15 + $0x38] sm:$0xff]
  %v2467 = vld [vmem:[%s15 + $0x40] sm:$0xff]
  %v2468 = vld [vmem:[%s15 + $0x48] sm:$0xff]
  %v2469 = vld [vmem:[%s15 + $0x50] sm:$0xff]
  %v2470 = vld [vmem:[%s15 + $0x58] sm:$0xff]
  %v2471 = vld [vmem:[%s15 + $0x60] sm:$0xff]
  %v2472 = vld [vmem:[%s15 + $0x68] sm:$0xff]
  %v2473 = vld [vmem:[%s15 + $0x70] sm:$0xff]
  %v2474 = vld [vmem:[%s15 + $0x78] sm:$0xff]
  %v2475 = vld [vmem:[%s16] sm:$0xff]
  %v2476 = vld [vmem:[%s16 + $0x8] sm:$0xff]
  %v2493 = vunpack.c.l.b16 %v2459
  %v2494 = vunpack.c.h.b16 %v2459
  %v2495 = vunpack.c.l.b16 %v2460
  %v2496 = vunpack.c.h.b16 %v2460
  %v2497 = vunpack.c.l.b16 %v2461
  %v2498 = vunpack.c.h.b16 %v2461
  %v2499 = vunpack.c.l.b16 %v2462
  %v2500 = vunpack.c.h.b16 %v2462
  %v2501 = vunpack.c.l.b16 %v2463
  %v2502 = vunpack.c.h.b16 %v2463
  %v2503 = vunpack.c.l.b16 %v2464
  %v2504 = vunpack.c.h.b16 %v2464
  %v2505 = vunpack.c.l.b16 %v2465
  %v2506 = vunpack.c.h.b16 %v2465
  %v2507 = vunpack.c.l.b16 %v2466
  %v2508 = vunpack.c.h.b16 %v2466
  %v2509 = vunpack.c.l.b16 %v2467
  %v2510 = vunpack.c.h.b16 %v2467
  %v2511 = vunpack.c.l.b16 %v2468
  %v2512 = vunpack.c.h.b16 %v2468
  %v2513 = vunpack.c.l.b16 %v2469
  %v2514 = vunpack.c.h.b16 %v2469
  %v2515 = vunpack.c.l.b16 %v2470
  %v2516 = vunpack.c.h.b16 %v2470
  %v2517 = vunpack.c.l.b16 %v2471
  %v2518 = vunpack.c.h.b16 %v2471
  %v2519 = vunpack.c.l.b16 %v2472
  %v2520 = vunpack.c.h.b16 %v2472
  %v2521 = vunpack.c.l.b16 %v2473
  %v2522 = vunpack.c.h.b16 %v2473
  %v2523 = vunpack.c.l.b16 %v2474
  %v2524 = vunpack.c.h.b16 %v2474
  %v2525 = vpack.c.b16 %v2495, %v2493
  %v2526 = vpack.c.b16 %v2496, %v2494
  %v2527 = vpack.c.b16 %v2499, %v2497
  %v2528 = vpack.c.b16 %v2500, %v2498
  %v2529 = vpack.c.b16 %v2503, %v2501
  %v2530 = vpack.c.b16 %v2504, %v2502
  %v2531 = vpack.c.b16 %v2507, %v2505
  %v2532 = vpack.c.b16 %v2508, %v2506
  %v2533 = vpack.c.b16 %v2511, %v2509
  %v2534 = vpack.c.b16 %v2512, %v2510
  %v2535 = vpack.c.b16 %v2515, %v2513
  %v2536 = vpack.c.b16 %v2516, %v2514
  %v2537 = vpack.c.b16 %v2519, %v2517
  %v2538 = vpack.c.b16 %v2520, %v2518
  %v2539 = vpack.c.b16 %v2523, %v2521
  %v2540 = vpack.c.b16 %v2524, %v2522
  %2557 = vmatprep.subr.bf16.mxu0 %v2540
  %2558 = vmatpush1.bf16.msra.mxu0 %v2539
  %2559 = vmatprep.subr.bf16.mxu0 %v2538
  %2560 = vmatpush1.bf16.msra.mxu0 %v2537
  %2561 = vmatprep.subr.bf16.mxu0 %v2536
  %2562 = vmatpush1.bf16.msra.mxu0 %v2535
  %2563 = vmatprep.subr.bf16.mxu0 %v2534
  %2564 = vmatpush1.bf16.msra.mxu0 %v2533
  %2565 = vmatprep.subr.bf16.mxu0 %v2532
  %2566 = vmatpush1.bf16.msra.mxu0 %v2531
  %2567 = vmatprep.subr.bf16.mxu0 %v2530
  %2568 = vmatpush1.bf16.msra.mxu0 %v2529
  %2569 = vmatprep.subr.bf16.mxu0 %v2528
  %2570 = vmatpush1.bf16.msra.mxu0 %v2527
  %2571 = vmatprep.subr.bf16.mxu0 %v2526
  %2572 = vmatpush1.bf16.msra.mxu0 %v2525
  %2573 = vmatprep.subr.bf16.mxu0 0
  %2574 = vmatpush2.bf16.msra.mxu0 0
  %2575 = vmatprep.subr.bf16.mxu0 0
  %2576 = vmatpush2.bf16.msra.mxu0 0
  %2577 = vmatprep.subr.bf16.mxu0 0
  %2578 = vmatpush2.bf16.msra.mxu0 0
  %2579 = vmatprep.subr.bf16.mxu0 0
  %2580 = vmatpush2.bf16.msra.mxu0 0
  %2581 = vmatprep.subr.bf16.mxu0 0
  %2582 = vmatpush2.bf16.msra.mxu0 0
  %2583 = vmatprep.subr.bf16.mxu0 0
  %2584 = vmatpush2.bf16.msra.mxu0 0
  %2585 = vmatprep.subr.bf16.mxu0 0
  %2586 = vmatpush2.bf16.msra.mxu0 0
  %2587 = vmatprep.subr.bf16.mxu0 0
  %2588 = vmatpush2.bf16.msra.mxu0 0
  %2589 = vmatprep.mubr.bf16.mxu0 0
  %2590 = vmatmul.mubr.bf16.gmra.mxu0 %v2458
  %v2591 = vpop.f32.mrf.mxu0
  %v2592 = vadd.f32 %v2475, %v2591
  %v2593 = vpop.f32.mrf.mxu0
  %v2594 = vadd.f32 %v2476, %v2593
  %v2595 = vpop.f32.mrf.mxu0
  %v2596 = vpop.f32.mrf.mxu0
  %2597 = vdwg.mxu0
  %v2598 = vsel %vm813, 1, 0
  %2599 = vset.pattern.permute.xlu0 0
  %2600 = vperm.xlu0 %2599, %v2598
  %v2601 = vpop.permute.xlu0 %2600
  %vm2602 = vcmp.eq.s32.totalorder %v2601, 1
  %v2603 = vsel %vm2602, %v2592, 0.0
  %v2604 = vsel %vm2602, %v2594, 0.0
  %2605 = vst [vmem:[%s17] sm:$0xff] %v2603
  %2606 = vst [vmem:[%s17 + $0x8] sm:$0xff] %v2604
  %vm2607 = vcmp.gt.s32.totalorder %v797, 0
  %vm2608 = vcmp.gt.s32.totalorder %v798, 0
  %vm2609 = vcmp.gt.s32.totalorder %v799, 0
  %vm2610 = vcmp.gt.s32.totalorder %v800, 0
  %vm2611 = vcmp.gt.s32.totalorder %v801, 0
  %vm2612 = vcmp.gt.s32.totalorder %v802, 0
  %vm2613 = vcmp.gt.s32.totalorder %v803, 0
  %vm2614 = vcmp.gt.s32.totalorder %v804, 0
  %vm2615 = vcmp.gt.s32.totalorder %v805, 0
  %vm2616 = vcmp.gt.s32.totalorder %v806, 0
  %vm2617 = vcmp.gt.s32.totalorder %v807, 0
  %vm2618 = vcmp.gt.s32.totalorder %v808, 0
  %vm2619 = vcmp.gt.s32.totalorder %v809, 0
  %vm2620 = vcmp.gt.s32.totalorder %v810, 0
  %vm2621 = vcmp.gt.s32.totalorder %v811, 0
  %vm2622 = vcmp.gt.s32.totalorder %v812, 0
  %v2623 = vsel %vm2607, %v1701, 0.0
  %v2624 = vsel %vm2608, %v1702, 0.0
  %v2625 = vsel %vm2609, %v1703, 0.0
  %v2626 = vsel %vm2610, %v1704, 0.0
  %v2627 = vsel %vm2611, %v1705, 0.0
  %v2628 = vsel %vm2612, %v1706, 0.0
  %v2629 = vsel %vm2613, %v1707, 0.0
  %v2630 = vsel %vm2614, %v1708, 0.0
  %v2631 = vsel %vm2615, %v1709, 0.0
  %v2632 = vsel %vm2616, %v1710, 0.0
  %v2633 = vsel %vm2617, %v1711, 0.0
  %v2634 = vsel %vm2618, %v1712, 0.0
  %v2635 = vsel %vm2619, %v1713, 0.0
  %v2636 = vsel %vm2620, %v1714, 0.0
  %v2637 = vsel %vm2621, %v1715, 0.0
  %v2638 = vsel %vm2622, %v1716, 0.0
  %vm2639 = vcmask 7168
  %2640 = vst.msk [vmem:[%s18] sm:$0xff] %vm2639, %v2623
  %2641 = vst.msk [vmem:[%s18 + $0x8] sm:$0xff] %vm2639, %v2624
  %2642 = vst.msk [vmem:[%s18 + $0x10] sm:$0xff] %vm2639, %v2625
  %2643 = vst.msk [vmem:[%s18 + $0x18] sm:$0xff] %vm2639, %v2626
  %2644 = vst.msk [vmem:[%s18 + $0x20] sm:$0xff] %vm2639, %v2627
  %2645 = vst.msk [vmem:[%s18 + $0x28] sm:$0xff] %vm2639, %v2628
  %2646 = vst.msk [vmem:[%s18 + $0x30] sm:$0xff] %vm2639, %v2629
  %2647 = vst.msk [vmem:[%s18 + $0x38] sm:$0xff] %vm2639, %v2630
  %2648 = vst.msk [vmem:[%s18 + $0x40] sm:$0xff] %vm2639, %v2631
  %2649 = vst.msk [vmem:[%s18 + $0x48] sm:$0xff] %vm2639, %v2632
  %2650 = vst.msk [vmem:[%s18 + $0x50] sm:$0xff] %vm2639, %v2633
  %2651 = vst.msk [vmem:[%s18 + $0x58] sm:$0xff] %vm2639, %v2634
  %2652 = vst.msk [vmem:[%s18 + $0x60] sm:$0xff] %vm2639, %v2635
  %2653 = vst.msk [vmem:[%s18 + $0x68] sm:$0xff] %vm2639, %v2636
  %2654 = vst.msk [vmem:[%s18 + $0x70] sm:$0xff] %vm2639, %v2637
  %2655 = vst.msk [vmem:[%s18 + $0x78] sm:$0xff] %vm2639, %v2638
  %v2656 = vsel %vm2602, %v2457, %v547
  %v2657 = vsel %vm2602, %v2455, %v549
  %vm2658 = vcmp.gt.s32.totalorder %v796, 1
  %v2659 = vpack.c.bf16 %v2656, %v2656
  %v2660 = vld [vmem:[%s12] sm:$0xff]
  %v2661 = vld [vmem:[%s12 + $0x8] sm:$0xff]
  %v2662 = vld [vmem:[%s12 + $0x10] sm:$0xff]
  %v2663 = vld [vmem:[%s12 + $0x18] sm:$0xff]
  %v2664 = vld [vmem:[%s12 + $0x20] sm:$0xff]
  %v2665 = vld [vmem:[%s12 + $0x28] sm:$0xff]
  %v2666 = vld [vmem:[%s12 + $0x30] sm:$0xff]
  %v2667 = vld [vmem:[%s12 + $0x38] sm:$0xff]
  %v2668 = vld [vmem:[%s12 + $0x40] sm:$0xff]
  %v2669 = vld [vmem:[%s12 + $0x48] sm:$0xff]
  %v2670 = vld [vmem:[%s12 + $0x50] sm:$0xff]
  %v2671 = vld [vmem:[%s12 + $0x58] sm:$0xff]
  %v2672 = vld [vmem:[%s12 + $0x60] sm:$0xff]
  %v2673 = vld [vmem:[%s12 + $0x68] sm:$0xff]
  %v2674 = vld [vmem:[%s12 + $0x70] sm:$0xff]
  %v2675 = vld [vmem:[%s12 + $0x78] sm:$0xff]
  %v2676 = vld [vmem:[%s12 + $0x80] sm:$0xff]
  %v2677 = vld [vmem:[%s12 + $0x88] sm:$0xff]
  %v2678 = vld [vmem:[%s12 + $0x90] sm:$0xff]
  %v2679 = vld [vmem:[%s12 + $0x98] sm:$0xff]
  %v2680 = vld [vmem:[%s12 + $0xa0] sm:$0xff]
  %v2681 = vld [vmem:[%s12 + $0xa8] sm:$0xff]
  %v2682 = vld [vmem:[%s12 + $0xb0] sm:$0xff]
  %v2683 = vld [vmem:[%s12 + $0xb8] sm:$0xff]
  %v2684 = vld [vmem:[%s12 + $0xc0] sm:$0xff]
  %v2685 = vld [vmem:[%s12 + $0xc8] sm:$0xff]
  %v2686 = vld [vmem:[%s12 + $0xd0] sm:$0xff]
  %v2687 = vld [vmem:[%s12 + $0xd8] sm:$0xff]
  %v2688 = vld [vmem:[%s12 + $0xe0] sm:$0xff]
  %v2689 = vld [vmem:[%s12 + $0xe8] sm:$0xff]
  %v2690 = vld [vmem:[%s12 + $0xf0] sm:$0xff]
  %v2691 = vld [vmem:[%s12 + $0xf8] sm:$0xff]
  %v2692 = vld [vmem:[%s12 + $0x100] sm:$0xff]
  %v2693 = vld [vmem:[%s12 + $0x108] sm:$0xff]
  %v2694 = vld [vmem:[%s12 + $0x110] sm:$0xff]
  %v2695 = vld [vmem:[%s12 + $0x118] sm:$0xff]
  %v2696 = vld [vmem:[%s12 + $0x120] sm:$0xff]
  %v2697 = vld [vmem:[%s12 + $0x128] sm:$0xff]
  %v2698 = vld [vmem:[%s12 + $0x130] sm:$0xff]
  %v2699 = vld [vmem:[%s12 + $0x138] sm:$0xff]
  %v2700 = vld [vmem:[%s12 + $0x140] sm:$0xff]
  %v2701 = vld [vmem:[%s12 + $0x148] sm:$0xff]
  %v2702 = vld [vmem:[%s12 + $0x150] sm:$0xff]
  %v2703 = vld [vmem:[%s12 + $0x158] sm:$0xff]
  %v2704 = vld [vmem:[%s12 + $0x160] sm:$0xff]
  %v2705 = vld [vmem:[%s12 + $0x168] sm:$0xff]
  %v2706 = vld [vmem:[%s12 + $0x170] sm:$0xff]
  %v2707 = vld [vmem:[%s12 + $0x178] sm:$0xff]
  %v2708 = vld [vmem:[%s13] sm:$0xff]
  %v2709 = vld [vmem:[%s13 + $0x8] sm:$0xff]
  %v2710 = vld [vmem:[%s13 + $0x10] sm:$0xff]
  %v2711 = vld [vmem:[%s13 + $0x18] sm:$0xff]
  %v2712 = vld [vmem:[%s13 + $0x20] sm:$0xff]
  %v2713 = vld [vmem:[%s13 + $0x28] sm:$0xff]
  %v2762 = vunpack.c.l.b16 %v2660
  %v2763 = vunpack.c.h.b16 %v2660
  %v2764 = vunpack.c.l.b16 %v2661
  %v2765 = vunpack.c.h.b16 %v2661
  %v2766 = vunpack.c.l.b16 %v2662
  %v2767 = vunpack.c.h.b16 %v2662
  %v2768 = vunpack.c.l.b16 %v2663
  %v2769 = vunpack.c.h.b16 %v2663
  %v2770 = vunpack.c.l.b16 %v2664
  %v2771 = vunpack.c.h.b16 %v2664
  %v2772 = vunpack.c.l.b16 %v2665
  %v2773 = vunpack.c.h.b16 %v2665
  %v2774 = vunpack.c.l.b16 %v2666
  %v2775 = vunpack.c.h.b16 %v2666
  %v2776 = vunpack.c.l.b16 %v2667
  %v2777 = vunpack.c.h.b16 %v2667
  %v2778 = vunpack.c.l.b16 %v2668
  %v2779 = vunpack.c.h.b16 %v2668
  %v2780 = vunpack.c.l.b16 %v2669
  %v2781 = vunpack.c.h.b16 %v2669
  %v2782 = vunpack.c.l.b16 %v2670
  %v2783 = vunpack.c.h.b16 %v2670
  %v2784 = vunpack.c.l.b16 %v2671
  %v2785 = vunpack.c.h.b16 %v2671
  %v2786 = vunpack.c.l.b16 %v2672
  %v2787 = vunpack.c.h.b16 %v2672
  %v2788 = vunpack.c.l.b16 %v2673
  %v2789 = vunpack.c.h.b16 %v2673
  %v2790 = vunpack.c.l.b16 %v2674
  %v2791 = vunpack.c.h.b16 %v2674
  %v2792 = vunpack.c.l.b16 %v2675
  %v2793 = vunpack.c.h.b16 %v2675
  %v2794 = vunpack.c.l.b16 %v2676
  %v2795 = vunpack.c.h.b16 %v2676
  %v2796 = vunpack.c.l.b16 %v2677
  %v2797 = vunpack.c.h.b16 %v2677
  %v2798 = vunpack.c.l.b16 %v2678
  %v2799 = vunpack.c.h.b16 %v2678
  %v2800 = vunpack.c.l.b16 %v2679
  %v2801 = vunpack.c.h.b16 %v2679
  %v2802 = vunpack.c.l.b16 %v2680
  %v2803 = vunpack.c.h.b16 %v2680
  %v2804 = vunpack.c.l.b16 %v2681
  %v2805 = vunpack.c.h.b16 %v2681
  %v2806 = vunpack.c.l.b16 %v2682
  %v2807 = vunpack.c.h.b16 %v2682
  %v2808 = vunpack.c.l.b16 %v2683
  %v2809 = vunpack.c.h.b16 %v2683
  %v2810 = vunpack.c.l.b16 %v2684
  %v2811 = vunpack.c.h.b16 %v2684
  %v2812 = vunpack.c.l.b16 %v2685
  %v2813 = vunpack.c.h.b16 %v2685
  %v2814 = vunpack.c.l.b16 %v2686
  %v2815 = vunpack.c.h.b16 %v2686
  %v2816 = vunpack.c.l.b16 %v2687
  %v2817 = vunpack.c.h.b16 %v2687
  %v2818 = vunpack.c.l.b16 %v2688
  %v2819 = vunpack.c.h.b16 %v2688
  %v2820 = vunpack.c.l.b16 %v2689
  %v2821 = vunpack.c.h.b16 %v2689
  %v2822 = vunpack.c.l.b16 %v2690
  %v2823 = vunpack.c.h.b16 %v2690
  %v2824 = vunpack.c.l.b16 %v2691
  %v2825 = vunpack.c.h.b16 %v2691
  %v2826 = vunpack.c.l.b16 %v2692
  %v2827 = vunpack.c.h.b16 %v2692
  %v2828 = vunpack.c.l.b16 %v2693
  %v2829 = vunpack.c.h.b16 %v2693
  %v2830 = vunpack.c.l.b16 %v2694
  %v2831 = vunpack.c.h.b16 %v2694
  %v2832 = vunpack.c.l.b16 %v2695
  %v2833 = vunpack.c.h.b16 %v2695
  %v2834 = vunpack.c.l.b16 %v2696
  %v2835 = vunpack.c.h.b16 %v2696
  %v2836 = vunpack.c.l.b16 %v2697
  %v2837 = vunpack.c.h.b16 %v2697
  %v2838 = vunpack.c.l.b16 %v2698
  %v2839 = vunpack.c.h.b16 %v2698
  %v2840 = vunpack.c.l.b16 %v2699
  %v2841 = vunpack.c.h.b16 %v2699
  %v2842 = vunpack.c.l.b16 %v2700
  %v2843 = vunpack.c.h.b16 %v2700
  %v2844 = vunpack.c.l.b16 %v2701
  %v2845 = vunpack.c.h.b16 %v2701
  %v2846 = vunpack.c.l.b16 %v2702
  %v2847 = vunpack.c.h.b16 %v2702
  %v2848 = vunpack.c.l.b16 %v2703
  %v2849 = vunpack.c.h.b16 %v2703
  %v2850 = vunpack.c.l.b16 %v2704
  %v2851 = vunpack.c.h.b16 %v2704
  %v2852 = vunpack.c.l.b16 %v2705
  %v2853 = vunpack.c.h.b16 %v2705
  %v2854 = vunpack.c.l.b16 %v2706
  %v2855 = vunpack.c.h.b16 %v2706
  %v2856 = vunpack.c.l.b16 %v2707
  %v2857 = vunpack.c.h.b16 %v2707
  %v2858 = vpack.c.b16 %v2768, %v2762
  %v2859 = vpack.c.b16 %v2769, %v2763
  %v2860 = vpack.c.b16 %v2770, %v2764
  %v2861 = vpack.c.b16 %v2771, %v2765
  %v2862 = vpack.c.b16 %v2772, %v2766
  %v2863 = vpack.c.b16 %v2773, %v2767
  %v2864 = vpack.c.b16 %v2780, %v2774
  %v2865 = vpack.c.b16 %v2781, %v2775
  %v2866 = vpack.c.b16 %v2782, %v2776
  %v2867 = vpack.c.b16 %v2783, %v2777
  %v2868 = vpack.c.b16 %v2784, %v2778
  %v2869 = vpack.c.b16 %v2785, %v2779
  %v2870 = vpack.c.b16 %v2792, %v2786
  %v2871 = vpack.c.b16 %v2793, %v2787
  %v2872 = vpack.c.b16 %v2794, %v2788
  %v2873 = vpack.c.b16 %v2795, %v2789
  %v2874 = vpack.c.b16 %v2796, %v2790
  %v2875 = vpack.c.b16 %v2797, %v2791
  %v2876 = vpack.c.b16 %v2804, %v2798
  %v2877 = vpack.c.b16 %v2805, %v2799
  %v2878 = vpack.c.b16 %v2806, %v2800
  %v2879 = vpack.c.b16 %v2807, %v2801
  %v2880 = vpack.c.b16 %v2808, %v2802
  %v2881 = vpack.c.b16 %v2809, %v2803
  %v2882 = vpack.c.b16 %v2816, %v2810
  %v2883 = vpack.c.b16 %v2817, %v2811
  %v2884 = vpack.c.b16 %v2818, %v2812
  %v2885 = vpack.c.b16 %v2819, %v2813
  %v2886 = vpack.c.b16 %v2820, %v2814
  %v2887 = vpack.c.b16 %v2821, %v2815
  %v2888 = vpack.c.b16 %v2828, %v2822
  %v2889 = vpack.c.b16 %v2829, %v2823
  %v2890 = vpack.c.b16 %v2830, %v2824
  %v2891 = vpack.c.b16 %v2831, %v2825
  %v2892 = vpack.c.b16 %v2832, %v2826
  %v2893 = vpack.c.b16 %v2833, %v2827
  %v2894 = vpack.c.b16 %v2840, %v2834
  %v2895 = vpack.c.b16 %v2841, %v2835
  %v2896 = vpack.c.b16 %v2842, %v2836
  %v2897 = vpack.c.b16 %v2843, %v2837
  %v2898 = vpack.c.b16 %v2844, %v2838
  %v2899 = vpack.c.b16 %v2845, %v2839
  %v2900 = vpack.c.b16 %v2852, %v2846
  %v2901 = vpack.c.b16 %v2853, %v2847
  %v2902 = vpack.c.b16 %v2854, %v2848
  %v2903 = vpack.c.b16 %v2855, %v2849
  %v2904 = vpack.c.b16 %v2856, %v2850
  %v2905 = vpack.c.b16 %v2857, %v2851
  %2954 = vmatprep.subr.bf16.mxu0 %v2901
  %2955 = vmatpush1.bf16.msra.mxu0 %v2900
  %2956 = vmatprep.subr.bf16.mxu0 %v2895
  %2957 = vmatpush1.bf16.msra.mxu0 %v2894
  %2958 = vmatprep.subr.bf16.mxu0 %v2889
  %2959 = vmatpush1.bf16.msra.mxu0 %v2888
  %2960 = vmatprep.subr.bf16.mxu0 %v2883
  %2961 = vmatpush1.bf16.msra.mxu0 %v2882
  %2962 = vmatprep.subr.bf16.mxu0 %v2877
  %2963 = vmatpush1.bf16.msra.mxu0 %v2876
  %2964 = vmatprep.subr.bf16.mxu0 %v2871
  %2965 = vmatpush1.bf16.msra.mxu0 %v2870
  %2966 = vmatprep.subr.bf16.mxu0 %v2865
  %2967 = vmatpush1.bf16.msra.mxu0 %v2864
  %2968 = vmatprep.subr.bf16.mxu0 %v2859
  %2969 = vmatpush1.bf16.msra.mxu0 %v2858
  %2970 = vmatprep.subr.bf16.mxu0 0
  %2971 = vmatpush2.bf16.msra.mxu0 0
  %2972 = vmatprep.subr.bf16.mxu0 0
  %2973 = vmatpush2.bf16.msra.mxu0 0
  %2974 = vmatprep.subr.bf16.mxu0 0
  %2975 = vmatpush2.bf16.msra.mxu0 0
  %2976 = vmatprep.subr.bf16.mxu0 0
  %2977 = vmatpush2.bf16.msra.mxu0 0
  %2978 = vmatprep.subr.bf16.mxu0 0
  %2979 = vmatpush2.bf16.msra.mxu0 0
  %2980 = vmatprep.subr.bf16.mxu0 0
  %2981 = vmatpush2.bf16.msra.mxu0 0
  %2982 = vmatprep.subr.bf16.mxu0 0
  %2983 = vmatpush2.bf16.msra.mxu0 0
  %2984 = vmatprep.subr.bf16.mxu0 0
  %2985 = vmatpush2.bf16.msra.mxu0 0
  %2986 = vmatprep.mubr.bf16.mxu0 0
  %2987 = vmatmul.mubr.bf16.gmra.mxu0 %v2659
  %v2988 = vpop.f32.mrf.mxu0
  %v2989 = vadd.f32 %v2708, %v2988
  %v2990 = vpop.f32.mrf.mxu0
  %v2991 = vadd.f32 %v2709, %v2990
  %v2992 = vpop.f32.mrf.mxu0
  %v2993 = vpop.f32.mrf.mxu0
  %2994 = vdwg.mxu0
  %2995 = vmatprep.subr.bf16.mxu0 %v2903
  %2996 = vmatpush1.bf16.msra.mxu0 %v2902
  %2997 = vmatprep.subr.bf16.mxu0 %v2897
  %2998 = vmatpush1.bf16.msra.mxu0 %v2896
  %2999 = vmatprep.subr.bf16.mxu0 %v2891
  %3000 = vmatpush1.bf16.msra.mxu0 %v2890
  %3001 = vmatprep.subr.bf16.mxu0 %v2885
  %3002 = vmatpush1.bf16.msra.mxu0 %v2884
  %3003 = vmatprep.subr.bf16.mxu0 %v2879
  %3004 = vmatpush1.bf16.msra.mxu0 %v2878
  %3005 = vmatprep.subr.bf16.mxu0 %v2873
  %3006 = vmatpush1.bf16.msra.mxu0 %v2872
  %3007 = vmatprep.subr.bf16.mxu0 %v2867
  %3008 = vmatpush1.bf16.msra.mxu0 %v2866
  %3009 = vmatprep.subr.bf16.mxu0 %v2861
  %3010 = vmatpush1.bf16.msra.mxu0 %v2860
  %3011 = vmatprep.subr.bf16.mxu0 0
  %3012 = vmatpush2.bf16.msra.mxu0 0
  %3013 = vmatprep.subr.bf16.mxu0 0
  %3014 = vmatpush2.bf16.msra.mxu0 0
  %3015 = vmatprep.subr.bf16.mxu0 0
  %3016 = vmatpush2.bf16.msra.mxu0 0
  %3017 = vmatprep.subr.bf16.mxu0 0
  %3018 = vmatpush2.bf16.msra.mxu0 0
  %3019 = vmatprep.subr.bf16.mxu0 0
  %3020 = vmatpush2.bf16.msra.mxu0 0
  %3021 = vmatprep.subr.bf16.mxu0 0
  %3022 = vmatpush2.bf16.msra.mxu0 0
  %3023 = vmatprep.subr.bf16.mxu0 0
  %3024 = vmatpush2.bf16.msra.mxu0 0
  %3025 = vmatprep.subr.bf16.mxu0 0
  %3026 = vmatpush2.bf16.msra.mxu0 0
  %3027 = vmatprep.mubr.bf16.mxu0 0
  %3028 = vmatmul.mubr.bf16.gmra.mxu0 %v2659
  %v3029 = vpop.f32.mrf.mxu0
  %v3030 = vadd.f32 %v2710, %v3029
  %v3031 = vpop.f32.mrf.mxu0
  %v3032 = vadd.f32 %v2711, %v3031
  %v3033 = vpop.f32.mrf.mxu0
  %v3034 = vpop.f32.mrf.mxu0
  %3035 = vdwg.mxu0
  %3036 = vmatprep.subr.bf16.mxu0 %v2905
  %3037 = vmatpush1.bf16.msra.mxu0 %v2904
  %3038 = vmatprep.subr.bf16.mxu0 %v2899
  %3039 = vmatpush1.bf16.msra.mxu0 %v2898
  %3040 = vmatprep.subr.bf16.mxu0 %v2893
  %3041 = vmatpush1.bf16.msra.mxu0 %v2892
  %3042 = vmatprep.subr.bf16.mxu0 %v2887
  %3043 = vmatpush1.bf16.msra.mxu0 %v2886
  %3044 = vmatprep.subr.bf16.mxu0 %v2881
  %3045 = vmatpush1.bf16.msra.mxu0 %v2880
  %3046 = vmatprep.subr.bf16.mxu0 %v2875
  %3047 = vmatpush1.bf16.msra.mxu0 %v2874
  %3048 = vmatprep.subr.bf16.mxu0 %v2869
  %3049 = vmatpush1.bf16.msra.mxu0 %v2868
  %3050 = vmatprep.subr.bf16.mxu0 %v2863
  %3051 = vmatpush1.bf16.msra.mxu0 %v2862
  %3052 = vmatprep.subr.bf16.mxu0 0
  %3053 = vmatpush2.bf16.msra.mxu0 0
  %3054 = vmatprep.subr.bf16.mxu0 0
  %3055 = vmatpush2.bf16.msra.mxu0 0
  %3056 = vmatprep.subr.bf16.mxu0 0
  %3057 = vmatpush2.bf16.msra.mxu0 0
  %3058 = vmatprep.subr.bf16.mxu0 0
  %3059 = vmatpush2.bf16.msra.mxu0 0
  %3060 = vmatprep.subr.bf16.mxu0 0
  %3061 = vmatpush2.bf16.msra.mxu0 0
  %3062 = vmatprep.subr.bf16.mxu0 0
  %3063 = vmatpush2.bf16.msra.mxu0 0
  %3064 = vmatprep.subr.bf16.mxu0 0
  %3065 = vmatpush2.bf16.msra.mxu0 0
  %3066 = vmatprep.subr.bf16.mxu0 0
  %3067 = vmatpush2.bf16.msra.mxu0 0
  %3068 = vmatprep.mubr.bf16.mxu0 0
  %3069 = vmatmul.mubr.bf16.gmra.mxu0 %v2659
  %v3070 = vpop.f32.mrf.mxu0
  %v3071 = vadd.f32 %v2712, %v3070
  %v3072 = vpop.f32.mrf.mxu0
  %v3073 = vadd.f32 %v2713, %v3072
  %v3074 = vpop.f32.mrf.mxu0
  %v3075 = vpop.f32.mrf.mxu0
  %3076 = vdwg.mxu0
  %v3077 = vxor.u32 %v2991, 2147483648
  %v3078 = vmul.f32 %v3077, 1.442695
  %v3079 = vpow.pop %v3078
  %v3080 = vadd.f32 %v3079, 1.0
  %v3081 = vrcp.pop %v3080
  %v3082 = vmul.f32 1.0, %v3081
  %v3083 = vld [vmem:[%s5] sm:$0xf]
  %v3084 = vld [vmem:[%s5 + $0x4] sm:$0xf]
  %v3085 = vld [vmem:[%s5 + $0x8] sm:$0xf]
  %v3086 = vld [vmem:[%s5 + $0xc] sm:$0xf]
  %v3087 = vld [vmem:[%s5 + $0x10] sm:$0xf]
  %v3088 = vld [vmem:[%s5 + $0x14] sm:$0xf]
  %v3089 = vld [vmem:[%s5 + $0x18] sm:$0xf]
  %v3090 = vld [vmem:[%s5 + $0x1c] sm:$0xf]
  %v3091 = vld [vmem:[%s5 + $0x20] sm:$0xf]
  %v3092 = vld [vmem:[%s5 + $0x24] sm:$0xf]
  %v3093 = vld [vmem:[%s5 + $0x28] sm:$0xf]
  %v3094 = vld [vmem:[%s5 + $0x2c] sm:$0xf]
  %v3095 = vld [vmem:[%s5 + $0x30] sm:$0xf]
  %v3096 = vld [vmem:[%s5 + $0x34] sm:$0xf]
  %v3097 = vld [vmem:[%s5 + $0x38] sm:$0xf]
  %v3098 = vld [vmem:[%s5 + $0x3c] sm:$0xf]
  %v3099 = vpack.c.bf16 %v2989, %v2989
  %v3116 = vunpack.c.l.b16 %v3083
  %v3117 = vunpack.c.l.b16 %v3084
  %v3118 = vunpack.c.l.b16 %v3085
  %v3119 = vunpack.c.l.b16 %v3086
  %v3120 = vunpack.c.l.b16 %v3087
  %v3121 = vunpack.c.l.b16 %v3088
  %v3122 = vunpack.c.l.b16 %v3089
  %v3123 = vunpack.c.l.b16 %v3090
  %v3124 = vunpack.c.l.b16 %v3091
  %v3125 = vunpack.c.l.b16 %v3092
  %v3126 = vunpack.c.l.b16 %v3093
  %v3127 = vunpack.c.l.b16 %v3094
  %v3128 = vunpack.c.l.b16 %v3095
  %v3129 = vunpack.c.l.b16 %v3096
  %v3130 = vunpack.c.l.b16 %v3097
  %v3131 = vunpack.c.l.b16 %v3098
  %v3132 = vpack.c.b16 %v3117, %v3116
  %v3133 = vpack.c.b16 %v3119, %v3118
  %v3134 = vpack.c.b16 %v3121, %v3120
  %v3135 = vpack.c.b16 %v3123, %v3122
  %v3136 = vpack.c.b16 %v3125, %v3124
  %v3137 = vpack.c.b16 %v3127, %v3126
  %v3138 = vpack.c.b16 %v3129, %v3128
  %v3139 = vpack.c.b16 %v3131, %v3130
  %v3141 = vsel %vm1295, %v3132, 0
  %v3144 = vsel %vm1295, %v3133, 0
  %v3147 = vsel %vm1295, %v3134, 0
  %v3150 = vsel %vm1295, %v3135, 0
  %v3153 = vsel %vm1295, %v3136, 0
  %v3156 = vsel %vm1295, %v3137, 0
  %v3159 = vsel %vm1295, %v3138, 0
  %v3162 = vsel %vm1295, %v3139, 0
  %v3165 = vsel %vm1320, %v3099, 0
  %3167 = vmatprep.subr.bf16.mxu0 0
  %3168 = vmatpush1.bf16.msra.mxu0 0
  %3169 = vmatprep.subr.bf16.mxu0 0
  %3170 = vmatpush1.bf16.msra.mxu0 0
  %3171 = vmatprep.subr.bf16.mxu0 0
  %3172 = vmatpush1.bf16.msra.mxu0 0
  %3173 = vmatprep.subr.bf16.mxu0 0
  %3174 = vmatpush1.bf16.msra.mxu0 0
  %3175 = vmatprep.subr.bf16.mxu0 0
  %3176 = vmatpush1.bf16.msra.mxu0 0
  %3177 = vmatprep.subr.bf16.mxu0 0
  %3178 = vmatpush1.bf16.msra.mxu0 0
  %3179 = vmatprep.subr.bf16.mxu0 0
  %3180 = vmatpush1.bf16.msra.mxu0 0
  %3181 = vmatprep.subr.bf16.mxu0 0
  %3182 = vmatpush1.bf16.msra.mxu0 %v3165
  %3183 = vmatprep.subr.bf16.mxu0 0
  %3184 = vmatpush2.bf16.msra.mxu0 0
  %3185 = vmatprep.subr.bf16.mxu0 0
  %3186 = vmatpush2.bf16.msra.mxu0 0
  %3187 = vmatprep.subr.bf16.mxu0 0
  %3188 = vmatpush2.bf16.msra.mxu0 0
  %3189 = vmatprep.subr.bf16.mxu0 0
  %3190 = vmatpush2.bf16.msra.mxu0 0
  %3191 = vmatprep.subr.bf16.mxu0 0
  %3192 = vmatpush2.bf16.msra.mxu0 0
  %3193 = vmatprep.subr.bf16.mxu0 0
  %3194 = vmatpush2.bf16.msra.mxu0 0
  %3195 = vmatprep.subr.bf16.mxu0 0
  %3196 = vmatpush2.bf16.msra.mxu0 0
  %3197 = vmatprep.subr.bf16.mxu0 0
  %3198 = vmatpush2.bf16.msra.mxu0 0
  %3199 = vmatprep.mubr.bf16.mxu0 0
  %3200 = vmatmul.mubr.bf16.gmra.mxu0 %v3141
  %v3201 = vpop.f32.mrf.mxu0
  %v3202 = vadd.f32 0.0, %v3201
  %v3203 = vpop.f32.mrf.mxu0
  %v3204 = vpop.f32.mrf.mxu0
  %v3205 = vadd.f32 0.0, %v3204
  %v3206 = vpop.f32.mrf.mxu0
  %3207 = vmatprep.mubr.bf16.mxu0 0
  %3208 = vmatmul.mubr.bf16.gmra.mxu0 %v3144
  %v3209 = vpop.f32.mrf.mxu0
  %v3210 = vadd.f32 0.0, %v3209
  %v3211 = vpop.f32.mrf.mxu0
  %v3212 = vpop.f32.mrf.mxu0
  %v3213 = vadd.f32 0.0, %v3212
  %v3214 = vpop.f32.mrf.mxu0
  %3215 = vmatprep.mubr.bf16.mxu0 0
  %3216 = vmatmul.mubr.bf16.gmra.mxu0 %v3147
  %v3217 = vpop.f32.mrf.mxu0
  %v3218 = vadd.f32 0.0, %v3217
  %v3219 = vpop.f32.mrf.mxu0
  %v3220 = vpop.f32.mrf.mxu0
  %v3221 = vadd.f32 0.0, %v3220
  %v3222 = vpop.f32.mrf.mxu0
  %3223 = vmatprep.mubr.bf16.mxu0 0
  %3224 = vmatmul.mubr.bf16.gmra.mxu0 %v3150
  %v3225 = vpop.f32.mrf.mxu0
  %v3226 = vadd.f32 0.0, %v3225
  %v3227 = vpop.f32.mrf.mxu0
  %v3228 = vpop.f32.mrf.mxu0
  %v3229 = vadd.f32 0.0, %v3228
  %v3230 = vpop.f32.mrf.mxu0
  %3231 = vmatprep.mubr.bf16.mxu0 0
  %3232 = vmatmul.mubr.bf16.gmra.mxu0 %v3153
  %v3233 = vpop.f32.mrf.mxu0
  %v3234 = vadd.f32 0.0, %v3233
  %v3235 = vpop.f32.mrf.mxu0
  %v3236 = vpop.f32.mrf.mxu0
  %v3237 = vadd.f32 0.0, %v3236
  %v3238 = vpop.f32.mrf.mxu0
  %3239 = vmatprep.mubr.bf16.mxu0 0
  %3240 = vmatmul.mubr.bf16.gmra.mxu0 %v3156
  %v3241 = vpop.f32.mrf.mxu0
  %v3242 = vadd.f32 0.0, %v3241
  %v3243 = vpop.f32.mrf.mxu0
  %v3244 = vpop.f32.mrf.mxu0
  %v3245 = vadd.f32 0.0, %v3244
  %v3246 = vpop.f32.mrf.mxu0
  %3247 = vmatprep.mubr.bf16.mxu0 0
  %3248 = vmatmul.mubr.bf16.gmra.mxu0 %v3159
  %v3249 = vpop.f32.mrf.mxu0
  %v3250 = vadd.f32 0.0, %v3249
  %v3251 = vpop.f32.mrf.mxu0
  %v3252 = vpop.f32.mrf.mxu0
  %v3253 = vadd.f32 0.0, %v3252
  %v3254 = vpop.f32.mrf.mxu0
  %3255 = vmatprep.mubr.bf16.mxu0 0
  %3256 = vmatmul.mubr.bf16.gmra.mxu0 %v3162
  %v3257 = vpop.f32.mrf.mxu0
  %v3258 = vadd.f32 0.0, %v3257
  %v3259 = vpop.f32.mrf.mxu0
  %v3260 = vpop.f32.mrf.mxu0
  %v3261 = vadd.f32 0.0, %v3260
  %v3262 = vpop.f32.mrf.mxu0
  %3263 = vdwg.mxu0
  %v3264 = vld [vmem:[#allocation2] sm:$0xff]
  %v3265 = vld [vmem:[#allocation2 + $0x8] sm:$0xff]
  %v3266 = vld [vmem:[#allocation2 + $0x10] sm:$0xff]
  %v3267 = vld [vmem:[#allocation2 + $0x18] sm:$0xff]
  %v3268 = vld [vmem:[#allocation2 + $0x20] sm:$0xff]
  %v3269 = vld [vmem:[#allocation2 + $0x28] sm:$0xff]
  %v3270 = vld [vmem:[#allocation2 + $0x30] sm:$0xff]
  %v3271 = vld [vmem:[#allocation2 + $0x38] sm:$0xff]
  %v3272 = vld [vmem:[#allocation2 + $0x40] sm:$0xff]
  %v3273 = vld [vmem:[#allocation2 + $0x48] sm:$0xff]
  %v3274 = vld [vmem:[#allocation2 + $0x50] sm:$0xff]
  %v3275 = vld [vmem:[#allocation2 + $0x58] sm:$0xff]
  %v3276 = vld [vmem:[#allocation2 + $0x60] sm:$0xff]
  %v3277 = vld [vmem:[#allocation2 + $0x68] sm:$0xff]
  %v3278 = vld [vmem:[#allocation2 + $0x70] sm:$0xff]
  %v3279 = vld [vmem:[#allocation2 + $0x78] sm:$0xff]
  %v3280 = vadd.f32 %v3264, %v3202
  %v3281 = vadd.f32 %v3265, %v3205
  %v3282 = vadd.f32 %v3266, %v3210
  %v3283 = vadd.f32 %v3267, %v3213
  %v3284 = vadd.f32 %v3268, %v3218
  %v3285 = vadd.f32 %v3269, %v3221
  %v3286 = vadd.f32 %v3270, %v3226
  %v3287 = vadd.f32 %v3271, %v3229
  %v3288 = vadd.f32 %v3272, %v3234
  %v3289 = vadd.f32 %v3273, %v3237
  %v3290 = vadd.f32 %v3274, %v3242
  %v3291 = vadd.f32 %v3275, %v3245
  %v3292 = vadd.f32 %v3276, %v3250
  %v3293 = vadd.f32 %v3277, %v3253
  %v3294 = vadd.f32 %v3278, %v3258
  %v3295 = vadd.f32 %v3279, %v3261
  %v3296 = vmax.f32 %v3280, 0.0
  %v3297 = vmax.f32 %v3281, 0.0
  %v3298 = vmax.f32 %v3282, 0.0
  %v3299 = vmax.f32 %v3283, 0.0
  %v3300 = vmax.f32 %v3284, 0.0
  %v3301 = vmax.f32 %v3285, 0.0
  %v3302 = vmax.f32 %v3286, 0.0
  %v3303 = vmax.f32 %v3287, 0.0
  %v3304 = vmax.f32 %v3288, 0.0
  %v3305 = vmax.f32 %v3289, 0.0
  %v3306 = vmax.f32 %v3290, 0.0
  %v3307 = vmax.f32 %v3291, 0.0
  %v3308 = vmax.f32 %v3292, 0.0
  %v3309 = vmax.f32 %v3293, 0.0
  %v3310 = vmax.f32 %v3294, 0.0
  %v3311 = vmax.f32 %v3295, 0.0
  %v3312 = vld [vmem:[%s9] sm:$0xff]
  %v3313 = vld [vmem:[%s9 + $0x8] sm:$0xff]
  %v3314 = vld [vmem:[%s9 + $0x10] sm:$0xff]
  %v3315 = vld [vmem:[%s9 + $0x18] sm:$0xff]
  %v3316 = vld [vmem:[%s9 + $0x20] sm:$0xff]
  %v3317 = vld [vmem:[%s9 + $0x28] sm:$0xff]
  %v3318 = vld [vmem:[%s9 + $0x30] sm:$0xff]
  %v3319 = vld [vmem:[%s9 + $0x38] sm:$0xff]
  %v3320 = vld [vmem:[%s9 + $0x40] sm:$0xff]
  %v3321 = vld [vmem:[%s9 + $0x48] sm:$0xff]
  %v3322 = vld [vmem:[%s9 + $0x50] sm:$0xff]
  %v3323 = vld [vmem:[%s9 + $0x58] sm:$0xff]
  %v3324 = vld [vmem:[%s9 + $0x60] sm:$0xff]
  %v3325 = vld [vmem:[%s9 + $0x68] sm:$0xff]
  %v3326 = vld [vmem:[%s9 + $0x70] sm:$0xff]
  %v3327 = vld [vmem:[%s9 + $0x78] sm:$0xff]
  %v3328 = vmul.f32 %v3296, %v3312
  %v3329 = vmul.f32 %v3297, %v3313
  %v3330 = vmul.f32 %v3298, %v3314
  %v3331 = vmul.f32 %v3299, %v3315
  %v3332 = vmul.f32 %v3300, %v3316
  %v3333 = vmul.f32 %v3301, %v3317
  %v3334 = vmul.f32 %v3302, %v3318
  %v3335 = vmul.f32 %v3303, %v3319
  %v3336 = vmul.f32 %v3304, %v3320
  %v3337 = vmul.f32 %v3305, %v3321
  %v3338 = vmul.f32 %v3306, %v3322
  %v3339 = vmul.f32 %v3307, %v3323
  %v3340 = vmul.f32 %v3308, %v3324
  %v3341 = vmul.f32 %v3309, %v3325
  %v3342 = vmul.f32 %v3310, %v3326
  %v3343 = vmul.f32 %v3311, %v3327
  %3344 = vadd.xlane.f32.xlu0 %v3328
  %v3345 = vpop.xlane.xlu0 %3344
  %3346 = vadd.xlane.f32.xlu0 %v3329
  %v3347 = vpop.xlane.xlu0 %3346
  %3348 = vadd.xlane.f32.xlu0 %v3330
  %v3349 = vpop.xlane.xlu0 %3348
  %3350 = vadd.xlane.f32.xlu0 %v3331
  %v3351 = vpop.xlane.xlu0 %3350
  %3352 = vadd.xlane.f32.xlu0 %v3332
  %v3353 = vpop.xlane.xlu0 %3352
  %3354 = vadd.xlane.f32.xlu0 %v3333
  %v3355 = vpop.xlane.xlu0 %3354
  %3356 = vadd.xlane.f32.xlu0 %v3334
  %v3357 = vpop.xlane.xlu0 %3356
  %3358 = vadd.xlane.f32.xlu0 %v3335
  %v3359 = vpop.xlane.xlu0 %3358
  %3360 = vadd.xlane.f32.xlu0 %v3336
  %v3361 = vpop.xlane.xlu0 %3360
  %3362 = vadd.xlane.f32.xlu0 %v3337
  %v3363 = vpop.xlane.xlu0 %3362
  %3364 = vadd.xlane.f32.xlu0 %v3338
  %v3365 = vpop.xlane.xlu0 %3364
  %3366 = vadd.xlane.f32.xlu0 %v3339
  %v3367 = vpop.xlane.xlu0 %3366
  %3368 = vadd.xlane.f32.xlu0 %v3340
  %v3369 = vpop.xlane.xlu0 %3368
  %3370 = vadd.xlane.f32.xlu0 %v3341
  %v3371 = vpop.xlane.xlu0 %3370
  %3372 = vadd.xlane.f32.xlu0 %v3342
  %v3373 = vpop.xlane.xlu0 %3372
  %3374 = vadd.xlane.f32.xlu0 %v3343
  %v3375 = vpop.xlane.xlu0 %3374
  %v3376 = vmax.f32 %v3345, %v3347
  %v3377 = vrot.slane %v3376, 4
  %v3378 = vmax.f32 %v3376, %v3377
  %v3379 = vrot.slane %v3378, 2
  %v3380 = vmax.f32 %v3378, %v3379
  %v3381 = vrot.slane %v3380, 1
  %v3382 = vmax.f32 %v3380, %v3381
  %v3383 = vmax.f32 %v3349, %v3351
  %v3384 = vrot.slane %v3383, 4
  %v3385 = vmax.f32 %v3383, %v3384
  %v3386 = vrot.slane %v3385, 2
  %v3387 = vmax.f32 %v3385, %v3386
  %v3388 = vrot.slane %v3387, 1
  %v3389 = vmax.f32 %v3387, %v3388
  %v3390 = vmax.f32 %v3353, %v3355
  %v3391 = vrot.slane %v3390, 4
  %v3392 = vmax.f32 %v3390, %v3391
  %v3393 = vrot.slane %v3392, 2
  %v3394 = vmax.f32 %v3392, %v3393
  %v3395 = vrot.slane %v3394, 1
  %v3396 = vmax.f32 %v3394, %v3395
  %v3397 = vmax.f32 %v3357, %v3359
  %v3398 = vrot.slane %v3397, 4
  %v3399 = vmax.f32 %v3397, %v3398
  %v3400 = vrot.slane %v3399, 2
  %v3401 = vmax.f32 %v3399, %v3400
  %v3402 = vrot.slane %v3401, 1
  %v3403 = vmax.f32 %v3401, %v3402
  %v3404 = vmax.f32 %v3361, %v3363
  %v3405 = vrot.slane %v3404, 4
  %v3406 = vmax.f32 %v3404, %v3405
  %v3407 = vrot.slane %v3406, 2
  %v3408 = vmax.f32 %v3406, %v3407
  %v3409 = vrot.slane %v3408, 1
  %v3410 = vmax.f32 %v3408, %v3409
  %v3411 = vmax.f32 %v3365, %v3367
  %v3412 = vrot.slane %v3411, 4
  %v3413 = vmax.f32 %v3411, %v3412
  %v3414 = vrot.slane %v3413, 2
  %v3415 = vmax.f32 %v3413, %v3414
  %v3416 = vrot.slane %v3415, 1
  %v3417 = vmax.f32 %v3415, %v3416
  %v3418 = vmax.f32 %v3369, %v3371
  %v3419 = vrot.slane %v3418, 4
  %v3420 = vmax.f32 %v3418, %v3419
  %v3421 = vrot.slane %v3420, 2
  %v3422 = vmax.f32 %v3420, %v3421
  %v3423 = vrot.slane %v3422, 1
  %v3424 = vmax.f32 %v3422, %v3423
  %v3425 = vmax.f32 %v3373, %v3375
  %v3426 = vrot.slane %v3425, 4
  %v3427 = vmax.f32 %v3425, %v3426
  %v3428 = vrot.slane %v3427, 2
  %v3429 = vmax.f32 %v3427, %v3428
  %v3430 = vrot.slane %v3429, 1
  %v3431 = vmax.f32 %v3429, %v3430
  %v3432 = vsub.f32 %v3345, %v3382
  %v3433 = vsub.f32 %v3347, %v3382
  %v3434 = vsub.f32 %v3349, %v3389
  %v3435 = vsub.f32 %v3351, %v3389
  %v3436 = vsub.f32 %v3353, %v3396
  %v3437 = vsub.f32 %v3355, %v3396
  %v3438 = vsub.f32 %v3357, %v3403
  %v3439 = vsub.f32 %v3359, %v3403
  %v3440 = vsub.f32 %v3361, %v3410
  %v3441 = vsub.f32 %v3363, %v3410
  %v3442 = vsub.f32 %v3365, %v3417
  %v3443 = vsub.f32 %v3367, %v3417
  %v3444 = vsub.f32 %v3369, %v3424
  %v3445 = vsub.f32 %v3371, %v3424
  %v3446 = vsub.f32 %v3373, %v3431
  %v3447 = vsub.f32 %v3375, %v3431
  %v3448 = vmul.f32 %v3432, 1.442695
  %v3449 = vpow.pop %v3448
  %v3450 = vmul.f32 %v3433, 1.442695
  %v3451 = vpow.pop %v3450
  %v3452 = vmul.f32 %v3434, 1.442695
  %v3453 = vpow.pop %v3452
  %v3454 = vmul.f32 %v3435, 1.442695
  %v3455 = vpow.pop %v3454
  %v3456 = vmul.f32 %v3436, 1.442695
  %v3457 = vpow.pop %v3456
  %v3458 = vmul.f32 %v3437, 1.442695
  %v3459 = vpow.pop %v3458
  %v3460 = vmul.f32 %v3438, 1.442695
  %v3461 = vpow.pop %v3460
  %v3462 = vmul.f32 %v3439, 1.442695
  %v3463 = vpow.pop %v3462
  %v3464 = vmul.f32 %v3440, 1.442695
  %v3465 = vpow.pop %v3464
  %v3466 = vmul.f32 %v3441, 1.442695
  %v3467 = vpow.pop %v3466
  %v3468 = vmul.f32 %v3442, 1.442695
  %v3469 = vpow.pop %v3468
  %v3470 = vmul.f32 %v3443, 1.442695
  %v3471 = vpow.pop %v3470
  %v3472 = vmul.f32 %v3444, 1.442695
  %v3473 = vpow.pop %v3472
  %v3474 = vmul.f32 %v3445, 1.442695
  %v3475 = vpow.pop %v3474
  %v3476 = vmul.f32 %v3446, 1.442695
  %v3477 = vpow.pop %v3476
  %v3478 = vmul.f32 %v3447, 1.442695
  %v3479 = vpow.pop %v3478
  %v3480 = vadd.f32 %v3449, %v3451
  %v3481 = vrot.slane %v3480, 4
  %v3482 = vadd.f32 %v3480, %v3481
  %v3483 = vrot.slane %v3482, 2
  %v3484 = vadd.f32 %v3482, %v3483
  %v3485 = vrot.slane %v3484, 1
  %v3486 = vadd.f32 %v3484, %v3485
  %v3487 = vadd.f32 %v3453, %v3455
  %v3488 = vrot.slane %v3487, 4
  %v3489 = vadd.f32 %v3487, %v3488
  %v3490 = vrot.slane %v3489, 2
  %v3491 = vadd.f32 %v3489, %v3490
  %v3492 = vrot.slane %v3491, 1
  %v3493 = vadd.f32 %v3491, %v3492
  %v3494 = vadd.f32 %v3457, %v3459
  %v3495 = vrot.slane %v3494, 4
  %v3496 = vadd.f32 %v3494, %v3495
  %v3497 = vrot.slane %v3496, 2
  %v3498 = vadd.f32 %v3496, %v3497
  %v3499 = vrot.slane %v3498, 1
  %v3500 = vadd.f32 %v3498, %v3499
  %v3501 = vadd.f32 %v3461, %v3463
  %v3502 = vrot.slane %v3501, 4
  %v3503 = vadd.f32 %v3501, %v3502
  %v3504 = vrot.slane %v3503, 2
  %v3505 = vadd.f32 %v3503, %v3504
  %v3506 = vrot.slane %v3505, 1
  %v3507 = vadd.f32 %v3505, %v3506
  %v3508 = vadd.f32 %v3465, %v3467
  %v3509 = vrot.slane %v3508, 4
  %v3510 = vadd.f32 %v3508, %v3509
  %v3511 = vrot.slane %v3510, 2
  %v3512 = vadd.f32 %v3510, %v3511
  %v3513 = vrot.slane %v3512, 1
  %v3514 = vadd.f32 %v3512, %v3513
  %v3515 = vadd.f32 %v3469, %v3471
  %v3516 = vrot.slane %v3515, 4
  %v3517 = vadd.f32 %v3515, %v3516
  %v3518 = vrot.slane %v3517, 2
  %v3519 = vadd.f32 %v3517, %v3518
  %v3520 = vrot.slane %v3519, 1
  %v3521 = vadd.f32 %v3519, %v3520
  %v3522 = vadd.f32 %v3473, %v3475
  %v3523 = vrot.slane %v3522, 4
  %v3524 = vadd.f32 %v3522, %v3523
  %v3525 = vrot.slane %v3524, 2
  %v3526 = vadd.f32 %v3524, %v3525
  %v3527 = vrot.slane %v3526, 1
  %v3528 = vadd.f32 %v3526, %v3527
  %v3529 = vadd.f32 %v3477, %v3479
  %v3530 = vrot.slane %v3529, 4
  %v3531 = vadd.f32 %v3529, %v3530
  %v3532 = vrot.slane %v3531, 2
  %v3533 = vadd.f32 %v3531, %v3532
  %v3534 = vrot.slane %v3533, 1
  %v3535 = vadd.f32 %v3533, %v3534
  %v3536 = vrcp.pop %v3486
  %v3537 = vrcp.pop %v3493
  %v3538 = vrcp.pop %v3500
  %v3539 = vrcp.pop %v3507
  %v3540 = vrcp.pop %v3514
  %v3541 = vrcp.pop %v3521
  %v3542 = vrcp.pop %v3528
  %v3543 = vrcp.pop %v3535
  %v3544 = vmul.f32 %v3449, %v3536
  %v3545 = vmul.f32 %v3451, %v3536
  %v3546 = vmul.f32 %v3453, %v3537
  %v3547 = vmul.f32 %v3455, %v3537
  %v3548 = vmul.f32 %v3457, %v3538
  %v3549 = vmul.f32 %v3459, %v3538
  %v3550 = vmul.f32 %v3461, %v3539
  %v3551 = vmul.f32 %v3463, %v3539
  %v3552 = vmul.f32 %v3465, %v3540
  %v3553 = vmul.f32 %v3467, %v3540
  %v3554 = vmul.f32 %v3469, %v3541
  %v3555 = vmul.f32 %v3471, %v3541
  %v3556 = vmul.f32 %v3473, %v3542
  %v3557 = vmul.f32 %v3475, %v3542
  %v3558 = vmul.f32 %v3477, %v3543
  %v3559 = vmul.f32 %v3479, %v3543
  %v3560 = vld [vmem:[%s4] sm:$0xf]
  %v3561 = vld [vmem:[%s0] sm:$0xf]
  %v3562 = vld [vmem:[%s0 + $0x4] sm:$0xf]
  %v3563 = vld [vmem:[%s0 + $0x8] sm:$0xf]
  %v3564 = vld [vmem:[%s0 + $0xc] sm:$0xf]
  %v3565 = vld [vmem:[%s0 + $0x10] sm:$0xf]
  %v3566 = vld [vmem:[%s0 + $0x14] sm:$0xf]
  %v3567 = vld [vmem:[%s0 + $0x18] sm:$0xf]
  %v3568 = vld [vmem:[%s0 + $0x1c] sm:$0xf]
  %v3569 = vld [vmem:[%s0 + $0x20] sm:$0xf]
  %v3570 = vld [vmem:[%s0 + $0x24] sm:$0xf]
  %v3571 = vld [vmem:[%s0 + $0x28] sm:$0xf]
  %v3572 = vld [vmem:[%s0 + $0x2c] sm:$0xf]
  %v3573 = vld [vmem:[%s0 + $0x30] sm:$0xf]
  %v3574 = vld [vmem:[%s0 + $0x34] sm:$0xf]
  %v3575 = vld [vmem:[%s0 + $0x38] sm:$0xf]
  %v3576 = vld [vmem:[%s0 + $0x3c] sm:$0xf]
  %v3577 = vpack.c.bf16 %v3545, %v3544
  %v3578 = vpack.c.bf16 %v3547, %v3546
  %v3579 = vpack.c.bf16 %v3549, %v3548
  %v3580 = vpack.c.bf16 %v3551, %v3550
  %v3581 = vpack.c.bf16 %v3553, %v3552
  %v3582 = vpack.c.bf16 %v3555, %v3554
  %v3583 = vpack.c.bf16 %v3557, %v3556
  %v3584 = vpack.c.bf16 %v3559, %v3558
  %v3594 = vunpack.c.l.s4 839922192
  %v3595 = vunpack.c.0.s8 %v3594
  %v3596 = vlaneseq
  %v3597 = vshrl.u32 %v3596, 7
  %v3598 = vsub.s32 %v3595, %v3597
  %v3599 = vrot.slane %v3577, %v3598
  %v3601 = vunpack.c.l.s4 1985246804
  %v3602 = vunpack.c.0.s8 %v3601
  %v3603 = vlaneseq
  %v3604 = vshrl.u32 %v3603, 7
  %v3605 = vsub.s32 %v3602, %v3604
  %v3606 = vrot.slane %v3577, %v3605
  %v3608 = vunpack.c.l.s4 839922192
  %v3609 = vunpack.c.0.s8 %v3608
  %v3610 = vlaneseq
  %v3611 = vshrl.u32 %v3610, 7
  %v3612 = vsub.s32 %v3609, %v3611
  %v3613 = vrot.slane %v3578, %v3612
  %v3615 = vunpack.c.l.s4 1985246804
  %v3616 = vunpack.c.0.s8 %v3615
  %v3617 = vlaneseq
  %v3618 = vshrl.u32 %v3617, 7
  %v3619 = vsub.s32 %v3616, %v3618
  %v3620 = vrot.slane %v3578, %v3619
  %v3622 = vunpack.c.l.s4 839922192
  %v3623 = vunpack.c.0.s8 %v3622
  %v3624 = vlaneseq
  %v3625 = vshrl.u32 %v3624, 7
  %v3626 = vsub.s32 %v3623, %v3625
  %v3627 = vrot.slane %v3579, %v3626
  %v3629 = vunpack.c.l.s4 1985246804
  %v3630 = vunpack.c.0.s8 %v3629
  %v3631 = vlaneseq
  %v3632 = vshrl.u32 %v3631, 7
  %v3633 = vsub.s32 %v3630, %v3632
  %v3634 = vrot.slane %v3579, %v3633
  %v3636 = vunpack.c.l.s4 839922192
  %v3637 = vunpack.c.0.s8 %v3636
  %v3638 = vlaneseq
  %v3639 = vshrl.u32 %v3638, 7
  %v3640 = vsub.s32 %v3637, %v3639
  %v3641 = vrot.slane %v3580, %v3640
  %v3643 = vunpack.c.l.s4 1985246804
  %v3644 = vunpack.c.0.s8 %v3643
  %v3645 = vlaneseq
  %v3646 = vshrl.u32 %v3645, 7
  %v3647 = vsub.s32 %v3644, %v3646
  %v3648 = vrot.slane %v3580, %v3647
  %v3650 = vunpack.c.l.s4 839922192
  %v3651 = vunpack.c.0.s8 %v3650
  %v3652 = vlaneseq
  %v3653 = vshrl.u32 %v3652, 7
  %v3654 = vsub.s32 %v3651, %v3653
  %v3655 = vrot.slane %v3581, %v3654
  %v3657 = vunpack.c.l.s4 1985246804
  %v3658 = vunpack.c.0.s8 %v3657
  %v3659 = vlaneseq
  %v3660 = vshrl.u32 %v3659, 7
  %v3661 = vsub.s32 %v3658, %v3660
  %v3662 = vrot.slane %v3581, %v3661
  %v3664 = vunpack.c.l.s4 839922192
  %v3665 = vunpack.c.0.s8 %v3664
  %v3666 = vlaneseq
  %v3667 = vshrl.u32 %v3666, 7
  %v3668 = vsub.s32 %v3665, %v3667
  %v3669 = vrot.slane %v3582, %v3668
  %v3671 = vunpack.c.l.s4 1985246804
  %v3672 = vunpack.c.0.s8 %v3671
  %v3673 = vlaneseq
  %v3674 = vshrl.u32 %v3673, 7
  %v3675 = vsub.s32 %v3672, %v3674
  %v3676 = vrot.slane %v3582, %v3675
  %v3678 = vunpack.c.l.s4 839922192
  %v3679 = vunpack.c.0.s8 %v3678
  %v3680 = vlaneseq
  %v3681 = vshrl.u32 %v3680, 7
  %v3682 = vsub.s32 %v3679, %v3681
  %v3683 = vrot.slane %v3583, %v3682
  %v3685 = vunpack.c.l.s4 1985246804
  %v3686 = vunpack.c.0.s8 %v3685
  %v3687 = vlaneseq
  %v3688 = vshrl.u32 %v3687, 7
  %v3689 = vsub.s32 %v3686, %v3688
  %v3690 = vrot.slane %v3583, %v3689
  %v3692 = vunpack.c.l.s4 839922192
  %v3693 = vunpack.c.0.s8 %v3692
  %v3694 = vlaneseq
  %v3695 = vshrl.u32 %v3694, 7
  %v3696 = vsub.s32 %v3693, %v3695
  %v3697 = vrot.slane %v3584, %v3696
  %v3699 = vunpack.c.l.s4 1985246804
  %v3700 = vunpack.c.0.s8 %v3699
  %v3701 = vlaneseq
  %v3702 = vshrl.u32 %v3701, 7
  %v3703 = vsub.s32 %v3700, %v3702
  %v3704 = vrot.slane %v3584, %v3703
  %v3721 = vmul.bf16 %v3561, %v3599
  %v3722 = vmul.bf16 %v3562, %v3606
  %v3723 = vmul.bf16 %v3563, %v3613
  %v3724 = vmul.bf16 %v3564, %v3620
  %v3725 = vmul.bf16 %v3565, %v3627
  %v3726 = vmul.bf16 %v3566, %v3634
  %v3727 = vmul.bf16 %v3567, %v3641
  %v3728 = vmul.bf16 %v3568, %v3648
  %v3729 = vmul.bf16 %v3569, %v3655
  %v3730 = vmul.bf16 %v3570, %v3662
  %v3731 = vmul.bf16 %v3571, %v3669
  %v3732 = vmul.bf16 %v3572, %v3676
  %v3733 = vmul.bf16 %v3573, %v3683
  %v3734 = vmul.bf16 %v3574, %v3690
  %v3735 = vmul.bf16 %v3575, %v3697
  %v3736 = vmul.bf16 %v3576, %v3704
  %v3753 = vunpack.c.l.b16 %v3721
  %v3754 = vunpack.c.l.b16 %v3722
  %v3755 = vunpack.c.l.b16 %v3723
  %v3756 = vunpack.c.l.b16 %v3724
  %v3757 = vunpack.c.l.b16 %v3725
  %v3758 = vunpack.c.l.b16 %v3726
  %v3759 = vunpack.c.l.b16 %v3727
  %v3760 = vunpack.c.l.b16 %v3728
  %v3761 = vunpack.c.l.b16 %v3729
  %v3762 = vunpack.c.l.b16 %v3730
  %v3763 = vunpack.c.l.b16 %v3731
  %v3764 = vunpack.c.l.b16 %v3732
  %v3765 = vunpack.c.l.b16 %v3733
  %v3766 = vunpack.c.l.b16 %v3734
  %v3767 = vunpack.c.l.b16 %v3735
  %v3768 = vunpack.c.l.b16 %v3736
  %v3769 = vpack.c.b16 %v3754, %v3753
  %v3770 = vpack.c.b16 %v3756, %v3755
  %v3771 = vpack.c.b16 %v3758, %v3757
  %v3772 = vpack.c.b16 %v3760, %v3759
  %v3773 = vpack.c.b16 %v3762, %v3761
  %v3774 = vpack.c.b16 %v3764, %v3763
  %v3775 = vpack.c.b16 %v3766, %v3765
  %v3776 = vpack.c.b16 %v3768, %v3767
  %3785 = vmatprep.subr.bf16.mxu0 0
  %3786 = vmatpush1.bf16.msra.mxu0 %v3776
  %3787 = vmatprep.subr.bf16.mxu0 0
  %3788 = vmatpush1.bf16.msra.mxu0 %v3775
  %3789 = vmatprep.subr.bf16.mxu0 0
  %3790 = vmatpush1.bf16.msra.mxu0 %v3774
  %3791 = vmatprep.subr.bf16.mxu0 0
  %3792 = vmatpush1.bf16.msra.mxu0 %v3773
  %3793 = vmatprep.subr.bf16.mxu0 0
  %3794 = vmatpush1.bf16.msra.mxu0 %v3772
  %3795 = vmatprep.subr.bf16.mxu0 0
  %3796 = vmatpush1.bf16.msra.mxu0 %v3771
  %3797 = vmatprep.subr.bf16.mxu0 0
  %3798 = vmatpush1.bf16.msra.mxu0 %v3770
  %3799 = vmatprep.subr.bf16.mxu0 0
  %3800 = vmatpush1.bf16.msra.mxu0 %v3769
  %3801 = vmatprep.subr.bf16.mxu0 0
  %3802 = vmatpush2.bf16.msra.mxu0 0
  %3803 = vmatprep.subr.bf16.mxu0 0
  %3804 = vmatpush2.bf16.msra.mxu0 0
  %3805 = vmatprep.subr.bf16.mxu0 0
  %3806 = vmatpush2.bf16.msra.mxu0 0
  %3807 = vmatprep.subr.bf16.mxu0 0
  %3808 = vmatpush2.bf16.msra.mxu0 0
  %3809 = vmatprep.subr.bf16.mxu0 0
  %3810 = vmatpush2.bf16.msra.mxu0 0
  %3811 = vmatprep.subr.bf16.mxu0 0
  %3812 = vmatpush2.bf16.msra.mxu0 0
  %3813 = vmatprep.subr.bf16.mxu0 0
  %3814 = vmatpush2.bf16.msra.mxu0 0
  %3815 = vmatprep.subr.bf16.mxu0 0
  %3816 = vmatpush2.bf16.msra.mxu0 0
  %3817 = vmatprep.mubr.bf16.mxu0 0
  %3818 = vmatmul.mubr.bf16.gmra.mxu0 %v3560
  %v3819 = vpop.f32.mrf.mxu0
  %v3820 = vadd.f32 0.0, %v3819
  %v3821 = vpop.f32.mrf.mxu0
  %v3822 = vpop.f32.mrf.mxu0
  %v3823 = vpop.f32.mrf.mxu0
  %3824 = vdwg.mxu0
  %v3825 = vmul.f32 %v3082, %v3820
  %v3826 = vpack.c.bf16 %v778, %v778
  %v3827 = vpack.c.bf16 %v3825, %v3825
  %v3828 = vld [vmem:[%s14] sm:$0xff]
  %v3829 = vld [vmem:[%s14 + $0x8] sm:$0xff]
  %v3830 = vld [vmem:[%s14 + $0x10] sm:$0xff]
  %v3831 = vld [vmem:[%s14 + $0x18] sm:$0xff]
  %v3832 = vld [vmem:[%s14 + $0x20] sm:$0xff]
  %v3833 = vld [vmem:[%s14 + $0x28] sm:$0xff]
  %v3834 = vld [vmem:[%s14 + $0x30] sm:$0xff]
  %v3835 = vld [vmem:[%s14 + $0x38] sm:$0xff]
  %v3836 = vld [vmem:[%s14 + $0x40] sm:$0xff]
  %v3837 = vld [vmem:[%s14 + $0x48] sm:$0xff]
  %v3838 = vld [vmem:[%s14 + $0x50] sm:$0xff]
  %v3839 = vld [vmem:[%s14 + $0x58] sm:$0xff]
  %v3840 = vld [vmem:[%s14 + $0x60] sm:$0xff]
  %v3841 = vld [vmem:[%s14 + $0x68] sm:$0xff]
  %v3842 = vld [vmem:[%s14 + $0x70] sm:$0xff]
  %v3843 = vld [vmem:[%s14 + $0x78] sm:$0xff]
  %v3844 = vld [vmem:[%s14 + $0x80] sm:$0xff]
  %v3845 = vld [vmem:[%s14 + $0x88] sm:$0xff]
  %v3846 = vld [vmem:[%s14 + $0x90] sm:$0xff]
  %v3847 = vld [vmem:[%s14 + $0x98] sm:$0xff]
  %v3848 = vld [vmem:[%s14 + $0xa0] sm:$0xff]
  %v3849 = vld [vmem:[%s14 + $0xa8] sm:$0xff]
  %v3850 = vld [vmem:[%s14 + $0xb0] sm:$0xff]
  %v3851 = vld [vmem:[%s14 + $0xb8] sm:$0xff]
  %v3852 = vld [vmem:[%s14 + $0xc0] sm:$0xff]
  %v3853 = vld [vmem:[%s14 + $0xc8] sm:$0xff]
  %v3854 = vld [vmem:[%s14 + $0xd0] sm:$0xff]
  %v3855 = vld [vmem:[%s14 + $0xd8] sm:$0xff]
  %v3856 = vld [vmem:[%s14 + $0xe0] sm:$0xff]
  %v3857 = vld [vmem:[%s14 + $0xe8] sm:$0xff]
  %v3858 = vld [vmem:[%s14 + $0xf0] sm:$0xff]
  %v3859 = vld [vmem:[%s14 + $0xf8] sm:$0xff]
  %v3860 = vld [vmem:[%s14 + $0x100] sm:$0xff]
  %v3861 = vld [vmem:[%s14 + $0x108] sm:$0xff]
  %v3862 = vld [vmem:[%s14 + $0x110] sm:$0xff]
  %v3863 = vld [vmem:[%s14 + $0x118] sm:$0xff]
  %v3864 = vld [vmem:[%s14 + $0x120] sm:$0xff]
  %v3865 = vld [vmem:[%s14 + $0x128] sm:$0xff]
  %v3866 = vld [vmem:[%s14 + $0x130] sm:$0xff]
  %v3867 = vld [vmem:[%s14 + $0x138] sm:$0xff]
  %v3868 = vld [vmem:[%s14 + $0x140] sm:$0xff]
  %v3869 = vld [vmem:[%s14 + $0x148] sm:$0xff]
  %v3870 = vld [vmem:[%s14 + $0x150] sm:$0xff]
  %v3871 = vld [vmem:[%s14 + $0x158] sm:$0xff]
  %v3872 = vld [vmem:[%s14 + $0x160] sm:$0xff]
  %v3873 = vld [vmem:[%s14 + $0x168] sm:$0xff]
  %v3874 = vld [vmem:[%s14 + $0x170] sm:$0xff]
  %v3875 = vld [vmem:[%s14 + $0x178] sm:$0xff]
  %v3876 = vld [vmem:[%s14 + $0x180] sm:$0xff]
  %v3877 = vld [vmem:[%s14 + $0x188] sm:$0xff]
  %v3878 = vld [vmem:[%s14 + $0x190] sm:$0xff]
  %v3879 = vld [vmem:[%s14 + $0x198] sm:$0xff]
  %v3880 = vld [vmem:[%s14 + $0x1a0] sm:$0xff]
  %v3881 = vld [vmem:[%s14 + $0x1a8] sm:$0xff]
  %v3882 = vld [vmem:[%s14 + $0x1b0] sm:$0xff]
  %v3883 = vld [vmem:[%s14 + $0x1b8] sm:$0xff]
  %v3884 = vld [vmem:[%s14 + $0x1c0] sm:$0xff]
  %v3885 = vld [vmem:[%s14 + $0x1c8] sm:$0xff]
  %v3886 = vld [vmem:[%s14 + $0x1d0] sm:$0xff]
  %v3887 = vld [vmem:[%s14 + $0x1d8] sm:$0xff]
  %v3888 = vld [vmem:[%s14 + $0x1e0] sm:$0xff]
  %v3889 = vld [vmem:[%s14 + $0x1e8] sm:$0xff]
  %v3890 = vld [vmem:[%s14 + $0x1f0] sm:$0xff]
  %v3891 = vld [vmem:[%s14 + $0x1f8] sm:$0xff]
  %v3956 = vunpack.c.l.b16 %v3828
  %v3957 = vunpack.c.h.b16 %v3828
  %v3958 = vunpack.c.l.b16 %v3829
  %v3959 = vunpack.c.h.b16 %v3829
  %v3960 = vunpack.c.l.b16 %v3830
  %v3961 = vunpack.c.h.b16 %v3830
  %v3962 = vunpack.c.l.b16 %v3831
  %v3963 = vunpack.c.h.b16 %v3831
  %v3964 = vunpack.c.l.b16 %v3832
  %v3965 = vunpack.c.h.b16 %v3832
  %v3966 = vunpack.c.l.b16 %v3833
  %v3967 = vunpack.c.h.b16 %v3833
  %v3968 = vunpack.c.l.b16 %v3834
  %v3969 = vunpack.c.h.b16 %v3834
  %v3970 = vunpack.c.l.b16 %v3835
  %v3971 = vunpack.c.h.b16 %v3835
  %v3972 = vunpack.c.l.b16 %v3836
  %v3973 = vunpack.c.h.b16 %v3836
  %v3974 = vunpack.c.l.b16 %v3837
  %v3975 = vunpack.c.h.b16 %v3837
  %v3976 = vunpack.c.l.b16 %v3838
  %v3977 = vunpack.c.h.b16 %v3838
  %v3978 = vunpack.c.l.b16 %v3839
  %v3979 = vunpack.c.h.b16 %v3839
  %v3980 = vunpack.c.l.b16 %v3840
  %v3981 = vunpack.c.h.b16 %v3840
  %v3982 = vunpack.c.l.b16 %v3841
  %v3983 = vunpack.c.h.b16 %v3841
  %v3984 = vunpack.c.l.b16 %v3842
  %v3985 = vunpack.c.h.b16 %v3842
  %v3986 = vunpack.c.l.b16 %v3843
  %v3987 = vunpack.c.h.b16 %v3843
  %v3988 = vunpack.c.l.b16 %v3844
  %v3989 = vunpack.c.h.b16 %v3844
  %v3990 = vunpack.c.l.b16 %v3845
  %v3991 = vunpack.c.h.b16 %v3845
  %v3992 = vunpack.c.l.b16 %v3846
  %v3993 = vunpack.c.h.b16 %v3846
  %v3994 = vunpack.c.l.b16 %v3847
  %v3995 = vunpack.c.h.b16 %v3847
  %v3996 = vunpack.c.l.b16 %v3848
  %v3997 = vunpack.c.h.b16 %v3848
  %v3998 = vunpack.c.l.b16 %v3849
  %v3999 = vunpack.c.h.b16 %v3849
  %v4000 = vunpack.c.l.b16 %v3850
  %v4001 = vunpack.c.h.b16 %v3850
  %v4002 = vunpack.c.l.b16 %v3851
  %v4003 = vunpack.c.h.b16 %v3851
  %v4004 = vunpack.c.l.b16 %v3852
  %v4005 = vunpack.c.h.b16 %v3852
  %v4006 = vunpack.c.l.b16 %v3853
  %v4007 = vunpack.c.h.b16 %v3853
  %v4008 = vunpack.c.l.b16 %v3854
  %v4009 = vunpack.c.h.b16 %v3854
  %v4010 = vunpack.c.l.b16 %v3855
  %v4011 = vunpack.c.h.b16 %v3855
  %v4012 = vunpack.c.l.b16 %v3856
  %v4013 = vunpack.c.h.b16 %v3856
  %v4014 = vunpack.c.l.b16 %v3857
  %v4015 = vunpack.c.h.b16 %v3857
  %v4016 = vunpack.c.l.b16 %v3858
  %v4017 = vunpack.c.h.b16 %v3858
  %v4018 = vunpack.c.l.b16 %v3859
  %v4019 = vunpack.c.h.b16 %v3859
  %v4020 = vunpack.c.l.b16 %v3860
  %v4021 = vunpack.c.h.b16 %v3860
  %v4022 = vunpack.c.l.b16 %v3861
  %v4023 = vunpack.c.h.b16 %v3861
  %v4024 = vunpack.c.l.b16 %v3862
  %v4025 = vunpack.c.h.b16 %v3862
  %v4026 = vunpack.c.l.b16 %v3863
  %v4027 = vunpack.c.h.b16 %v3863
  %v4028 = vunpack.c.l.b16 %v3864
  %v4029 = vunpack.c.h.b16 %v3864
  %v4030 = vunpack.c.l.b16 %v3865
  %v4031 = vunpack.c.h.b16 %v3865
  %v4032 = vunpack.c.l.b16 %v3866
  %v4033 = vunpack.c.h.b16 %v3866
  %v4034 = vunpack.c.l.b16 %v3867
  %v4035 = vunpack.c.h.b16 %v3867
  %v4036 = vunpack.c.l.b16 %v3868
  %v4037 = vunpack.c.h.b16 %v3868
  %v4038 = vunpack.c.l.b16 %v3869
  %v4039 = vunpack.c.h.b16 %v3869
  %v4040 = vunpack.c.l.b16 %v3870
  %v4041 = vunpack.c.h.b16 %v3870
  %v4042 = vunpack.c.l.b16 %v3871
  %v4043 = vunpack.c.h.b16 %v3871
  %v4044 = vunpack.c.l.b16 %v3872
  %v4045 = vunpack.c.h.b16 %v3872
  %v4046 = vunpack.c.l.b16 %v3873
  %v4047 = vunpack.c.h.b16 %v3873
  %v4048 = vunpack.c.l.b16 %v3874
  %v4049 = vunpack.c.h.b16 %v3874
  %v4050 = vunpack.c.l.b16 %v3875
  %v4051 = vunpack.c.h.b16 %v3875
  %v4052 = vunpack.c.l.b16 %v3876
  %v4053 = vunpack.c.h.b16 %v3876
  %v4054 = vunpack.c.l.b16 %v3877
  %v4055 = vunpack.c.h.b16 %v3877
  %v4056 = vunpack.c.l.b16 %v3878
  %v4057 = vunpack.c.h.b16 %v3878
  %v4058 = vunpack.c.l.b16 %v3879
  %v4059 = vunpack.c.h.b16 %v3879
  %v4060 = vunpack.c.l.b16 %v3880
  %v4061 = vunpack.c.h.b16 %v3880
  %v4062 = vunpack.c.l.b16 %v3881
  %v4063 = vunpack.c.h.b16 %v3881
  %v4064 = vunpack.c.l.b16 %v3882
  %v4065 = vunpack.c.h.b16 %v3882
  %v4066 = vunpack.c.l.b16 %v3883
  %v4067 = vunpack.c.h.b16 %v3883
  %v4068 = vunpack.c.l.b16 %v3884
  %v4069 = vunpack.c.h.b16 %v3884
  %v4070 = vunpack.c.l.b16 %v3885
  %v4071 = vunpack.c.h.b16 %v3885
  %v4072 = vunpack.c.l.b16 %v3886
  %v4073 = vunpack.c.h.b16 %v3886
  %v4074 = vunpack.c.l.b16 %v3887
  %v4075 = vunpack.c.h.b16 %v3887
  %v4076 = vunpack.c.l.b16 %v3888
  %v4077 = vunpack.c.h.b16 %v3888
  %v4078 = vunpack.c.l.b16 %v3889
  %v4079 = vunpack.c.h.b16 %v3889
  %v4080 = vunpack.c.l.b16 %v3890
  %v4081 = vunpack.c.h.b16 %v3890
  %v4082 = vunpack.c.l.b16 %v3891
  %v4083 = vunpack.c.h.b16 %v3891
  %v4084 = vpack.c.b16 %v3960, %v3956
  %v4085 = vpack.c.b16 %v3961, %v3957
  %v4086 = vpack.c.b16 %v3962, %v3958
  %v4087 = vpack.c.b16 %v3963, %v3959
  %v4088 = vpack.c.b16 %v3968, %v3964
  %v4089 = vpack.c.b16 %v3969, %v3965
  %v4090 = vpack.c.b16 %v3970, %v3966
  %v4091 = vpack.c.b16 %v3971, %v3967
  %v4092 = vpack.c.b16 %v3976, %v3972
  %v4093 = vpack.c.b16 %v3977, %v3973
  %v4094 = vpack.c.b16 %v3978, %v3974
  %v4095 = vpack.c.b16 %v3979, %v3975
  %v4096 = vpack.c.b16 %v3984, %v3980
  %v4097 = vpack.c.b16 %v3985, %v3981
  %v4098 = vpack.c.b16 %v3986, %v3982
  %v4099 = vpack.c.b16 %v3987, %v3983
  %v4100 = vpack.c.b16 %v3992, %v3988
  %v4101 = vpack.c.b16 %v3993, %v3989
  %v4102 = vpack.c.b16 %v3994, %v3990
  %v4103 = vpack.c.b16 %v3995, %v3991
  %v4104 = vpack.c.b16 %v4000, %v3996
  %v4105 = vpack.c.b16 %v4001, %v3997
  %v4106 = vpack.c.b16 %v4002, %v3998
  %v4107 = vpack.c.b16 %v4003, %v3999
  %v4108 = vpack.c.b16 %v4008, %v4004
  %v4109 = vpack.c.b16 %v4009, %v4005
  %v4110 = vpack.c.b16 %v4010, %v4006
  %v4111 = vpack.c.b16 %v4011, %v4007
  %v4112 = vpack.c.b16 %v4016, %v4012
  %v4113 = vpack.c.b16 %v4017, %v4013
  %v4114 = vpack.c.b16 %v4018, %v4014
  %v4115 = vpack.c.b16 %v4019, %v4015
  %v4116 = vpack.c.b16 %v4024, %v4020
  %v4117 = vpack.c.b16 %v4025, %v4021
  %v4118 = vpack.c.b16 %v4026, %v4022
  %v4119 = vpack.c.b16 %v4027, %v4023
  %v4120 = vpack.c.b16 %v4032, %v4028
  %v4121 = vpack.c.b16 %v4033, %v4029
  %v4122 = vpack.c.b16 %v4034, %v4030
  %v4123 = vpack.c.b16 %v4035, %v4031
  %v4124 = vpack.c.b16 %v4040, %v4036
  %v4125 = vpack.c.b16 %v4041, %v4037
  %v4126 = vpack.c.b16 %v4042, %v4038
  %v4127 = vpack.c.b16 %v4043, %v4039
  %v4128 = vpack.c.b16 %v4048, %v4044
  %v4129 = vpack.c.b16 %v4049, %v4045
  %v4130 = vpack.c.b16 %v4050, %v4046
  %v4131 = vpack.c.b16 %v4051, %v4047
  %v4132 = vpack.c.b16 %v4056, %v4052
  %v4133 = vpack.c.b16 %v4057, %v4053
  %v4134 = vpack.c.b16 %v4058, %v4054
  %v4135 = vpack.c.b16 %v4059, %v4055
  %v4136 = vpack.c.b16 %v4064, %v4060
  %v4137 = vpack.c.b16 %v4065, %v4061
  %v4138 = vpack.c.b16 %v4066, %v4062
  %v4139 = vpack.c.b16 %v4067, %v4063
  %v4140 = vpack.c.b16 %v4072, %v4068
  %v4141 = vpack.c.b16 %v4073, %v4069
  %v4142 = vpack.c.b16 %v4074, %v4070
  %v4143 = vpack.c.b16 %v4075, %v4071
  %v4144 = vpack.c.b16 %v4080, %v4076
  %v4145 = vpack.c.b16 %v4081, %v4077
  %v4146 = vpack.c.b16 %v4082, %v4078
  %v4147 = vpack.c.b16 %v4083, %v4079
  %4212 = vmatprep.subr.bf16.mxu0 %v4113
  %4213 = vmatpush1.bf16.msra.mxu0 %v4112
  %4214 = vmatprep.subr.bf16.mxu0 %v4109
  %4215 = vmatpush1.bf16.msra.mxu0 %v4108
  %4216 = vmatprep.subr.bf16.mxu0 %v4105
  %4217 = vmatpush1.bf16.msra.mxu0 %v4104
  %4218 = vmatprep.subr.bf16.mxu0 %v4101
  %4219 = vmatpush1.bf16.msra.mxu0 %v4100
  %4220 = vmatprep.subr.bf16.mxu0 %v4097
  %4221 = vmatpush1.bf16.msra.mxu0 %v4096
  %4222 = vmatprep.subr.bf16.mxu0 %v4093
  %4223 = vmatpush1.bf16.msra.mxu0 %v4092
  %4224 = vmatprep.subr.bf16.mxu0 %v4089
  %4225 = vmatpush1.bf16.msra.mxu0 %v4088
  %4226 = vmatprep.subr.bf16.mxu0 %v4085
  %4227 = vmatpush1.bf16.msra.mxu0 %v4084
  %4228 = vmatprep.subr.bf16.mxu0 %v4145
  %4229 = vmatpush2.bf16.msra.mxu0 %v4144
  %4230 = vmatprep.subr.bf16.mxu0 %v4141
  %4231 = vmatpush2.bf16.msra.mxu0 %v4140
  %4232 = vmatprep.subr.bf16.mxu0 %v4137
  %4233 = vmatpush2.bf16.msra.mxu0 %v4136
  %4234 = vmatprep.subr.bf16.mxu0 %v4133
  %4235 = vmatpush2.bf16.msra.mxu0 %v4132
  %4236 = vmatprep.subr.bf16.mxu0 %v4129
  %4237 = vmatpush2.bf16.msra.mxu0 %v4128
  %4238 = vmatprep.subr.bf16.mxu0 %v4125
  %4239 = vmatpush2.bf16.msra.mxu0 %v4124
  %4240 = vmatprep.subr.bf16.mxu0 %v4121
  %4241 = vmatpush2.bf16.msra.mxu0 %v4120
  %4242 = vmatprep.subr.bf16.mxu0 %v4117
  %4243 = vmatpush2.bf16.msra.mxu0 %v4116
  %4244 = vmatprep.mubr.bf16.mxu0 %v3827
  %4245 = vmatmul.mubr.bf16.gmra.mxu0 %v3826
  %v4246 = vpop.f32.mrf.mxu0
  %v4247 = vadd.f32 %v3030, %v4246
  %v4248 = vpop.f32.mrf.mxu0
  %v4249 = vadd.f32 %v3032, %v4248
  %v4250 = vpop.f32.mrf.mxu0
  %v4251 = vpop.f32.mrf.mxu0
  %4252 = vdwg.mxu0
  %4253 = vmatprep.subr.bf16.mxu0 %v4115
  %4254 = vmatpush1.bf16.msra.mxu0 %v4114
  %4255 = vmatprep.subr.bf16.mxu0 %v4111
  %4256 = vmatpush1.bf16.msra.mxu0 %v4110
  %4257 = vmatprep.subr.bf16.mxu0 %v4107
  %4258 = vmatpush1.bf16.msra.mxu0 %v4106
  %4259 = vmatprep.subr.bf16.mxu0 %v4103
  %4260 = vmatpush1.bf16.msra.mxu0 %v4102
  %4261 = vmatprep.subr.bf16.mxu0 %v4099
  %4262 = vmatpush1.bf16.msra.mxu0 %v4098
  %4263 = vmatprep.subr.bf16.mxu0 %v4095
  %4264 = vmatpush1.bf16.msra.mxu0 %v4094
  %4265 = vmatprep.subr.bf16.mxu0 %v4091
  %4266 = vmatpush1.bf16.msra.mxu0 %v4090
  %4267 = vmatprep.subr.bf16.mxu0 %v4087
  %4268 = vmatpush1.bf16.msra.mxu0 %v4086
  %4269 = vmatprep.subr.bf16.mxu0 %v4147
  %4270 = vmatpush2.bf16.msra.mxu0 %v4146
  %4271 = vmatprep.subr.bf16.mxu0 %v4143
  %4272 = vmatpush2.bf16.msra.mxu0 %v4142
  %4273 = vmatprep.subr.bf16.mxu0 %v4139
  %4274 = vmatpush2.bf16.msra.mxu0 %v4138
  %4275 = vmatprep.subr.bf16.mxu0 %v4135
  %4276 = vmatpush2.bf16.msra.mxu0 %v4134
  %4277 = vmatprep.subr.bf16.mxu0 %v4131
  %4278 = vmatpush2.bf16.msra.mxu0 %v4130
  %4279 = vmatprep.subr.bf16.mxu0 %v4127
  %4280 = vmatpush2.bf16.msra.mxu0 %v4126
  %4281 = vmatprep.subr.bf16.mxu0 %v4123
  %4282 = vmatpush2.bf16.msra.mxu0 %v4122
  %4283 = vmatprep.subr.bf16.mxu0 %v4119
  %4284 = vmatpush2.bf16.msra.mxu0 %v4118
  %4285 = vmatprep.mubr.bf16.mxu0 %v3827
  %4286 = vmatmul.mubr.bf16.gmra.mxu0 %v3826
  %v4287 = vpop.f32.mrf.mxu0
  %v4288 = vadd.f32 %v3071, %v4287
  %v4289 = vpop.f32.mrf.mxu0
  %v4290 = vadd.f32 %v3073, %v4289
  %v4291 = vpop.f32.mrf.mxu0
  %v4292 = vpop.f32.mrf.mxu0
  %4293 = vdwg.mxu0
  %v4294 = vxor.u32 %v4247, 2147483648
  %v4295 = vmul.f32 %v4294, 1.442695
  %v4296 = vpow.pop %v4295
  %v4297 = vadd.f32 %v4296, 1.0
  %v4298 = vrcp.pop %v4297
  %v4299 = vmul.f32 1.0, %v4298
  %v4300 = vxor.u32 %v4249, 2147483648
  %v4301 = vmul.f32 %v4300, 1.442695
  %v4302 = vpow.pop %v4301
  %v4303 = vadd.f32 %v4302, 1.0
  %v4304 = vrcp.pop %v4303
  %v4305 = vmul.f32 1.0, %v4304
  %v4306 = vtanh.pop %v4288
  %v4307 = vxor.u32 %v4290, 2147483648
  %v4308 = vmul.f32 %v4307, 1.442695
  %v4309 = vpow.pop %v4308
  %v4310 = vadd.f32 %v4309, 1.0
  %v4311 = vrcp.pop %v4310
  %v4312 = vmul.f32 1.0, %v4311
  %v4313 = vmul.f32 %v4305, %v2657
  %v4314 = vmul.f32 %v4299, %v4306
  %v4315 = vadd.f32 %v4313, %v4314
  %v4316 = vtanh.pop %v4315
  %v4317 = vmul.f32 %v4312, %v4316
  %v4318 = vpack.c.bf16 %v4317, %v4317
  %v4319 = vld [vmem:[%s15] sm:$0xff]
  %v4320 = vld [vmem:[%s15 + $0x8] sm:$0xff]
  %v4321 = vld [vmem:[%s15 + $0x10] sm:$0xff]
  %v4322 = vld [vmem:[%s15 + $0x18] sm:$0xff]
  %v4323 = vld [vmem:[%s15 + $0x20] sm:$0xff]
  %v4324 = vld [vmem:[%s15 + $0x28] sm:$0xff]
  %v4325 = vld [vmem:[%s15 + $0x30] sm:$0xff]
  %v4326 = vld [vmem:[%s15 + $0x38] sm:$0xff]
  %v4327 = vld [vmem:[%s15 + $0x40] sm:$0xff]
  %v4328 = vld [vmem:[%s15 + $0x48] sm:$0xff]
  %v4329 = vld [vmem:[%s15 + $0x50] sm:$0xff]
  %v4330 = vld [vmem:[%s15 + $0x58] sm:$0xff]
  %v4331 = vld [vmem:[%s15 + $0x60] sm:$0xff]
  %v4332 = vld [vmem:[%s15 + $0x68] sm:$0xff]
  %v4333 = vld [vmem:[%s15 + $0x70] sm:$0xff]
  %v4334 = vld [vmem:[%s15 + $0x78] sm:$0xff]
  %v4335 = vld [vmem:[%s16] sm:$0xff]
  %v4336 = vld [vmem:[%s16 + $0x8] sm:$0xff]
  %v4353 = vunpack.c.l.b16 %v4319
  %v4354 = vunpack.c.h.b16 %v4319
  %v4355 = vunpack.c.l.b16 %v4320
  %v4356 = vunpack.c.h.b16 %v4320
  %v4357 = vunpack.c.l.b16 %v4321
  %v4358 = vunpack.c.h.b16 %v4321
  %v4359 = vunpack.c.l.b16 %v4322
  %v4360 = vunpack.c.h.b16 %v4322
  %v4361 = vunpack.c.l.b16 %v4323
  %v4362 = vunpack.c.h.b16 %v4323
  %v4363 = vunpack.c.l.b16 %v4324
  %v4364 = vunpack.c.h.b16 %v4324
  %v4365 = vunpack.c.l.b16 %v4325
  %v4366 = vunpack.c.h.b16 %v4325
  %v4367 = vunpack.c.l.b16 %v4326
  %v4368 = vunpack.c.h.b16 %v4326
  %v4369 = vunpack.c.l.b16 %v4327
  %v4370 = vunpack.c.h.b16 %v4327
  %v4371 = vunpack.c.l.b16 %v4328
  %v4372 = vunpack.c.h.b16 %v4328
  %v4373 = vunpack.c.l.b16 %v4329
  %v4374 = vunpack.c.h.b16 %v4329
  %v4375 = vunpack.c.l.b16 %v4330
  %v4376 = vunpack.c.h.b16 %v4330
  %v4377 = vunpack.c.l.b16 %v4331
  %v4378 = vunpack.c.h.b16 %v4331
  %v4379 = vunpack.c.l.b16 %v4332
  %v4380 = vunpack.c.h.b16 %v4332
  %v4381 = vunpack.c.l.b16 %v4333
  %v4382 = vunpack.c.h.b16 %v4333
  %v4383 = vunpack.c.l.b16 %v4334
  %v4384 = vunpack.c.h.b16 %v4334
  %v4385 = vpack.c.b16 %v4355, %v4353
  %v4386 = vpack.c.b16 %v4356, %v4354
  %v4387 = vpack.c.b16 %v4359, %v4357
  %v4388 = vpack.c.b16 %v4360, %v4358
  %v4389 = vpack.c.b16 %v4363, %v4361
  %v4390 = vpack.c.b16 %v4364, %v4362
  %v4391 = vpack.c.b16 %v4367, %v4365
  %v4392 = vpack.c.b16 %v4368, %v4366
  %v4393 = vpack.c.b16 %v4371, %v4369
  %v4394 = vpack.c.b16 %v4372, %v4370
  %v4395 = vpack.c.b16 %v4375, %v4373
  %v4396 = vpack.c.b16 %v4376, %v4374
  %v4397 = vpack.c.b16 %v4379, %v4377
  %v4398 = vpack.c.b16 %v4380, %v4378
  %v4399 = vpack.c.b16 %v4383, %v4381
  %v4400 = vpack.c.b16 %v4384, %v4382
  %4417 = vmatprep.subr.bf16.mxu0 %v4400
  %4418 = vmatpush1.bf16.msra.mxu0 %v4399
  %4419 = vmatprep.subr.bf16.mxu0 %v4398
  %4420 = vmatpush1.bf16.msra.mxu0 %v4397
  %4421 = vmatprep.subr.bf16.mxu0 %v4396
  %4422 = vmatpush1.bf16.msra.mxu0 %v4395
  %4423 = vmatprep.subr.bf16.mxu0 %v4394
  %4424 = vmatpush1.bf16.msra.mxu0 %v4393
  %4425 = vmatprep.subr.bf16.mxu0 %v4392
  %4426 = vmatpush1.bf16.msra.mxu0 %v4391
  %4427 = vmatprep.subr.bf16.mxu0 %v4390
  %4428 = vmatpush1.bf16.msra.mxu0 %v4389
  %4429 = vmatprep.subr.bf16.mxu0 %v4388
  %4430 = vmatpush1.bf16.msra.mxu0 %v4387
  %4431 = vmatprep.subr.bf16.mxu0 %v4386
  %4432 = vmatpush1.bf16.msra.mxu0 %v4385
  %4433 = vmatprep.subr.bf16.mxu0 0
  %4434 = vmatpush2.bf16.msra.mxu0 0
  %4435 = vmatprep.subr.bf16.mxu0 0
  %4436 = vmatpush2.bf16.msra.mxu0 0
  %4437 = vmatprep.subr.bf16.mxu0 0
  %4438 = vmatpush2.bf16.msra.mxu0 0
  %4439 = vmatprep.subr.bf16.mxu0 0
  %4440 = vmatpush2.bf16.msra.mxu0 0
  %4441 = vmatprep.subr.bf16.mxu0 0
  %4442 = vmatpush2.bf16.msra.mxu0 0
  %4443 = vmatprep.subr.bf16.mxu0 0
  %4444 = vmatpush2.bf16.msra.mxu0 0
  %4445 = vmatprep.subr.bf16.mxu0 0
  %4446 = vmatpush2.bf16.msra.mxu0 0
  %4447 = vmatprep.subr.bf16.mxu0 0
  %4448 = vmatpush2.bf16.msra.mxu0 0
  %4449 = vmatprep.mubr.bf16.mxu0 0
  %4450 = vmatmul.mubr.bf16.gmra.mxu0 %v4318
  %v4451 = vpop.f32.mrf.mxu0
  %v4452 = vadd.f32 %v4335, %v4451
  %v4453 = vpop.f32.mrf.mxu0
  %v4454 = vadd.f32 %v4336, %v4453
  %v4455 = vpop.f32.mrf.mxu0
  %v4456 = vpop.f32.mrf.mxu0
  %4457 = vdwg.mxu0
  %v4458 = vsel %vm2658, 1, 0
  %4459 = vset.pattern.permute.xlu0 0
  %4460 = vperm.xlu0 %4459, %v4458
  %v4461 = vpop.permute.xlu0 %4460
  %vm4462 = vcmp.eq.s32.totalorder %v4461, 1
  %v4463 = vsel %vm4462, %v4452, 0.0
  %v4464 = vsel %vm4462, %v4454, 0.0
  %s4465 = scalar_lea.vmem %s17, 16
  %4466 = vst [vmem:[%s4465] sm:$0xff] %v4463
  %4467 = vst [vmem:[%s4465 + $0x8] sm:$0xff] %v4464
  %vm4468 = vcmp.gt.s32.totalorder %v797, 1
  %vm4469 = vcmp.gt.s32.totalorder %v798, 1
  %vm4470 = vcmp.gt.s32.totalorder %v799, 1
  %vm4471 = vcmp.gt.s32.totalorder %v800, 1
  %vm4472 = vcmp.gt.s32.totalorder %v801, 1
  %vm4473 = vcmp.gt.s32.totalorder %v802, 1
  %vm4474 = vcmp.gt.s32.totalorder %v803, 1
  %vm4475 = vcmp.gt.s32.totalorder %v804, 1
  %vm4476 = vcmp.gt.s32.totalorder %v805, 1
  %vm4477 = vcmp.gt.s32.totalorder %v806, 1
  %vm4478 = vcmp.gt.s32.totalorder %v807, 1
  %vm4479 = vcmp.gt.s32.totalorder %v808, 1
  %vm4480 = vcmp.gt.s32.totalorder %v809, 1
  %vm4481 = vcmp.gt.s32.totalorder %v810, 1
  %vm4482 = vcmp.gt.s32.totalorder %v811, 1
  %vm4483 = vcmp.gt.s32.totalorder %v812, 1
  %v4484 = vsel %vm4468, %v3544, 0.0
  %v4485 = vsel %vm4469, %v3545, 0.0
  %v4486 = vsel %vm4470, %v3546, 0.0
  %v4487 = vsel %vm4471, %v3547, 0.0
  %v4488 = vsel %vm4472, %v3548, 0.0
  %v4489 = vsel %vm4473, %v3549, 0.0
  %v4490 = vsel %vm4474, %v3550, 0.0
  %v4491 = vsel %vm4475, %v3551, 0.0
  %v4492 = vsel %vm4476, %v3552, 0.0
  %v4493 = vsel %vm4477, %v3553, 0.0
  %v4494 = vsel %vm4478, %v3554, 0.0
  %v4495 = vsel %vm4479, %v3555, 0.0
  %v4496 = vsel %vm4480, %v3556, 0.0
  %v4497 = vsel %vm4481, %v3557, 0.0
  %v4498 = vsel %vm4482, %v3558, 0.0
  %v4499 = vsel %vm4483, %v3559, 0.0
  %4516 = vrot.lane.b32.xlu0 %v4484, 1
  %v4517 = vpop.permute.xlu0 %4516
  %4518 = vrot.lane.b32.xlu0 %v4485, 1
  %v4519 = vpop.permute.xlu0 %4518
  %4520 = vrot.lane.b32.xlu0 %v4486, 1
  %v4521 = vpop.permute.xlu0 %4520
  %4522 = vrot.lane.b32.xlu0 %v4487, 1
  %v4523 = vpop.permute.xlu0 %4522
  %4524 = vrot.lane.b32.xlu0 %v4488, 1
  %v4525 = vpop.permute.xlu0 %4524
  %4526 = vrot.lane.b32.xlu0 %v4489, 1
  %v4527 = vpop.permute.xlu0 %4526
  %4528 = vrot.lane.b32.xlu0 %v4490, 1
  %v4529 = vpop.permute.xlu0 %4528
  %4530 = vrot.lane.b32.xlu0 %v4491, 1
  %v4531 = vpop.permute.xlu0 %4530
  %4532 = vrot.lane.b32.xlu0 %v4492, 1
  %v4533 = vpop.permute.xlu0 %4532
  %4534 = vrot.lane.b32.xlu0 %v4493, 1
  %v4535 = vpop.permute.xlu0 %4534
  %4536 = vrot.lane.b32.xlu0 %v4494, 1
  %v4537 = vpop.permute.xlu0 %4536
  %4538 = vrot.lane.b32.xlu0 %v4495, 1
  %v4539 = vpop.permute.xlu0 %4538
  %4540 = vrot.lane.b32.xlu0 %v4496, 1
  %v4541 = vpop.permute.xlu0 %4540
  %4542 = vrot.lane.b32.xlu0 %v4497, 1
  %v4543 = vpop.permute.xlu0 %4542
  %4544 = vrot.lane.b32.xlu0 %v4498, 1
  %v4545 = vpop.permute.xlu0 %4544
  %4546 = vrot.lane.b32.xlu0 %v4499, 1
  %v4547 = vpop.permute.xlu0 %4546
  %vm4564 = vcmask 15368
  %4565 = vst.msk [vmem:[%s18] sm:$0xff] %vm4564, %v4517
  %4566 = vst.msk [vmem:[%s18 + $0x8] sm:$0xff] %vm4564, %v4519
  %4567 = vst.msk [vmem:[%s18 + $0x10] sm:$0xff] %vm4564, %v4521
  %4568 = vst.msk [vmem:[%s18 + $0x18] sm:$0xff] %vm4564, %v4523
  %4569 = vst.msk [vmem:[%s18 + $0x20] sm:$0xff] %vm4564, %v4525
  %4570 = vst.msk [vmem:[%s18 + $0x28] sm:$0xff] %vm4564, %v4527
  %4571 = vst.msk [vmem:[%s18 + $0x30] sm:$0xff] %vm4564, %v4529
  %4572 = vst.msk [vmem:[%s18 + $0x38] sm:$0xff] %vm4564, %v4531
  %4573 = vst.msk [vmem:[%s18 + $0x40] sm:$0xff] %vm4564, %v4533
  %4574 = vst.msk [vmem:[%s18 + $0x48] sm:$0xff] %vm4564, %v4535
  %4575 = vst.msk [vmem:[%s18 + $0x50] sm:$0xff] %vm4564, %v4537
  %4576 = vst.msk [vmem:[%s18 + $0x58] sm:$0xff] %vm4564, %v4539
  %4577 = vst.msk [vmem:[%s18 + $0x60] sm:$0xff] %vm4564, %v4541
  %4578 = vst.msk [vmem:[%s18 + $0x68] sm:$0xff] %vm4564, %v4543
  %4579 = vst.msk [vmem:[%s18 + $0x70] sm:$0xff] %vm4564, %v4545
  %4580 = vst.msk [vmem:[%s18 + $0x78] sm:$0xff] %vm4564, %v4547
  %v4581 = vsel %vm4462, %v4317, %v2656
  %v4582 = vsel %vm4462, %v4315, %v2657
  %vm4583 = vcmp.gt.s32.totalorder %v796, 2
  %v4584 = vpack.c.bf16 %v4581, %v4581
  %v4585 = vld [vmem:[%s12] sm:$0xff]
  %v4586 = vld [vmem:[%s12 + $0x8] sm:$0xff]
  %v4587 = vld [vmem:[%s12 + $0x10] sm:$0xff]
  %v4588 = vld [vmem:[%s12 + $0x18] sm:$0xff]
  %v4589 = vld [vmem:[%s12 + $0x20] sm:$0xff]
  %v4590 = vld [vmem:[%s12 + $0x28] sm:$0xff]
  %v4591 = vld [vmem:[%s12 + $0x30] sm:$0xff]
  %v4592 = vld [vmem:[%s12 + $0x38] sm:$0xff]
  %v4593 = vld [vmem:[%s12 + $0x40] sm:$0xff]
  %v4594 = vld [vmem:[%s12 + $0x48] sm:$0xff]
  %v4595 = vld [vmem:[%s12 + $0x50] sm:$0xff]
  %v4596 = vld [vmem:[%s12 + $0x58] sm:$0xff]
  %v4597 = vld [vmem:[%s12 + $0x60] sm:$0xff]
  %v4598 = vld [vmem:[%s12 + $0x68] sm:$0xff]
  %v4599 = vld [vmem:[%s12 + $0x70] sm:$0xff]
  %v4600 = vld [vmem:[%s12 + $0x78] sm:$0xff]
  %v4601 = vld [vmem:[%s12 + $0x80] sm:$0xff]
  %v4602 = vld [vmem:[%s12 + $0x88] sm:$0xff]
  %v4603 = vld [vmem:[%s12 + $0x90] sm:$0xff]
  %v4604 = vld [vmem:[%s12 + $0x98] sm:$0xff]
  %v4605 = vld [vmem:[%s12 + $0xa0] sm:$0xff]
  %v4606 = vld [vmem:[%s12 + $0xa8] sm:$0xff]
  %v4607 = vld [vmem:[%s12 + $0xb0] sm:$0xff]
  %v4608 = vld [vmem:[%s12 + $0xb8] sm:$0xff]
  %v4609 = vld [vmem:[%s12 + $0xc0] sm:$0xff]
  %v4610 = vld [vmem:[%s12 + $0xc8] sm:$0xff]
  %v4611 = vld [vmem:[%s12 + $0xd0] sm:$0xff]
  %v4612 = vld [vmem:[%s12 + $0xd8] sm:$0xff]
  %v4613 = vld [vmem:[%s12 + $0xe0] sm:$0xff]
  %v4614 = vld [vmem:[%s12 + $0xe8] sm:$0xff]
  %v4615 = vld [vmem:[%s12 + $0xf0] sm:$0xff]
  %v4616 = vld [vmem:[%s12 + $0xf8] sm:$0xff]
  %v4617 = vld [vmem:[%s12 + $0x100] sm:$0xff]
  %v4618 = vld [vmem:[%s12 + $0x108] sm:$0xff]
  %v4619 = vld [vmem:[%s12 + $0x110] sm:$0xff]
  %v4620 = vld [vmem:[%s12 + $0x118] sm:$0xff]
  %v4621 = vld [vmem:[%s12 + $0x120] sm:$0xff]
  %v4622 = vld [vmem:[%s12 + $0x128] sm:$0xff]
  %v4623 = vld [vmem:[%s12 + $0x130] sm:$0xff]
  %v4624 = vld [vmem:[%s12 + $0x138] sm:$0xff]
  %v4625 = vld [vmem:[%s12 + $0x140] sm:$0xff]
  %v4626 = vld [vmem:[%s12 + $0x148] sm:$0xff]
  %v4627 = vld [vmem:[%s12 + $0x150] sm:$0xff]
  %v4628 = vld [vmem:[%s12 + $0x158] sm:$0xff]
  %v4629 = vld [vmem:[%s12 + $0x160] sm:$0xff]
  %v4630 = vld [vmem:[%s12 + $0x168] sm:$0xff]
  %v4631 = vld [vmem:[%s12 + $0x170] sm:$0xff]
  %v4632 = vld [vmem:[%s12 + $0x178] sm:$0xff]
  %v4633 = vld [vmem:[%s13] sm:$0xff]
  %v4634 = vld [vmem:[%s13 + $0x8] sm:$0xff]
  %v4635 = vld [vmem:[%s13 + $0x10] sm:$0xff]
  %v4636 = vld [vmem:[%s13 + $0x18] sm:$0xff]
  %v4637 = vld [vmem:[%s13 + $0x20] sm:$0xff]
  %v4638 = vld [vmem:[%s13 + $0x28] sm:$0xff]
  %v4687 = vunpack.c.l.b16 %v4585
  %v4688 = vunpack.c.h.b16 %v4585
  %v4689 = vunpack.c.l.b16 %v4586
  %v4690 = vunpack.c.h.b16 %v4586
  %v4691 = vunpack.c.l.b16 %v4587
  %v4692 = vunpack.c.h.b16 %v4587
  %v4693 = vunpack.c.l.b16 %v4588
  %v4694 = vunpack.c.h.b16 %v4588
  %v4695 = vunpack.c.l.b16 %v4589
  %v4696 = vunpack.c.h.b16 %v4589
  %v4697 = vunpack.c.l.b16 %v4590
  %v4698 = vunpack.c.h.b16 %v4590
  %v4699 = vunpack.c.l.b16 %v4591
  %v4700 = vunpack.c.h.b16 %v4591
  %v4701 = vunpack.c.l.b16 %v4592
  %v4702 = vunpack.c.h.b16 %v4592
  %v4703 = vunpack.c.l.b16 %v4593
  %v4704 = vunpack.c.h.b16 %v4593
  %v4705 = vunpack.c.l.b16 %v4594
  %v4706 = vunpack.c.h.b16 %v4594
  %v4707 = vunpack.c.l.b16 %v4595
  %v4708 = vunpack.c.h.b16 %v4595
  %v4709 = vunpack.c.l.b16 %v4596
  %v4710 = vunpack.c.h.b16 %v4596
  %v4711 = vunpack.c.l.b16 %v4597
  %v4712 = vunpack.c.h.b16 %v4597
  %v4713 = vunpack.c.l.b16 %v4598
  %v4714 = vunpack.c.h.b16 %v4598
  %v4715 = vunpack.c.l.b16 %v4599
  %v4716 = vunpack.c.h.b16 %v4599
  %v4717 = vunpack.c.l.b16 %v4600
  %v4718 = vunpack.c.h.b16 %v4600
  %v4719 = vunpack.c.l.b16 %v4601
  %v4720 = vunpack.c.h.b16 %v4601
  %v4721 = vunpack.c.l.b16 %v4602
  %v4722 = vunpack.c.h.b16 %v4602
  %v4723 = vunpack.c.l.b16 %v4603
  %v4724 = vunpack.c.h.b16 %v4603
  %v4725 = vunpack.c.l.b16 %v4604
  %v4726 = vunpack.c.h.b16 %v4604
  %v4727 = vunpack.c.l.b16 %v4605
  %v4728 = vunpack.c.h.b16 %v4605
  %v4729 = vunpack.c.l.b16 %v4606
  %v4730 = vunpack.c.h.b16 %v4606
  %v4731 = vunpack.c.l.b16 %v4607
  %v4732 = vunpack.c.h.b16 %v4607
  %v4733 = vunpack.c.l.b16 %v4608
  %v4734 = vunpack.c.h.b16 %v4608
  %v4735 = vunpack.c.l.b16 %v4609
  %v4736 = vunpack.c.h.b16 %v4609
  %v4737 = vunpack.c.l.b16 %v4610
  %v4738 = vunpack.c.h.b16 %v4610
  %v4739 = vunpack.c.l.b16 %v4611
  %v4740 = vunpack.c.h.b16 %v4611
  %v4741 = vunpack.c.l.b16 %v4612
  %v4742 = vunpack.c.h.b16 %v4612
  %v4743 = vunpack.c.l.b16 %v4613
  %v4744 = vunpack.c.h.b16 %v4613
  %v4745 = vunpack.c.l.b16 %v4614
  %v4746 = vunpack.c.h.b16 %v4614
  %v4747 = vunpack.c.l.b16 %v4615
  %v4748 = vunpack.c.h.b16 %v4615
  %v4749 = vunpack.c.l.b16 %v4616
  %v4750 = vunpack.c.h.b16 %v4616
  %v4751 = vunpack.c.l.b16 %v4617
  %v4752 = vunpack.c.h.b16 %v4617
  %v4753 = vunpack.c.l.b16 %v4618
  %v4754 = vunpack.c.h.b16 %v4618
  %v4755 = vunpack.c.l.b16 %v4619
  %v4756 = vunpack.c.h.b16 %v4619
  %v4757 = vunpack.c.l.b16 %v4620
  %v4758 = vunpack.c.h.b16 %v4620
  %v4759 = vunpack.c.l.b16 %v4621
  %v4760 = vunpack.c.h.b16 %v4621
  %v4761 = vunpack.c.l.b16 %v4622
  %v4762 = vunpack.c.h.b16 %v4622
  %v4763 = vunpack.c.l.b16 %v4623
  %v4764 = vunpack.c.h.b16 %v4623
  %v4765 = vunpack.c.l.b16 %v4624
  %v4766 = vunpack.c.h.b16 %v4624
  %v4767 = vunpack.c.l.b16 %v4625
  %v4768 = vunpack.c.h.b16 %v4625
  %v4769 = vunpack.c.l.b16 %v4626
  %v4770 = vunpack.c.h.b16 %v4626
  %v4771 = vunpack.c.l.b16 %v4627
  %v4772 = vunpack.c.h.b16 %v4627
  %v4773 = vunpack.c.l.b16 %v4628
  %v4774 = vunpack.c.h.b16 %v4628
  %v4775 = vunpack.c.l.b16 %v4629
  %v4776 = vunpack.c.h.b16 %v4629
  %v4777 = vunpack.c.l.b16 %v4630
  %v4778 = vunpack.c.h.b16 %v4630
  %v4779 = vunpack.c.l.b16 %v4631
  %v4780 = vunpack.c.h.b16 %v4631
  %v4781 = vunpack.c.l.b16 %v4632
  %v4782 = vunpack.c.h.b16 %v4632
  %v4783 = vpack.c.b16 %v4693, %v4687
  %v4784 = vpack.c.b16 %v4694, %v4688
  %v4785 = vpack.c.b16 %v4695, %v4689
  %v4786 = vpack.c.b16 %v4696, %v4690
  %v4787 = vpack.c.b16 %v4697, %v4691
  %v4788 = vpack.c.b16 %v4698, %v4692
  %v4789 = vpack.c.b16 %v4705, %v4699
  %v4790 = vpack.c.b16 %v4706, %v4700
  %v4791 = vpack.c.b16 %v4707, %v4701
  %v4792 = vpack.c.b16 %v4708, %v4702
  %v4793 = vpack.c.b16 %v4709, %v4703
  %v4794 = vpack.c.b16 %v4710, %v4704
  %v4795 = vpack.c.b16 %v4717, %v4711
  %v4796 = vpack.c.b16 %v4718, %v4712
  %v4797 = vpack.c.b16 %v4719, %v4713
  %v4798 = vpack.c.b16 %v4720, %v4714
  %v4799 = vpack.c.b16 %v4721, %v4715
  %v4800 = vpack.c.b16 %v4722, %v4716
  %v4801 = vpack.c.b16 %v4729, %v4723
  %v4802 = vpack.c.b16 %v4730, %v4724
  %v4803 = vpack.c.b16 %v4731, %v4725
  %v4804 = vpack.c.b16 %v4732, %v4726
  %v4805 = vpack.c.b16 %v4733, %v4727
  %v4806 = vpack.c.b16 %v4734, %v4728
  %v4807 = vpack.c.b16 %v4741, %v4735
  %v4808 = vpack.c.b16 %v4742, %v4736
  %v4809 = vpack.c.b16 %v4743, %v4737
  %v4810 = vpack.c.b16 %v4744, %v4738
  %v4811 = vpack.c.b16 %v4745, %v4739
  %v4812 = vpack.c.b16 %v4746, %v4740
  %v4813 = vpack.c.b16 %v4753, %v4747
  %v4814 = vpack.c.b16 %v4754, %v4748
  %v4815 = vpack.c.b16 %v4755, %v4749
  %v4816 = vpack.c.b16 %v4756, %v4750
  %v4817 = vpack.c.b16 %v4757, %v4751
  %v4818 = vpack.c.b16 %v4758, %v4752
  %v4819 = vpack.c.b16 %v4765, %v4759
  %v4820 = vpack.c.b16 %v4766, %v4760
  %v4821 = vpack.c.b16 %v4767, %v4761
  %v4822 = vpack.c.b16 %v4768, %v4762
  %v4823 = vpack.c.b16 %v4769, %v4763
  %v4824 = vpack.c.b16 %v4770, %v4764
  %v4825 = vpack.c.b16 %v4777, %v4771
  %v4826 = vpack.c.b16 %v4778, %v4772
  %v4827 = vpack.c.b16 %v4779, %v4773
  %v4828 = vpack.c.b16 %v4780, %v4774
  %v4829 = vpack.c.b16 %v4781, %v4775
  %v4830 = vpack.c.b16 %v4782, %v4776
  %4879 = vmatprep.subr.bf16.mxu0 %v4826
  %4880 = vmatpush1.bf16.msra.mxu0 %v4825
  %4881 = vmatprep.subr.bf16.mxu0 %v4820
  %4882 = vmatpush1.bf16.msra.mxu0 %v4819
  %4883 = vmatprep.subr.bf16.mxu0 %v4814
  %4884 = vmatpush1.bf16.msra.mxu0 %v4813
  %4885 = vmatprep.subr.bf16.mxu0 %v4808
  %4886 = vmatpush1.bf16.msra.mxu0 %v4807
  %4887 = vmatprep.subr.bf16.mxu0 %v4802
  %4888 = vmatpush1.bf16.msra.mxu0 %v4801
  %4889 = vmatprep.subr.bf16.mxu0 %v4796
  %4890 = vmatpush1.bf16.msra.mxu0 %v4795
  %4891 = vmatprep.subr.bf16.mxu0 %v4790
  %4892 = vmatpush1.bf16.msra.mxu0 %v4789
  %4893 = vmatprep.subr.bf16.mxu0 %v4784
  %4894 = vmatpush1.bf16.msra.mxu0 %v4783
  %4895 = vmatprep.subr.bf16.mxu0 0
  %4896 = vmatpush2.bf16.msra.mxu0 0
  %4897 = vmatprep.subr.bf16.mxu0 0
  %4898 = vmatpush2.bf16.msra.mxu0 0
  %4899 = vmatprep.subr.bf16.mxu0 0
  %4900 = vmatpush2.bf16.msra.mxu0 0
  %4901 = vmatprep.subr.bf16.mxu0 0
  %4902 = vmatpush2.bf16.msra.mxu0 0
  %4903 = vmatprep.subr.bf16.mxu0 0
  %4904 = vmatpush2.bf16.msra.mxu0 0
  %4905 = vmatprep.subr.bf16.mxu0 0
  %4906 = vmatpush2.bf16.msra.mxu0 0
  %4907 = vmatprep.subr.bf16.mxu0 0
  %4908 = vmatpush2.bf16.msra.mxu0 0
  %4909 = vmatprep.subr.bf16.mxu0 0
  %4910 = vmatpush2.bf16.msra.mxu0 0
  %4911 = vmatprep.mubr.bf16.mxu0 0
  %4912 = vmatmul.mubr.bf16.gmra.mxu0 %v4584
  %v4913 = vpop.f32.mrf.mxu0
  %v4914 = vadd.f32 %v4633, %v4913
  %v4915 = vpop.f32.mrf.mxu0
  %v4916 = vadd.f32 %v4634, %v4915
  %v4917 = vpop.f32.mrf.mxu0
  %v4918 = vpop.f32.mrf.mxu0
  %4919 = vdwg.mxu0
  %4920 = vmatprep.subr.bf16.mxu0 %v4828
  %4921 = vmatpush1.bf16.msra.mxu0 %v4827
  %4922 = vmatprep.subr.bf16.mxu0 %v4822
  %4923 = vmatpush1.bf16.msra.mxu0 %v4821
  %4924 = vmatprep.subr.bf16.mxu0 %v4816
  %4925 = vmatpush1.bf16.msra.mxu0 %v4815
  %4926 = vmatprep.subr.bf16.mxu0 %v4810
  %4927 = vmatpush1.bf16.msra.mxu0 %v4809
  %4928 = vmatprep.subr.bf16.mxu0 %v4804
  %4929 = vmatpush1.bf16.msra.mxu0 %v4803
  %4930 = vmatprep.subr.bf16.mxu0 %v4798
  %4931 = vmatpush1.bf16.msra.mxu0 %v4797
  %4932 = vmatprep.subr.bf16.mxu0 %v4792
  %4933 = vmatpush1.bf16.msra.mxu0 %v4791
  %4934 = vmatprep.subr.bf16.mxu0 %v4786
  %4935 = vmatpush1.bf16.msra.mxu0 %v4785
  %4936 = vmatprep.subr.bf16.mxu0 0
  %4937 = vmatpush2.bf16.msra.mxu0 0
  %4938 = vmatprep.subr.bf16.mxu0 0
  %4939 = vmatpush2.bf16.msra.mxu0 0
  %4940 = vmatprep.subr.bf16.mxu0 0
  %4941 = vmatpush2.bf16.msra.mxu0 0
  %4942 = vmatprep.subr.bf16.mxu0 0
  %4943 = vmatpush2.bf16.msra.mxu0 0
  %4944 = vmatprep.subr.bf16.mxu0 0
  %4945 = vmatpush2.bf16.msra.mxu0 0
  %4946 = vmatprep.subr.bf16.mxu0 0
  %4947 = vmatpush2.bf16.msra.mxu0 0
  %4948 = vmatprep.subr.bf16.mxu0 0
  %4949 = vmatpush2.bf16.msra.mxu0 0
  %4950 = vmatprep.subr.bf16.mxu0 0
  %4951 = vmatpush2.bf16.msra.mxu0 0
  %4952 = vmatprep.mubr.bf16.mxu0 0
  %4953 = vmatmul.mubr.bf16.gmra.mxu0 %v4584
  %v4954 = vpop.f32.mrf.mxu0
  %v4955 = vadd.f32 %v4635, %v4954
  %v4956 = vpop.f32.mrf.mxu0
  %v4957 = vadd.f32 %v4636, %v4956
  %v4958 = vpop.f32.mrf.mxu0
  %v4959 = vpop.f32.mrf.mxu0
  %4960 = vdwg.mxu0
  %4961 = vmatprep.subr.bf16.mxu0 %v4830
  %4962 = vmatpush1.bf16.msra.mxu0 %v4829
  %4963 = vmatprep.subr.bf16.mxu0 %v4824
  %4964 = vmatpush1.bf16.msra.mxu0 %v4823
  %4965 = vmatprep.subr.bf16.mxu0 %v4818
  %4966 = vmatpush1.bf16.msra.mxu0 %v4817
  %4967 = vmatprep.subr.bf16.mxu0 %v4812
  %4968 = vmatpush1.bf16.msra.mxu0 %v4811
  %4969 = vmatprep.subr.bf16.mxu0 %v4806
  %4970 = vmatpush1.bf16.msra.mxu0 %v4805
  %4971 = vmatprep.subr.bf16.mxu0 %v4800
  %4972 = vmatpush1.bf16.msra.mxu0 %v4799
  %4973 = vmatprep.subr.bf16.mxu0 %v4794
  %4974 = vmatpush1.bf16.msra.mxu0 %v4793
  %4975 = vmatprep.subr.bf16.mxu0 %v4788
  %4976 = vmatpush1.bf16.msra.mxu0 %v4787
  %4977 = vmatprep.subr.bf16.mxu0 0
  %4978 = vmatpush2.bf16.msra.mxu0 0
  %4979 = vmatprep.subr.bf16.mxu0 0
  %4980 = vmatpush2.bf16.msra.mxu0 0
  %4981 = vmatprep.subr.bf16.mxu0 0
  %4982 = vmatpush2.bf16.msra.mxu0 0
  %4983 = vmatprep.subr.bf16.mxu0 0
  %4984 = vmatpush2.bf16.msra.mxu0 0
  %4985 = vmatprep.subr.bf16.mxu0 0
  %4986 = vmatpush2.bf16.msra.mxu0 0
  %4987 = vmatprep.subr.bf16.mxu0 0
  %4988 = vmatpush2.bf16.msra.mxu0 0
  %4989 = vmatprep.subr.bf16.mxu0 0
  %4990 = vmatpush2.bf16.msra.mxu0 0
  %4991 = vmatprep.subr.bf16.mxu0 0
  %4992 = vmatpush2.bf16.msra.mxu0 0
  %4993 = vmatprep.mubr.bf16.mxu0 0
  %4994 = vmatmul.mubr.bf16.gmra.mxu0 %v4584
  %v4995 = vpop.f32.mrf.mxu0
  %v4996 = vadd.f32 %v4637, %v4995
  %v4997 = vpop.f32.mrf.mxu0
  %v4998 = vadd.f32 %v4638, %v4997
  %v4999 = vpop.f32.mrf.mxu0
  %v5000 = vpop.f32.mrf.mxu0
  %5001 = vdwg.mxu0
  %v5002 = vxor.u32 %v4916, 2147483648
  %v5003 = vmul.f32 %v5002, 1.442695
  %v5004 = vpow.pop %v5003
  %v5005 = vadd.f32 %v5004, 1.0
  %v5006 = vrcp.pop %v5005
  %v5007 = vmul.f32 1.0, %v5006
  %v5008 = vld [vmem:[%s5] sm:$0xf]
  %v5009 = vld [vmem:[%s5 + $0x4] sm:$0xf]
  %v5010 = vld [vmem:[%s5 + $0x8] sm:$0xf]
  %v5011 = vld [vmem:[%s5 + $0xc] sm:$0xf]
  %v5012 = vld [vmem:[%s5 + $0x10] sm:$0xf]
  %v5013 = vld [vmem:[%s5 + $0x14] sm:$0xf]
  %v5014 = vld [vmem:[%s5 + $0x18] sm:$0xf]
  %v5015 = vld [vmem:[%s5 + $0x1c] sm:$0xf]
  %v5016 = vld [vmem:[%s5 + $0x20] sm:$0xf]
  %v5017 = vld [vmem:[%s5 + $0x24] sm:$0xf]
  %v5018 = vld [vmem:[%s5 + $0x28] sm:$0xf]
  %v5019 = vld [vmem:[%s5 + $0x2c] sm:$0xf]
  %v5020 = vld [vmem:[%s5 + $0x30] sm:$0xf]
  %v5021 = vld [vmem:[%s5 + $0x34] sm:$0xf]
  %v5022 = vld [vmem:[%s5 + $0x38] sm:$0xf]
  %v5023 = vld [vmem:[%s5 + $0x3c] sm:$0xf]
  %v5024 = vpack.c.bf16 %v4914, %v4914
  %v5041 = vunpack.c.l.b16 %v5008
  %v5042 = vunpack.c.l.b16 %v5009
  %v5043 = vunpack.c.l.b16 %v5010
  %v5044 = vunpack.c.l.b16 %v5011
  %v5045 = vunpack.c.l.b16 %v5012
  %v5046 = vunpack.c.l.b16 %v5013
  %v5047 = vunpack.c.l.b16 %v5014
  %v5048 = vunpack.c.l.b16 %v5015
  %v5049 = vunpack.c.l.b16 %v5016
  %v5050 = vunpack.c.l.b16 %v5017
  %v5051 = vunpack.c.l.b16 %v5018
  %v5052 = vunpack.c.l.b16 %v5019
  %v5053 = vunpack.c.l.b16 %v5020
  %v5054 = vunpack.c.l.b16 %v5021
  %v5055 = vunpack.c.l.b16 %v5022
  %v5056 = vunpack.c.l.b16 %v5023
  %v5057 = vpack.c.b16 %v5042, %v5041
  %v5058 = vpack.c.b16 %v5044, %v5043
  %v5059 = vpack.c.b16 %v5046, %v5045
  %v5060 = vpack.c.b16 %v5048, %v5047
  %v5061 = vpack.c.b16 %v5050, %v5049
  %v5062 = vpack.c.b16 %v5052, %v5051
  %v5063 = vpack.c.b16 %v5054, %v5053
  %v5064 = vpack.c.b16 %v5056, %v5055
  %v5066 = vsel %vm1295, %v5057, 0
  %v5069 = vsel %vm1295, %v5058, 0
  %v5072 = vsel %vm1295, %v5059, 0
  %v5075 = vsel %vm1295, %v5060, 0
  %v5078 = vsel %vm1295, %v5061, 0
  %v5081 = vsel %vm1295, %v5062, 0
  %v5084 = vsel %vm1295, %v5063, 0
  %v5087 = vsel %vm1295, %v5064, 0
  %v5090 = vsel %vm1320, %v5024, 0
  %5092 = vmatprep.subr.bf16.mxu0 0
  %5093 = vmatpush1.bf16.msra.mxu0 0
  %5094 = vmatprep.subr.bf16.mxu0 0
  %5095 = vmatpush1.bf16.msra.mxu0 0
  %5096 = vmatprep.subr.bf16.mxu0 0
  %5097 = vmatpush1.bf16.msra.mxu0 0
  %5098 = vmatprep.subr.bf16.mxu0 0
  %5099 = vmatpush1.bf16.msra.mxu0 0
  %5100 = vmatprep.subr.bf16.mxu0 0
  %5101 = vmatpush1.bf16.msra.mxu0 0
  %5102 = vmatprep.subr.bf16.mxu0 0
  %5103 = vmatpush1.bf16.msra.mxu0 0
  %5104 = vmatprep.subr.bf16.mxu0 0
  %5105 = vmatpush1.bf16.msra.mxu0 0
  %5106 = vmatprep.subr.bf16.mxu0 0
  %5107 = vmatpush1.bf16.msra.mxu0 %v5090
  %5108 = vmatprep.subr.bf16.mxu0 0
  %5109 = vmatpush2.bf16.msra.mxu0 0
  %5110 = vmatprep.subr.bf16.mxu0 0
  %5111 = vmatpush2.bf16.msra.mxu0 0
  %5112 = vmatprep.subr.bf16.mxu0 0
  %5113 = vmatpush2.bf16.msra.mxu0 0
  %5114 = vmatprep.subr.bf16.mxu0 0
  %5115 = vmatpush2.bf16.msra.mxu0 0
  %5116 = vmatprep.subr.bf16.mxu0 0
  %5117 = vmatpush2.bf16.msra.mxu0 0
  %5118 = vmatprep.subr.bf16.mxu0 0
  %5119 = vmatpush2.bf16.msra.mxu0 0
  %5120 = vmatprep.subr.bf16.mxu0 0
  %5121 = vmatpush2.bf16.msra.mxu0 0
  %5122 = vmatprep.subr.bf16.mxu0 0
  %5123 = vmatpush2.bf16.msra.mxu0 0
  %5124 = vmatprep.mubr.bf16.mxu0 0
  %5125 = vmatmul.mubr.bf16.gmra.mxu0 %v5066
  %v5126 = vpop.f32.mrf.mxu0
  %v5127 = vadd.f32 0.0, %v5126
  %v5128 = vpop.f32.mrf.mxu0
  %v5129 = vpop.f32.mrf.mxu0
  %v5130 = vadd.f32 0.0, %v5129
  %v5131 = vpop.f32.mrf.mxu0
  %5132 = vmatprep.mubr.bf16.mxu0 0
  %5133 = vmatmul.mubr.bf16.gmra.mxu0 %v5069
  %v5134 = vpop.f32.mrf.mxu0
  %v5135 = vadd.f32 0.0, %v5134
  %v5136 = vpop.f32.mrf.mxu0
  %v5137 = vpop.f32.mrf.mxu0
  %v5138 = vadd.f32 0.0, %v5137
  %v5139 = vpop.f32.mrf.mxu0
  %5140 = vmatprep.mubr.bf16.mxu0 0
  %5141 = vmatmul.mubr.bf16.gmra.mxu0 %v5072
  %v5142 = vpop.f32.mrf.mxu0
  %v5143 = vadd.f32 0.0, %v5142
  %v5144 = vpop.f32.mrf.mxu0
  %v5145 = vpop.f32.mrf.mxu0
  %v5146 = vadd.f32 0.0, %v5145
  %v5147 = vpop.f32.mrf.mxu0
  %5148 = vmatprep.mubr.bf16.mxu0 0
  %5149 = vmatmul.mubr.bf16.gmra.mxu0 %v5075
  %v5150 = vpop.f32.mrf.mxu0
  %v5151 = vadd.f32 0.0, %v5150
  %v5152 = vpop.f32.mrf.mxu0
  %v5153 = vpop.f32.mrf.mxu0
  %v5154 = vadd.f32 0.0, %v5153
  %v5155 = vpop.f32.mrf.mxu0
  %5156 = vmatprep.mubr.bf16.mxu0 0
  %5157 = vmatmul.mubr.bf16.gmra.mxu0 %v5078
  %v5158 = vpop.f32.mrf.mxu0
  %v5159 = vadd.f32 0.0, %v5158
  %v5160 = vpop.f32.mrf.mxu0
  %v5161 = vpop.f32.mrf.mxu0
  %v5162 = vadd.f32 0.0, %v5161
  %v5163 = vpop.f32.mrf.mxu0
  %5164 = vmatprep.mubr.bf16.mxu0 0
  %5165 = vmatmul.mubr.bf16.gmra.mxu0 %v5081
  %v5166 = vpop.f32.mrf.mxu0
  %v5167 = vadd.f32 0.0, %v5166
  %v5168 = vpop.f32.mrf.mxu0
  %v5169 = vpop.f32.mrf.mxu0
  %v5170 = vadd.f32 0.0, %v5169
  %v5171 = vpop.f32.mrf.mxu0
  %5172 = vmatprep.mubr.bf16.mxu0 0
  %5173 = vmatmul.mubr.bf16.gmra.mxu0 %v5084
  %v5174 = vpop.f32.mrf.mxu0
  %v5175 = vadd.f32 0.0, %v5174
  %v5176 = vpop.f32.mrf.mxu0
  %v5177 = vpop.f32.mrf.mxu0
  %v5178 = vadd.f32 0.0, %v5177
  %v5179 = vpop.f32.mrf.mxu0
  %5180 = vmatprep.mubr.bf16.mxu0 0
  %5181 = vmatmul.mubr.bf16.gmra.mxu0 %v5087
  %v5182 = vpop.f32.mrf.mxu0
  %v5183 = vadd.f32 0.0, %v5182
  %v5184 = vpop.f32.mrf.mxu0
  %v5185 = vpop.f32.mrf.mxu0
  %v5186 = vadd.f32 0.0, %v5185
  %v5187 = vpop.f32.mrf.mxu0
  %5188 = vdwg.mxu0
  %v5189 = vld [vmem:[#allocation2] sm:$0xff]
  %v5190 = vld [vmem:[#allocation2 + $0x8] sm:$0xff]
  %v5191 = vld [vmem:[#allocation2 + $0x10] sm:$0xff]
  %v5192 = vld [vmem:[#allocation2 + $0x18] sm:$0xff]
  %v5193 = vld [vmem:[#allocation2 + $0x20] sm:$0xff]
  %v5194 = vld [vmem:[#allocation2 + $0x28] sm:$0xff]
  %v5195 = vld [vmem:[#allocation2 + $0x30] sm:$0xff]
  %v5196 = vld [vmem:[#allocation2 + $0x38] sm:$0xff]
  %v5197 = vld [vmem:[#allocation2 + $0x40] sm:$0xff]
  %v5198 = vld [vmem:[#allocation2 + $0x48] sm:$0xff]
  %v5199 = vld [vmem:[#allocation2 + $0x50] sm:$0xff]
  %v5200 = vld [vmem:[#allocation2 + $0x58] sm:$0xff]
  %v5201 = vld [vmem:[#allocation2 + $0x60] sm:$0xff]
  %v5202 = vld [vmem:[#allocation2 + $0x68] sm:$0xff]
  %v5203 = vld [vmem:[#allocation2 + $0x70] sm:$0xff]
  %v5204 = vld [vmem:[#allocation2 + $0x78] sm:$0xff]
  %v5205 = vadd.f32 %v5189, %v5127
  %v5206 = vadd.f32 %v5190, %v5130
  %v5207 = vadd.f32 %v5191, %v5135
  %v5208 = vadd.f32 %v5192, %v5138
  %v5209 = vadd.f32 %v5193, %v5143
  %v5210 = vadd.f32 %v5194, %v5146
  %v5211 = vadd.f32 %v5195, %v5151
  %v5212 = vadd.f32 %v5196, %v5154
  %v5213 = vadd.f32 %v5197, %v5159
  %v5214 = vadd.f32 %v5198, %v5162
  %v5215 = vadd.f32 %v5199, %v5167
  %v5216 = vadd.f32 %v5200, %v5170
  %v5217 = vadd.f32 %v5201, %v5175
  %v5218 = vadd.f32 %v5202, %v5178
  %v5219 = vadd.f32 %v5203, %v5183
  %v5220 = vadd.f32 %v5204, %v5186
  %v5221 = vmax.f32 %v5205, 0.0
  %v5222 = vmax.f32 %v5206, 0.0
  %v5223 = vmax.f32 %v5207, 0.0
  %v5224 = vmax.f32 %v5208, 0.0
  %v5225 = vmax.f32 %v5209, 0.0
  %v5226 = vmax.f32 %v5210, 0.0
  %v5227 = vmax.f32 %v5211, 0.0
  %v5228 = vmax.f32 %v5212, 0.0
  %v5229 = vmax.f32 %v5213, 0.0
  %v5230 = vmax.f32 %v5214, 0.0
  %v5231 = vmax.f32 %v5215, 0.0
  %v5232 = vmax.f32 %v5216, 0.0
  %v5233 = vmax.f32 %v5217, 0.0
  %v5234 = vmax.f32 %v5218, 0.0
  %v5235 = vmax.f32 %v5219, 0.0
  %v5236 = vmax.f32 %v5220, 0.0
  %v5237 = vld [vmem:[%s9] sm:$0xff]
  %v5238 = vld [vmem:[%s9 + $0x8] sm:$0xff]
  %v5239 = vld [vmem:[%s9 + $0x10] sm:$0xff]
  %v5240 = vld [vmem:[%s9 + $0x18] sm:$0xff]
  %v5241 = vld [vmem:[%s9 + $0x20] sm:$0xff]
  %v5242 = vld [vmem:[%s9 + $0x28] sm:$0xff]
  %v5243 = vld [vmem:[%s9 + $0x30] sm:$0xff]
  %v5244 = vld [vmem:[%s9 + $0x38] sm:$0xff]
  %v5245 = vld [vmem:[%s9 + $0x40] sm:$0xff]
  %v5246 = vld [vmem:[%s9 + $0x48] sm:$0xff]
  %v5247 = vld [vmem:[%s9 + $0x50] sm:$0xff]
  %v5248 = vld [vmem:[%s9 + $0x58] sm:$0xff]
  %v5249 = vld [vmem:[%s9 + $0x60] sm:$0xff]
  %v5250 = vld [vmem:[%s9 + $0x68] sm:$0xff]
  %v5251 = vld [vmem:[%s9 + $0x70] sm:$0xff]
  %v5252 = vld [vmem:[%s9 + $0x78] sm:$0xff]
  %v5253 = vmul.f32 %v5221, %v5237
  %v5254 = vmul.f32 %v5222, %v5238
  %v5255 = vmul.f32 %v5223, %v5239
  %v5256 = vmul.f32 %v5224, %v5240
  %v5257 = vmul.f32 %v5225, %v5241
  %v5258 = vmul.f32 %v5226, %v5242
  %v5259 = vmul.f32 %v5227, %v5243
  %v5260 = vmul.f32 %v5228, %v5244
  %v5261 = vmul.f32 %v5229, %v5245
  %v5262 = vmul.f32 %v5230, %v5246
  %v5263 = vmul.f32 %v5231, %v5247
  %v5264 = vmul.f32 %v5232, %v5248
  %v5265 = vmul.f32 %v5233, %v5249
  %v5266 = vmul.f32 %v5234, %v5250
  %v5267 = vmul.f32 %v5235, %v5251
  %v5268 = vmul.f32 %v5236, %v5252
  %5269 = vadd.xlane.f32.xlu0 %v5253
  %v5270 = vpop.xlane.xlu0 %5269
  %5271 = vadd.xlane.f32.xlu0 %v5254
  %v5272 = vpop.xlane.xlu0 %5271
  %5273 = vadd.xlane.f32.xlu0 %v5255
  %v5274 = vpop.xlane.xlu0 %5273
  %5275 = vadd.xlane.f32.xlu0 %v5256
  %v5276 = vpop.xlane.xlu0 %5275
  %5277 = vadd.xlane.f32.xlu0 %v5257
  %v5278 = vpop.xlane.xlu0 %5277
  %5279 = vadd.xlane.f32.xlu0 %v5258
  %v5280 = vpop.xlane.xlu0 %5279
  %5281 = vadd.xlane.f32.xlu0 %v5259
  %v5282 = vpop.xlane.xlu0 %5281
  %5283 = vadd.xlane.f32.xlu0 %v5260
  %v5284 = vpop.xlane.xlu0 %5283
  %5285 = vadd.xlane.f32.xlu0 %v5261
  %v5286 = vpop.xlane.xlu0 %5285
  %5287 = vadd.xlane.f32.xlu0 %v5262
  %v5288 = vpop.xlane.xlu0 %5287
  %5289 = vadd.xlane.f32.xlu0 %v5263
  %v5290 = vpop.xlane.xlu0 %5289
  %5291 = vadd.xlane.f32.xlu0 %v5264
  %v5292 = vpop.xlane.xlu0 %5291
  %5293 = vadd.xlane.f32.xlu0 %v5265
  %v5294 = vpop.xlane.xlu0 %5293
  %5295 = vadd.xlane.f32.xlu0 %v5266
  %v5296 = vpop.xlane.xlu0 %5295
  %5297 = vadd.xlane.f32.xlu0 %v5267
  %v5298 = vpop.xlane.xlu0 %5297
  %5299 = vadd.xlane.f32.xlu0 %v5268
  %v5300 = vpop.xlane.xlu0 %5299
  %v5301 = vmax.f32 %v5270, %v5272
  %v5302 = vrot.slane %v5301, 4
  %v5303 = vmax.f32 %v5301, %v5302
  %v5304 = vrot.slane %v5303, 2
  %v5305 = vmax.f32 %v5303, %v5304
  %v5306 = vrot.slane %v5305, 1
  %v5307 = vmax.f32 %v5305, %v5306
  %v5308 = vmax.f32 %v5274, %v5276
  %v5309 = vrot.slane %v5308, 4
  %v5310 = vmax.f32 %v5308, %v5309
  %v5311 = vrot.slane %v5310, 2
  %v5312 = vmax.f32 %v5310, %v5311
  %v5313 = vrot.slane %v5312, 1
  %v5314 = vmax.f32 %v5312, %v5313
  %v5315 = vmax.f32 %v5278, %v5280
  %v5316 = vrot.slane %v5315, 4
  %v5317 = vmax.f32 %v5315, %v5316
  %v5318 = vrot.slane %v5317, 2
  %v5319 = vmax.f32 %v5317, %v5318
  %v5320 = vrot.slane %v5319, 1
  %v5321 = vmax.f32 %v5319, %v5320
  %v5322 = vmax.f32 %v5282, %v5284
  %v5323 = vrot.slane %v5322, 4
  %v5324 = vmax.f32 %v5322, %v5323
  %v5325 = vrot.slane %v5324, 2
  %v5326 = vmax.f32 %v5324, %v5325
  %v5327 = vrot.slane %v5326, 1
  %v5328 = vmax.f32 %v5326, %v5327
  %v5329 = vmax.f32 %v5286, %v5288
  %v5330 = vrot.slane %v5329, 4
  %v5331 = vmax.f32 %v5329, %v5330
  %v5332 = vrot.slane %v5331, 2
  %v5333 = vmax.f32 %v5331, %v5332
  %v5334 = vrot.slane %v5333, 1
  %v5335 = vmax.f32 %v5333, %v5334
  %v5336 = vmax.f32 %v5290, %v5292
  %v5337 = vrot.slane %v5336, 4
  %v5338 = vmax.f32 %v5336, %v5337
  %v5339 = vrot.slane %v5338, 2
  %v5340 = vmax.f32 %v5338, %v5339
  %v5341 = vrot.slane %v5340, 1
  %v5342 = vmax.f32 %v5340, %v5341
  %v5343 = vmax.f32 %v5294, %v5296
  %v5344 = vrot.slane %v5343, 4
  %v5345 = vmax.f32 %v5343, %v5344
  %v5346 = vrot.slane %v5345, 2
  %v5347 = vmax.f32 %v5345, %v5346
  %v5348 = vrot.slane %v5347, 1
  %v5349 = vmax.f32 %v5347, %v5348
  %v5350 = vmax.f32 %v5298, %v5300
  %v5351 = vrot.slane %v5350, 4
  %v5352 = vmax.f32 %v5350, %v5351
  %v5353 = vrot.slane %v5352, 2
  %v5354 = vmax.f32 %v5352, %v5353
  %v5355 = vrot.slane %v5354, 1
  %v5356 = vmax.f32 %v5354, %v5355
  %v5357 = vsub.f32 %v5270, %v5307
  %v5358 = vsub.f32 %v5272, %v5307
  %v5359 = vsub.f32 %v5274, %v5314
  %v5360 = vsub.f32 %v5276, %v5314
  %v5361 = vsub.f32 %v5278, %v5321
  %v5362 = vsub.f32 %v5280, %v5321
  %v5363 = vsub.f32 %v5282, %v5328
  %v5364 = vsub.f32 %v5284, %v5328
  %v5365 = vsub.f32 %v5286, %v5335
  %v5366 = vsub.f32 %v5288, %v5335
  %v5367 = vsub.f32 %v5290, %v5342
  %v5368 = vsub.f32 %v5292, %v5342
  %v5369 = vsub.f32 %v5294, %v5349
  %v5370 = vsub.f32 %v5296, %v5349
  %v5371 = vsub.f32 %v5298, %v5356
  %v5372 = vsub.f32 %v5300, %v5356
  %v5373 = vmul.f32 %v5357, 1.442695
  %v5374 = vpow.pop %v5373
  %v5375 = vmul.f32 %v5358, 1.442695
  %v5376 = vpow.pop %v5375
  %v5377 = vmul.f32 %v5359, 1.442695
  %v5378 = vpow.pop %v5377
  %v5379 = vmul.f32 %v5360, 1.442695
  %v5380 = vpow.pop %v5379
  %v5381 = vmul.f32 %v5361, 1.442695
  %v5382 = vpow.pop %v5381
  %v5383 = vmul.f32 %v5362, 1.442695
  %v5384 = vpow.pop %v5383
  %v5385 = vmul.f32 %v5363, 1.442695
  %v5386 = vpow.pop %v5385
  %v5387 = vmul.f32 %v5364, 1.442695
  %v5388 = vpow.pop %v5387
  %v5389 = vmul.f32 %v5365, 1.442695
  %v5390 = vpow.pop %v5389
  %v5391 = vmul.f32 %v5366, 1.442695
  %v5392 = vpow.pop %v5391
  %v5393 = vmul.f32 %v5367, 1.442695
  %v5394 = vpow.pop %v5393
  %v5395 = vmul.f32 %v5368, 1.442695
  %v5396 = vpow.pop %v5395
  %v5397 = vmul.f32 %v5369, 1.442695
  %v5398 = vpow.pop %v5397
  %v5399 = vmul.f32 %v5370, 1.442695
  %v5400 = vpow.pop %v5399
  %v5401 = vmul.f32 %v5371, 1.442695
  %v5402 = vpow.pop %v5401
  %v5403 = vmul.f32 %v5372, 1.442695
  %v5404 = vpow.pop %v5403
  %v5405 = vadd.f32 %v5374, %v5376
  %v5406 = vrot.slane %v5405, 4
  %v5407 = vadd.f32 %v5405, %v5406
  %v5408 = vrot.slane %v5407, 2
  %v5409 = vadd.f32 %v5407, %v5408
  %v5410 = vrot.slane %v5409, 1
  %v5411 = vadd.f32 %v5409, %v5410
  %v5412 = vadd.f32 %v5378, %v5380
  %v5413 = vrot.slane %v5412, 4
  %v5414 = vadd.f32 %v5412, %v5413
  %v5415 = vrot.slane %v5414, 2
  %v5416 = vadd.f32 %v5414, %v5415
  %v5417 = vrot.slane %v5416, 1
  %v5418 = vadd.f32 %v5416, %v5417
  %v5419 = vadd.f32 %v5382, %v5384
  %v5420 = vrot.slane %v5419, 4
  %v5421 = vadd.f32 %v5419, %v5420
  %v5422 = vrot.slane %v5421, 2
  %v5423 = vadd.f32 %v5421, %v5422
  %v5424 = vrot.slane %v5423, 1
  %v5425 = vadd.f32 %v5423, %v5424
  %v5426 = vadd.f32 %v5386, %v5388
  %v5427 = vrot.slane %v5426, 4
  %v5428 = vadd.f32 %v5426, %v5427
  %v5429 = vrot.slane %v5428, 2
  %v5430 = vadd.f32 %v5428, %v5429
  %v5431 = vrot.slane %v5430, 1
  %v5432 = vadd.f32 %v5430, %v5431
  %v5433 = vadd.f32 %v5390, %v5392
  %v5434 = vrot.slane %v5433, 4
  %v5435 = vadd.f32 %v5433, %v5434
  %v5436 = vrot.slane %v5435, 2
  %v5437 = vadd.f32 %v5435, %v5436
  %v5438 = vrot.slane %v5437, 1
  %v5439 = vadd.f32 %v5437, %v5438
  %v5440 = vadd.f32 %v5394, %v5396
  %v5441 = vrot.slane %v5440, 4
  %v5442 = vadd.f32 %v5440, %v5441
  %v5443 = vrot.slane %v5442, 2
  %v5444 = vadd.f32 %v5442, %v5443
  %v5445 = vrot.slane %v5444, 1
  %v5446 = vadd.f32 %v5444, %v5445
  %v5447 = vadd.f32 %v5398, %v5400
  %v5448 = vrot.slane %v5447, 4
  %v5449 = vadd.f32 %v5447, %v5448
  %v5450 = vrot.slane %v5449, 2
  %v5451 = vadd.f32 %v5449, %v5450
  %v5452 = vrot.slane %v5451, 1
  %v5453 = vadd.f32 %v5451, %v5452
  %v5454 = vadd.f32 %v5402, %v5404
  %v5455 = vrot.slane %v5454, 4
  %v5456 = vadd.f32 %v5454, %v5455
  %v5457 = vrot.slane %v5456, 2
  %v5458 = vadd.f32 %v5456, %v5457
  %v5459 = vrot.slane %v5458, 1
  %v5460 = vadd.f32 %v5458, %v5459
  %v5461 = vrcp.pop %v5411
  %v5462 = vrcp.pop %v5418
  %v5463 = vrcp.pop %v5425
  %v5464 = vrcp.pop %v5432
  %v5465 = vrcp.pop %v5439
  %v5466 = vrcp.pop %v5446
  %v5467 = vrcp.pop %v5453
  %v5468 = vrcp.pop %v5460
  %v5469 = vmul.f32 %v5374, %v5461
  %v5470 = vmul.f32 %v5376, %v5461
  %v5471 = vmul.f32 %v5378, %v5462
  %v5472 = vmul.f32 %v5380, %v5462
  %v5473 = vmul.f32 %v5382, %v5463
  %v5474 = vmul.f32 %v5384, %v5463
  %v5475 = vmul.f32 %v5386, %v5464
  %v5476 = vmul.f32 %v5388, %v5464
  %v5477 = vmul.f32 %v5390, %v5465
  %v5478 = vmul.f32 %v5392, %v5465
  %v5479 = vmul.f32 %v5394, %v5466
  %v5480 = vmul.f32 %v5396, %v5466
  %v5481 = vmul.f32 %v5398, %v5467
  %v5482 = vmul.f32 %v5400, %v5467
  %v5483 = vmul.f32 %v5402, %v5468
  %v5484 = vmul.f32 %v5404, %v5468
  %v5485 = vld [vmem:[%s4] sm:$0xf]
  %v5486 = vld [vmem:[%s0] sm:$0xf]
  %v5487 = vld [vmem:[%s0 + $0x4] sm:$0xf]
  %v5488 = vld [vmem:[%s0 + $0x8] sm:$0xf]
  %v5489 = vld [vmem:[%s0 + $0xc] sm:$0xf]
  %v5490 = vld [vmem:[%s0 + $0x10] sm:$0xf]
  %v5491 = vld [vmem:[%s0 + $0x14] sm:$0xf]
  %v5492 = vld [vmem:[%s0 + $0x18] sm:$0xf]
  %v5493 = vld [vmem:[%s0 + $0x1c] sm:$0xf]
  %v5494 = vld [vmem:[%s0 + $0x20] sm:$0xf]
  %v5495 = vld [vmem:[%s0 + $0x24] sm:$0xf]
  %v5496 = vld [vmem:[%s0 + $0x28] sm:$0xf]
  %v5497 = vld [vmem:[%s0 + $0x2c] sm:$0xf]
  %v5498 = vld [vmem:[%s0 + $0x30] sm:$0xf]
  %v5499 = vld [vmem:[%s0 + $0x34] sm:$0xf]
  %v5500 = vld [vmem:[%s0 + $0x38] sm:$0xf]
  %v5501 = vld [vmem:[%s0 + $0x3c] sm:$0xf]
  %v5502 = vpack.c.bf16 %v5470, %v5469
  %v5503 = vpack.c.bf16 %v5472, %v5471
  %v5504 = vpack.c.bf16 %v5474, %v5473
  %v5505 = vpack.c.bf16 %v5476, %v5475
  %v5506 = vpack.c.bf16 %v5478, %v5477
  %v5507 = vpack.c.bf16 %v5480, %v5479
  %v5508 = vpack.c.bf16 %v5482, %v5481
  %v5509 = vpack.c.bf16 %v5484, %v5483
  %v5519 = vunpack.c.l.s4 839922192
  %v5520 = vunpack.c.0.s8 %v5519
  %v5521 = vlaneseq
  %v5522 = vshrl.u32 %v5521, 7
  %v5523 = vsub.s32 %v5520, %v5522
  %v5524 = vrot.slane %v5502, %v5523
  %v5526 = vunpack.c.l.s4 1985246804
  %v5527 = vunpack.c.0.s8 %v5526
  %v5528 = vlaneseq
  %v5529 = vshrl.u32 %v5528, 7
  %v5530 = vsub.s32 %v5527, %v5529
  %v5531 = vrot.slane %v5502, %v5530
  %v5533 = vunpack.c.l.s4 839922192
  %v5534 = vunpack.c.0.s8 %v5533
  %v5535 = vlaneseq
  %v5536 = vshrl.u32 %v5535, 7
  %v5537 = vsub.s32 %v5534, %v5536
  %v5538 = vrot.slane %v5503, %v5537
  %v5540 = vunpack.c.l.s4 1985246804
  %v5541 = vunpack.c.0.s8 %v5540
  %v5542 = vlaneseq
  %v5543 = vshrl.u32 %v5542, 7
  %v5544 = vsub.s32 %v5541, %v5543
  %v5545 = vrot.slane %v5503, %v5544
  %v5547 = vunpack.c.l.s4 839922192
  %v5548 = vunpack.c.0.s8 %v5547
  %v5549 = vlaneseq
  %v5550 = vshrl.u32 %v5549, 7
  %v5551 = vsub.s32 %v5548, %v5550
  %v5552 = vrot.slane %v5504, %v5551
  %v5554 = vunpack.c.l.s4 1985246804
  %v5555 = vunpack.c.0.s8 %v5554
  %v5556 = vlaneseq
  %v5557 = vshrl.u32 %v5556, 7
  %v5558 = vsub.s32 %v5555, %v5557
  %v5559 = vrot.slane %v5504, %v5558
  %v5561 = vunpack.c.l.s4 839922192
  %v5562 = vunpack.c.0.s8 %v5561
  %v5563 = vlaneseq
  %v5564 = vshrl.u32 %v5563, 7
  %v5565 = vsub.s32 %v5562, %v5564
  %v5566 = vrot.slane %v5505, %v5565
  %v5568 = vunpack.c.l.s4 1985246804
  %v5569 = vunpack.c.0.s8 %v5568
  %v5570 = vlaneseq
  %v5571 = vshrl.u32 %v5570, 7
  %v5572 = vsub.s32 %v5569, %v5571
  %v5573 = vrot.slane %v5505, %v5572
  %v5575 = vunpack.c.l.s4 839922192
  %v5576 = vunpack.c.0.s8 %v5575
  %v5577 = vlaneseq
  %v5578 = vshrl.u32 %v5577, 7
  %v5579 = vsub.s32 %v5576, %v5578
  %v5580 = vrot.slane %v5506, %v5579
  %v5582 = vunpack.c.l.s4 1985246804
  %v5583 = vunpack.c.0.s8 %v5582
  %v5584 = vlaneseq
  %v5585 = vshrl.u32 %v5584, 7
  %v5586 = vsub.s32 %v5583, %v5585
  %v5587 = vrot.slane %v5506, %v5586
  %v5589 = vunpack.c.l.s4 839922192
  %v5590 = vunpack.c.0.s8 %v5589
  %v5591 = vlaneseq
  %v5592 = vshrl.u32 %v5591, 7
  %v5593 = vsub.s32 %v5590, %v5592
  %v5594 = vrot.slane %v5507, %v5593
  %v5596 = vunpack.c.l.s4 1985246804
  %v5597 = vunpack.c.0.s8 %v5596
  %v5598 = vlaneseq
  %v5599 = vshrl.u32 %v5598, 7
  %v5600 = vsub.s32 %v5597, %v5599
  %v5601 = vrot.slane %v5507, %v5600
  %v5603 = vunpack.c.l.s4 839922192
  %v5604 = vunpack.c.0.s8 %v5603
  %v5605 = vlaneseq
  %v5606 = vshrl.u32 %v5605, 7
  %v5607 = vsub.s32 %v5604, %v5606
  %v5608 = vrot.slane %v5508, %v5607
  %v5610 = vunpack.c.l.s4 1985246804
  %v5611 = vunpack.c.0.s8 %v5610
  %v5612 = vlaneseq
  %v5613 = vshrl.u32 %v5612, 7
  %v5614 = vsub.s32 %v5611, %v5613
  %v5615 = vrot.slane %v5508, %v5614
  %v5617 = vunpack.c.l.s4 839922192
  %v5618 = vunpack.c.0.s8 %v5617
  %v5619 = vlaneseq
  %v5620 = vshrl.u32 %v5619, 7
  %v5621 = vsub.s32 %v5618, %v5620
  %v5622 = vrot.slane %v5509, %v5621
  %v5624 = vunpack.c.l.s4 1985246804
  %v5625 = vunpack.c.0.s8 %v5624
  %v5626 = vlaneseq
  %v5627 = vshrl.u32 %v5626, 7
  %v5628 = vsub.s32 %v5625, %v5627
  %v5629 = vrot.slane %v5509, %v5628
  %v5646 = vmul.bf16 %v5486, %v5524
  %v5647 = vmul.bf16 %v5487, %v5531
  %v5648 = vmul.bf16 %v5488, %v5538
  %v5649 = vmul.bf16 %v5489, %v5545
  %v5650 = vmul.bf16 %v5490, %v5552
  %v5651 = vmul.bf16 %v5491, %v5559
  %v5652 = vmul.bf16 %v5492, %v5566
  %v5653 = vmul.bf16 %v5493, %v5573
  %v5654 = vmul.bf16 %v5494, %v5580
  %v5655 = vmul.bf16 %v5495, %v5587
  %v5656 = vmul.bf16 %v5496, %v5594
  %v5657 = vmul.bf16 %v5497, %v5601
  %v5658 = vmul.bf16 %v5498, %v5608
  %v5659 = vmul.bf16 %v5499, %v5615
  %v5660 = vmul.bf16 %v5500, %v5622
  %v5661 = vmul.bf16 %v5501, %v5629
  %v5678 = vunpack.c.l.b16 %v5646
  %v5679 = vunpack.c.l.b16 %v5647
  %v5680 = vunpack.c.l.b16 %v5648
  %v5681 = vunpack.c.l.b16 %v5649
  %v5682 = vunpack.c.l.b16 %v5650
  %v5683 = vunpack.c.l.b16 %v5651
  %v5684 = vunpack.c.l.b16 %v5652
  %v5685 = vunpack.c.l.b16 %v5653
  %v5686 = vunpack.c.l.b16 %v5654
  %v5687 = vunpack.c.l.b16 %v5655
  %v5688 = vunpack.c.l.b16 %v5656
  %v5689 = vunpack.c.l.b16 %v5657
  %v5690 = vunpack.c.l.b16 %v5658
  %v5691 = vunpack.c.l.b16 %v5659
  %v5692 = vunpack.c.l.b16 %v5660
  %v5693 = vunpack.c.l.b16 %v5661
  %v5694 = vpack.c.b16 %v5679, %v5678
  %v5695 = vpack.c.b16 %v5681, %v5680
  %v5696 = vpack.c.b16 %v5683, %v5682
  %v5697 = vpack.c.b16 %v5685, %v5684
  %v5698 = vpack.c.b16 %v5687, %v5686
  %v5699 = vpack.c.b16 %v5689, %v5688
  %v5700 = vpack.c.b16 %v5691, %v5690
  %v5701 = vpack.c.b16 %v5693, %v5692
  %5710 = vmatprep.subr.bf16.mxu0 0
  %5711 = vmatpush1.bf16.msra.mxu0 %v5701
  %5712 = vmatprep.subr.bf16.mxu0 0
  %5713 = vmatpush1.bf16.msra.mxu0 %v5700
  %5714 = vmatprep.subr.bf16.mxu0 0
  %5715 = vmatpush1.bf16.msra.mxu0 %v5699
  %5716 = vmatprep.subr.bf16.mxu0 0
  %5717 = vmatpush1.bf16.msra.mxu0 %v5698
  %5718 = vmatprep.subr.bf16.mxu0 0
  %5719 = vmatpush1.bf16.msra.mxu0 %v5697
  %5720 = vmatprep.subr.bf16.mxu0 0
  %5721 = vmatpush1.bf16.msra.mxu0 %v5696
  %5722 = vmatprep.subr.bf16.mxu0 0
  %5723 = vmatpush1.bf16.msra.mxu0 %v5695
  %5724 = vmatprep.subr.bf16.mxu0 0
  %5725 = vmatpush1.bf16.msra.mxu0 %v5694
  %5726 = vmatprep.subr.bf16.mxu0 0
  %5727 = vmatpush2.bf16.msra.mxu0 0
  %5728 = vmatprep.subr.bf16.mxu0 0
  %5729 = vmatpush2.bf16.msra.mxu0 0
  %5730 = vmatprep.subr.bf16.mxu0 0
  %5731 = vmatpush2.bf16.msra.mxu0 0
  %5732 = vmatprep.subr.bf16.mxu0 0
  %5733 = vmatpush2.bf16.msra.mxu0 0
  %5734 = vmatprep.subr.bf16.mxu0 0
  %5735 = vmatpush2.bf16.msra.mxu0 0
  %5736 = vmatprep.subr.bf16.mxu0 0
  %5737 = vmatpush2.bf16.msra.mxu0 0
  %5738 = vmatprep.subr.bf16.mxu0 0
  %5739 = vmatpush2.bf16.msra.mxu0 0
  %5740 = vmatprep.subr.bf16.mxu0 0
  %5741 = vmatpush2.bf16.msra.mxu0 0
  %5742 = vmatprep.mubr.bf16.mxu0 0
  %5743 = vmatmul.mubr.bf16.gmra.mxu0 %v5485
  %v5744 = vpop.f32.mrf.mxu0
  %v5745 = vadd.f32 0.0, %v5744
  %v5746 = vpop.f32.mrf.mxu0
  %v5747 = vpop.f32.mrf.mxu0
  %v5748 = vpop.f32.mrf.mxu0
  %5749 = vdwg.mxu0
  %v5750 = vmul.f32 %v5007, %v5745
  %v5751 = vpack.c.bf16 %v783, %v783
  %v5752 = vpack.c.bf16 %v5750, %v5750
  %v5753 = vld [vmem:[%s14] sm:$0xff]
  %v5754 = vld [vmem:[%s14 + $0x8] sm:$0xff]
  %v5755 = vld [vmem:[%s14 + $0x10] sm:$0xff]
  %v5756 = vld [vmem:[%s14 + $0x18] sm:$0xff]
  %v5757 = vld [vmem:[%s14 + $0x20] sm:$0xff]
  %v5758 = vld [vmem:[%s14 + $0x28] sm:$0xff]
  %v5759 = vld [vmem:[%s14 + $0x30] sm:$0xff]
  %v5760 = vld [vmem:[%s14 + $0x38] sm:$0xff]
  %v5761 = vld [vmem:[%s14 + $0x40] sm:$0xff]
  %v5762 = vld [vmem:[%s14 + $0x48] sm:$0xff]
  %v5763 = vld [vmem:[%s14 + $0x50] sm:$0xff]
  %v5764 = vld [vmem:[%s14 + $0x58] sm:$0xff]
  %v5765 = vld [vmem:[%s14 + $0x60] sm:$0xff]
  %v5766 = vld [vmem:[%s14 + $0x68] sm:$0xff]
  %v5767 = vld [vmem:[%s14 + $0x70] sm:$0xff]
  %v5768 = vld [vmem:[%s14 + $0x78] sm:$0xff]
  %v5769 = vld [vmem:[%s14 + $0x80] sm:$0xff]
  %v5770 = vld [vmem:[%s14 + $0x88] sm:$0xff]
  %v5771 = vld [vmem:[%s14 + $0x90] sm:$0xff]
  %v5772 = vld [vmem:[%s14 + $0x98] sm:$0xff]
  %v5773 = vld [vmem:[%s14 + $0xa0] sm:$0xff]
  %v5774 = vld [vmem:[%s14 + $0xa8] sm:$0xff]
  %v5775 = vld [vmem:[%s14 + $0xb0] sm:$0xff]
  %v5776 = vld [vmem:[%s14 + $0xb8] sm:$0xff]
  %v5777 = vld [vmem:[%s14 + $0xc0] sm:$0xff]
  %v5778 = vld [vmem:[%s14 + $0xc8] sm:$0xff]
  %v5779 = vld [vmem:[%s14 + $0xd0] sm:$0xff]
  %v5780 = vld [vmem:[%s14 + $0xd8] sm:$0xff]
  %v5781 = vld [vmem:[%s14 + $0xe0] sm:$0xff]
  %v5782 = vld [vmem:[%s14 + $0xe8] sm:$0xff]
  %v5783 = vld [vmem:[%s14 + $0xf0] sm:$0xff]
  %v5784 = vld [vmem:[%s14 + $0xf8] sm:$0xff]
  %v5785 = vld [vmem:[%s14 + $0x100] sm:$0xff]
  %v5786 = vld [vmem:[%s14 + $0x108] sm:$0xff]
  %v5787 = vld [vmem:[%s14 + $0x110] sm:$0xff]
  %v5788 = vld [vmem:[%s14 + $0x118] sm:$0xff]
  %v5789 = vld [vmem:[%s14 + $0x120] sm:$0xff]
  %v5790 = vld [vmem:[%s14 + $0x128] sm:$0xff]
  %v5791 = vld [vmem:[%s14 + $0x130] sm:$0xff]
  %v5792 = vld [vmem:[%s14 + $0x138] sm:$0xff]
  %v5793 = vld [vmem:[%s14 + $0x140] sm:$0xff]
  %v5794 = vld [vmem:[%s14 + $0x148] sm:$0xff]
  %v5795 = vld [vmem:[%s14 + $0x150] sm:$0xff]
  %v5796 = vld [vmem:[%s14 + $0x158] sm:$0xff]
  %v5797 = vld [vmem:[%s14 + $0x160] sm:$0xff]
  %v5798 = vld [vmem:[%s14 + $0x168] sm:$0xff]
  %v5799 = vld [vmem:[%s14 + $0x170] sm:$0xff]
  %v5800 = vld [vmem:[%s14 + $0x178] sm:$0xff]
  %v5801 = vld [vmem:[%s14 + $0x180] sm:$0xff]
  %v5802 = vld [vmem:[%s14 + $0x188] sm:$0xff]
  %v5803 = vld [vmem:[%s14 + $0x190] sm:$0xff]
  %v5804 = vld [vmem:[%s14 + $0x198] sm:$0xff]
  %v5805 = vld [vmem:[%s14 + $0x1a0] sm:$0xff]
  %v5806 = vld [vmem:[%s14 + $0x1a8] sm:$0xff]
  %v5807 = vld [vmem:[%s14 + $0x1b0] sm:$0xff]
  %v5808 = vld [vmem:[%s14 + $0x1b8] sm:$0xff]
  %v5809 = vld [vmem:[%s14 + $0x1c0] sm:$0xff]
  %v5810 = vld [vmem:[%s14 + $0x1c8] sm:$0xff]
  %v5811 = vld [vmem:[%s14 + $0x1d0] sm:$0xff]
  %v5812 = vld [vmem:[%s14 + $0x1d8] sm:$0xff]
  %v5813 = vld [vmem:[%s14 + $0x1e0] sm:$0xff]
  %v5814 = vld [vmem:[%s14 + $0x1e8] sm:$0xff]
  %v5815 = vld [vmem:[%s14 + $0x1f0] sm:$0xff]
  %v5816 = vld [vmem:[%s14 + $0x1f8] sm:$0xff]
  %v5881 = vunpack.c.l.b16 %v5753
  %v5882 = vunpack.c.h.b16 %v5753
  %v5883 = vunpack.c.l.b16 %v5754
  %v5884 = vunpack.c.h.b16 %v5754
  %v5885 = vunpack.c.l.b16 %v5755
  %v5886 = vunpack.c.h.b16 %v5755
  %v5887 = vunpack.c.l.b16 %v5756
  %v5888 = vunpack.c.h.b16 %v5756
  %v5889 = vunpack.c.l.b16 %v5757
  %v5890 = vunpack.c.h.b16 %v5757
  %v5891 = vunpack.c.l.b16 %v5758
  %v5892 = vunpack.c.h.b16 %v5758
  %v5893 = vunpack.c.l.b16 %v5759
  %v5894 = vunpack.c.h.b16 %v5759
  %v5895 = vunpack.c.l.b16 %v5760
  %v5896 = vunpack.c.h.b16 %v5760
  %v5897 = vunpack.c.l.b16 %v5761
  %v5898 = vunpack.c.h.b16 %v5761
  %v5899 = vunpack.c.l.b16 %v5762
  %v5900 = vunpack.c.h.b16 %v5762
  %v5901 = vunpack.c.l.b16 %v5763
  %v5902 = vunpack.c.h.b16 %v5763
  %v5903 = vunpack.c.l.b16 %v5764
  %v5904 = vunpack.c.h.b16 %v5764
  %v5905 = vunpack.c.l.b16 %v5765
  %v5906 = vunpack.c.h.b16 %v5765
  %v5907 = vunpack.c.l.b16 %v5766
  %v5908 = vunpack.c.h.b16 %v5766
  %v5909 = vunpack.c.l.b16 %v5767
  %v5910 = vunpack.c.h.b16 %v5767
  %v5911 = vunpack.c.l.b16 %v5768
  %v5912 = vunpack.c.h.b16 %v5768
  %v5913 = vunpack.c.l.b16 %v5769
  %v5914 = vunpack.c.h.b16 %v5769
  %v5915 = vunpack.c.l.b16 %v5770
  %v5916 = vunpack.c.h.b16 %v5770
  %v5917 = vunpack.c.l.b16 %v5771
  %v5918 = vunpack.c.h.b16 %v5771
  %v5919 = vunpack.c.l.b16 %v5772
  %v5920 = vunpack.c.h.b16 %v5772
  %v5921 = vunpack.c.l.b16 %v5773
  %v5922 = vunpack.c.h.b16 %v5773
  %v5923 = vunpack.c.l.b16 %v5774
  %v5924 = vunpack.c.h.b16 %v5774
  %v5925 = vunpack.c.l.b16 %v5775
  %v5926 = vunpack.c.h.b16 %v5775
  %v5927 = vunpack.c.l.b16 %v5776
  %v5928 = vunpack.c.h.b16 %v5776
  %v5929 = vunpack.c.l.b16 %v5777
  %v5930 = vunpack.c.h.b16 %v5777
  %v5931 = vunpack.c.l.b16 %v5778
  %v5932 = vunpack.c.h.b16 %v5778
  %v5933 = vunpack.c.l.b16 %v5779
  %v5934 = vunpack.c.h.b16 %v5779
  %v5935 = vunpack.c.l.b16 %v5780
  %v5936 = vunpack.c.h.b16 %v5780
  %v5937 = vunpack.c.l.b16 %v5781
  %v5938 = vunpack.c.h.b16 %v5781
  %v5939 = vunpack.c.l.b16 %v5782
  %v5940 = vunpack.c.h.b16 %v5782
  %v5941 = vunpack.c.l.b16 %v5783
  %v5942 = vunpack.c.h.b16 %v5783
  %v5943 = vunpack.c.l.b16 %v5784
  %v5944 = vunpack.c.h.b16 %v5784
  %v5945 = vunpack.c.l.b16 %v5785
  %v5946 = vunpack.c.h.b16 %v5785
  %v5947 = vunpack.c.l.b16 %v5786
  %v5948 = vunpack.c.h.b16 %v5786
  %v5949 = vunpack.c.l.b16 %v5787
  %v5950 = vunpack.c.h.b16 %v5787
  %v5951 = vunpack.c.l.b16 %v5788
  %v5952 = vunpack.c.h.b16 %v5788
  %v5953 = vunpack.c.l.b16 %v5789
  %v5954 = vunpack.c.h.b16 %v5789
  %v5955 = vunpack.c.l.b16 %v5790
  %v5956 = vunpack.c.h.b16 %v5790
  %v5957 = vunpack.c.l.b16 %v5791
  %v5958 = vunpack.c.h.b16 %v5791
  %v5959 = vunpack.c.l.b16 %v5792
  %v5960 = vunpack.c.h.b16 %v5792
  %v5961 = vunpack.c.l.b16 %v5793
  %v5962 = vunpack.c.h.b16 %v5793
  %v5963 = vunpack.c.l.b16 %v5794
  %v5964 = vunpack.c.h.b16 %v5794
  %v5965 = vunpack.c.l.b16 %v5795
  %v5966 = vunpack.c.h.b16 %v5795
  %v5967 = vunpack.c.l.b16 %v5796
  %v5968 = vunpack.c.h.b16 %v5796
  %v5969 = vunpack.c.l.b16 %v5797
  %v5970 = vunpack.c.h.b16 %v5797
  %v5971 = vunpack.c.l.b16 %v5798
  %v5972 = vunpack.c.h.b16 %v5798
  %v5973 = vunpack.c.l.b16 %v5799
  %v5974 = vunpack.c.h.b16 %v5799
  %v5975 = vunpack.c.l.b16 %v5800
  %v5976 = vunpack.c.h.b16 %v5800
  %v5977 = vunpack.c.l.b16 %v5801
  %v5978 = vunpack.c.h.b16 %v5801
  %v5979 = vunpack.c.l.b16 %v5802
  %v5980 = vunpack.c.h.b16 %v5802
  %v5981 = vunpack.c.l.b16 %v5803
  %v5982 = vunpack.c.h.b16 %v5803
  %v5983 = vunpack.c.l.b16 %v5804
  %v5984 = vunpack.c.h.b16 %v5804
  %v5985 = vunpack.c.l.b16 %v5805
  %v5986 = vunpack.c.h.b16 %v5805
  %v5987 = vunpack.c.l.b16 %v5806
  %v5988 = vunpack.c.h.b16 %v5806
  %v5989 = vunpack.c.l.b16 %v5807
  %v5990 = vunpack.c.h.b16 %v5807
  %v5991 = vunpack.c.l.b16 %v5808
  %v5992 = vunpack.c.h.b16 %v5808
  %v5993 = vunpack.c.l.b16 %v5809
  %v5994 = vunpack.c.h.b16 %v5809
  %v5995 = vunpack.c.l.b16 %v5810
  %v5996 = vunpack.c.h.b16 %v5810
  %v5997 = vunpack.c.l.b16 %v5811
  %v5998 = vunpack.c.h.b16 %v5811
  %v5999 = vunpack.c.l.b16 %v5812
  %v6000 = vunpack.c.h.b16 %v5812
  %v6001 = vunpack.c.l.b16 %v5813
  %v6002 = vunpack.c.h.b16 %v5813
  %v6003 = vunpack.c.l.b16 %v5814
  %v6004 = vunpack.c.h.b16 %v5814
  %v6005 = vunpack.c.l.b16 %v5815
  %v6006 = vunpack.c.h.b16 %v5815
  %v6007 = vunpack.c.l.b16 %v5816
  %v6008 = vunpack.c.h.b16 %v5816
  %v6009 = vpack.c.b16 %v5885, %v5881
  %v6010 = vpack.c.b16 %v5886, %v5882
  %v6011 = vpack.c.b16 %v5887, %v5883
  %v6012 = vpack.c.b16 %v5888, %v5884
  %v6013 = vpack.c.b16 %v5893, %v5889
  %v6014 = vpack.c.b16 %v5894, %v5890
  %v6015 = vpack.c.b16 %v5895, %v5891
  %v6016 = vpack.c.b16 %v5896, %v5892
  %v6017 = vpack.c.b16 %v5901, %v5897
  %v6018 = vpack.c.b16 %v5902, %v5898
  %v6019 = vpack.c.b16 %v5903, %v5899
  %v6020 = vpack.c.b16 %v5904, %v5900
  %v6021 = vpack.c.b16 %v5909, %v5905
  %v6022 = vpack.c.b16 %v5910, %v5906
  %v6023 = vpack.c.b16 %v5911, %v5907
  %v6024 = vpack.c.b16 %v5912, %v5908
  %v6025 = vpack.c.b16 %v5917, %v5913
  %v6026 = vpack.c.b16 %v5918, %v5914
  %v6027 = vpack.c.b16 %v5919, %v5915
  %v6028 = vpack.c.b16 %v5920, %v5916
  %v6029 = vpack.c.b16 %v5925, %v5921
  %v6030 = vpack.c.b16 %v5926, %v5922
  %v6031 = vpack.c.b16 %v5927, %v5923
  %v6032 = vpack.c.b16 %v5928, %v5924
  %v6033 = vpack.c.b16 %v5933, %v5929
  %v6034 = vpack.c.b16 %v5934, %v5930
  %v6035 = vpack.c.b16 %v5935, %v5931
  %v6036 = vpack.c.b16 %v5936, %v5932
  %v6037 = vpack.c.b16 %v5941, %v5937
  %v6038 = vpack.c.b16 %v5942, %v5938
  %v6039 = vpack.c.b16 %v5943, %v5939
  %v6040 = vpack.c.b16 %v5944, %v5940
  %v6041 = vpack.c.b16 %v5949, %v5945
  %v6042 = vpack.c.b16 %v5950, %v5946
  %v6043 = vpack.c.b16 %v5951, %v5947
  %v6044 = vpack.c.b16 %v5952, %v5948
  %v6045 = vpack.c.b16 %v5957, %v5953
  %v6046 = vpack.c.b16 %v5958, %v5954
  %v6047 = vpack.c.b16 %v5959, %v5955
  %v6048 = vpack.c.b16 %v5960, %v5956
  %v6049 = vpack.c.b16 %v5965, %v5961
  %v6050 = vpack.c.b16 %v5966, %v5962
  %v6051 = vpack.c.b16 %v5967, %v5963
  %v6052 = vpack.c.b16 %v5968, %v5964
  %v6053 = vpack.c.b16 %v5973, %v5969
  %v6054 = vpack.c.b16 %v5974, %v5970
  %v6055 = vpack.c.b16 %v5975, %v5971
  %v6056 = vpack.c.b16 %v5976, %v5972
  %v6057 = vpack.c.b16 %v5981, %v5977
  %v6058 = vpack.c.b16 %v5982, %v5978
  %v6059 = vpack.c.b16 %v5983, %v5979
  %v6060 = vpack.c.b16 %v5984, %v5980
  %v6061 = vpack.c.b16 %v5989, %v5985
  %v6062 = vpack.c.b16 %v5990, %v5986
  %v6063 = vpack.c.b16 %v5991, %v5987
  %v6064 = vpack.c.b16 %v5992, %v5988
  %v6065 = vpack.c.b16 %v5997, %v5993
  %v6066 = vpack.c.b16 %v5998, %v5994
  %v6067 = vpack.c.b16 %v5999, %v5995
  %v6068 = vpack.c.b16 %v6000, %v5996
  %v6069 = vpack.c.b16 %v6005, %v6001
  %v6070 = vpack.c.b16 %v6006, %v6002
  %v6071 = vpack.c.b16 %v6007, %v6003
  %v6072 = vpack.c.b16 %v6008, %v6004
  %6137 = vmatprep.subr.bf16.mxu0 %v6038
  %6138 = vmatpush1.bf16.msra.mxu0 %v6037
  %6139 = vmatprep.subr.bf16.mxu0 %v6034
  %6140 = vmatpush1.bf16.msra.mxu0 %v6033
  %6141 = vmatprep.subr.bf16.mxu0 %v6030
  %6142 = vmatpush1.bf16.msra.mxu0 %v6029
  %6143 = vmatprep.subr.bf16.mxu0 %v6026
  %6144 = vmatpush1.bf16.msra.mxu0 %v6025
  %6145 = vmatprep.subr.bf16.mxu0 %v6022
  %6146 = vmatpush1.bf16.msra.mxu0 %v6021
  %6147 = vmatprep.subr.bf16.mxu0 %v6018
  %6148 = vmatpush1.bf16.msra.mxu0 %v6017
  %6149 = vmatprep.subr.bf16.mxu0 %v6014
  %6150 = vmatpush1.bf16.msra.mxu0 %v6013
  %6151 = vmatprep.subr.bf16.mxu0 %v6010
  %6152 = vmatpush1.bf16.msra.mxu0 %v6009
  %6153 = vmatprep.subr.bf16.mxu0 %v6070
  %6154 = vmatpush2.bf16.msra.mxu0 %v6069
  %6155 = vmatprep.subr.bf16.mxu0 %v6066
  %6156 = vmatpush2.bf16.msra.mxu0 %v6065
  %6157 = vmatprep.subr.bf16.mxu0 %v6062
  %6158 = vmatpush2.bf16.msra.mxu0 %v6061
  %6159 = vmatprep.subr.bf16.mxu0 %v6058
  %6160 = vmatpush2.bf16.msra.mxu0 %v6057
  %6161 = vmatprep.subr.bf16.mxu0 %v6054
  %6162 = vmatpush2.bf16.msra.mxu0 %v6053
  %6163 = vmatprep.subr.bf16.mxu0 %v6050
  %6164 = vmatpush2.bf16.msra.mxu0 %v6049
  %6165 = vmatprep.subr.bf16.mxu0 %v6046
  %6166 = vmatpush2.bf16.msra.mxu0 %v6045
  %6167 = vmatprep.subr.bf16.mxu0 %v6042
  %6168 = vmatpush2.bf16.msra.mxu0 %v6041
  %6169 = vmatprep.mubr.bf16.mxu0 %v5752
  %6170 = vmatmul.mubr.bf16.gmra.mxu0 %v5751
  %v6171 = vpop.f32.mrf.mxu0
  %v6172 = vadd.f32 %v4955, %v6171
  %v6173 = vpop.f32.mrf.mxu0
  %v6174 = vadd.f32 %v4957, %v6173
  %v6175 = vpop.f32.mrf.mxu0
  %v6176 = vpop.f32.mrf.mxu0
  %6177 = vdwg.mxu0
  %6178 = vmatprep.subr.bf16.mxu0 %v6040
  %6179 = vmatpush1.bf16.msra.mxu0 %v6039
  %6180 = vmatprep.subr.bf16.mxu0 %v6036
  %6181 = vmatpush1.bf16.msra.mxu0 %v6035
  %6182 = vmatprep.subr.bf16.mxu0 %v6032
  %6183 = vmatpush1.bf16.msra.mxu0 %v6031
  %6184 = vmatprep.subr.bf16.mxu0 %v6028
  %6185 = vmatpush1.bf16.msra.mxu0 %v6027
  %6186 = vmatprep.subr.bf16.mxu0 %v6024
  %6187 = vmatpush1.bf16.msra.mxu0 %v6023
  %6188 = vmatprep.subr.bf16.mxu0 %v6020
  %6189 = vmatpush1.bf16.msra.mxu0 %v6019
  %6190 = vmatprep.subr.bf16.mxu0 %v6016
  %6191 = vmatpush1.bf16.msra.mxu0 %v6015
  %6192 = vmatprep.subr.bf16.mxu0 %v6012
  %6193 = vmatpush1.bf16.msra.mxu0 %v6011
  %6194 = vmatprep.subr.bf16.mxu0 %v6072
  %6195 = vmatpush2.bf16.msra.mxu0 %v6071
  %6196 = vmatprep.subr.bf16.mxu0 %v6068
  %6197 = vmatpush2.bf16.msra.mxu0 %v6067
  %6198 = vmatprep.subr.bf16.mxu0 %v6064
  %6199 = vmatpush2.bf16.msra.mxu0 %v6063
  %6200 = vmatprep.subr.bf16.mxu0 %v6060
  %6201 = vmatpush2.bf16.msra.mxu0 %v6059
  %6202 = vmatprep.subr.bf16.mxu0 %v6056
  %6203 = vmatpush2.bf16.msra.mxu0 %v6055
  %6204 = vmatprep.subr.bf16.mxu0 %v6052
  %6205 = vmatpush2.bf16.msra.mxu0 %v6051
  %6206 = vmatprep.subr.bf16.mxu0 %v6048
  %6207 = vmatpush2.bf16.msra.mxu0 %v6047
  %6208 = vmatprep.subr.bf16.mxu0 %v6044
  %6209 = vmatpush2.bf16.msra.mxu0 %v6043
  %6210 = vmatprep.mubr.bf16.mxu0 %v5752
  %6211 = vmatmul.mubr.bf16.gmra.mxu0 %v5751
  %v6212 = vpop.f32.mrf.mxu0
  %v6213 = vadd.f32 %v4996, %v6212
  %v6214 = vpop.f32.mrf.mxu0
  %v6215 = vadd.f32 %v4998, %v6214
  %v6216 = vpop.f32.mrf.mxu0
  %v6217 = vpop.f32.mrf.mxu0
  %6218 = vdwg.mxu0
  %v6219 = vxor.u32 %v6172, 2147483648
  %v6220 = vmul.f32 %v6219, 1.442695
  %v6221 = vpow.pop %v6220
  %v6222 = vadd.f32 %v6221, 1.0
  %v6223 = vrcp.pop %v6222
  %v6224 = vmul.f32 1.0, %v6223
  %v6225 = vxor.u32 %v6174, 2147483648
  %v6226 = vmul.f32 %v6225, 1.442695
  %v6227 = vpow.pop %v6226
  %v6228 = vadd.f32 %v6227, 1.0
  %v6229 = vrcp.pop %v6228
  %v6230 = vmul.f32 1.0, %v6229
  %v6231 = vtanh.pop %v6213
  %v6232 = vxor.u32 %v6215, 2147483648
  %v6233 = vmul.f32 %v6232, 1.442695
  %v6234 = vpow.pop %v6233
  %v6235 = vadd.f32 %v6234, 1.0
  %v6236 = vrcp.pop %v6235
  %v6237 = vmul.f32 1.0, %v6236
  %v6238 = vmul.f32 %v6230, %v4582
  %v6239 = vmul.f32 %v6224, %v6231
  %v6240 = vadd.f32 %v6238, %v6239
  %v6241 = vtanh.pop %v6240
  %v6242 = vmul.f32 %v6237, %v6241
  %v6243 = vpack.c.bf16 %v6242, %v6242
  %v6244 = vld [vmem:[%s15] sm:$0xff]
  %v6245 = vld [vmem:[%s15 + $0x8] sm:$0xff]
  %v6246 = vld [vmem:[%s15 + $0x10] sm:$0xff]
  %v6247 = vld [vmem:[%s15 + $0x18] sm:$0xff]
  %v6248 = vld [vmem:[%s15 + $0x20] sm:$0xff]
  %v6249 = vld [vmem:[%s15 + $0x28] sm:$0xff]
  %v6250 = vld [vmem:[%s15 + $0x30] sm:$0xff]
  %v6251 = vld [vmem:[%s15 + $0x38] sm:$0xff]
  %v6252 = vld [vmem:[%s15 + $0x40] sm:$0xff]
  %v6253 = vld [vmem:[%s15 + $0x48] sm:$0xff]
  %v6254 = vld [vmem:[%s15 + $0x50] sm:$0xff]
  %v6255 = vld [vmem:[%s15 + $0x58] sm:$0xff]
  %v6256 = vld [vmem:[%s15 + $0x60] sm:$0xff]
  %v6257 = vld [vmem:[%s15 + $0x68] sm:$0xff]
  %v6258 = vld [vmem:[%s15 + $0x70] sm:$0xff]
  %v6259 = vld [vmem:[%s15 + $0x78] sm:$0xff]
  %v6260 = vld [vmem:[%s16] sm:$0xff]
  %v6261 = vld [vmem:[%s16 + $0x8] sm:$0xff]
  %v6278 = vunpack.c.l.b16 %v6244
  %v6279 = vunpack.c.h.b16 %v6244
  %v6280 = vunpack.c.l.b16 %v6245
  %v6281 = vunpack.c.h.b16 %v6245
  %v6282 = vunpack.c.l.b16 %v6246
  %v6283 = vunpack.c.h.b16 %v6246
  %v6284 = vunpack.c.l.b16 %v6247
  %v6285 = vunpack.c.h.b16 %v6247
  %v6286 = vunpack.c.l.b16 %v6248
  %v6287 = vunpack.c.h.b16 %v6248
  %v6288 = vunpack.c.l.b16 %v6249
  %v6289 = vunpack.c.h.b16 %v6249
  %v6290 = vunpack.c.l.b16 %v6250
  %v6291 = vunpack.c.h.b16 %v6250
  %v6292 = vunpack.c.l.b16 %v6251
  %v6293 = vunpack.c.h.b16 %v6251
  %v6294 = vunpack.c.l.b16 %v6252
  %v6295 = vunpack.c.h.b16 %v6252
  %v6296 = vunpack.c.l.b16 %v6253
  %v6297 = vunpack.c.h.b16 %v6253
  %v6298 = vunpack.c.l.b16 %v6254
  %v6299 = vunpack.c.h.b16 %v6254
  %v6300 = vunpack.c.l.b16 %v6255
  %v6301 = vunpack.c.h.b16 %v6255
  %v6302 = vunpack.c.l.b16 %v6256
  %v6303 = vunpack.c.h.b16 %v6256
  %v6304 = vunpack.c.l.b16 %v6257
  %v6305 = vunpack.c.h.b16 %v6257
  %v6306 = vunpack.c.l.b16 %v6258
  %v6307 = vunpack.c.h.b16 %v6258
  %v6308 = vunpack.c.l.b16 %v6259
  %v6309 = vunpack.c.h.b16 %v6259
  %v6310 = vpack.c.b16 %v6280, %v6278
  %v6311 = vpack.c.b16 %v6281, %v6279
  %v6312 = vpack.c.b16 %v6284, %v6282
  %v6313 = vpack.c.b16 %v6285, %v6283
  %v6314 = vpack.c.b16 %v6288, %v6286
  %v6315 = vpack.c.b16 %v6289, %v6287
  %v6316 = vpack.c.b16 %v6292, %v6290
  %v6317 = vpack.c.b16 %v6293, %v6291
  %v6318 = vpack.c.b16 %v6296, %v6294
  %v6319 = vpack.c.b16 %v6297, %v6295
  %v6320 = vpack.c.b16 %v6300, %v6298
  %v6321 = vpack.c.b16 %v6301, %v6299
  %v6322 = vpack.c.b16 %v6304, %v6302
  %v6323 = vpack.c.b16 %v6305, %v6303
  %v6324 = vpack.c.b16 %v6308, %v6306
  %v6325 = vpack.c.b16 %v6309, %v6307
  %6342 = vmatprep.subr.bf16.mxu0 %v6325
  %6343 = vmatpush1.bf16.msra.mxu0 %v6324
  %6344 = vmatprep.subr.bf16.mxu0 %v6323
  %6345 = vmatpush1.bf16.msra.mxu0 %v6322
  %6346 = vmatprep.subr.bf16.mxu0 %v6321
  %6347 = vmatpush1.bf16.msra.mxu0 %v6320
  %6348 = vmatprep.subr.bf16.mxu0 %v6319
  %6349 = vmatpush1.bf16.msra.mxu0 %v6318
  %6350 = vmatprep.subr.bf16.mxu0 %v6317
  %6351 = vmatpush1.bf16.msra.mxu0 %v6316
  %6352 = vmatprep.subr.bf16.mxu0 %v6315
  %6353 = vmatpush1.bf16.msra.mxu0 %v6314
  %6354 = vmatprep.subr.bf16.mxu0 %v6313
  %6355 = vmatpush1.bf16.msra.mxu0 %v6312
  %6356 = vmatprep.subr.bf16.mxu0 %v6311
  %6357 = vmatpush1.bf16.msra.mxu0 %v6310
  %6358 = vmatprep.subr.bf16.mxu0 0
  %6359 = vmatpush2.bf16.msra.mxu0 0
  %6360 = vmatprep.subr.bf16.mxu0 0
  %6361 = vmatpush2.bf16.msra.mxu0 0
  %6362 = vmatprep.subr.bf16.mxu0 0
  %6363 = vmatpush2.bf16.msra.mxu0 0
  %6364 = vmatprep.subr.bf16.mxu0 0
  %6365 = vmatpush2.bf16.msra.mxu0 0
  %6366 = vmatprep.subr.bf16.mxu0 0
  %6367 = vmatpush2.bf16.msra.mxu0 0
  %6368 = vmatprep.subr.bf16.mxu0 0
  %6369 = vmatpush2.bf16.msra.mxu0 0
  %6370 = vmatprep.subr.bf16.mxu0 0
  %6371 = vmatpush2.bf16.msra.mxu0 0
  %6372 = vmatprep.subr.bf16.mxu0 0
  %6373 = vmatpush2.bf16.msra.mxu0 0
  %6374 = vmatprep.mubr.bf16.mxu0 0
  %6375 = vmatmul.mubr.bf16.gmra.mxu0 %v6243
  %v6376 = vpop.f32.mrf.mxu0
  %v6377 = vadd.f32 %v6260, %v6376
  %v6378 = vpop.f32.mrf.mxu0
  %v6379 = vadd.f32 %v6261, %v6378
  %v6380 = vpop.f32.mrf.mxu0
  %v6381 = vpop.f32.mrf.mxu0
  %6382 = vdwg.mxu0
  %v6383 = vsel %vm4583, 1, 0
  %6384 = vset.pattern.permute.xlu0 0
  %6385 = vperm.xlu0 %6384, %v6383
  %v6386 = vpop.permute.xlu0 %6385
  %vm6387 = vcmp.eq.s32.totalorder %v6386, 1
  %v6388 = vsel %vm6387, %v6377, 0.0
  %v6389 = vsel %vm6387, %v6379, 0.0
  %s6390 = scalar_lea.vmem %s17, 32
  %6391 = vst [vmem:[%s6390] sm:$0xff] %v6388
  %6392 = vst [vmem:[%s6390 + $0x8] sm:$0xff] %v6389
  %vm6393 = vcmp.gt.s32.totalorder %v797, 2
  %vm6394 = vcmp.gt.s32.totalorder %v798, 2
  %vm6395 = vcmp.gt.s32.totalorder %v799, 2
  %vm6396 = vcmp.gt.s32.totalorder %v800, 2
  %vm6397 = vcmp.gt.s32.totalorder %v801, 2
  %vm6398 = vcmp.gt.s32.totalorder %v802, 2
  %vm6399 = vcmp.gt.s32.totalorder %v803, 2
  %vm6400 = vcmp.gt.s32.totalorder %v804, 2
  %vm6401 = vcmp.gt.s32.totalorder %v805, 2
  %vm6402 = vcmp.gt.s32.totalorder %v806, 2
  %vm6403 = vcmp.gt.s32.totalorder %v807, 2
  %vm6404 = vcmp.gt.s32.totalorder %v808, 2
  %vm6405 = vcmp.gt.s32.totalorder %v809, 2
  %vm6406 = vcmp.gt.s32.totalorder %v810, 2
  %vm6407 = vcmp.gt.s32.totalorder %v811, 2
  %vm6408 = vcmp.gt.s32.totalorder %v812, 2
  %v6409 = vsel %vm6393, %v5469, 0.0
  %v6410 = vsel %vm6394, %v5470, 0.0
  %v6411 = vsel %vm6395, %v5471, 0.0
  %v6412 = vsel %vm6396, %v5472, 0.0
  %v6413 = vsel %vm6397, %v5473, 0.0
  %v6414 = vsel %vm6398, %v5474, 0.0
  %v6415 = vsel %vm6399, %v5475, 0.0
  %v6416 = vsel %vm6400, %v5476, 0.0
  %v6417 = vsel %vm6401, %v5477, 0.0
  %v6418 = vsel %vm6402, %v5478, 0.0
  %v6419 = vsel %vm6403, %v5479, 0.0
  %v6420 = vsel %vm6404, %v5480, 0.0
  %v6421 = vsel %vm6405, %v5481, 0.0
  %v6422 = vsel %vm6406, %v5482, 0.0
  %v6423 = vsel %vm6407, %v5483, 0.0
  %v6424 = vsel %vm6408, %v5484, 0.0
  %6441 = vrot.lane.b32.xlu0 %v6409, 2
  %v6442 = vpop.permute.xlu0 %6441
  %6443 = vrot.lane.b32.xlu0 %v6410, 2
  %v6444 = vpop.permute.xlu0 %6443
  %6445 = vrot.lane.b32.xlu0 %v6411, 2
  %v6446 = vpop.permute.xlu0 %6445
  %6447 = vrot.lane.b32.xlu0 %v6412, 2
  %v6448 = vpop.permute.xlu0 %6447
  %6449 = vrot.lane.b32.xlu0 %v6413, 2
  %v6450 = vpop.permute.xlu0 %6449
  %6451 = vrot.lane.b32.xlu0 %v6414, 2
  %v6452 = vpop.permute.xlu0 %6451
  %6453 = vrot.lane.b32.xlu0 %v6415, 2
  %v6454 = vpop.permute.xlu0 %6453
  %6455 = vrot.lane.b32.xlu0 %v6416, 2
  %v6456 = vpop.permute.xlu0 %6455
  %6457 = vrot.lane.b32.xlu0 %v6417, 2
  %v6458 = vpop.permute.xlu0 %6457
  %6459 = vrot.lane.b32.xlu0 %v6418, 2
  %v6460 = vpop.permute.xlu0 %6459
  %6461 = vrot.lane.b32.xlu0 %v6419, 2
  %v6462 = vpop.permute.xlu0 %6461
  %6463 = vrot.lane.b32.xlu0 %v6420, 2
  %v6464 = vpop.permute.xlu0 %6463
  %6465 = vrot.lane.b32.xlu0 %v6421, 2
  %v6466 = vpop.permute.xlu0 %6465
  %6467 = vrot.lane.b32.xlu0 %v6422, 2
  %v6468 = vpop.permute.xlu0 %6467
  %6469 = vrot.lane.b32.xlu0 %v6423, 2
  %v6470 = vpop.permute.xlu0 %6469
  %6471 = vrot.lane.b32.xlu0 %v6424, 2
  %v6472 = vpop.permute.xlu0 %6471
  %vm6489 = vcmask 23568
  %6490 = vst.msk [vmem:[%s18] sm:$0xff] %vm6489, %v6442
  %6491 = vst.msk [vmem:[%s18 + $0x8] sm:$0xff] %vm6489, %v6444
  %6492 = vst.msk [vmem:[%s18 + $0x10] sm:$0xff] %vm6489, %v6446
  %6493 = vst.msk [vmem:[%s18 + $0x18] sm:$0xff] %vm6489, %v6448
  %6494 = vst.msk [vmem:[%s18 + $0x20] sm:$0xff] %vm6489, %v6450
  %6495 = vst.msk [vmem:[%s18 + $0x28] sm:$0xff] %vm6489, %v6452
  %6496 = vst.msk [vmem:[%s18 + $0x30] sm:$0xff] %vm6489, %v6454
  %6497 = vst.msk [vmem:[%s18 + $0x38] sm:$0xff] %vm6489, %v6456
  %6498 = vst.msk [vmem:[%s18 + $0x40] sm:$0xff] %vm6489, %v6458
  %6499 = vst.msk [vmem:[%s18 + $0x48] sm:$0xff] %vm6489, %v6460
  %6500 = vst.msk [vmem:[%s18 + $0x50] sm:$0xff] %vm6489, %v6462
  %6501 = vst.msk [vmem:[%s18 + $0x58] sm:$0xff] %vm6489, %v6464
  %6502 = vst.msk [vmem:[%s18 + $0x60] sm:$0xff] %vm6489, %v6466
  %6503 = vst.msk [vmem:[%s18 + $0x68] sm:$0xff] %vm6489, %v6468
  %6504 = vst.msk [vmem:[%s18 + $0x70] sm:$0xff] %vm6489, %v6470
  %6505 = vst.msk [vmem:[%s18 + $0x78] sm:$0xff] %vm6489, %v6472
  %v6506 = vsel %vm6387, %v6242, %v4581
  %v6507 = vsel %vm6387, %v6240, %v4582
  %vm6508 = vcmp.gt.s32.totalorder %v796, 3
  %v6509 = vpack.c.bf16 %v6506, %v6506
  %v6510 = vld [vmem:[%s12] sm:$0xff]
  %v6511 = vld [vmem:[%s12 + $0x8] sm:$0xff]
  %v6512 = vld [vmem:[%s12 + $0x10] sm:$0xff]
  %v6513 = vld [vmem:[%s12 + $0x18] sm:$0xff]
  %v6514 = vld [vmem:[%s12 + $0x20] sm:$0xff]
  %v6515 = vld [vmem:[%s12 + $0x28] sm:$0xff]
  %v6516 = vld [vmem:[%s12 + $0x30] sm:$0xff]
  %v6517 = vld [vmem:[%s12 + $0x38] sm:$0xff]
  %v6518 = vld [vmem:[%s12 + $0x40] sm:$0xff]
  %v6519 = vld [vmem:[%s12 + $0x48] sm:$0xff]
  %v6520 = vld [vmem:[%s12 + $0x50] sm:$0xff]
  %v6521 = vld [vmem:[%s12 + $0x58] sm:$0xff]
  %v6522 = vld [vmem:[%s12 + $0x60] sm:$0xff]
  %v6523 = vld [vmem:[%s12 + $0x68] sm:$0xff]
  %v6524 = vld [vmem:[%s12 + $0x70] sm:$0xff]
  %v6525 = vld [vmem:[%s12 + $0x78] sm:$0xff]
  %v6526 = vld [vmem:[%s12 + $0x80] sm:$0xff]
  %v6527 = vld [vmem:[%s12 + $0x88] sm:$0xff]
  %v6528 = vld [vmem:[%s12 + $0x90] sm:$0xff]
  %v6529 = vld [vmem:[%s12 + $0x98] sm:$0xff]
  %v6530 = vld [vmem:[%s12 + $0xa0] sm:$0xff]
  %v6531 = vld [vmem:[%s12 + $0xa8] sm:$0xff]
  %v6532 = vld [vmem:[%s12 + $0xb0] sm:$0xff]
  %v6533 = vld [vmem:[%s12 + $0xb8] sm:$0xff]
  %v6534 = vld [vmem:[%s12 + $0xc0] sm:$0xff]
  %v6535 = vld [vmem:[%s12 + $0xc8] sm:$0xff]
  %v6536 = vld [vmem:[%s12 + $0xd0] sm:$0xff]
  %v6537 = vld [vmem:[%s12 + $0xd8] sm:$0xff]
  %v6538 = vld [vmem:[%s12 + $0xe0] sm:$0xff]
  %v6539 = vld [vmem:[%s12 + $0xe8] sm:$0xff]
  %v6540 = vld [vmem:[%s12 + $0xf0] sm:$0xff]
  %v6541 = vld [vmem:[%s12 + $0xf8] sm:$0xff]
  %v6542 = vld [vmem:[%s12 + $0x100] sm:$0xff]
  %v6543 = vld [vmem:[%s12 + $0x108] sm:$0xff]
  %v6544 = vld [vmem:[%s12 + $0x110] sm:$0xff]
  %v6545 = vld [vmem:[%s12 + $0x118] sm:$0xff]
  %v6546 = vld [vmem:[%s12 + $0x120] sm:$0xff]
  %v6547 = vld [vmem:[%s12 + $0x128] sm:$0xff]
  %v6548 = vld [vmem:[%s12 + $0x130] sm:$0xff]
  %v6549 = vld [vmem:[%s12 + $0x138] sm:$0xff]
  %v6550 = vld [vmem:[%s12 + $0x140] sm:$0xff]
  %v6551 = vld [vmem:[%s12 + $0x148] sm:$0xff]
  %v6552 = vld [vmem:[%s12 + $0x150] sm:$0xff]
  %v6553 = vld [vmem:[%s12 + $0x158] sm:$0xff]
  %v6554 = vld [vmem:[%s12 + $0x160] sm:$0xff]
  %v6555 = vld [vmem:[%s12 + $0x168] sm:$0xff]
  %v6556 = vld [vmem:[%s12 + $0x170] sm:$0xff]
  %v6557 = vld [vmem:[%s12 + $0x178] sm:$0xff]
  %v6558 = vld [vmem:[%s13] sm:$0xff]
  %v6559 = vld [vmem:[%s13 + $0x8] sm:$0xff]
  %v6560 = vld [vmem:[%s13 + $0x10] sm:$0xff]
  %v6561 = vld [vmem:[%s13 + $0x18] sm:$0xff]
  %v6562 = vld [vmem:[%s13 + $0x20] sm:$0xff]
  %v6563 = vld [vmem:[%s13 + $0x28] sm:$0xff]
  %v6612 = vunpack.c.l.b16 %v6510
  %v6613 = vunpack.c.h.b16 %v6510
  %v6614 = vunpack.c.l.b16 %v6511
  %v6615 = vunpack.c.h.b16 %v6511
  %v6616 = vunpack.c.l.b16 %v6512
  %v6617 = vunpack.c.h.b16 %v6512
  %v6618 = vunpack.c.l.b16 %v6513
  %v6619 = vunpack.c.h.b16 %v6513
  %v6620 = vunpack.c.l.b16 %v6514
  %v6621 = vunpack.c.h.b16 %v6514
  %v6622 = vunpack.c.l.b16 %v6515
  %v6623 = vunpack.c.h.b16 %v6515
  %v6624 = vunpack.c.l.b16 %v6516
  %v6625 = vunpack.c.h.b16 %v6516
  %v6626 = vunpack.c.l.b16 %v6517
  %v6627 = vunpack.c.h.b16 %v6517
  %v6628 = vunpack.c.l.b16 %v6518
  %v6629 = vunpack.c.h.b16 %v6518
  %v6630 = vunpack.c.l.b16 %v6519
  %v6631 = vunpack.c.h.b16 %v6519
  %v6632 = vunpack.c.l.b16 %v6520
  %v6633 = vunpack.c.h.b16 %v6520
  %v6634 = vunpack.c.l.b16 %v6521
  %v6635 = vunpack.c.h.b16 %v6521
  %v6636 = vunpack.c.l.b16 %v6522
  %v6637 = vunpack.c.h.b16 %v6522
  %v6638 = vunpack.c.l.b16 %v6523
  %v6639 = vunpack.c.h.b16 %v6523
  %v6640 = vunpack.c.l.b16 %v6524
  %v6641 = vunpack.c.h.b16 %v6524
  %v6642 = vunpack.c.l.b16 %v6525
  %v6643 = vunpack.c.h.b16 %v6525
  %v6644 = vunpack.c.l.b16 %v6526
  %v6645 = vunpack.c.h.b16 %v6526
  %v6646 = vunpack.c.l.b16 %v6527
  %v6647 = vunpack.c.h.b16 %v6527
  %v6648 = vunpack.c.l.b16 %v6528
  %v6649 = vunpack.c.h.b16 %v6528
  %v6650 = vunpack.c.l.b16 %v6529
  %v6651 = vunpack.c.h.b16 %v6529
  %v6652 = vunpack.c.l.b16 %v6530
  %v6653 = vunpack.c.h.b16 %v6530
  %v6654 = vunpack.c.l.b16 %v6531
  %v6655 = vunpack.c.h.b16 %v6531
  %v6656 = vunpack.c.l.b16 %v6532
  %v6657 = vunpack.c.h.b16 %v6532
  %v6658 = vunpack.c.l.b16 %v6533
  %v6659 = vunpack.c.h.b16 %v6533
  %v6660 = vunpack.c.l.b16 %v6534
  %v6661 = vunpack.c.h.b16 %v6534
  %v6662 = vunpack.c.l.b16 %v6535
  %v6663 = vunpack.c.h.b16 %v6535
  %v6664 = vunpack.c.l.b16 %v6536
  %v6665 = vunpack.c.h.b16 %v6536
  %v6666 = vunpack.c.l.b16 %v6537
  %v6667 = vunpack.c.h.b16 %v6537
  %v6668 = vunpack.c.l.b16 %v6538
  %v6669 = vunpack.c.h.b16 %v6538
  %v6670 = vunpack.c.l.b16 %v6539
  %v6671 = vunpack.c.h.b16 %v6539
  %v6672 = vunpack.c.l.b16 %v6540
  %v6673 = vunpack.c.h.b16 %v6540
  %v6674 = vunpack.c.l.b16 %v6541
  %v6675 = vunpack.c.h.b16 %v6541
  %v6676 = vunpack.c.l.b16 %v6542
  %v6677 = vunpack.c.h.b16 %v6542
  %v6678 = vunpack.c.l.b16 %v6543
  %v6679 = vunpack.c.h.b16 %v6543
  %v6680 = vunpack.c.l.b16 %v6544
  %v6681 = vunpack.c.h.b16 %v6544
  %v6682 = vunpack.c.l.b16 %v6545
  %v6683 = vunpack.c.h.b16 %v6545
  %v6684 = vunpack.c.l.b16 %v6546
  %v6685 = vunpack.c.h.b16 %v6546
  %v6686 = vunpack.c.l.b16 %v6547
  %v6687 = vunpack.c.h.b16 %v6547
  %v6688 = vunpack.c.l.b16 %v6548
  %v6689 = vunpack.c.h.b16 %v6548
  %v6690 = vunpack.c.l.b16 %v6549
  %v6691 = vunpack.c.h.b16 %v6549
  %v6692 = vunpack.c.l.b16 %v6550
  %v6693 = vunpack.c.h.b16 %v6550
  %v6694 = vunpack.c.l.b16 %v6551
  %v6695 = vunpack.c.h.b16 %v6551
  %v6696 = vunpack.c.l.b16 %v6552
  %v6697 = vunpack.c.h.b16 %v6552
  %v6698 = vunpack.c.l.b16 %v6553
  %v6699 = vunpack.c.h.b16 %v6553
  %v6700 = vunpack.c.l.b16 %v6554
  %v6701 = vunpack.c.h.b16 %v6554
  %v6702 = vunpack.c.l.b16 %v6555
  %v6703 = vunpack.c.h.b16 %v6555
  %v6704 = vunpack.c.l.b16 %v6556
  %v6705 = vunpack.c.h.b16 %v6556
  %v6706 = vunpack.c.l.b16 %v6557
  %v6707 = vunpack.c.h.b16 %v6557
  %v6708 = vpack.c.b16 %v6618, %v6612
  %v6709 = vpack.c.b16 %v6619, %v6613
  %v6710 = vpack.c.b16 %v6620, %v6614
  %v6711 = vpack.c.b16 %v6621, %v6615
  %v6712 = vpack.c.b16 %v6622, %v6616
  %v6713 = vpack.c.b16 %v6623, %v6617
  %v6714 = vpack.c.b16 %v6630, %v6624
  %v6715 = vpack.c.b16 %v6631, %v6625
  %v6716 = vpack.c.b16 %v6632, %v6626
  %v6717 = vpack.c.b16 %v6633, %v6627
  %v6718 = vpack.c.b16 %v6634, %v6628
  %v6719 = vpack.c.b16 %v6635, %v6629
  %v6720 = vpack.c.b16 %v6642, %v6636
  %v6721 = vpack.c.b16 %v6643, %v6637
  %v6722 = vpack.c.b16 %v6644, %v6638
  %v6723 = vpack.c.b16 %v6645, %v6639
  %v6724 = vpack.c.b16 %v6646, %v6640
  %v6725 = vpack.c.b16 %v6647, %v6641
  %v6726 = vpack.c.b16 %v6654, %v6648
  %v6727 = vpack.c.b16 %v6655, %v6649
  %v6728 = vpack.c.b16 %v6656, %v6650
  %v6729 = vpack.c.b16 %v6657, %v6651
  %v6730 = vpack.c.b16 %v6658, %v6652
  %v6731 = vpack.c.b16 %v6659, %v6653
  %v6732 = vpack.c.b16 %v6666, %v6660
  %v6733 = vpack.c.b16 %v6667, %v6661
  %v6734 = vpack.c.b16 %v6668, %v6662
  %v6735 = vpack.c.b16 %v6669, %v6663
  %v6736 = vpack.c.b16 %v6670, %v6664
  %v6737 = vpack.c.b16 %v6671, %v6665
  %v6738 = vpack.c.b16 %v6678, %v6672
  %v6739 = vpack.c.b16 %v6679, %v6673
  %v6740 = vpack.c.b16 %v6680, %v6674
  %v6741 = vpack.c.b16 %v6681, %v6675
  %v6742 = vpack.c.b16 %v6682, %v6676
  %v6743 = vpack.c.b16 %v6683, %v6677
  %v6744 = vpack.c.b16 %v6690, %v6684
  %v6745 = vpack.c.b16 %v6691, %v6685
  %v6746 = vpack.c.b16 %v6692, %v6686
  %v6747 = vpack.c.b16 %v6693, %v6687
  %v6748 = vpack.c.b16 %v6694, %v6688
  %v6749 = vpack.c.b16 %v6695, %v6689
  %v6750 = vpack.c.b16 %v6702, %v6696
  %v6751 = vpack.c.b16 %v6703, %v6697
  %v6752 = vpack.c.b16 %v6704, %v6698
  %v6753 = vpack.c.b16 %v6705, %v6699
  %v6754 = vpack.c.b16 %v6706, %v6700
  %v6755 = vpack.c.b16 %v6707, %v6701
  %6804 = vmatprep.subr.bf16.mxu0 %v6751
  %6805 = vmatpush1.bf16.msra.mxu0 %v6750
  %6806 = vmatprep.subr.bf16.mxu0 %v6745
  %6807 = vmatpush1.bf16.msra.mxu0 %v6744
  %6808 = vmatprep.subr.bf16.mxu0 %v6739
  %6809 = vmatpush1.bf16.msra.mxu0 %v6738
  %6810 = vmatprep.subr.bf16.mxu0 %v6733
  %6811 = vmatpush1.bf16.msra.mxu0 %v6732
  %6812 = vmatprep.subr.bf16.mxu0 %v6727
  %6813 = vmatpush1.bf16.msra.mxu0 %v6726
  %6814 = vmatprep.subr.bf16.mxu0 %v6721
  %6815 = vmatpush1.bf16.msra.mxu0 %v6720
  %6816 = vmatprep.subr.bf16.mxu0 %v6715
  %6817 = vmatpush1.bf16.msra.mxu0 %v6714
  %6818 = vmatprep.subr.bf16.mxu0 %v6709
  %6819 = vmatpush1.bf16.msra.mxu0 %v6708
  %6820 = vmatprep.subr.bf16.mxu0 0
  %6821 = vmatpush2.bf16.msra.mxu0 0
  %6822 = vmatprep.subr.bf16.mxu0 0
  %6823 = vmatpush2.bf16.msra.mxu0 0
  %6824 = vmatprep.subr.bf16.mxu0 0
  %6825 = vmatpush2.bf16.msra.mxu0 0
  %6826 = vmatprep.subr.bf16.mxu0 0
  %6827 = vmatpush2.bf16.msra.mxu0 0
  %6828 = vmatprep.subr.bf16.mxu0 0
  %6829 = vmatpush2.bf16.msra.mxu0 0
  %6830 = vmatprep.subr.bf16.mxu0 0
  %6831 = vmatpush2.bf16.msra.mxu0 0
  %6832 = vmatprep.subr.bf16.mxu0 0
  %6833 = vmatpush2.bf16.msra.mxu0 0
  %6834 = vmatprep.subr.bf16.mxu0 0
  %6835 = vmatpush2.bf16.msra.mxu0 0
  %6836 = vmatprep.mubr.bf16.mxu0 0
  %6837 = vmatmul.mubr.bf16.gmra.mxu0 %v6509
  %v6838 = vpop.f32.mrf.mxu0
  %v6839 = vadd.f32 %v6558, %v6838
  %v6840 = vpop.f32.mrf.mxu0
  %v6841 = vadd.f32 %v6559, %v6840
  %v6842 = vpop.f32.mrf.mxu0
  %v6843 = vpop.f32.mrf.mxu0
  %6844 = vdwg.mxu0
  %6845 = vmatprep.subr.bf16.mxu0 %v6753
  %6846 = vmatpush1.bf16.msra.mxu0 %v6752
  %6847 = vmatprep.subr.bf16.mxu0 %v6747
  %6848 = vmatpush1.bf16.msra.mxu0 %v6746
  %6849 = vmatprep.subr.bf16.mxu0 %v6741
  %6850 = vmatpush1.bf16.msra.mxu0 %v6740
  %6851 = vmatprep.subr.bf16.mxu0 %v6735
  %6852 = vmatpush1.bf16.msra.mxu0 %v6734
  %6853 = vmatprep.subr.bf16.mxu0 %v6729
  %6854 = vmatpush1.bf16.msra.mxu0 %v6728
  %6855 = vmatprep.subr.bf16.mxu0 %v6723
  %6856 = vmatpush1.bf16.msra.mxu0 %v6722
  %6857 = vmatprep.subr.bf16.mxu0 %v6717
  %6858 = vmatpush1.bf16.msra.mxu0 %v6716
  %6859 = vmatprep.subr.bf16.mxu0 %v6711
  %6860 = vmatpush1.bf16.msra.mxu0 %v6710
  %6861 = vmatprep.subr.bf16.mxu0 0
  %6862 = vmatpush2.bf16.msra.mxu0 0
  %6863 = vmatprep.subr.bf16.mxu0 0
  %6864 = vmatpush2.bf16.msra.mxu0 0
  %6865 = vmatprep.subr.bf16.mxu0 0
  %6866 = vmatpush2.bf16.msra.mxu0 0
  %6867 = vmatprep.subr.bf16.mxu0 0
  %6868 = vmatpush2.bf16.msra.mxu0 0
  %6869 = vmatprep.subr.bf16.mxu0 0
  %6870 = vmatpush2.bf16.msra.mxu0 0
  %6871 = vmatprep.subr.bf16.mxu0 0
  %6872 = vmatpush2.bf16.msra.mxu0 0
  %6873 = vmatprep.subr.bf16.mxu0 0
  %6874 = vmatpush2.bf16.msra.mxu0 0
  %6875 = vmatprep.subr.bf16.mxu0 0
  %6876 = vmatpush2.bf16.msra.mxu0 0
  %6877 = vmatprep.mubr.bf16.mxu0 0
  %6878 = vmatmul.mubr.bf16.gmra.mxu0 %v6509
  %v6879 = vpop.f32.mrf.mxu0
  %v6880 = vadd.f32 %v6560, %v6879
  %v6881 = vpop.f32.mrf.mxu0
  %v6882 = vadd.f32 %v6561, %v6881
  %v6883 = vpop.f32.mrf.mxu0
  %v6884 = vpop.f32.mrf.mxu0
  %6885 = vdwg.mxu0
  %6886 = vmatprep.subr.bf16.mxu0 %v6755
  %6887 = vmatpush1.bf16.msra.mxu0 %v6754
  %6888 = vmatprep.subr.bf16.mxu0 %v6749
  %6889 = vmatpush1.bf16.msra.mxu0 %v6748
  %6890 = vmatprep.subr.bf16.mxu0 %v6743
  %6891 = vmatpush1.bf16.msra.mxu0 %v6742
  %6892 = vmatprep.subr.bf16.mxu0 %v6737
  %6893 = vmatpush1.bf16.msra.mxu0 %v6736
  %6894 = vmatprep.subr.bf16.mxu0 %v6731
  %6895 = vmatpush1.bf16.msra.mxu0 %v6730
  %6896 = vmatprep.subr.bf16.mxu0 %v6725
  %6897 = vmatpush1.bf16.msra.mxu0 %v6724
  %6898 = vmatprep.subr.bf16.mxu0 %v6719
  %6899 = vmatpush1.bf16.msra.mxu0 %v6718
  %6900 = vmatprep.subr.bf16.mxu0 %v6713
  %6901 = vmatpush1.bf16.msra.mxu0 %v6712
  %6902 = vmatprep.subr.bf16.mxu0 0
  %6903 = vmatpush2.bf16.msra.mxu0 0
  %6904 = vmatprep.subr.bf16.mxu0 0
  %6905 = vmatpush2.bf16.msra.mxu0 0
  %6906 = vmatprep.subr.bf16.mxu0 0
  %6907 = vmatpush2.bf16.msra.mxu0 0
  %6908 = vmatprep.subr.bf16.mxu0 0
  %6909 = vmatpush2.bf16.msra.mxu0 0
  %6910 = vmatprep.subr.bf16.mxu0 0
  %6911 = vmatpush2.bf16.msra.mxu0 0
  %6912 = vmatprep.subr.bf16.mxu0 0
  %6913 = vmatpush2.bf16.msra.mxu0 0
  %6914 = vmatprep.subr.bf16.mxu0 0
  %6915 = vmatpush2.bf16.msra.mxu0 0
  %6916 = vmatprep.subr.bf16.mxu0 0
  %6917 = vmatpush2.bf16.msra.mxu0 0
  %6918 = vmatprep.mubr.bf16.mxu0 0
  %6919 = vmatmul.mubr.bf16.gmra.mxu0 %v6509
  %v6920 = vpop.f32.mrf.mxu0
  %v6921 = vadd.f32 %v6562, %v6920
  %v6922 = vpop.f32.mrf.mxu0
  %v6923 = vadd.f32 %v6563, %v6922
  %v6924 = vpop.f32.mrf.mxu0
  %v6925 = vpop.f32.mrf.mxu0
  %6926 = vdwg.mxu0
  %v6927 = vxor.u32 %v6841, 2147483648
  %v6928 = vmul.f32 %v6927, 1.442695
  %v6929 = vpow.pop %v6928
  %v6930 = vadd.f32 %v6929, 1.0
  %v6931 = vrcp.pop %v6930
  %v6932 = vmul.f32 1.0, %v6931
  %v6933 = vld [vmem:[%s5] sm:$0xf]
  %v6934 = vld [vmem:[%s5 + $0x4] sm:$0xf]
  %v6935 = vld [vmem:[%s5 + $0x8] sm:$0xf]
  %v6936 = vld [vmem:[%s5 + $0xc] sm:$0xf]
  %v6937 = vld [vmem:[%s5 + $0x10] sm:$0xf]
  %v6938 = vld [vmem:[%s5 + $0x14] sm:$0xf]
  %v6939 = vld [vmem:[%s5 + $0x18] sm:$0xf]
  %v6940 = vld [vmem:[%s5 + $0x1c] sm:$0xf]
  %v6941 = vld [vmem:[%s5 + $0x20] sm:$0xf]
  %v6942 = vld [vmem:[%s5 + $0x24] sm:$0xf]
  %v6943 = vld [vmem:[%s5 + $0x28] sm:$0xf]
  %v6944 = vld [vmem:[%s5 + $0x2c] sm:$0xf]
  %v6945 = vld [vmem:[%s5 + $0x30] sm:$0xf]
  %v6946 = vld [vmem:[%s5 + $0x34] sm:$0xf]
  %v6947 = vld [vmem:[%s5 + $0x38] sm:$0xf]
  %v6948 = vld [vmem:[%s5 + $0x3c] sm:$0xf]
  %v6949 = vpack.c.bf16 %v6839, %v6839
  %v6966 = vunpack.c.l.b16 %v6933
  %v6967 = vunpack.c.l.b16 %v6934
  %v6968 = vunpack.c.l.b16 %v6935
  %v6969 = vunpack.c.l.b16 %v6936
  %v6970 = vunpack.c.l.b16 %v6937
  %v6971 = vunpack.c.l.b16 %v6938
  %v6972 = vunpack.c.l.b16 %v6939
  %v6973 = vunpack.c.l.b16 %v6940
  %v6974 = vunpack.c.l.b16 %v6941
  %v6975 = vunpack.c.l.b16 %v6942
  %v6976 = vunpack.c.l.b16 %v6943
  %v6977 = vunpack.c.l.b16 %v6944
  %v6978 = vunpack.c.l.b16 %v6945
  %v6979 = vunpack.c.l.b16 %v6946
  %v6980 = vunpack.c.l.b16 %v6947
  %v6981 = vunpack.c.l.b16 %v6948
  %v6982 = vpack.c.b16 %v6967, %v6966
  %v6983 = vpack.c.b16 %v6969, %v6968
  %v6984 = vpack.c.b16 %v6971, %v6970
  %v6985 = vpack.c.b16 %v6973, %v6972
  %v6986 = vpack.c.b16 %v6975, %v6974
  %v6987 = vpack.c.b16 %v6977, %v6976
  %v6988 = vpack.c.b16 %v6979, %v6978
  %v6989 = vpack.c.b16 %v6981, %v6980
  %v6991 = vsel %vm1295, %v6982, 0
  %v6994 = vsel %vm1295, %v6983, 0
  %v6997 = vsel %vm1295, %v6984, 0
  %v7000 = vsel %vm1295, %v6985, 0
  %v7003 = vsel %vm1295, %v6986, 0
  %v7006 = vsel %vm1295, %v6987, 0
  %v7009 = vsel %vm1295, %v6988, 0
  %v7012 = vsel %vm1295, %v6989, 0
  %v7015 = vsel %vm1320, %v6949, 0
  %7017 = vmatprep.subr.bf16.mxu0 0
  %7018 = vmatpush1.bf16.msra.mxu0 0
  %7019 = vmatprep.subr.bf16.mxu0 0
  %7020 = vmatpush1.bf16.msra.mxu0 0
  %7021 = vmatprep.subr.bf16.mxu0 0
  %7022 = vmatpush1.bf16.msra.mxu0 0
  %7023 = vmatprep.subr.bf16.mxu0 0
  %7024 = vmatpush1.bf16.msra.mxu0 0
  %7025 = vmatprep.subr.bf16.mxu0 0
  %7026 = vmatpush1.bf16.msra.mxu0 0
  %7027 = vmatprep.subr.bf16.mxu0 0
  %7028 = vmatpush1.bf16.msra.mxu0 0
  %7029 = vmatprep.subr.bf16.mxu0 0
  %7030 = vmatpush1.bf16.msra.mxu0 0
  %7031 = vmatprep.subr.bf16.mxu0 0
  %7032 = vmatpush1.bf16.msra.mxu0 %v7015
  %7033 = vmatprep.subr.bf16.mxu0 0
  %7034 = vmatpush2.bf16.msra.mxu0 0
  %7035 = vmatprep.subr.bf16.mxu0 0
  %7036 = vmatpush2.bf16.msra.mxu0 0
  %7037 = vmatprep.subr.bf16.mxu0 0
  %7038 = vmatpush2.bf16.msra.mxu0 0
  %7039 = vmatprep.subr.bf16.mxu0 0
  %7040 = vmatpush2.bf16.msra.mxu0 0
  %7041 = vmatprep.subr.bf16.mxu0 0
  %7042 = vmatpush2.bf16.msra.mxu0 0
  %7043 = vmatprep.subr.bf16.mxu0 0
  %7044 = vmatpush2.bf16.msra.mxu0 0
  %7045 = vmatprep.subr.bf16.mxu0 0
  %7046 = vmatpush2.bf16.msra.mxu0 0
  %7047 = vmatprep.subr.bf16.mxu0 0
  %7048 = vmatpush2.bf16.msra.mxu0 0
  %7049 = vmatprep.mubr.bf16.mxu0 0
  %7050 = vmatmul.mubr.bf16.gmra.mxu0 %v6991
  %v7051 = vpop.f32.mrf.mxu0
  %v7052 = vadd.f32 0.0, %v7051
  %v7053 = vpop.f32.mrf.mxu0
  %v7054 = vpop.f32.mrf.mxu0
  %v7055 = vadd.f32 0.0, %v7054
  %v7056 = vpop.f32.mrf.mxu0
  %7057 = vmatprep.mubr.bf16.mxu0 0
  %7058 = vmatmul.mubr.bf16.gmra.mxu0 %v6994
  %v7059 = vpop.f32.mrf.mxu0
  %v7060 = vadd.f32 0.0, %v7059
  %v7061 = vpop.f32.mrf.mxu0
  %v7062 = vpop.f32.mrf.mxu0
  %v7063 = vadd.f32 0.0, %v7062
  %v7064 = vpop.f32.mrf.mxu0
  %7065 = vmatprep.mubr.bf16.mxu0 0
  %7066 = vmatmul.mubr.bf16.gmra.mxu0 %v6997
  %v7067 = vpop.f32.mrf.mxu0
  %v7068 = vadd.f32 0.0, %v7067
  %v7069 = vpop.f32.mrf.mxu0
  %v7070 = vpop.f32.mrf.mxu0
  %v7071 = vadd.f32 0.0, %v7070
  %v7072 = vpop.f32.mrf.mxu0
  %7073 = vmatprep.mubr.bf16.mxu0 0
  %7074 = vmatmul.mubr.bf16.gmra.mxu0 %v7000
  %v7075 = vpop.f32.mrf.mxu0
  %v7076 = vadd.f32 0.0, %v7075
  %v7077 = vpop.f32.mrf.mxu0
  %v7078 = vpop.f32.mrf.mxu0
  %v7079 = vadd.f32 0.0, %v7078
  %v7080 = vpop.f32.mrf.mxu0
  %7081 = vmatprep.mubr.bf16.mxu0 0
  %7082 = vmatmul.mubr.bf16.gmra.mxu0 %v7003
  %v7083 = vpop.f32.mrf.mxu0
  %v7084 = vadd.f32 0.0, %v7083
  %v7085 = vpop.f32.mrf.mxu0
  %v7086 = vpop.f32.mrf.mxu0
  %v7087 = vadd.f32 0.0, %v7086
  %v7088 = vpop.f32.mrf.mxu0
  %7089 = vmatprep.mubr.bf16.mxu0 0
  %7090 = vmatmul.mubr.bf16.gmra.mxu0 %v7006
  %v7091 = vpop.f32.mrf.mxu0
  %v7092 = vadd.f32 0.0, %v7091
  %v7093 = vpop.f32.mrf.mxu0
  %v7094 = vpop.f32.mrf.mxu0
  %v7095 = vadd.f32 0.0, %v7094
  %v7096 = vpop.f32.mrf.mxu0
  %7097 = vmatprep.mubr.bf16.mxu0 0
  %7098 = vmatmul.mubr.bf16.gmra.mxu0 %v7009
  %v7099 = vpop.f32.mrf.mxu0
  %v7100 = vadd.f32 0.0, %v7099
  %v7101 = vpop.f32.mrf.mxu0
  %v7102 = vpop.f32.mrf.mxu0
  %v7103 = vadd.f32 0.0, %v7102
  %v7104 = vpop.f32.mrf.mxu0
  %7105 = vmatprep.mubr.bf16.mxu0 0
  %7106 = vmatmul.mubr.bf16.gmra.mxu0 %v7012
  %v7107 = vpop.f32.mrf.mxu0
  %v7108 = vadd.f32 0.0, %v7107
  %v7109 = vpop.f32.mrf.mxu0
  %v7110 = vpop.f32.mrf.mxu0
  %v7111 = vadd.f32 0.0, %v7110
  %v7112 = vpop.f32.mrf.mxu0
  %7113 = vdwg.mxu0
  %v7114 = vld [vmem:[#allocation2] sm:$0xff]
  %v7115 = vld [vmem:[#allocation2 + $0x8] sm:$0xff]
  %v7116 = vld [vmem:[#allocation2 + $0x10] sm:$0xff]
  %v7117 = vld [vmem:[#allocation2 + $0x18] sm:$0xff]
  %v7118 = vld [vmem:[#allocation2 + $0x20] sm:$0xff]
  %v7119 = vld [vmem:[#allocation2 + $0x28] sm:$0xff]
  %v7120 = vld [vmem:[#allocation2 + $0x30] sm:$0xff]
  %v7121 = vld [vmem:[#allocation2 + $0x38] sm:$0xff]
  %v7122 = vld [vmem:[#allocation2 + $0x40] sm:$0xff]
  %v7123 = vld [vmem:[#allocation2 + $0x48] sm:$0xff]
  %v7124 = vld [vmem:[#allocation2 + $0x50] sm:$0xff]
  %v7125 = vld [vmem:[#allocation2 + $0x58] sm:$0xff]
  %v7126 = vld [vmem:[#allocation2 + $0x60] sm:$0xff]
  %v7127 = vld [vmem:[#allocation2 + $0x68] sm:$0xff]
  %v7128 = vld [vmem:[#allocation2 + $0x70] sm:$0xff]
  %v7129 = vld [vmem:[#allocation2 + $0x78] sm:$0xff]
  %v7130 = vadd.f32 %v7114, %v7052
  %v7131 = vadd.f32 %v7115, %v7055
  %v7132 = vadd.f32 %v7116, %v7060
  %v7133 = vadd.f32 %v7117, %v7063
  %v7134 = vadd.f32 %v7118, %v7068
  %v7135 = vadd.f32 %v7119, %v7071
  %v7136 = vadd.f32 %v7120, %v7076
  %v7137 = vadd.f32 %v7121, %v7079
  %v7138 = vadd.f32 %v7122, %v7084
  %v7139 = vadd.f32 %v7123, %v7087
  %v7140 = vadd.f32 %v7124, %v7092
  %v7141 = vadd.f32 %v7125, %v7095
  %v7142 = vadd.f32 %v7126, %v7100
  %v7143 = vadd.f32 %v7127, %v7103
  %v7144 = vadd.f32 %v7128, %v7108
  %v7145 = vadd.f32 %v7129, %v7111
  %v7146 = vmax.f32 %v7130, 0.0
  %v7147 = vmax.f32 %v7131, 0.0
  %v7148 = vmax.f32 %v7132, 0.0
  %v7149 = vmax.f32 %v7133, 0.0
  %v7150 = vmax.f32 %v7134, 0.0
  %v7151 = vmax.f32 %v7135, 0.0
  %v7152 = vmax.f32 %v7136, 0.0
  %v7153 = vmax.f32 %v7137, 0.0
  %v7154 = vmax.f32 %v7138, 0.0
  %v7155 = vmax.f32 %v7139, 0.0
  %v7156 = vmax.f32 %v7140, 0.0
  %v7157 = vmax.f32 %v7141, 0.0
  %v7158 = vmax.f32 %v7142, 0.0
  %v7159 = vmax.f32 %v7143, 0.0
  %v7160 = vmax.f32 %v7144, 0.0
  %v7161 = vmax.f32 %v7145, 0.0
  %v7162 = vld [vmem:[%s9] sm:$0xff]
  %v7163 = vld [vmem:[%s9 + $0x8] sm:$0xff]
  %v7164 = vld [vmem:[%s9 + $0x10] sm:$0xff]
  %v7165 = vld [vmem:[%s9 + $0x18] sm:$0xff]
  %v7166 = vld [vmem:[%s9 + $0x20] sm:$0xff]
  %v7167 = vld [vmem:[%s9 + $0x28] sm:$0xff]
  %v7168 = vld [vmem:[%s9 + $0x30] sm:$0xff]
  %v7169 = vld [vmem:[%s9 + $0x38] sm:$0xff]
  %v7170 = vld [vmem:[%s9 + $0x40] sm:$0xff]
  %v7171 = vld [vmem:[%s9 + $0x48] sm:$0xff]
  %v7172 = vld [vmem:[%s9 + $0x50] sm:$0xff]
  %v7173 = vld [vmem:[%s9 + $0x58] sm:$0xff]
  %v7174 = vld [vmem:[%s9 + $0x60] sm:$0xff]
  %v7175 = vld [vmem:[%s9 + $0x68] sm:$0xff]
  %v7176 = vld [vmem:[%s9 + $0x70] sm:$0xff]
  %v7177 = vld [vmem:[%s9 + $0x78] sm:$0xff]
  %v7178 = vmul.f32 %v7146, %v7162
  %v7179 = vmul.f32 %v7147, %v7163
  %v7180 = vmul.f32 %v7148, %v7164
  %v7181 = vmul.f32 %v7149, %v7165
  %v7182 = vmul.f32 %v7150, %v7166
  %v7183 = vmul.f32 %v7151, %v7167
  %v7184 = vmul.f32 %v7152, %v7168
  %v7185 = vmul.f32 %v7153, %v7169
  %v7186 = vmul.f32 %v7154, %v7170
  %v7187 = vmul.f32 %v7155, %v7171
  %v7188 = vmul.f32 %v7156, %v7172
  %v7189 = vmul.f32 %v7157, %v7173
  %v7190 = vmul.f32 %v7158, %v7174
  %v7191 = vmul.f32 %v7159, %v7175
  %v7192 = vmul.f32 %v7160, %v7176
  %v7193 = vmul.f32 %v7161, %v7177
  %7194 = vadd.xlane.f32.xlu0 %v7178
  %v7195 = vpop.xlane.xlu0 %7194
  %7196 = vadd.xlane.f32.xlu0 %v7179
  %v7197 = vpop.xlane.xlu0 %7196
  %7198 = vadd.xlane.f32.xlu0 %v7180
  %v7199 = vpop.xlane.xlu0 %7198
  %7200 = vadd.xlane.f32.xlu0 %v7181
  %v7201 = vpop.xlane.xlu0 %7200
  %7202 = vadd.xlane.f32.xlu0 %v7182
  %v7203 = vpop.xlane.xlu0 %7202
  %7204 = vadd.xlane.f32.xlu0 %v7183
  %v7205 = vpop.xlane.xlu0 %7204
  %7206 = vadd.xlane.f32.xlu0 %v7184
  %v7207 = vpop.xlane.xlu0 %7206
  %7208 = vadd.xlane.f32.xlu0 %v7185
  %v7209 = vpop.xlane.xlu0 %7208
  %7210 = vadd.xlane.f32.xlu0 %v7186
  %v7211 = vpop.xlane.xlu0 %7210
  %7212 = vadd.xlane.f32.xlu0 %v7187
  %v7213 = vpop.xlane.xlu0 %7212
  %7214 = vadd.xlane.f32.xlu0 %v7188
  %v7215 = vpop.xlane.xlu0 %7214
  %7216 = vadd.xlane.f32.xlu0 %v7189
  %v7217 = vpop.xlane.xlu0 %7216
  %7218 = vadd.xlane.f32.xlu0 %v7190
  %v7219 = vpop.xlane.xlu0 %7218
  %7220 = vadd.xlane.f32.xlu0 %v7191
  %v7221 = vpop.xlane.xlu0 %7220
  %7222 = vadd.xlane.f32.xlu0 %v7192
  %v7223 = vpop.xlane.xlu0 %7222
  %7224 = vadd.xlane.f32.xlu0 %v7193
  %v7225 = vpop.xlane.xlu0 %7224
  %v7226 = vmax.f32 %v7195, %v7197
  %v7227 = vrot.slane %v7226, 4
  %v7228 = vmax.f32 %v7226, %v7227
  %v7229 = vrot.slane %v7228, 2
  %v7230 = vmax.f32 %v7228, %v7229
  %v7231 = vrot.slane %v7230, 1
  %v7232 = vmax.f32 %v7230, %v7231
  %v7233 = vmax.f32 %v7199, %v7201
  %v7234 = vrot.slane %v7233, 4
  %v7235 = vmax.f32 %v7233, %v7234
  %v7236 = vrot.slane %v7235, 2
  %v7237 = vmax.f32 %v7235, %v7236
  %v7238 = vrot.slane %v7237, 1
  %v7239 = vmax.f32 %v7237, %v7238
  %v7240 = vmax.f32 %v7203, %v7205
  %v7241 = vrot.slane %v7240, 4
  %v7242 = vmax.f32 %v7240, %v7241
  %v7243 = vrot.slane %v7242, 2
  %v7244 = vmax.f32 %v7242, %v7243
  %v7245 = vrot.slane %v7244, 1
  %v7246 = vmax.f32 %v7244, %v7245
  %v7247 = vmax.f32 %v7207, %v7209
  %v7248 = vrot.slane %v7247, 4
  %v7249 = vmax.f32 %v7247, %v7248
  %v7250 = vrot.slane %v7249, 2
  %v7251 = vmax.f32 %v7249, %v7250
  %v7252 = vrot.slane %v7251, 1
  %v7253 = vmax.f32 %v7251, %v7252
  %v7254 = vmax.f32 %v7211, %v7213
  %v7255 = vrot.slane %v7254, 4
  %v7256 = vmax.f32 %v7254, %v7255
  %v7257 = vrot.slane %v7256, 2
  %v7258 = vmax.f32 %v7256, %v7257
  %v7259 = vrot.slane %v7258, 1
  %v7260 = vmax.f32 %v7258, %v7259
  %v7261 = vmax.f32 %v7215, %v7217
  %v7262 = vrot.slane %v7261, 4
  %v7263 = vmax.f32 %v7261, %v7262
  %v7264 = vrot.slane %v7263, 2
  %v7265 = vmax.f32 %v7263, %v7264
  %v7266 = vrot.slane %v7265, 1
  %v7267 = vmax.f32 %v7265, %v7266
  %v7268 = vmax.f32 %v7219, %v7221
  %v7269 = vrot.slane %v7268, 4
  %v7270 = vmax.f32 %v7268, %v7269
  %v7271 = vrot.slane %v7270, 2
  %v7272 = vmax.f32 %v7270, %v7271
  %v7273 = vrot.slane %v7272, 1
  %v7274 = vmax.f32 %v7272, %v7273
  %v7275 = vmax.f32 %v7223, %v7225
  %v7276 = vrot.slane %v7275, 4
  %v7277 = vmax.f32 %v7275, %v7276
  %v7278 = vrot.slane %v7277, 2
  %v7279 = vmax.f32 %v7277, %v7278
  %v7280 = vrot.slane %v7279, 1
  %v7281 = vmax.f32 %v7279, %v7280
  %v7282 = vsub.f32 %v7195, %v7232
  %v7283 = vsub.f32 %v7197, %v7232
  %v7284 = vsub.f32 %v7199, %v7239
  %v7285 = vsub.f32 %v7201, %v7239
  %v7286 = vsub.f32 %v7203, %v7246
  %v7287 = vsub.f32 %v7205, %v7246
  %v7288 = vsub.f32 %v7207, %v7253
  %v7289 = vsub.f32 %v7209, %v7253
  %v7290 = vsub.f32 %v7211, %v7260
  %v7291 = vsub.f32 %v7213, %v7260
  %v7292 = vsub.f32 %v7215, %v7267
  %v7293 = vsub.f32 %v7217, %v7267
  %v7294 = vsub.f32 %v7219, %v7274
  %v7295 = vsub.f32 %v7221, %v7274
  %v7296 = vsub.f32 %v7223, %v7281
  %v7297 = vsub.f32 %v7225, %v7281
  %v7298 = vmul.f32 %v7282, 1.442695
  %v7299 = vpow.pop %v7298
  %v7300 = vmul.f32 %v7283, 1.442695
  %v7301 = vpow.pop %v7300
  %v7302 = vmul.f32 %v7284, 1.442695
  %v7303 = vpow.pop %v7302
  %v7304 = vmul.f32 %v7285, 1.442695
  %v7305 = vpow.pop %v7304
  %v7306 = vmul.f32 %v7286, 1.442695
  %v7307 = vpow.pop %v7306
  %v7308 = vmul.f32 %v7287, 1.442695
  %v7309 = vpow.pop %v7308
  %v7310 = vmul.f32 %v7288, 1.442695
  %v7311 = vpow.pop %v7310
  %v7312 = vmul.f32 %v7289, 1.442695
  %v7313 = vpow.pop %v7312
  %v7314 = vmul.f32 %v7290, 1.442695
  %v7315 = vpow.pop %v7314
  %v7316 = vmul.f32 %v7291, 1.442695
  %v7317 = vpow.pop %v7316
  %v7318 = vmul.f32 %v7292, 1.442695
  %v7319 = vpow.pop %v7318
  %v7320 = vmul.f32 %v7293, 1.442695
  %v7321 = vpow.pop %v7320
  %v7322 = vmul.f32 %v7294, 1.442695
  %v7323 = vpow.pop %v7322
  %v7324 = vmul.f32 %v7295, 1.442695
  %v7325 = vpow.pop %v7324
  %v7326 = vmul.f32 %v7296, 1.442695
  %v7327 = vpow.pop %v7326
  %v7328 = vmul.f32 %v7297, 1.442695
  %v7329 = vpow.pop %v7328
  %v7330 = vadd.f32 %v7299, %v7301
  %v7331 = vrot.slane %v7330, 4
  %v7332 = vadd.f32 %v7330, %v7331
  %v7333 = vrot.slane %v7332, 2
  %v7334 = vadd.f32 %v7332, %v7333
  %v7335 = vrot.slane %v7334, 1
  %v7336 = vadd.f32 %v7334, %v7335
  %v7337 = vadd.f32 %v7303, %v7305
  %v7338 = vrot.slane %v7337, 4
  %v7339 = vadd.f32 %v7337, %v7338
  %v7340 = vrot.slane %v7339, 2
  %v7341 = vadd.f32 %v7339, %v7340
  %v7342 = vrot.slane %v7341, 1
  %v7343 = vadd.f32 %v7341, %v7342
  %v7344 = vadd.f32 %v7307, %v7309
  %v7345 = vrot.slane %v7344, 4
  %v7346 = vadd.f32 %v7344, %v7345
  %v7347 = vrot.slane %v7346, 2
  %v7348 = vadd.f32 %v7346, %v7347
  %v7349 = vrot.slane %v7348, 1
  %v7350 = vadd.f32 %v7348, %v7349
  %v7351 = vadd.f32 %v7311, %v7313
  %v7352 = vrot.slane %v7351, 4
  %v7353 = vadd.f32 %v7351, %v7352
  %v7354 = vrot.slane %v7353, 2
  %v7355 = vadd.f32 %v7353, %v7354
  %v7356 = vrot.slane %v7355, 1
  %v7357 = vadd.f32 %v7355, %v7356
  %v7358 = vadd.f32 %v7315, %v7317
  %v7359 = vrot.slane %v7358, 4
  %v7360 = vadd.f32 %v7358, %v7359
  %v7361 = vrot.slane %v7360, 2
  %v7362 = vadd.f32 %v7360, %v7361
  %v7363 = vrot.slane %v7362, 1
  %v7364 = vadd.f32 %v7362, %v7363
  %v7365 = vadd.f32 %v7319, %v7321
  %v7366 = vrot.slane %v7365, 4
  %v7367 = vadd.f32 %v7365, %v7366
  %v7368 = vrot.slane %v7367, 2
  %v7369 = vadd.f32 %v7367, %v7368
  %v7370 = vrot.slane %v7369, 1
  %v7371 = vadd.f32 %v7369, %v7370
  %v7372 = vadd.f32 %v7323, %v7325
  %v7373 = vrot.slane %v7372, 4
  %v7374 = vadd.f32 %v7372, %v7373
  %v7375 = vrot.slane %v7374, 2
  %v7376 = vadd.f32 %v7374, %v7375
  %v7377 = vrot.slane %v7376, 1
  %v7378 = vadd.f32 %v7376, %v7377
  %v7379 = vadd.f32 %v7327, %v7329
  %v7380 = vrot.slane %v7379, 4
  %v7381 = vadd.f32 %v7379, %v7380
  %v7382 = vrot.slane %v7381, 2
  %v7383 = vadd.f32 %v7381, %v7382
  %v7384 = vrot.slane %v7383, 1
  %v7385 = vadd.f32 %v7383, %v7384
  %v7386 = vrcp.pop %v7336
  %v7387 = vrcp.pop %v7343
  %v7388 = vrcp.pop %v7350
  %v7389 = vrcp.pop %v7357
  %v7390 = vrcp.pop %v7364
  %v7391 = vrcp.pop %v7371
  %v7392 = vrcp.pop %v7378
  %v7393 = vrcp.pop %v7385
  %v7394 = vmul.f32 %v7299, %v7386
  %v7395 = vmul.f32 %v7301, %v7386
  %v7396 = vmul.f32 %v7303, %v7387
  %v7397 = vmul.f32 %v7305, %v7387
  %v7398 = vmul.f32 %v7307, %v7388
  %v7399 = vmul.f32 %v7309, %v7388
  %v7400 = vmul.f32 %v7311, %v7389
  %v7401 = vmul.f32 %v7313, %v7389
  %v7402 = vmul.f32 %v7315, %v7390
  %v7403 = vmul.f32 %v7317, %v7390
  %v7404 = vmul.f32 %v7319, %v7391
  %v7405 = vmul.f32 %v7321, %v7391
  %v7406 = vmul.f32 %v7323, %v7392
  %v7407 = vmul.f32 %v7325, %v7392
  %v7408 = vmul.f32 %v7327, %v7393
  %v7409 = vmul.f32 %v7329, %v7393
  %v7410 = vld [vmem:[%s4] sm:$0xf]
  %v7411 = vld [vmem:[%s0] sm:$0xf]
  %v7412 = vld [vmem:[%s0 + $0x4] sm:$0xf]
  %v7413 = vld [vmem:[%s0 + $0x8] sm:$0xf]
  %v7414 = vld [vmem:[%s0 + $0xc] sm:$0xf]
  %v7415 = vld [vmem:[%s0 + $0x10] sm:$0xf]
  %v7416 = vld [vmem:[%s0 + $0x14] sm:$0xf]
  %v7417 = vld [vmem:[%s0 + $0x18] sm:$0xf]
  %v7418 = vld [vmem:[%s0 + $0x1c] sm:$0xf]
  %v7419 = vld [vmem:[%s0 + $0x20] sm:$0xf]
  %v7420 = vld [vmem:[%s0 + $0x24] sm:$0xf]
  %v7421 = vld [vmem:[%s0 + $0x28] sm:$0xf]
  %v7422 = vld [vmem:[%s0 + $0x2c] sm:$0xf]
  %v7423 = vld [vmem:[%s0 + $0x30] sm:$0xf]
  %v7424 = vld [vmem:[%s0 + $0x34] sm:$0xf]
  %v7425 = vld [vmem:[%s0 + $0x38] sm:$0xf]
  %v7426 = vld [vmem:[%s0 + $0x3c] sm:$0xf]
  %v7427 = vpack.c.bf16 %v7395, %v7394
  %v7428 = vpack.c.bf16 %v7397, %v7396
  %v7429 = vpack.c.bf16 %v7399, %v7398
  %v7430 = vpack.c.bf16 %v7401, %v7400
  %v7431 = vpack.c.bf16 %v7403, %v7402
  %v7432 = vpack.c.bf16 %v7405, %v7404
  %v7433 = vpack.c.bf16 %v7407, %v7406
  %v7434 = vpack.c.bf16 %v7409, %v7408
  %v7444 = vunpack.c.l.s4 839922192
  %v7445 = vunpack.c.0.s8 %v7444
  %v7446 = vlaneseq
  %v7447 = vshrl.u32 %v7446, 7
  %v7448 = vsub.s32 %v7445, %v7447
  %v7449 = vrot.slane %v7427, %v7448
  %v7451 = vunpack.c.l.s4 1985246804
  %v7452 = vunpack.c.0.s8 %v7451
  %v7453 = vlaneseq
  %v7454 = vshrl.u32 %v7453, 7
  %v7455 = vsub.s32 %v7452, %v7454
  %v7456 = vrot.slane %v7427, %v7455
  %v7458 = vunpack.c.l.s4 839922192
  %v7459 = vunpack.c.0.s8 %v7458
  %v7460 = vlaneseq
  %v7461 = vshrl.u32 %v7460, 7
  %v7462 = vsub.s32 %v7459, %v7461
  %v7463 = vrot.slane %v7428, %v7462
  %v7465 = vunpack.c.l.s4 1985246804
  %v7466 = vunpack.c.0.s8 %v7465
  %v7467 = vlaneseq
  %v7468 = vshrl.u32 %v7467, 7
  %v7469 = vsub.s32 %v7466, %v7468
  %v7470 = vrot.slane %v7428, %v7469
  %v7472 = vunpack.c.l.s4 839922192
  %v7473 = vunpack.c.0.s8 %v7472
  %v7474 = vlaneseq
  %v7475 = vshrl.u32 %v7474, 7
  %v7476 = vsub.s32 %v7473, %v7475
  %v7477 = vrot.slane %v7429, %v7476
  %v7479 = vunpack.c.l.s4 1985246804
  %v7480 = vunpack.c.0.s8 %v7479
  %v7481 = vlaneseq
  %v7482 = vshrl.u32 %v7481, 7
  %v7483 = vsub.s32 %v7480, %v7482
  %v7484 = vrot.slane %v7429, %v7483
  %v7486 = vunpack.c.l.s4 839922192
  %v7487 = vunpack.c.0.s8 %v7486
  %v7488 = vlaneseq
  %v7489 = vshrl.u32 %v7488, 7
  %v7490 = vsub.s32 %v7487, %v7489
  %v7491 = vrot.slane %v7430, %v7490
  %v7493 = vunpack.c.l.s4 1985246804
  %v7494 = vunpack.c.0.s8 %v7493
  %v7495 = vlaneseq
  %v7496 = vshrl.u32 %v7495, 7
  %v7497 = vsub.s32 %v7494, %v7496
  %v7498 = vrot.slane %v7430, %v7497
  %v7500 = vunpack.c.l.s4 839922192
  %v7501 = vunpack.c.0.s8 %v7500
  %v7502 = vlaneseq
  %v7503 = vshrl.u32 %v7502, 7
  %v7504 = vsub.s32 %v7501, %v7503
  %v7505 = vrot.slane %v7431, %v7504
  %v7507 = vunpack.c.l.s4 1985246804
  %v7508 = vunpack.c.0.s8 %v7507
  %v7509 = vlaneseq
  %v7510 = vshrl.u32 %v7509, 7
  %v7511 = vsub.s32 %v7508, %v7510
  %v7512 = vrot.slane %v7431, %v7511
  %v7514 = vunpack.c.l.s4 839922192
  %v7515 = vunpack.c.0.s8 %v7514
  %v7516 = vlaneseq
  %v7517 = vshrl.u32 %v7516, 7
  %v7518 = vsub.s32 %v7515, %v7517
  %v7519 = vrot.slane %v7432, %v7518
  %v7521 = vunpack.c.l.s4 1985246804
  %v7522 = vunpack.c.0.s8 %v7521
  %v7523 = vlaneseq
  %v7524 = vshrl.u32 %v7523, 7
  %v7525 = vsub.s32 %v7522, %v7524
  %v7526 = vrot.slane %v7432, %v7525
  %v7528 = vunpack.c.l.s4 839922192
  %v7529 = vunpack.c.0.s8 %v7528
  %v7530 = vlaneseq
  %v7531 = vshrl.u32 %v7530, 7
  %v7532 = vsub.s32 %v7529, %v7531
  %v7533 = vrot.slane %v7433, %v7532
  %v7535 = vunpack.c.l.s4 1985246804
  %v7536 = vunpack.c.0.s8 %v7535
  %v7537 = vlaneseq
  %v7538 = vshrl.u32 %v7537, 7
  %v7539 = vsub.s32 %v7536, %v7538
  %v7540 = vrot.slane %v7433, %v7539
  %v7542 = vunpack.c.l.s4 839922192
  %v7543 = vunpack.c.0.s8 %v7542
  %v7544 = vlaneseq
  %v7545 = vshrl.u32 %v7544, 7
  %v7546 = vsub.s32 %v7543, %v7545
  %v7547 = vrot.slane %v7434, %v7546
  %v7549 = vunpack.c.l.s4 1985246804
  %v7550 = vunpack.c.0.s8 %v7549
  %v7551 = vlaneseq
  %v7552 = vshrl.u32 %v7551, 7
  %v7553 = vsub.s32 %v7550, %v7552
  %v7554 = vrot.slane %v7434, %v7553
  %v7571 = vmul.bf16 %v7411, %v7449
  %v7572 = vmul.bf16 %v7412, %v7456
  %v7573 = vmul.bf16 %v7413, %v7463
  %v7574 = vmul.bf16 %v7414, %v7470
  %v7575 = vmul.bf16 %v7415, %v7477
  %v7576 = vmul.bf16 %v7416, %v7484
  %v7577 = vmul.bf16 %v7417, %v7491
  %v7578 = vmul.bf16 %v7418, %v7498
  %v7579 = vmul.bf16 %v7419, %v7505
  %v7580 = vmul.bf16 %v7420, %v7512
  %v7581 = vmul.bf16 %v7421, %v7519
  %v7582 = vmul.bf16 %v7422, %v7526
  %v7583 = vmul.bf16 %v7423, %v7533
  %v7584 = vmul.bf16 %v7424, %v7540
  %v7585 = vmul.bf16 %v7425, %v7547
  %v7586 = vmul.bf16 %v7426, %v7554
  %v7603 = vunpack.c.l.b16 %v7571
  %v7604 = vunpack.c.l.b16 %v7572
  %v7605 = vunpack.c.l.b16 %v7573
  %v7606 = vunpack.c.l.b16 %v7574
  %v7607 = vunpack.c.l.b16 %v7575
  %v7608 = vunpack.c.l.b16 %v7576
  %v7609 = vunpack.c.l.b16 %v7577
  %v7610 = vunpack.c.l.b16 %v7578
  %v7611 = vunpack.c.l.b16 %v7579
  %v7612 = vunpack.c.l.b16 %v7580
  %v7613 = vunpack.c.l.b16 %v7581
  %v7614 = vunpack.c.l.b16 %v7582
  %v7615 = vunpack.c.l.b16 %v7583
  %v7616 = vunpack.c.l.b16 %v7584
  %v7617 = vunpack.c.l.b16 %v7585
  %v7618 = vunpack.c.l.b16 %v7586
  %v7619 = vpack.c.b16 %v7604, %v7603
  %v7620 = vpack.c.b16 %v7606, %v7605
  %v7621 = vpack.c.b16 %v7608, %v7607
  %v7622 = vpack.c.b16 %v7610, %v7609
  %v7623 = vpack.c.b16 %v7612, %v7611
  %v7624 = vpack.c.b16 %v7614, %v7613
  %v7625 = vpack.c.b16 %v7616, %v7615
  %v7626 = vpack.c.b16 %v7618, %v7617
  %7635 = vmatprep.subr.bf16.mxu0 0
  %7636 = vmatpush1.bf16.msra.mxu0 %v7626
  %7637 = vmatprep.subr.bf16.mxu0 0
  %7638 = vmatpush1.bf16.msra.mxu0 %v7625
  %7639 = vmatprep.subr.bf16.mxu0 0
  %7640 = vmatpush1.bf16.msra.mxu0 %v7624
  %7641 = vmatprep.subr.bf16.mxu0 0
  %7642 = vmatpush1.bf16.msra.mxu0 %v7623
  %7643 = vmatprep.subr.bf16.mxu0 0
  %7644 = vmatpush1.bf16.msra.mxu0 %v7622
  %7645 = vmatprep.subr.bf16.mxu0 0
  %7646 = vmatpush1.bf16.msra.mxu0 %v7621
  %7647 = vmatprep.subr.bf16.mxu0 0
  %7648 = vmatpush1.bf16.msra.mxu0 %v7620
  %7649 = vmatprep.subr.bf16.mxu0 0
  %7650 = vmatpush1.bf16.msra.mxu0 %v7619
  %7651 = vmatprep.subr.bf16.mxu0 0
  %7652 = vmatpush2.bf16.msra.mxu0 0
  %7653 = vmatprep.subr.bf16.mxu0 0
  %7654 = vmatpush2.bf16.msra.mxu0 0
  %7655 = vmatprep.subr.bf16.mxu0 0
  %7656 = vmatpush2.bf16.msra.mxu0 0
  %7657 = vmatprep.subr.bf16.mxu0 0
  %7658 = vmatpush2.bf16.msra.mxu0 0
  %7659 = vmatprep.subr.bf16.mxu0 0
  %7660 = vmatpush2.bf16.msra.mxu0 0
  %7661 = vmatprep.subr.bf16.mxu0 0
  %7662 = vmatpush2.bf16.msra.mxu0 0
  %7663 = vmatprep.subr.bf16.mxu0 0
  %7664 = vmatpush2.bf16.msra.mxu0 0
  %7665 = vmatprep.subr.bf16.mxu0 0
  %7666 = vmatpush2.bf16.msra.mxu0 0
  %7667 = vmatprep.mubr.bf16.mxu0 0
  %7668 = vmatmul.mubr.bf16.gmra.mxu0 %v7410
  %v7669 = vpop.f32.mrf.mxu0
  %v7670 = vadd.f32 0.0, %v7669
  %v7671 = vpop.f32.mrf.mxu0
  %v7672 = vpop.f32.mrf.mxu0
  %v7673 = vpop.f32.mrf.mxu0
  %7674 = vdwg.mxu0
  %v7675 = vmul.f32 %v6932, %v7670
  %v7676 = vpack.c.bf16 %v786, %v786
  %v7677 = vpack.c.bf16 %v7675, %v7675
  %v7678 = vld [vmem:[%s14] sm:$0xff]
  %v7679 = vld [vmem:[%s14 + $0x8] sm:$0xff]
  %v7680 = vld [vmem:[%s14 + $0x10] sm:$0xff]
  %v7681 = vld [vmem:[%s14 + $0x18] sm:$0xff]
  %v7682 = vld [vmem:[%s14 + $0x20] sm:$0xff]
  %v7683 = vld [vmem:[%s14 + $0x28] sm:$0xff]
  %v7684 = vld [vmem:[%s14 + $0x30] sm:$0xff]
  %v7685 = vld [vmem:[%s14 + $0x38] sm:$0xff]
  %v7686 = vld [vmem:[%s14 + $0x40] sm:$0xff]
  %v7687 = vld [vmem:[%s14 + $0x48] sm:$0xff]
  %v7688 = vld [vmem:[%s14 + $0x50] sm:$0xff]
  %v7689 = vld [vmem:[%s14 + $0x58] sm:$0xff]
  %v7690 = vld [vmem:[%s14 + $0x60] sm:$0xff]
  %v7691 = vld [vmem:[%s14 + $0x68] sm:$0xff]
  %v7692 = vld [vmem:[%s14 + $0x70] sm:$0xff]
  %v7693 = vld [vmem:[%s14 + $0x78] sm:$0xff]
  %v7694 = vld [vmem:[%s14 + $0x80] sm:$0xff]
  %v7695 = vld [vmem:[%s14 + $0x88] sm:$0xff]
  %v7696 = vld [vmem:[%s14 + $0x90] sm:$0xff]
  %v7697 = vld [vmem:[%s14 + $0x98] sm:$0xff]
  %v7698 = vld [vmem:[%s14 + $0xa0] sm:$0xff]
  %v7699 = vld [vmem:[%s14 + $0xa8] sm:$0xff]
  %v7700 = vld [vmem:[%s14 + $0xb0] sm:$0xff]
  %v7701 = vld [vmem:[%s14 + $0xb8] sm:$0xff]
  %v7702 = vld [vmem:[%s14 + $0xc0] sm:$0xff]
  %v7703 = vld [vmem:[%s14 + $0xc8] sm:$0xff]
  %v7704 = vld [vmem:[%s14 + $0xd0] sm:$0xff]
  %v7705 = vld [vmem:[%s14 + $0xd8] sm:$0xff]
  %v7706 = vld [vmem:[%s14 + $0xe0] sm:$0xff]
  %v7707 = vld [vmem:[%s14 + $0xe8] sm:$0xff]
  %v7708 = vld [vmem:[%s14 + $0xf0] sm:$0xff]
  %v7709 = vld [vmem:[%s14 + $0xf8] sm:$0xff]
  %v7710 = vld [vmem:[%s14 + $0x100] sm:$0xff]
  %v7711 = vld [vmem:[%s14 + $0x108] sm:$0xff]
  %v7712 = vld [vmem:[%s14 + $0x110] sm:$0xff]
  %v7713 = vld [vmem:[%s14 + $0x118] sm:$0xff]
  %v7714 = vld [vmem:[%s14 + $0x120] sm:$0xff]
  %v7715 = vld [vmem:[%s14 + $0x128] sm:$0xff]
  %v7716 = vld [vmem:[%s14 + $0x130] sm:$0xff]
  %v7717 = vld [vmem:[%s14 + $0x138] sm:$0xff]
  %v7718 = vld [vmem:[%s14 + $0x140] sm:$0xff]
  %v7719 = vld [vmem:[%s14 + $0x148] sm:$0xff]
  %v7720 = vld [vmem:[%s14 + $0x150] sm:$0xff]
  %v7721 = vld [vmem:[%s14 + $0x158] sm:$0xff]
  %v7722 = vld [vmem:[%s14 + $0x160] sm:$0xff]
  %v7723 = vld [vmem:[%s14 + $0x168] sm:$0xff]
  %v7724 = vld [vmem:[%s14 + $0x170] sm:$0xff]
  %v7725 = vld [vmem:[%s14 + $0x178] sm:$0xff]
  %v7726 = vld [vmem:[%s14 + $0x180] sm:$0xff]
  %v7727 = vld [vmem:[%s14 + $0x188] sm:$0xff]
  %v7728 = vld [vmem:[%s14 + $0x190] sm:$0xff]
  %v7729 = vld [vmem:[%s14 + $0x198] sm:$0xff]
  %v7730 = vld [vmem:[%s14 + $0x1a0] sm:$0xff]
  %v7731 = vld [vmem:[%s14 + $0x1a8] sm:$0xff]
  %v7732 = vld [vmem:[%s14 + $0x1b0] sm:$0xff]
  %v7733 = vld [vmem:[%s14 + $0x1b8] sm:$0xff]
  %v7734 = vld [vmem:[%s14 + $0x1c0] sm:$0xff]
  %v7735 = vld [vmem:[%s14 + $0x1c8] sm:$0xff]
  %v7736 = vld [vmem:[%s14 + $0x1d0] sm:$0xff]
  %v7737 = vld [vmem:[%s14 + $0x1d8] sm:$0xff]
  %v7738 = vld [vmem:[%s14 + $0x1e0] sm:$0xff]
  %v7739 = vld [vmem:[%s14 + $0x1e8] sm:$0xff]
  %v7740 = vld [vmem:[%s14 + $0x1f0] sm:$0xff]
  %v7741 = vld [vmem:[%s14 + $0x1f8] sm:$0xff]
  %v7806 = vunpack.c.l.b16 %v7678
  %v7807 = vunpack.c.h.b16 %v7678
  %v7808 = vunpack.c.l.b16 %v7679
  %v7809 = vunpack.c.h.b16 %v7679
  %v7810 = vunpack.c.l.b16 %v7680
  %v7811 = vunpack.c.h.b16 %v7680
  %v7812 = vunpack.c.l.b16 %v7681
  %v7813 = vunpack.c.h.b16 %v7681
  %v7814 = vunpack.c.l.b16 %v7682
  %v7815 = vunpack.c.h.b16 %v7682
  %v7816 = vunpack.c.l.b16 %v7683
  %v7817 = vunpack.c.h.b16 %v7683
  %v7818 = vunpack.c.l.b16 %v7684
  %v7819 = vunpack.c.h.b16 %v7684
  %v7820 = vunpack.c.l.b16 %v7685
  %v7821 = vunpack.c.h.b16 %v7685
  %v7822 = vunpack.c.l.b16 %v7686
  %v7823 = vunpack.c.h.b16 %v7686
  %v7824 = vunpack.c.l.b16 %v7687
  %v7825 = vunpack.c.h.b16 %v7687
  %v7826 = vunpack.c.l.b16 %v7688
  %v7827 = vunpack.c.h.b16 %v7688
  %v7828 = vunpack.c.l.b16 %v7689
  %v7829 = vunpack.c.h.b16 %v7689
  %v7830 = vunpack.c.l.b16 %v7690
  %v7831 = vunpack.c.h.b16 %v7690
  %v7832 = vunpack.c.l.b16 %v7691
  %v7833 = vunpack.c.h.b16 %v7691
  %v7834 = vunpack.c.l.b16 %v7692
  %v7835 = vunpack.c.h.b16 %v7692
  %v7836 = vunpack.c.l.b16 %v7693
  %v7837 = vunpack.c.h.b16 %v7693
  %v7838 = vunpack.c.l.b16 %v7694
  %v7839 = vunpack.c.h.b16 %v7694
  %v7840 = vunpack.c.l.b16 %v7695
  %v7841 = vunpack.c.h.b16 %v7695
  %v7842 = vunpack.c.l.b16 %v7696
  %v7843 = vunpack.c.h.b16 %v7696
  %v7844 = vunpack.c.l.b16 %v7697
  %v7845 = vunpack.c.h.b16 %v7697
  %v7846 = vunpack.c.l.b16 %v7698
  %v7847 = vunpack.c.h.b16 %v7698
  %v7848 = vunpack.c.l.b16 %v7699
  %v7849 = vunpack.c.h.b16 %v7699
  %v7850 = vunpack.c.l.b16 %v7700
  %v7851 = vunpack.c.h.b16 %v7700
  %v7852 = vunpack.c.l.b16 %v7701
  %v7853 = vunpack.c.h.b16 %v7701
  %v7854 = vunpack.c.l.b16 %v7702
  %v7855 = vunpack.c.h.b16 %v7702
  %v7856 = vunpack.c.l.b16 %v7703
  %v7857 = vunpack.c.h.b16 %v7703
  %v7858 = vunpack.c.l.b16 %v7704
  %v7859 = vunpack.c.h.b16 %v7704
  %v7860 = vunpack.c.l.b16 %v7705
  %v7861 = vunpack.c.h.b16 %v7705
  %v7862 = vunpack.c.l.b16 %v7706
  %v7863 = vunpack.c.h.b16 %v7706
  %v7864 = vunpack.c.l.b16 %v7707
  %v7865 = vunpack.c.h.b16 %v7707
  %v7866 = vunpack.c.l.b16 %v7708
  %v7867 = vunpack.c.h.b16 %v7708
  %v7868 = vunpack.c.l.b16 %v7709
  %v7869 = vunpack.c.h.b16 %v7709
  %v7870 = vunpack.c.l.b16 %v7710
  %v7871 = vunpack.c.h.b16 %v7710
  %v7872 = vunpack.c.l.b16 %v7711
  %v7873 = vunpack.c.h.b16 %v7711
  %v7874 = vunpack.c.l.b16 %v7712
  %v7875 = vunpack.c.h.b16 %v7712
  %v7876 = vunpack.c.l.b16 %v7713
  %v7877 = vunpack.c.h.b16 %v7713
  %v7878 = vunpack.c.l.b16 %v7714
  %v7879 = vunpack.c.h.b16 %v7714
  %v7880 = vunpack.c.l.b16 %v7715
  %v7881 = vunpack.c.h.b16 %v7715
  %v7882 = vunpack.c.l.b16 %v7716
  %v7883 = vunpack.c.h.b16 %v7716
  %v7884 = vunpack.c.l.b16 %v7717
  %v7885 = vunpack.c.h.b16 %v7717
  %v7886 = vunpack.c.l.b16 %v7718
  %v7887 = vunpack.c.h.b16 %v7718
  %v7888 = vunpack.c.l.b16 %v7719
  %v7889 = vunpack.c.h.b16 %v7719
  %v7890 = vunpack.c.l.b16 %v7720
  %v7891 = vunpack.c.h.b16 %v7720
  %v7892 = vunpack.c.l.b16 %v7721
  %v7893 = vunpack.c.h.b16 %v7721
  %v7894 = vunpack.c.l.b16 %v7722
  %v7895 = vunpack.c.h.b16 %v7722
  %v7896 = vunpack.c.l.b16 %v7723
  %v7897 = vunpack.c.h.b16 %v7723
  %v7898 = vunpack.c.l.b16 %v7724
  %v7899 = vunpack.c.h.b16 %v7724
  %v7900 = vunpack.c.l.b16 %v7725
  %v7901 = vunpack.c.h.b16 %v7725
  %v7902 = vunpack.c.l.b16 %v7726
  %v7903 = vunpack.c.h.b16 %v7726
  %v7904 = vunpack.c.l.b16 %v7727
  %v7905 = vunpack.c.h.b16 %v7727
  %v7906 = vunpack.c.l.b16 %v7728
  %v7907 = vunpack.c.h.b16 %v7728
  %v7908 = vunpack.c.l.b16 %v7729
  %v7909 = vunpack.c.h.b16 %v7729
  %v7910 = vunpack.c.l.b16 %v7730
  %v7911 = vunpack.c.h.b16 %v7730
  %v7912 = vunpack.c.l.b16 %v7731
  %v7913 = vunpack.c.h.b16 %v7731
  %v7914 = vunpack.c.l.b16 %v7732
  %v7915 = vunpack.c.h.b16 %v7732
  %v7916 = vunpack.c.l.b16 %v7733
  %v7917 = vunpack.c.h.b16 %v7733
  %v7918 = vunpack.c.l.b16 %v7734
  %v7919 = vunpack.c.h.b16 %v7734
  %v7920 = vunpack.c.l.b16 %v7735
  %v7921 = vunpack.c.h.b16 %v7735
  %v7922 = vunpack.c.l.b16 %v7736
  %v7923 = vunpack.c.h.b16 %v7736
  %v7924 = vunpack.c.l.b16 %v7737
  %v7925 = vunpack.c.h.b16 %v7737
  %v7926 = vunpack.c.l.b16 %v7738
  %v7927 = vunpack.c.h.b16 %v7738
  %v7928 = vunpack.c.l.b16 %v7739
  %v7929 = vunpack.c.h.b16 %v7739
  %v7930 = vunpack.c.l.b16 %v7740
  %v7931 = vunpack.c.h.b16 %v7740
  %v7932 = vunpack.c.l.b16 %v7741
  %v7933 = vunpack.c.h.b16 %v7741
  %v7934 = vpack.c.b16 %v7810, %v7806
  %v7935 = vpack.c.b16 %v7811, %v7807
  %v7936 = vpack.c.b16 %v7812, %v7808
  %v7937 = vpack.c.b16 %v7813, %v7809
  %v7938 = vpack.c.b16 %v7818, %v7814
  %v7939 = vpack.c.b16 %v7819, %v7815
  %v7940 = vpack.c.b16 %v7820, %v7816
  %v7941 = vpack.c.b16 %v7821, %v7817
  %v7942 = vpack.c.b16 %v7826, %v7822
  %v7943 = vpack.c.b16 %v7827, %v7823
  %v7944 = vpack.c.b16 %v7828, %v7824
  %v7945 = vpack.c.b16 %v7829, %v7825
  %v7946 = vpack.c.b16 %v7834, %v7830
  %v7947 = vpack.c.b16 %v7835, %v7831
  %v7948 = vpack.c.b16 %v7836, %v7832
  %v7949 = vpack.c.b16 %v7837, %v7833
  %v7950 = vpack.c.b16 %v7842, %v7838
  %v7951 = vpack.c.b16 %v7843, %v7839
  %v7952 = vpack.c.b16 %v7844, %v7840
  %v7953 = vpack.c.b16 %v7845, %v7841
  %v7954 = vpack.c.b16 %v7850, %v7846
  %v7955 = vpack.c.b16 %v7851, %v7847
  %v7956 = vpack.c.b16 %v7852, %v7848
  %v7957 = vpack.c.b16 %v7853, %v7849
  %v7958 = vpack.c.b16 %v7858, %v7854
  %v7959 = vpack.c.b16 %v7859, %v7855
  %v7960 = vpack.c.b16 %v7860, %v7856
  %v7961 = vpack.c.b16 %v7861, %v7857
  %v7962 = vpack.c.b16 %v7866, %v7862
  %v7963 = vpack.c.b16 %v7867, %v7863
  %v7964 = vpack.c.b16 %v7868, %v7864
  %v7965 = vpack.c.b16 %v7869, %v7865
  %v7966 = vpack.c.b16 %v7874, %v7870
  %v7967 = vpack.c.b16 %v7875, %v7871
  %v7968 = vpack.c.b16 %v7876, %v7872
  %v7969 = vpack.c.b16 %v7877, %v7873
  %v7970 = vpack.c.b16 %v7882, %v7878
  %v7971 = vpack.c.b16 %v7883, %v7879
  %v7972 = vpack.c.b16 %v7884, %v7880
  %v7973 = vpack.c.b16 %v7885, %v7881
  %v7974 = vpack.c.b16 %v7890, %v7886
  %v7975 = vpack.c.b16 %v7891, %v7887
  %v7976 = vpack.c.b16 %v7892, %v7888
  %v7977 = vpack.c.b16 %v7893, %v7889
  %v7978 = vpack.c.b16 %v7898, %v7894
  %v7979 = vpack.c.b16 %v7899, %v7895
  %v7980 = vpack.c.b16 %v7900, %v7896
  %v7981 = vpack.c.b16 %v7901, %v7897
  %v7982 = vpack.c.b16 %v7906, %v7902
  %v7983 = vpack.c.b16 %v7907, %v7903
  %v7984 = vpack.c.b16 %v7908, %v7904
  %v7985 = vpack.c.b16 %v7909, %v7905
  %v7986 = vpack.c.b16 %v7914, %v7910
  %v7987 = vpack.c.b16 %v7915, %v7911
  %v7988 = vpack.c.b16 %v7916, %v7912
  %v7989 = vpack.c.b16 %v7917, %v7913
  %v7990 = vpack.c.b16 %v7922, %v7918
  %v7991 = vpack.c.b16 %v7923, %v7919
  %v7992 = vpack.c.b16 %v7924, %v7920
  %v7993 = vpack.c.b16 %v7925, %v7921
  %v7994 = vpack.c.b16 %v7930, %v7926
  %v7995 = vpack.c.b16 %v7931, %v7927
  %v7996 = vpack.c.b16 %v7932, %v7928
  %v7997 = vpack.c.b16 %v7933, %v7929
  %8062 = vmatprep.subr.bf16.mxu0 %v7963
  %8063 = vmatpush1.bf16.msra.mxu0 %v7962
  %8064 = vmatprep.subr.bf16.mxu0 %v7959
  %8065 = vmatpush1.bf16.msra.mxu0 %v7958
  %8066 = vmatprep.subr.bf16.mxu0 %v7955
  %8067 = vmatpush1.bf16.msra.mxu0 %v7954
  %8068 = vmatprep.subr.bf16.mxu0 %v7951
  %8069 = vmatpush1.bf16.msra.mxu0 %v7950
  %8070 = vmatprep.subr.bf16.mxu0 %v7947
  %8071 = vmatpush1.bf16.msra.mxu0 %v7946
  %8072 = vmatprep.subr.bf16.mxu0 %v7943
  %8073 = vmatpush1.bf16.msra.mxu0 %v7942
  %8074 = vmatprep.subr.bf16.mxu0 %v7939
  %8075 = vmatpush1.bf16.msra.mxu0 %v7938
  %8076 = vmatprep.subr.bf16.mxu0 %v7935
  %8077 = vmatpush1.bf16.msra.mxu0 %v7934
  %8078 = vmatprep.subr.bf16.mxu0 %v7995
  %8079 = vmatpush2.bf16.msra.mxu0 %v7994
  %8080 = vmatprep.subr.bf16.mxu0 %v7991
  %8081 = vmatpush2.bf16.msra.mxu0 %v7990
  %8082 = vmatprep.subr.bf16.mxu0 %v7987
  %8083 = vmatpush2.bf16.msra.mxu0 %v7986
  %8084 = vmatprep.subr.bf16.mxu0 %v7983
  %8085 = vmatpush2.bf16.msra.mxu0 %v7982
  %8086 = vmatprep.subr.bf16.mxu0 %v7979
  %8087 = vmatpush2.bf16.msra.mxu0 %v7978
  %8088 = vmatprep.subr.bf16.mxu0 %v7975
  %8089 = vmatpush2.bf16.msra.mxu0 %v7974
  %8090 = vmatprep.subr.bf16.mxu0 %v7971
  %8091 = vmatpush2.bf16.msra.mxu0 %v7970
  %8092 = vmatprep.subr.bf16.mxu0 %v7967
  %8093 = vmatpush2.bf16.msra.mxu0 %v7966
  %8094 = vmatprep.mubr.bf16.mxu0 %v7677
  %8095 = vmatmul.mubr.bf16.gmra.mxu0 %v7676
  %v8096 = vpop.f32.mrf.mxu0
  %v8097 = vadd.f32 %v6880, %v8096
  %v8098 = vpop.f32.mrf.mxu0
  %v8099 = vadd.f32 %v6882, %v8098
  %v8100 = vpop.f32.mrf.mxu0
  %v8101 = vpop.f32.mrf.mxu0
  %8102 = vdwg.mxu0
  %8103 = vmatprep.subr.bf16.mxu0 %v7965
  %8104 = vmatpush1.bf16.msra.mxu0 %v7964
  %8105 = vmatprep.subr.bf16.mxu0 %v7961
  %8106 = vmatpush1.bf16.msra.mxu0 %v7960
  %8107 = vmatprep.subr.bf16.mxu0 %v7957
  %8108 = vmatpush1.bf16.msra.mxu0 %v7956
  %8109 = vmatprep.subr.bf16.mxu0 %v7953
  %8110 = vmatpush1.bf16.msra.mxu0 %v7952
  %8111 = vmatprep.subr.bf16.mxu0 %v7949
  %8112 = vmatpush1.bf16.msra.mxu0 %v7948
  %8113 = vmatprep.subr.bf16.mxu0 %v7945
  %8114 = vmatpush1.bf16.msra.mxu0 %v7944
  %8115 = vmatprep.subr.bf16.mxu0 %v7941
  %8116 = vmatpush1.bf16.msra.mxu0 %v7940
  %8117 = vmatprep.subr.bf16.mxu0 %v7937
  %8118 = vmatpush1.bf16.msra.mxu0 %v7936
  %8119 = vmatprep.subr.bf16.mxu0 %v7997
  %8120 = vmatpush2.bf16.msra.mxu0 %v7996
  %8121 = vmatprep.subr.bf16.mxu0 %v7993
  %8122 = vmatpush2.bf16.msra.mxu0 %v7992
  %8123 = vmatprep.subr.bf16.mxu0 %v7989
  %8124 = vmatpush2.bf16.msra.mxu0 %v7988
  %8125 = vmatprep.subr.bf16.mxu0 %v7985
  %8126 = vmatpush2.bf16.msra.mxu0 %v7984
  %8127 = vmatprep.subr.bf16.mxu0 %v7981
  %8128 = vmatpush2.bf16.msra.mxu0 %v7980
  %8129 = vmatprep.subr.bf16.mxu0 %v7977
  %8130 = vmatpush2.bf16.msra.mxu0 %v7976
  %8131 = vmatprep.subr.bf16.mxu0 %v7973
  %8132 = vmatpush2.bf16.msra.mxu0 %v7972
  %8133 = vmatprep.subr.bf16.mxu0 %v7969
  %8134 = vmatpush2.bf16.msra.mxu0 %v7968
  %8135 = vmatprep.mubr.bf16.mxu0 %v7677
  %8136 = vmatmul.mubr.bf16.gmra.mxu0 %v7676
  %v8137 = vpop.f32.mrf.mxu0
  %v8138 = vadd.f32 %v6921, %v8137
  %v8139 = vpop.f32.mrf.mxu0
  %v8140 = vadd.f32 %v6923, %v8139
  %v8141 = vpop.f32.mrf.mxu0
  %v8142 = vpop.f32.mrf.mxu0
  %8143 = vdwg.mxu0
  %v8144 = vxor.u32 %v8097, 2147483648
  %v8145 = vmul.f32 %v8144, 1.442695
  %v8146 = vpow.pop %v8145
  %v8147 = vadd.f32 %v8146, 1.0
  %v8148 = vrcp.pop %v8147
  %v8149 = vmul.f32 1.0, %v8148
  %v8150 = vxor.u32 %v8099, 2147483648
  %v8151 = vmul.f32 %v8150, 1.442695
  %v8152 = vpow.pop %v8151
  %v8153 = vadd.f32 %v8152, 1.0
  %v8154 = vrcp.pop %v8153
  %v8155 = vmul.f32 1.0, %v8154
  %v8156 = vtanh.pop %v8138
  %v8157 = vxor.u32 %v8140, 2147483648
  %v8158 = vmul.f32 %v8157, 1.442695
  %v8159 = vpow.pop %v8158
  %v8160 = vadd.f32 %v8159, 1.0
  %v8161 = vrcp.pop %v8160
  %v8162 = vmul.f32 1.0, %v8161
  %v8163 = vmul.f32 %v8155, %v6507
  %v8164 = vmul.f32 %v8149, %v8156
  %v8165 = vadd.f32 %v8163, %v8164
  %v8166 = vtanh.pop %v8165
  %v8167 = vmul.f32 %v8162, %v8166
  %v8168 = vpack.c.bf16 %v8167, %v8167
  %v8169 = vld [vmem:[%s15] sm:$0xff]
  %v8170 = vld [vmem:[%s15 + $0x8] sm:$0xff]
  %v8171 = vld [vmem:[%s15 + $0x10] sm:$0xff]
  %v8172 = vld [vmem:[%s15 + $0x18] sm:$0xff]
  %v8173 = vld [vmem:[%s15 + $0x20] sm:$0xff]
  %v8174 = vld [vmem:[%s15 + $0x28] sm:$0xff]
  %v8175 = vld [vmem:[%s15 + $0x30] sm:$0xff]
  %v8176 = vld [vmem:[%s15 + $0x38] sm:$0xff]
  %v8177 = vld [vmem:[%s15 + $0x40] sm:$0xff]
  %v8178 = vld [vmem:[%s15 + $0x48] sm:$0xff]
  %v8179 = vld [vmem:[%s15 + $0x50] sm:$0xff]
  %v8180 = vld [vmem:[%s15 + $0x58] sm:$0xff]
  %v8181 = vld [vmem:[%s15 + $0x60] sm:$0xff]
  %v8182 = vld [vmem:[%s15 + $0x68] sm:$0xff]
  %v8183 = vld [vmem:[%s15 + $0x70] sm:$0xff]
  %v8184 = vld [vmem:[%s15 + $0x78] sm:$0xff]
  %v8185 = vld [vmem:[%s16] sm:$0xff]
  %v8186 = vld [vmem:[%s16 + $0x8] sm:$0xff]
  %v8203 = vunpack.c.l.b16 %v8169
  %v8204 = vunpack.c.h.b16 %v8169
  %v8205 = vunpack.c.l.b16 %v8170
  %v8206 = vunpack.c.h.b16 %v8170
  %v8207 = vunpack.c.l.b16 %v8171
  %v8208 = vunpack.c.h.b16 %v8171
  %v8209 = vunpack.c.l.b16 %v8172
  %v8210 = vunpack.c.h.b16 %v8172
  %v8211 = vunpack.c.l.b16 %v8173
  %v8212 = vunpack.c.h.b16 %v8173
  %v8213 = vunpack.c.l.b16 %v8174
  %v8214 = vunpack.c.h.b16 %v8174
  %v8215 = vunpack.c.l.b16 %v8175
  %v8216 = vunpack.c.h.b16 %v8175
  %v8217 = vunpack.c.l.b16 %v8176
  %v8218 = vunpack.c.h.b16 %v8176
  %v8219 = vunpack.c.l.b16 %v8177
  %v8220 = vunpack.c.h.b16 %v8177
  %v8221 = vunpack.c.l.b16 %v8178
  %v8222 = vunpack.c.h.b16 %v8178
  %v8223 = vunpack.c.l.b16 %v8179
  %v8224 = vunpack.c.h.b16 %v8179
  %v8225 = vunpack.c.l.b16 %v8180
  %v8226 = vunpack.c.h.b16 %v8180
  %v8227 = vunpack.c.l.b16 %v8181
  %v8228 = vunpack.c.h.b16 %v8181
  %v8229 = vunpack.c.l.b16 %v8182
  %v8230 = vunpack.c.h.b16 %v8182
  %v8231 = vunpack.c.l.b16 %v8183
  %v8232 = vunpack.c.h.b16 %v8183
  %v8233 = vunpack.c.l.b16 %v8184
  %v8234 = vunpack.c.h.b16 %v8184
  %v8235 = vpack.c.b16 %v8205, %v8203
  %v8236 = vpack.c.b16 %v8206, %v8204
  %v8237 = vpack.c.b16 %v8209, %v8207
  %v8238 = vpack.c.b16 %v8210, %v8208
  %v8239 = vpack.c.b16 %v8213, %v8211
  %v8240 = vpack.c.b16 %v8214, %v8212
  %v8241 = vpack.c.b16 %v8217, %v8215
  %v8242 = vpack.c.b16 %v8218, %v8216
  %v8243 = vpack.c.b16 %v8221, %v8219
  %v8244 = vpack.c.b16 %v8222, %v8220
  %v8245 = vpack.c.b16 %v8225, %v8223
  %v8246 = vpack.c.b16 %v8226, %v8224
  %v8247 = vpack.c.b16 %v8229, %v8227
  %v8248 = vpack.c.b16 %v8230, %v8228
  %v8249 = vpack.c.b16 %v8233, %v8231
  %v8250 = vpack.c.b16 %v8234, %v8232
  %8267 = vmatprep.subr.bf16.mxu0 %v8250
  %8268 = vmatpush1.bf16.msra.mxu0 %v8249
  %8269 = vmatprep.subr.bf16.mxu0 %v8248
  %8270 = vmatpush1.bf16.msra.mxu0 %v8247
  %8271 = vmatprep.subr.bf16.mxu0 %v8246
  %8272 = vmatpush1.bf16.msra.mxu0 %v8245
  %8273 = vmatprep.subr.bf16.mxu0 %v8244
  %8274 = vmatpush1.bf16.msra.mxu0 %v8243
  %8275 = vmatprep.subr.bf16.mxu0 %v8242
  %8276 = vmatpush1.bf16.msra.mxu0 %v8241
  %8277 = vmatprep.subr.bf16.mxu0 %v8240
  %8278 = vmatpush1.bf16.msra.mxu0 %v8239
  %8279 = vmatprep.subr.bf16.mxu0 %v8238
  %8280 = vmatpush1.bf16.msra.mxu0 %v8237
  %8281 = vmatprep.subr.bf16.mxu0 %v8236
  %8282 = vmatpush1.bf16.msra.mxu0 %v8235
  %8283 = vmatprep.subr.bf16.mxu0 0
  %8284 = vmatpush2.bf16.msra.mxu0 0
  %8285 = vmatprep.subr.bf16.mxu0 0
  %8286 = vmatpush2.bf16.msra.mxu0 0
  %8287 = vmatprep.subr.bf16.mxu0 0
  %8288 = vmatpush2.bf16.msra.mxu0 0
  %8289 = vmatprep.subr.bf16.mxu0 0
  %8290 = vmatpush2.bf16.msra.mxu0 0
  %8291 = vmatprep.subr.bf16.mxu0 0
  %8292 = vmatpush2.bf16.msra.mxu0 0
  %8293 = vmatprep.subr.bf16.mxu0 0
  %8294 = vmatpush2.bf16.msra.mxu0 0
  %8295 = vmatprep.subr.bf16.mxu0 0
  %8296 = vmatpush2.bf16.msra.mxu0 0
  %8297 = vmatprep.subr.bf16.mxu0 0
  %8298 = vmatpush2.bf16.msra.mxu0 0
  %8299 = vmatprep.mubr.bf16.mxu0 0
  %8300 = vmatmul.mubr.bf16.gmra.mxu0 %v8168
  %v8301 = vpop.f32.mrf.mxu0
  %v8302 = vadd.f32 %v8185, %v8301
  %v8303 = vpop.f32.mrf.mxu0
  %v8304 = vadd.f32 %v8186, %v8303
  %v8305 = vpop.f32.mrf.mxu0
  %v8306 = vpop.f32.mrf.mxu0
  %8307 = vdwg.mxu0
  %v8308 = vsel %vm6508, 1, 0
  %8309 = vset.pattern.permute.xlu0 0
  %8310 = vperm.xlu0 %8309, %v8308
  %v8311 = vpop.permute.xlu0 %8310
  %vm8312 = vcmp.eq.s32.totalorder %v8311, 1
  %v8313 = vsel %vm8312, %v8302, 0.0
  %v8314 = vsel %vm8312, %v8304, 0.0
  %s8315 = scalar_lea.vmem %s17, 48
  %8316 = vst [vmem:[%s8315] sm:$0xff] %v8313
  %8317 = vst [vmem:[%s8315 + $0x8] sm:$0xff] %v8314
  %vm8318 = vcmp.gt.s32.totalorder %v797, 3
  %vm8319 = vcmp.gt.s32.totalorder %v798, 3
  %vm8320 = vcmp.gt.s32.totalorder %v799, 3
  %vm8321 = vcmp.gt.s32.totalorder %v800, 3
  %vm8322 = vcmp.gt.s32.totalorder %v801, 3
  %vm8323 = vcmp.gt.s32.totalorder %v802, 3
  %vm8324 = vcmp.gt.s32.totalorder %v803, 3
  %vm8325 = vcmp.gt.s32.totalorder %v804, 3
  %vm8326 = vcmp.gt.s32.totalorder %v805, 3
  %vm8327 = vcmp.gt.s32.totalorder %v806, 3
  %vm8328 = vcmp.gt.s32.totalorder %v807, 3
  %vm8329 = vcmp.gt.s32.totalorder %v808, 3
  %vm8330 = vcmp.gt.s32.totalorder %v809, 3
  %vm8331 = vcmp.gt.s32.totalorder %v810, 3
  %vm8332 = vcmp.gt.s32.totalorder %v811, 3
  %vm8333 = vcmp.gt.s32.totalorder %v812, 3
  %v8334 = vsel %vm8318, %v7394, 0.0
  %v8335 = vsel %vm8319, %v7395, 0.0
  %v8336 = vsel %vm8320, %v7396, 0.0
  %v8337 = vsel %vm8321, %v7397, 0.0
  %v8338 = vsel %vm8322, %v7398, 0.0
  %v8339 = vsel %vm8323, %v7399, 0.0
  %v8340 = vsel %vm8324, %v7400, 0.0
  %v8341 = vsel %vm8325, %v7401, 0.0
  %v8342 = vsel %vm8326, %v7402, 0.0
  %v8343 = vsel %vm8327, %v7403, 0.0
  %v8344 = vsel %vm8328, %v7404, 0.0
  %v8345 = vsel %vm8329, %v7405, 0.0
  %v8346 = vsel %vm8330, %v7406, 0.0
  %v8347 = vsel %vm8331, %v7407, 0.0
  %v8348 = vsel %vm8332, %v7408, 0.0
  %v8349 = vsel %vm8333, %v7409, 0.0
  %8366 = vrot.lane.b32.xlu0 %v8334, 3
  %v8367 = vpop.permute.xlu0 %8366
  %8368 = vrot.lane.b32.xlu0 %v8335, 3
  %v8369 = vpop.permute.xlu0 %8368
  %8370 = vrot.lane.b32.xlu0 %v8336, 3
  %v8371 = vpop.permute.xlu0 %8370
  %8372 = vrot.lane.b32.xlu0 %v8337, 3
  %v8373 = vpop.permute.xlu0 %8372
  %8374 = vrot.lane.b32.xlu0 %v8338, 3
  %v8375 = vpop.permute.xlu0 %8374
  %8376 = vrot.lane.b32.xlu0 %v8339, 3
  %v8377 = vpop.permute.xlu0 %8376
  %8378 = vrot.lane.b32.xlu0 %v8340, 3
  %v8379 = vpop.permute.xlu0 %8378
  %8380 = vrot.lane.b32.xlu0 %v8341, 3
  %v8381 = vpop.permute.xlu0 %8380
  %8382 = vrot.lane.b32.xlu0 %v8342, 3
  %v8383 = vpop.permute.xlu0 %8382
  %8384 = vrot.lane.b32.xlu0 %v8343, 3
  %v8385 = vpop.permute.xlu0 %8384
  %8386 = vrot.lane.b32.xlu0 %v8344, 3
  %v8387 = vpop.permute.xlu0 %8386
  %8388 = vrot.lane.b32.xlu0 %v8345, 3
  %v8389 = vpop.permute.xlu0 %8388
  %8390 = vrot.lane.b32.xlu0 %v8346, 3
  %v8391 = vpop.permute.xlu0 %8390
  %8392 = vrot.lane.b32.xlu0 %v8347, 3
  %v8393 = vpop.permute.xlu0 %8392
  %8394 = vrot.lane.b32.xlu0 %v8348, 3
  %v8395 = vpop.permute.xlu0 %8394
  %8396 = vrot.lane.b32.xlu0 %v8349, 3
  %v8397 = vpop.permute.xlu0 %8396
  %vm8414 = vcmask 31768
  %8415 = vst.msk [vmem:[%s18] sm:$0xff] %vm8414, %v8367
  %8416 = vst.msk [vmem:[%s18 + $0x8] sm:$0xff] %vm8414, %v8369
  %8417 = vst.msk [vmem:[%s18 + $0x10] sm:$0xff] %vm8414, %v8371
  %8418 = vst.msk [vmem:[%s18 + $0x18] sm:$0xff] %vm8414, %v8373
  %8419 = vst.msk [vmem:[%s18 + $0x20] sm:$0xff] %vm8414, %v8375
  %8420 = vst.msk [vmem:[%s18 + $0x28] sm:$0xff] %vm8414, %v8377
  %8421 = vst.msk [vmem:[%s18 + $0x30] sm:$0xff] %vm8414, %v8379
  %8422 = vst.msk [vmem:[%s18 + $0x38] sm:$0xff] %vm8414, %v8381
  %8423 = vst.msk [vmem:[%s18 + $0x40] sm:$0xff] %vm8414, %v8383
  %8424 = vst.msk [vmem:[%s18 + $0x48] sm:$0xff] %vm8414, %v8385
  %8425 = vst.msk [vmem:[%s18 + $0x50] sm:$0xff] %vm8414, %v8387
  %8426 = vst.msk [vmem:[%s18 + $0x58] sm:$0xff] %vm8414, %v8389
  %8427 = vst.msk [vmem:[%s18 + $0x60] sm:$0xff] %vm8414, %v8391
  %8428 = vst.msk [vmem:[%s18 + $0x68] sm:$0xff] %vm8414, %v8393
  %8429 = vst.msk [vmem:[%s18 + $0x70] sm:$0xff] %vm8414, %v8395
  %8430 = vst.msk [vmem:[%s18 + $0x78] sm:$0xff] %vm8414, %v8397
  %v8431 = vsel %vm8312, %v8167, %v6506
  %v8432 = vsel %vm8312, %v8165, %v6507
  %vm8433 = vcmp.gt.s32.totalorder %v796, 4
  %v8434 = vpack.c.bf16 %v8431, %v8431
  %v8435 = vld [vmem:[%s12] sm:$0xff]
  %v8436 = vld [vmem:[%s12 + $0x8] sm:$0xff]
  %v8437 = vld [vmem:[%s12 + $0x10] sm:$0xff]
  %v8438 = vld [vmem:[%s12 + $0x18] sm:$0xff]
  %v8439 = vld [vmem:[%s12 + $0x20] sm:$0xff]
  %v8440 = vld [vmem:[%s12 + $0x28] sm:$0xff]
  %v8441 = vld [vmem:[%s12 + $0x30] sm:$0xff]
  %v8442 = vld [vmem:[%s12 + $0x38] sm:$0xff]
  %v8443 = vld [vmem:[%s12 + $0x40] sm:$0xff]
  %v8444 = vld [vmem:[%s12 + $0x48] sm:$0xff]
  %v8445 = vld [vmem:[%s12 + $0x50] sm:$0xff]
  %v8446 = vld [vmem:[%s12 + $0x58] sm:$0xff]
  %v8447 = vld [vmem:[%s12 + $0x60] sm:$0xff]
  %v8448 = vld [vmem:[%s12 + $0x68] sm:$0xff]
  %v8449 = vld [vmem:[%s12 + $0x70] sm:$0xff]
  %v8450 = vld [vmem:[%s12 + $0x78] sm:$0xff]
  %v8451 = vld [vmem:[%s12 + $0x80] sm:$0xff]
  %v8452 = vld [vmem:[%s12 + $0x88] sm:$0xff]
  %v8453 = vld [vmem:[%s12 + $0x90] sm:$0xff]
  %v8454 = vld [vmem:[%s12 + $0x98] sm:$0xff]
  %v8455 = vld [vmem:[%s12 + $0xa0] sm:$0xff]
  %v8456 = vld [vmem:[%s12 + $0xa8] sm:$0xff]
  %v8457 = vld [vmem:[%s12 + $0xb0] sm:$0xff]
  %v8458 = vld [vmem:[%s12 + $0xb8] sm:$0xff]
  %v8459 = vld [vmem:[%s12 + $0xc0] sm:$0xff]
  %v8460 = vld [vmem:[%s12 + $0xc8] sm:$0xff]
  %v8461 = vld [vmem:[%s12 + $0xd0] sm:$0xff]
  %v8462 = vld [vmem:[%s12 + $0xd8] sm:$0xff]
  %v8463 = vld [vmem:[%s12 + $0xe0] sm:$0xff]
  %v8464 = vld [vmem:[%s12 + $0xe8] sm:$0xff]
  %v8465 = vld [vmem:[%s12 + $0xf0] sm:$0xff]
  %v8466 = vld [vmem:[%s12 + $0xf8] sm:$0xff]
  %v8467 = vld [vmem:[%s12 + $0x100] sm:$0xff]
  %v8468 = vld [vmem:[%s12 + $0x108] sm:$0xff]
  %v8469 = vld [vmem:[%s12 + $0x110] sm:$0xff]
  %v8470 = vld [vmem:[%s12 + $0x118] sm:$0xff]
  %v8471 = vld [vmem:[%s12 + $0x120] sm:$0xff]
  %v8472 = vld [vmem:[%s12 + $0x128] sm:$0xff]
  %v8473 = vld [vmem:[%s12 + $0x130] sm:$0xff]
  %v8474 = vld [vmem:[%s12 + $0x138] sm:$0xff]
  %v8475 = vld [vmem:[%s12 + $0x140] sm:$0xff]
  %v8476 = vld [vmem:[%s12 + $0x148] sm:$0xff]
  %v8477 = vld [vmem:[%s12 + $0x150] sm:$0xff]
  %v8478 = vld [vmem:[%s12 + $0x158] sm:$0xff]
  %v8479 = vld [vmem:[%s12 + $0x160] sm:$0xff]
  %v8480 = vld [vmem:[%s12 + $0x168] sm:$0xff]
  %v8481 = vld [vmem:[%s12 + $0x170] sm:$0xff]
  %v8482 = vld [vmem:[%s12 + $0x178] sm:$0xff]
  %v8483 = vld [vmem:[%s13] sm:$0xff]
  %v8484 = vld [vmem:[%s13 + $0x8] sm:$0xff]
  %v8485 = vld [vmem:[%s13 + $0x10] sm:$0xff]
  %v8486 = vld [vmem:[%s13 + $0x18] sm:$0xff]
  %v8487 = vld [vmem:[%s13 + $0x20] sm:$0xff]
  %v8488 = vld [vmem:[%s13 + $0x28] sm:$0xff]
  %v8537 = vunpack.c.l.b16 %v8435
  %v8538 = vunpack.c.h.b16 %v8435
  %v8539 = vunpack.c.l.b16 %v8436
  %v8540 = vunpack.c.h.b16 %v8436
  %v8541 = vunpack.c.l.b16 %v8437
  %v8542 = vunpack.c.h.b16 %v8437
  %v8543 = vunpack.c.l.b16 %v8438
  %v8544 = vunpack.c.h.b16 %v8438
  %v8545 = vunpack.c.l.b16 %v8439
  %v8546 = vunpack.c.h.b16 %v8439
  %v8547 = vunpack.c.l.b16 %v8440
  %v8548 = vunpack.c.h.b16 %v8440
  %v8549 = vunpack.c.l.b16 %v8441
  %v8550 = vunpack.c.h.b16 %v8441
  %v8551 = vunpack.c.l.b16 %v8442
  %v8552 = vunpack.c.h.b16 %v8442
  %v8553 = vunpack.c.l.b16 %v8443
  %v8554 = vunpack.c.h.b16 %v8443
  %v8555 = vunpack.c.l.b16 %v8444
  %v8556 = vunpack.c.h.b16 %v8444
  %v8557 = vunpack.c.l.b16 %v8445
  %v8558 = vunpack.c.h.b16 %v8445
  %v8559 = vunpack.c.l.b16 %v8446
  %v8560 = vunpack.c.h.b16 %v8446
  %v8561 = vunpack.c.l.b16 %v8447
  %v8562 = vunpack.c.h.b16 %v8447
  %v8563 = vunpack.c.l.b16 %v8448
  %v8564 = vunpack.c.h.b16 %v8448
  %v8565 = vunpack.c.l.b16 %v8449
  %v8566 = vunpack.c.h.b16 %v8449
  %v8567 = vunpack.c.l.b16 %v8450
  %v8568 = vunpack.c.h.b16 %v8450
  %v8569 = vunpack.c.l.b16 %v8451
  %v8570 = vunpack.c.h.b16 %v8451
  %v8571 = vunpack.c.l.b16 %v8452
  %v8572 = vunpack.c.h.b16 %v8452
  %v8573 = vunpack.c.l.b16 %v8453
  %v8574 = vunpack.c.h.b16 %v8453
  %v8575 = vunpack.c.l.b16 %v8454
  %v8576 = vunpack.c.h.b16 %v8454
  %v8577 = vunpack.c.l.b16 %v8455
  %v8578 = vunpack.c.h.b16 %v8455
  %v8579 = vunpack.c.l.b16 %v8456
  %v8580 = vunpack.c.h.b16 %v8456
  %v8581 = vunpack.c.l.b16 %v8457
  %v8582 = vunpack.c.h.b16 %v8457
  %v8583 = vunpack.c.l.b16 %v8458
  %v8584 = vunpack.c.h.b16 %v8458
  %v8585 = vunpack.c.l.b16 %v8459
  %v8586 = vunpack.c.h.b16 %v8459
  %v8587 = vunpack.c.l.b16 %v8460
  %v8588 = vunpack.c.h.b16 %v8460
  %v8589 = vunpack.c.l.b16 %v8461
  %v8590 = vunpack.c.h.b16 %v8461
  %v8591 = vunpack.c.l.b16 %v8462
  %v8592 = vunpack.c.h.b16 %v8462
  %v8593 = vunpack.c.l.b16 %v8463
  %v8594 = vunpack.c.h.b16 %v8463
  %v8595 = vunpack.c.l.b16 %v8464
  %v8596 = vunpack.c.h.b16 %v8464
  %v8597 = vunpack.c.l.b16 %v8465
  %v8598 = vunpack.c.h.b16 %v8465
  %v8599 = vunpack.c.l.b16 %v8466
  %v8600 = vunpack.c.h.b16 %v8466
  %v8601 = vunpack.c.l.b16 %v8467
  %v8602 = vunpack.c.h.b16 %v8467
  %v8603 = vunpack.c.l.b16 %v8468
  %v8604 = vunpack.c.h.b16 %v8468
  %v8605 = vunpack.c.l.b16 %v8469
  %v8606 = vunpack.c.h.b16 %v8469
  %v8607 = vunpack.c.l.b16 %v8470
  %v8608 = vunpack.c.h.b16 %v8470
  %v8609 = vunpack.c.l.b16 %v8471
  %v8610 = vunpack.c.h.b16 %v8471
  %v8611 = vunpack.c.l.b16 %v8472
  %v8612 = vunpack.c.h.b16 %v8472
  %v8613 = vunpack.c.l.b16 %v8473
  %v8614 = vunpack.c.h.b16 %v8473
  %v8615 = vunpack.c.l.b16 %v8474
  %v8616 = vunpack.c.h.b16 %v8474
  %v8617 = vunpack.c.l.b16 %v8475
  %v8618 = vunpack.c.h.b16 %v8475
  %v8619 = vunpack.c.l.b16 %v8476
  %v8620 = vunpack.c.h.b16 %v8476
  %v8621 = vunpack.c.l.b16 %v8477
  %v8622 = vunpack.c.h.b16 %v8477
  %v8623 = vunpack.c.l.b16 %v8478
  %v8624 = vunpack.c.h.b16 %v8478
  %v8625 = vunpack.c.l.b16 %v8479
  %v8626 = vunpack.c.h.b16 %v8479
  %v8627 = vunpack.c.l.b16 %v8480
  %v8628 = vunpack.c.h.b16 %v8480
  %v8629 = vunpack.c.l.b16 %v8481
  %v8630 = vunpack.c.h.b16 %v8481
  %v8631 = vunpack.c.l.b16 %v8482
  %v8632 = vunpack.c.h.b16 %v8482
  %v8633 = vpack.c.b16 %v8543, %v8537
  %v8634 = vpack.c.b16 %v8544, %v8538
  %v8635 = vpack.c.b16 %v8545, %v8539
  %v8636 = vpack.c.b16 %v8546, %v8540
  %v8637 = vpack.c.b16 %v8547, %v8541
  %v8638 = vpack.c.b16 %v8548, %v8542
  %v8639 = vpack.c.b16 %v8555, %v8549
  %v8640 = vpack.c.b16 %v8556, %v8550
  %v8641 = vpack.c.b16 %v8557, %v8551
  %v8642 = vpack.c.b16 %v8558, %v8552
  %v8643 = vpack.c.b16 %v8559, %v8553
  %v8644 = vpack.c.b16 %v8560, %v8554
  %v8645 = vpack.c.b16 %v8567, %v8561
  %v8646 = vpack.c.b16 %v8568, %v8562
  %v8647 = vpack.c.b16 %v8569, %v8563
  %v8648 = vpack.c.b16 %v8570, %v8564
  %v8649 = vpack.c.b16 %v8571, %v8565
  %v8650 = vpack.c.b16 %v8572, %v8566
  %v8651 = vpack.c.b16 %v8579, %v8573
  %v8652 = vpack.c.b16 %v8580, %v8574
  %v8653 = vpack.c.b16 %v8581, %v8575
  %v8654 = vpack.c.b16 %v8582, %v8576
  %v8655 = vpack.c.b16 %v8583, %v8577
  %v8656 = vpack.c.b16 %v8584, %v8578
  %v8657 = vpack.c.b16 %v8591, %v8585
  %v8658 = vpack.c.b16 %v8592, %v8586
  %v8659 = vpack.c.b16 %v8593, %v8587
  %v8660 = vpack.c.b16 %v8594, %v8588
  %v8661 = vpack.c.b16 %v8595, %v8589
  %v8662 = vpack.c.b16 %v8596, %v8590
  %v8663 = vpack.c.b16 %v8603, %v8597
  %v8664 = vpack.c.b16 %v8604, %v8598
  %v8665 = vpack.c.b16 %v8605, %v8599
  %v8666 = vpack.c.b16 %v8606, %v8600
  %v8667 = vpack.c.b16 %v8607, %v8601
  %v8668 = vpack.c.b16 %v8608, %v8602
  %v8669 = vpack.c.b16 %v8615, %v8609
  %v8670 = vpack.c.b16 %v8616, %v8610
  %v8671 = vpack.c.b16 %v8617, %v8611
  %v8672 = vpack.c.b16 %v8618, %v8612
  %v8673 = vpack.c.b16 %v8619, %v8613
  %v8674 = vpack.c.b16 %v8620, %v8614
  %v8675 = vpack.c.b16 %v8627, %v8621
  %v8676 = vpack.c.b16 %v8628, %v8622
  %v8677 = vpack.c.b16 %v8629, %v8623
  %v8678 = vpack.c.b16 %v8630, %v8624
  %v8679 = vpack.c.b16 %v8631, %v8625
  %v8680 = vpack.c.b16 %v8632, %v8626
  %8729 = vmatprep.subr.bf16.mxu0 %v8676
  %8730 = vmatpush1.bf16.msra.mxu0 %v8675
  %8731 = vmatprep.subr.bf16.mxu0 %v8670
  %8732 = vmatpush1.bf16.msra.mxu0 %v8669
  %8733 = vmatprep.subr.bf16.mxu0 %v8664
  %8734 = vmatpush1.bf16.msra.mxu0 %v8663
  %8735 = vmatprep.subr.bf16.mxu0 %v8658
  %8736 = vmatpush1.bf16.msra.mxu0 %v8657
  %8737 = vmatprep.subr.bf16.mxu0 %v8652
  %8738 = vmatpush1.bf16.msra.mxu0 %v8651
  %8739 = vmatprep.subr.bf16.mxu0 %v8646
  %8740 = vmatpush1.bf16.msra.mxu0 %v8645
  %8741 = vmatprep.subr.bf16.mxu0 %v8640
  %8742 = vmatpush1.bf16.msra.mxu0 %v8639
  %8743 = vmatprep.subr.bf16.mxu0 %v8634
  %8744 = vmatpush1.bf16.msra.mxu0 %v8633
  %8745 = vmatprep.subr.bf16.mxu0 0
  %8746 = vmatpush2.bf16.msra.mxu0 0
  %8747 = vmatprep.subr.bf16.mxu0 0
  %8748 = vmatpush2.bf16.msra.mxu0 0
  %8749 = vmatprep.subr.bf16.mxu0 0
  %8750 = vmatpush2.bf16.msra.mxu0 0
  %8751 = vmatprep.subr.bf16.mxu0 0
  %8752 = vmatpush2.bf16.msra.mxu0 0
  %8753 = vmatprep.subr.bf16.mxu0 0
  %8754 = vmatpush2.bf16.msra.mxu0 0
  %8755 = vmatprep.subr.bf16.mxu0 0
  %8756 = vmatpush2.bf16.msra.mxu0 0
  %8757 = vmatprep.subr.bf16.mxu0 0
  %8758 = vmatpush2.bf16.msra.mxu0 0
  %8759 = vmatprep.subr.bf16.mxu0 0
  %8760 = vmatpush2.bf16.msra.mxu0 0
  %8761 = vmatprep.mubr.bf16.mxu0 0
  %8762 = vmatmul.mubr.bf16.gmra.mxu0 %v8434
  %v8763 = vpop.f32.mrf.mxu0
  %v8764 = vadd.f32 %v8483, %v8763
  %v8765 = vpop.f32.mrf.mxu0
  %v8766 = vadd.f32 %v8484, %v8765
  %v8767 = vpop.f32.mrf.mxu0
  %v8768 = vpop.f32.mrf.mxu0
  %8769 = vdwg.mxu0
  %8770 = vmatprep.subr.bf16.mxu0 %v8678
  %8771 = vmatpush1.bf16.msra.mxu0 %v8677
  %8772 = vmatprep.subr.bf16.mxu0 %v8672
  %8773 = vmatpush1.bf16.msra.mxu0 %v8671
  %8774 = vmatprep.subr.bf16.mxu0 %v8666
  %8775 = vmatpush1.bf16.msra.mxu0 %v8665
  %8776 = vmatprep.subr.bf16.mxu0 %v8660
  %8777 = vmatpush1.bf16.msra.mxu0 %v8659
  %8778 = vmatprep.subr.bf16.mxu0 %v8654
  %8779 = vmatpush1.bf16.msra.mxu0 %v8653
  %8780 = vmatprep.subr.bf16.mxu0 %v8648
  %8781 = vmatpush1.bf16.msra.mxu0 %v8647
  %8782 = vmatprep.subr.bf16.mxu0 %v8642
  %8783 = vmatpush1.bf16.msra.mxu0 %v8641
  %8784 = vmatprep.subr.bf16.mxu0 %v8636
  %8785 = vmatpush1.bf16.msra.mxu0 %v8635
  %8786 = vmatprep.subr.bf16.mxu0 0
  %8787 = vmatpush2.bf16.msra.mxu0 0
  %8788 = vmatprep.subr.bf16.mxu0 0
  %8789 = vmatpush2.bf16.msra.mxu0 0
  %8790 = vmatprep.subr.bf16.mxu0 0
  %8791 = vmatpush2.bf16.msra.mxu0 0
  %8792 = vmatprep.subr.bf16.mxu0 0
  %8793 = vmatpush2.bf16.msra.mxu0 0
  %8794 = vmatprep.subr.bf16.mxu0 0
  %8795 = vmatpush2.bf16.msra.mxu0 0
  %8796 = vmatprep.subr.bf16.mxu0 0
  %8797 = vmatpush2.bf16.msra.mxu0 0
  %8798 = vmatprep.subr.bf16.mxu0 0
  %8799 = vmatpush2.bf16.msra.mxu0 0
  %8800 = vmatprep.subr.bf16.mxu0 0
  %8801 = vmatpush2.bf16.msra.mxu0 0
  %8802 = vmatprep.mubr.bf16.mxu0 0
  %8803 = vmatmul.mubr.bf16.gmra.mxu0 %v8434
  %v8804 = vpop.f32.mrf.mxu0
  %v8805 = vadd.f32 %v8485, %v8804
  %v8806 = vpop.f32.mrf.mxu0
  %v8807 = vadd.f32 %v8486, %v8806
  %v8808 = vpop.f32.mrf.mxu0
  %v8809 = vpop.f32.mrf.mxu0
  %8810 = vdwg.mxu0
  %8811 = vmatprep.subr.bf16.mxu0 %v8680
  %8812 = vmatpush1.bf16.msra.mxu0 %v8679
  %8813 = vmatprep.subr.bf16.mxu0 %v8674
  %8814 = vmatpush1.bf16.msra.mxu0 %v8673
  %8815 = vmatprep.subr.bf16.mxu0 %v8668
  %8816 = vmatpush1.bf16.msra.mxu0 %v8667
  %8817 = vmatprep.subr.bf16.mxu0 %v8662
  %8818 = vmatpush1.bf16.msra.mxu0 %v8661
  %8819 = vmatprep.subr.bf16.mxu0 %v8656
  %8820 = vmatpush1.bf16.msra.mxu0 %v8655
  %8821 = vmatprep.subr.bf16.mxu0 %v8650
  %8822 = vmatpush1.bf16.msra.mxu0 %v8649
  %8823 = vmatprep.subr.bf16.mxu0 %v8644
  %8824 = vmatpush1.bf16.msra.mxu0 %v8643
  %8825 = vmatprep.subr.bf16.mxu0 %v8638
  %8826 = vmatpush1.bf16.msra.mxu0 %v8637
  %8827 = vmatprep.subr.bf16.mxu0 0
  %8828 = vmatpush2.bf16.msra.mxu0 0
  %8829 = vmatprep.subr.bf16.mxu0 0
  %8830 = vmatpush2.bf16.msra.mxu0 0
  %8831 = vmatprep.subr.bf16.mxu0 0
  %8832 = vmatpush2.bf16.msra.mxu0 0
  %8833 = vmatprep.subr.bf16.mxu0 0
  %8834 = vmatpush2.bf16.msra.mxu0 0
  %8835 = vmatprep.subr.bf16.mxu0 0
  %8836 = vmatpush2.bf16.msra.mxu0 0
  %8837 = vmatprep.subr.bf16.mxu0 0
  %8838 = vmatpush2.bf16.msra.mxu0 0
  %8839 = vmatprep.subr.bf16.mxu0 0
  %8840 = vmatpush2.bf16.msra.mxu0 0
  %8841 = vmatprep.subr.bf16.mxu0 0
  %8842 = vmatpush2.bf16.msra.mxu0 0
  %8843 = vmatprep.mubr.bf16.mxu0 0
  %8844 = vmatmul.mubr.bf16.gmra.mxu0 %v8434
  %v8845 = vpop.f32.mrf.mxu0
  %v8846 = vadd.f32 %v8487, %v8845
  %v8847 = vpop.f32.mrf.mxu0
  %v8848 = vadd.f32 %v8488, %v8847
  %v8849 = vpop.f32.mrf.mxu0
  %v8850 = vpop.f32.mrf.mxu0
  %8851 = vdwg.mxu0
  %v8852 = vxor.u32 %v8766, 2147483648
  %v8853 = vmul.f32 %v8852, 1.442695
  %v8854 = vpow.pop %v8853
  %v8855 = vadd.f32 %v8854, 1.0
  %v8856 = vrcp.pop %v8855
  %v8857 = vmul.f32 1.0, %v8856
  %v8858 = vld [vmem:[%s5] sm:$0xf]
  %v8859 = vld [vmem:[%s5 + $0x4] sm:$0xf]
  %v8860 = vld [vmem:[%s5 + $0x8] sm:$0xf]
  %v8861 = vld [vmem:[%s5 + $0xc] sm:$0xf]
  %v8862 = vld [vmem:[%s5 + $0x10] sm:$0xf]
  %v8863 = vld [vmem:[%s5 + $0x14] sm:$0xf]
  %v8864 = vld [vmem:[%s5 + $0x18] sm:$0xf]
  %v8865 = vld [vmem:[%s5 + $0x1c] sm:$0xf]
  %v8866 = vld [vmem:[%s5 + $0x20] sm:$0xf]
  %v8867 = vld [vmem:[%s5 + $0x24] sm:$0xf]
  %v8868 = vld [vmem:[%s5 + $0x28] sm:$0xf]
  %v8869 = vld [vmem:[%s5 + $0x2c] sm:$0xf]
  %v8870 = vld [vmem:[%s5 + $0x30] sm:$0xf]
  %v8871 = vld [vmem:[%s5 + $0x34] sm:$0xf]
  %v8872 = vld [vmem:[%s5 + $0x38] sm:$0xf]
  %v8873 = vld [vmem:[%s5 + $0x3c] sm:$0xf]
  %v8874 = vpack.c.bf16 %v8764, %v8764
  %v8891 = vunpack.c.l.b16 %v8858
  %v8892 = vunpack.c.l.b16 %v8859
  %v8893 = vunpack.c.l.b16 %v8860
  %v8894 = vunpack.c.l.b16 %v8861
  %v8895 = vunpack.c.l.b16 %v8862
  %v8896 = vunpack.c.l.b16 %v8863
  %v8897 = vunpack.c.l.b16 %v8864
  %v8898 = vunpack.c.l.b16 %v8865
  %v8899 = vunpack.c.l.b16 %v8866
  %v8900 = vunpack.c.l.b16 %v8867
  %v8901 = vunpack.c.l.b16 %v8868
  %v8902 = vunpack.c.l.b16 %v8869
  %v8903 = vunpack.c.l.b16 %v8870
  %v8904 = vunpack.c.l.b16 %v8871
  %v8905 = vunpack.c.l.b16 %v8872
  %v8906 = vunpack.c.l.b16 %v8873
  %v8907 = vpack.c.b16 %v8892, %v8891
  %v8908 = vpack.c.b16 %v8894, %v8893
  %v8909 = vpack.c.b16 %v8896, %v8895
  %v8910 = vpack.c.b16 %v8898, %v8897
  %v8911 = vpack.c.b16 %v8900, %v8899
  %v8912 = vpack.c.b16 %v8902, %v8901
  %v8913 = vpack.c.b16 %v8904, %v8903
  %v8914 = vpack.c.b16 %v8906, %v8905
  %v8916 = vsel %vm1295, %v8907, 0
  %v8919 = vsel %vm1295, %v8908, 0
  %v8922 = vsel %vm1295, %v8909, 0
  %v8925 = vsel %vm1295, %v8910, 0
  %v8928 = vsel %vm1295, %v8911, 0
  %v8931 = vsel %vm1295, %v8912, 0
  %v8934 = vsel %vm1295, %v8913, 0
  %v8937 = vsel %vm1295, %v8914, 0
  %v8940 = vsel %vm1320, %v8874, 0
  %8942 = vmatprep.subr.bf16.mxu0 0
  %8943 = vmatpush1.bf16.msra.mxu0 0
  %8944 = vmatprep.subr.bf16.mxu0 0
  %8945 = vmatpush1.bf16.msra.mxu0 0
  %8946 = vmatprep.subr.bf16.mxu0 0
  %8947 = vmatpush1.bf16.msra.mxu0 0
  %8948 = vmatprep.subr.bf16.mxu0 0
  %8949 = vmatpush1.bf16.msra.mxu0 0
  %8950 = vmatprep.subr.bf16.mxu0 0
  %8951 = vmatpush1.bf16.msra.mxu0 0
  %8952 = vmatprep.subr.bf16.mxu0 0
  %8953 = vmatpush1.bf16.msra.mxu0 0
  %8954 = vmatprep.subr.bf16.mxu0 0
  %8955 = vmatpush1.bf16.msra.mxu0 0
  %8956 = vmatprep.subr.bf16.mxu0 0
  %8957 = vmatpush1.bf16.msra.mxu0 %v8940
  %8958 = vmatprep.subr.bf16.mxu0 0
  %8959 = vmatpush2.bf16.msra.mxu0 0
  %8960 = vmatprep.subr.bf16.mxu0 0
  %8961 = vmatpush2.bf16.msra.mxu0 0
  %8962 = vmatprep.subr.bf16.mxu0 0
  %8963 = vmatpush2.bf16.msra.mxu0 0
  %8964 = vmatprep.subr.bf16.mxu0 0
  %8965 = vmatpush2.bf16.msra.mxu0 0
  %8966 = vmatprep.subr.bf16.mxu0 0
  %8967 = vmatpush2.bf16.msra.mxu0 0
  %8968 = vmatprep.subr.bf16.mxu0 0
  %8969 = vmatpush2.bf16.msra.mxu0 0
  %8970 = vmatprep.subr.bf16.mxu0 0
  %8971 = vmatpush2.bf16.msra.mxu0 0
  %8972 = vmatprep.subr.bf16.mxu0 0
  %8973 = vmatpush2.bf16.msra.mxu0 0
  %8974 = vmatprep.mubr.bf16.mxu0 0
  %8975 = vmatmul.mubr.bf16.gmra.mxu0 %v8916
  %v8976 = vpop.f32.mrf.mxu0
  %v8977 = vadd.f32 0.0, %v8976
  %v8978 = vpop.f32.mrf.mxu0
  %v8979 = vpop.f32.mrf.mxu0
  %v8980 = vadd.f32 0.0, %v8979
  %v8981 = vpop.f32.mrf.mxu0
  %8982 = vmatprep.mubr.bf16.mxu0 0
  %8983 = vmatmul.mubr.bf16.gmra.mxu0 %v8919
  %v8984 = vpop.f32.mrf.mxu0
  %v8985 = vadd.f32 0.0, %v8984
  %v8986 = vpop.f32.mrf.mxu0
  %v8987 = vpop.f32.mrf.mxu0
  %v8988 = vadd.f32 0.0, %v8987
  %v8989 = vpop.f32.mrf.mxu0
  %8990 = vmatprep.mubr.bf16.mxu0 0
  %8991 = vmatmul.mubr.bf16.gmra.mxu0 %v8922
  %v8992 = vpop.f32.mrf.mxu0
  %v8993 = vadd.f32 0.0, %v8992
  %v8994 = vpop.f32.mrf.mxu0
  %v8995 = vpop.f32.mrf.mxu0
  %v8996 = vadd.f32 0.0, %v8995
  %v8997 = vpop.f32.mrf.mxu0
  %8998 = vmatprep.mubr.bf16.mxu0 0
  %8999 = vmatmul.mubr.bf16.gmra.mxu0 %v8925
  %v9000 = vpop.f32.mrf.mxu0
  %v9001 = vadd.f32 0.0, %v9000
  %v9002 = vpop.f32.mrf.mxu0
  %v9003 = vpop.f32.mrf.mxu0
  %v9004 = vadd.f32 0.0, %v9003
  %v9005 = vpop.f32.mrf.mxu0
  %9006 = vmatprep.mubr.bf16.mxu0 0
  %9007 = vmatmul.mubr.bf16.gmra.mxu0 %v8928
  %v9008 = vpop.f32.mrf.mxu0
  %v9009 = vadd.f32 0.0, %v9008
  %v9010 = vpop.f32.mrf.mxu0
  %v9011 = vpop.f32.mrf.mxu0
  %v9012 = vadd.f32 0.0, %v9011
  %v9013 = vpop.f32.mrf.mxu0
  %9014 = vmatprep.mubr.bf16.mxu0 0
  %9015 = vmatmul.mubr.bf16.gmra.mxu0 %v8931
  %v9016 = vpop.f32.mrf.mxu0
  %v9017 = vadd.f32 0.0, %v9016
  %v9018 = vpop.f32.mrf.mxu0
  %v9019 = vpop.f32.mrf.mxu0
  %v9020 = vadd.f32 0.0, %v9019
  %v9021 = vpop.f32.mrf.mxu0
  %9022 = vmatprep.mubr.bf16.mxu0 0
  %9023 = vmatmul.mubr.bf16.gmra.mxu0 %v8934
  %v9024 = vpop.f32.mrf.mxu0
  %v9025 = vadd.f32 0.0, %v9024
  %v9026 = vpop.f32.mrf.mxu0
  %v9027 = vpop.f32.mrf.mxu0
  %v9028 = vadd.f32 0.0, %v9027
  %v9029 = vpop.f32.mrf.mxu0
  %9030 = vmatprep.mubr.bf16.mxu0 0
  %9031 = vmatmul.mubr.bf16.gmra.mxu0 %v8937
  %v9032 = vpop.f32.mrf.mxu0
  %v9033 = vadd.f32 0.0, %v9032
  %v9034 = vpop.f32.mrf.mxu0
  %v9035 = vpop.f32.mrf.mxu0
  %v9036 = vadd.f32 0.0, %v9035
  %v9037 = vpop.f32.mrf.mxu0
  %9038 = vdwg.mxu0
  %v9039 = vld [vmem:[#allocation2] sm:$0xff]
  %v9040 = vld [vmem:[#allocation2 + $0x8] sm:$0xff]
  %v9041 = vld [vmem:[#allocation2 + $0x10] sm:$0xff]
  %v9042 = vld [vmem:[#allocation2 + $0x18] sm:$0xff]
  %v9043 = vld [vmem:[#allocation2 + $0x20] sm:$0xff]
  %v9044 = vld [vmem:[#allocation2 + $0x28] sm:$0xff]
  %v9045 = vld [vmem:[#allocation2 + $0x30] sm:$0xff]
  %v9046 = vld [vmem:[#allocation2 + $0x38] sm:$0xff]
  %v9047 = vld [vmem:[#allocation2 + $0x40] sm:$0xff]
  %v9048 = vld [vmem:[#allocation2 + $0x48] sm:$0xff]
  %v9049 = vld [vmem:[#allocation2 + $0x50] sm:$0xff]
  %v9050 = vld [vmem:[#allocation2 + $0x58] sm:$0xff]
  %v9051 = vld [vmem:[#allocation2 + $0x60] sm:$0xff]
  %v9052 = vld [vmem:[#allocation2 + $0x68] sm:$0xff]
  %v9053 = vld [vmem:[#allocation2 + $0x70] sm:$0xff]
  %v9054 = vld [vmem:[#allocation2 + $0x78] sm:$0xff]
  %v9055 = vadd.f32 %v9039, %v8977
  %v9056 = vadd.f32 %v9040, %v8980
  %v9057 = vadd.f32 %v9041, %v8985
  %v9058 = vadd.f32 %v9042, %v8988
  %v9059 = vadd.f32 %v9043, %v8993
  %v9060 = vadd.f32 %v9044, %v8996
  %v9061 = vadd.f32 %v9045, %v9001
  %v9062 = vadd.f32 %v9046, %v9004
  %v9063 = vadd.f32 %v9047, %v9009
  %v9064 = vadd.f32 %v9048, %v9012
  %v9065 = vadd.f32 %v9049, %v9017
  %v9066 = vadd.f32 %v9050, %v9020
  %v9067 = vadd.f32 %v9051, %v9025
  %v9068 = vadd.f32 %v9052, %v9028
  %v9069 = vadd.f32 %v9053, %v9033
  %v9070 = vadd.f32 %v9054, %v9036
  %v9071 = vmax.f32 %v9055, 0.0
  %v9072 = vmax.f32 %v9056, 0.0
  %v9073 = vmax.f32 %v9057, 0.0
  %v9074 = vmax.f32 %v9058, 0.0
  %v9075 = vmax.f32 %v9059, 0.0
  %v9076 = vmax.f32 %v9060, 0.0
  %v9077 = vmax.f32 %v9061, 0.0
  %v9078 = vmax.f32 %v9062, 0.0
  %v9079 = vmax.f32 %v9063, 0.0
  %v9080 = vmax.f32 %v9064, 0.0
  %v9081 = vmax.f32 %v9065, 0.0
  %v9082 = vmax.f32 %v9066, 0.0
  %v9083 = vmax.f32 %v9067, 0.0
  %v9084 = vmax.f32 %v9068, 0.0
  %v9085 = vmax.f32 %v9069, 0.0
  %v9086 = vmax.f32 %v9070, 0.0
  %v9087 = vld [vmem:[%s9] sm:$0xff]
  %v9088 = vld [vmem:[%s9 + $0x8] sm:$0xff]
  %v9089 = vld [vmem:[%s9 + $0x10] sm:$0xff]
  %v9090 = vld [vmem:[%s9 + $0x18] sm:$0xff]
  %v9091 = vld [vmem:[%s9 + $0x20] sm:$0xff]
  %v9092 = vld [vmem:[%s9 + $0x28] sm:$0xff]
  %v9093 = vld [vmem:[%s9 + $0x30] sm:$0xff]
  %v9094 = vld [vmem:[%s9 + $0x38] sm:$0xff]
  %v9095 = vld [vmem:[%s9 + $0x40] sm:$0xff]
  %v9096 = vld [vmem:[%s9 + $0x48] sm:$0xff]
  %v9097 = vld [vmem:[%s9 + $0x50] sm:$0xff]
  %v9098 = vld [vmem:[%s9 + $0x58] sm:$0xff]
  %v9099 = vld [vmem:[%s9 + $0x60] sm:$0xff]
  %v9100 = vld [vmem:[%s9 + $0x68] sm:$0xff]
  %v9101 = vld [vmem:[%s9 + $0x70] sm:$0xff]
  %v9102 = vld [vmem:[%s9 + $0x78] sm:$0xff]
  %v9103 = vmul.f32 %v9071, %v9087
  %v9104 = vmul.f32 %v9072, %v9088
  %v9105 = vmul.f32 %v9073, %v9089
  %v9106 = vmul.f32 %v9074, %v9090
  %v9107 = vmul.f32 %v9075, %v9091
  %v9108 = vmul.f32 %v9076, %v9092
  %v9109 = vmul.f32 %v9077, %v9093
  %v9110 = vmul.f32 %v9078, %v9094
  %v9111 = vmul.f32 %v9079, %v9095
  %v9112 = vmul.f32 %v9080, %v9096
  %v9113 = vmul.f32 %v9081, %v9097
  %v9114 = vmul.f32 %v9082, %v9098
  %v9115 = vmul.f32 %v9083, %v9099
  %v9116 = vmul.f32 %v9084, %v9100
  %v9117 = vmul.f32 %v9085, %v9101
  %v9118 = vmul.f32 %v9086, %v9102
  %9119 = vadd.xlane.f32.xlu0 %v9103
  %v9120 = vpop.xlane.xlu0 %9119
  %9121 = vadd.xlane.f32.xlu0 %v9104
  %v9122 = vpop.xlane.xlu0 %9121
  %9123 = vadd.xlane.f32.xlu0 %v9105
  %v9124 = vpop.xlane.xlu0 %9123
  %9125 = vadd.xlane.f32.xlu0 %v9106
  %v9126 = vpop.xlane.xlu0 %9125
  %9127 = vadd.xlane.f32.xlu0 %v9107
  %v9128 = vpop.xlane.xlu0 %9127
  %9129 = vadd.xlane.f32.xlu0 %v9108
  %v9130 = vpop.xlane.xlu0 %9129
  %9131 = vadd.xlane.f32.xlu0 %v9109
  %v9132 = vpop.xlane.xlu0 %9131
  %9133 = vadd.xlane.f32.xlu0 %v9110
  %v9134 = vpop.xlane.xlu0 %9133
  %9135 = vadd.xlane.f32.xlu0 %v9111
  %v9136 = vpop.xlane.xlu0 %9135
  %9137 = vadd.xlane.f32.xlu0 %v9112
  %v9138 = vpop.xlane.xlu0 %9137
  %9139 = vadd.xlane.f32.xlu0 %v9113
  %v9140 = vpop.xlane.xlu0 %9139
  %9141 = vadd.xlane.f32.xlu0 %v9114
  %v9142 = vpop.xlane.xlu0 %9141
  %9143 = vadd.xlane.f32.xlu0 %v9115
  %v9144 = vpop.xlane.xlu0 %9143
  %9145 = vadd.xlane.f32.xlu0 %v9116
  %v9146 = vpop.xlane.xlu0 %9145
  %9147 = vadd.xlane.f32.xlu0 %v9117
  %v9148 = vpop.xlane.xlu0 %9147
  %9149 = vadd.xlane.f32.xlu0 %v9118
  %v9150 = vpop.xlane.xlu0 %9149
  %v9151 = vmax.f32 %v9120, %v9122
  %v9152 = vrot.slane %v9151, 4
  %v9153 = vmax.f32 %v9151, %v9152
  %v9154 = vrot.slane %v9153, 2
  %v9155 = vmax.f32 %v9153, %v9154
  %v9156 = vrot.slane %v9155, 1
  %v9157 = vmax.f32 %v9155, %v9156
  %v9158 = vmax.f32 %v9124, %v9126
  %v9159 = vrot.slane %v9158, 4
  %v9160 = vmax.f32 %v9158, %v9159
  %v9161 = vrot.slane %v9160, 2
  %v9162 = vmax.f32 %v9160, %v9161
  %v9163 = vrot.slane %v9162, 1
  %v9164 = vmax.f32 %v9162, %v9163
  %v9165 = vmax.f32 %v9128, %v9130
  %v9166 = vrot.slane %v9165, 4
  %v9167 = vmax.f32 %v9165, %v9166
  %v9168 = vrot.slane %v9167, 2
  %v9169 = vmax.f32 %v9167, %v9168
  %v9170 = vrot.slane %v9169, 1
  %v9171 = vmax.f32 %v9169, %v9170
  %v9172 = vmax.f32 %v9132, %v9134
  %v9173 = vrot.slane %v9172, 4
  %v9174 = vmax.f32 %v9172, %v9173
  %v9175 = vrot.slane %v9174, 2
  %v9176 = vmax.f32 %v9174, %v9175
  %v9177 = vrot.slane %v9176, 1
  %v9178 = vmax.f32 %v9176, %v9177
  %v9179 = vmax.f32 %v9136, %v9138
  %v9180 = vrot.slane %v9179, 4
  %v9181 = vmax.f32 %v9179, %v9180
  %v9182 = vrot.slane %v9181, 2
  %v9183 = vmax.f32 %v9181, %v9182
  %v9184 = vrot.slane %v9183, 1
  %v9185 = vmax.f32 %v9183, %v9184
  %v9186 = vmax.f32 %v9140, %v9142
  %v9187 = vrot.slane %v9186, 4
  %v9188 = vmax.f32 %v9186, %v9187
  %v9189 = vrot.slane %v9188, 2
  %v9190 = vmax.f32 %v9188, %v9189
  %v9191 = vrot.slane %v9190, 1
  %v9192 = vmax.f32 %v9190, %v9191
  %v9193 = vmax.f32 %v9144, %v9146
  %v9194 = vrot.slane %v9193, 4
  %v9195 = vmax.f32 %v9193, %v9194
  %v9196 = vrot.slane %v9195, 2
  %v9197 = vmax.f32 %v9195, %v9196
  %v9198 = vrot.slane %v9197, 1
  %v9199 = vmax.f32 %v9197, %v9198
  %v9200 = vmax.f32 %v9148, %v9150
  %v9201 = vrot.slane %v9200, 4
  %v9202 = vmax.f32 %v9200, %v9201
  %v9203 = vrot.slane %v9202, 2
  %v9204 = vmax.f32 %v9202, %v9203
  %v9205 = vrot.slane %v9204, 1
  %v9206 = vmax.f32 %v9204, %v9205
  %v9207 = vsub.f32 %v9120, %v9157
  %v9208 = vsub.f32 %v9122, %v9157
  %v9209 = vsub.f32 %v9124, %v9164
  %v9210 = vsub.f32 %v9126, %v9164
  %v9211 = vsub.f32 %v9128, %v9171
  %v9212 = vsub.f32 %v9130, %v9171
  %v9213 = vsub.f32 %v9132, %v9178
  %v9214 = vsub.f32 %v9134, %v9178
  %v9215 = vsub.f32 %v9136, %v9185
  %v9216 = vsub.f32 %v9138, %v9185
  %v9217 = vsub.f32 %v9140, %v9192
  %v9218 = vsub.f32 %v9142, %v9192
  %v9219 = vsub.f32 %v9144, %v9199
  %v9220 = vsub.f32 %v9146, %v9199
  %v9221 = vsub.f32 %v9148, %v9206
  %v9222 = vsub.f32 %v9150, %v9206
  %v9223 = vmul.f32 %v9207, 1.442695
  %v9224 = vpow.pop %v9223
  %v9225 = vmul.f32 %v9208, 1.442695
  %v9226 = vpow.pop %v9225
  %v9227 = vmul.f32 %v9209, 1.442695
  %v9228 = vpow.pop %v9227
  %v9229 = vmul.f32 %v9210, 1.442695
  %v9230 = vpow.pop %v9229
  %v9231 = vmul.f32 %v9211, 1.442695
  %v9232 = vpow.pop %v9231
  %v9233 = vmul.f32 %v9212, 1.442695
  %v9234 = vpow.pop %v9233
  %v9235 = vmul.f32 %v9213, 1.442695
  %v9236 = vpow.pop %v9235
  %v9237 = vmul.f32 %v9214, 1.442695
  %v9238 = vpow.pop %v9237
  %v9239 = vmul.f32 %v9215, 1.442695
  %v9240 = vpow.pop %v9239
  %v9241 = vmul.f32 %v9216, 1.442695
  %v9242 = vpow.pop %v9241
  %v9243 = vmul.f32 %v9217, 1.442695
  %v9244 = vpow.pop %v9243
  %v9245 = vmul.f32 %v9218, 1.442695
  %v9246 = vpow.pop %v9245
  %v9247 = vmul.f32 %v9219, 1.442695
  %v9248 = vpow.pop %v9247
  %v9249 = vmul.f32 %v9220, 1.442695
  %v9250 = vpow.pop %v9249
  %v9251 = vmul.f32 %v9221, 1.442695
  %v9252 = vpow.pop %v9251
  %v9253 = vmul.f32 %v9222, 1.442695
  %v9254 = vpow.pop %v9253
  %v9255 = vadd.f32 %v9224, %v9226
  %v9256 = vrot.slane %v9255, 4
  %v9257 = vadd.f32 %v9255, %v9256
  %v9258 = vrot.slane %v9257, 2
  %v9259 = vadd.f32 %v9257, %v9258
  %v9260 = vrot.slane %v9259, 1
  %v9261 = vadd.f32 %v9259, %v9260
  %v9262 = vadd.f32 %v9228, %v9230
  %v9263 = vrot.slane %v9262, 4
  %v9264 = vadd.f32 %v9262, %v9263
  %v9265 = vrot.slane %v9264, 2
  %v9266 = vadd.f32 %v9264, %v9265
  %v9267 = vrot.slane %v9266, 1
  %v9268 = vadd.f32 %v9266, %v9267
  %v9269 = vadd.f32 %v9232, %v9234
  %v9270 = vrot.slane %v9269, 4
  %v9271 = vadd.f32 %v9269, %v9270
  %v9272 = vrot.slane %v9271, 2
  %v9273 = vadd.f32 %v9271, %v9272
  %v9274 = vrot.slane %v9273, 1
  %v9275 = vadd.f32 %v9273, %v9274
  %v9276 = vadd.f32 %v9236, %v9238
  %v9277 = vrot.slane %v9276, 4
  %v9278 = vadd.f32 %v9276, %v9277
  %v9279 = vrot.slane %v9278, 2
  %v9280 = vadd.f32 %v9278, %v9279
  %v9281 = vrot.slane %v9280, 1
  %v9282 = vadd.f32 %v9280, %v9281
  %v9283 = vadd.f32 %v9240, %v9242
  %v9284 = vrot.slane %v9283, 4
  %v9285 = vadd.f32 %v9283, %v9284
  %v9286 = vrot.slane %v9285, 2
  %v9287 = vadd.f32 %v9285, %v9286
  %v9288 = vrot.slane %v9287, 1
  %v9289 = vadd.f32 %v9287, %v9288
  %v9290 = vadd.f32 %v9244, %v9246
  %v9291 = vrot.slane %v9290, 4
  %v9292 = vadd.f32 %v9290, %v9291
  %v9293 = vrot.slane %v9292, 2
  %v9294 = vadd.f32 %v9292, %v9293
  %v9295 = vrot.slane %v9294, 1
  %v9296 = vadd.f32 %v9294, %v9295
  %v9297 = vadd.f32 %v9248, %v9250
  %v9298 = vrot.slane %v9297, 4
  %v9299 = vadd.f32 %v9297, %v9298
  %v9300 = vrot.slane %v9299, 2
  %v9301 = vadd.f32 %v9299, %v9300
  %v9302 = vrot.slane %v9301, 1
  %v9303 = vadd.f32 %v9301, %v9302
  %v9304 = vadd.f32 %v9252, %v9254
  %v9305 = vrot.slane %v9304, 4
  %v9306 = vadd.f32 %v9304, %v9305
  %v9307 = vrot.slane %v9306, 2
  %v9308 = vadd.f32 %v9306, %v9307
  %v9309 = vrot.slane %v9308, 1
  %v9310 = vadd.f32 %v9308, %v9309
  %v9311 = vrcp.pop %v9261
  %v9312 = vrcp.pop %v9268
  %v9313 = vrcp.pop %v9275
  %v9314 = vrcp.pop %v9282
  %v9315 = vrcp.pop %v9289
  %v9316 = vrcp.pop %v9296
  %v9317 = vrcp.pop %v9303
  %v9318 = vrcp.pop %v9310
  %v9319 = vmul.f32 %v9224, %v9311
  %v9320 = vmul.f32 %v9226, %v9311
  %v9321 = vmul.f32 %v9228, %v9312
  %v9322 = vmul.f32 %v9230, %v9312
  %v9323 = vmul.f32 %v9232, %v9313
  %v9324 = vmul.f32 %v9234, %v9313
  %v9325 = vmul.f32 %v9236, %v9314
  %v9326 = vmul.f32 %v9238, %v9314
  %v9327 = vmul.f32 %v9240, %v9315
  %v9328 = vmul.f32 %v9242, %v9315
  %v9329 = vmul.f32 %v9244, %v9316
  %v9330 = vmul.f32 %v9246, %v9316
  %v9331 = vmul.f32 %v9248, %v9317
  %v9332 = vmul.f32 %v9250, %v9317
  %v9333 = vmul.f32 %v9252, %v9318
  %v9334 = vmul.f32 %v9254, %v9318
  %v9335 = vld [vmem:[%s4] sm:$0xf]
  %v9336 = vld [vmem:[%s0] sm:$0xf]
  %v9337 = vld [vmem:[%s0 + $0x4] sm:$0xf]
  %v9338 = vld [vmem:[%s0 + $0x8] sm:$0xf]
  %v9339 = vld [vmem:[%s0 + $0xc] sm:$0xf]
  %v9340 = vld [vmem:[%s0 + $0x10] sm:$0xf]
  %v9341 = vld [vmem:[%s0 + $0x14] sm:$0xf]
  %v9342 = vld [vmem:[%s0 + $0x18] sm:$0xf]
  %v9343 = vld [vmem:[%s0 + $0x1c] sm:$0xf]
  %v9344 = vld [vmem:[%s0 + $0x20] sm:$0xf]
  %v9345 = vld [vmem:[%s0 + $0x24] sm:$0xf]
  %v9346 = vld [vmem:[%s0 + $0x28] sm:$0xf]
  %v9347 = vld [vmem:[%s0 + $0x2c] sm:$0xf]
  %v9348 = vld [vmem:[%s0 + $0x30] sm:$0xf]
  %v9349 = vld [vmem:[%s0 + $0x34] sm:$0xf]
  %v9350 = vld [vmem:[%s0 + $0x38] sm:$0xf]
  %v9351 = vld [vmem:[%s0 + $0x3c] sm:$0xf]
  %v9352 = vpack.c.bf16 %v9320, %v9319
  %v9353 = vpack.c.bf16 %v9322, %v9321
  %v9354 = vpack.c.bf16 %v9324, %v9323
  %v9355 = vpack.c.bf16 %v9326, %v9325
  %v9356 = vpack.c.bf16 %v9328, %v9327
  %v9357 = vpack.c.bf16 %v9330, %v9329
  %v9358 = vpack.c.bf16 %v9332, %v9331
  %v9359 = vpack.c.bf16 %v9334, %v9333
  %v9369 = vunpack.c.l.s4 839922192
  %v9370 = vunpack.c.0.s8 %v9369
  %v9371 = vlaneseq
  %v9372 = vshrl.u32 %v9371, 7
  %v9373 = vsub.s32 %v9370, %v9372
  %v9374 = vrot.slane %v9352, %v9373
  %v9376 = vunpack.c.l.s4 1985246804
  %v9377 = vunpack.c.0.s8 %v9376
  %v9378 = vlaneseq
  %v9379 = vshrl.u32 %v9378, 7
  %v9380 = vsub.s32 %v9377, %v9379
  %v9381 = vrot.slane %v9352, %v9380
  %v9383 = vunpack.c.l.s4 839922192
  %v9384 = vunpack.c.0.s8 %v9383
  %v9385 = vlaneseq
  %v9386 = vshrl.u32 %v9385, 7
  %v9387 = vsub.s32 %v9384, %v9386
  %v9388 = vrot.slane %v9353, %v9387
  %v9390 = vunpack.c.l.s4 1985246804
  %v9391 = vunpack.c.0.s8 %v9390
  %v9392 = vlaneseq
  %v9393 = vshrl.u32 %v9392, 7
  %v9394 = vsub.s32 %v9391, %v9393
  %v9395 = vrot.slane %v9353, %v9394
  %v9397 = vunpack.c.l.s4 839922192
  %v9398 = vunpack.c.0.s8 %v9397
  %v9399 = vlaneseq
  %v9400 = vshrl.u32 %v9399, 7
  %v9401 = vsub.s32 %v9398, %v9400
  %v9402 = vrot.slane %v9354, %v9401
  %v9404 = vunpack.c.l.s4 1985246804
  %v9405 = vunpack.c.0.s8 %v9404
  %v9406 = vlaneseq
  %v9407 = vshrl.u32 %v9406, 7
  %v9408 = vsub.s32 %v9405, %v9407
  %v9409 = vrot.slane %v9354, %v9408
  %v9411 = vunpack.c.l.s4 839922192
  %v9412 = vunpack.c.0.s8 %v9411
  %v9413 = vlaneseq
  %v9414 = vshrl.u32 %v9413, 7
  %v9415 = vsub.s32 %v9412, %v9414
  %v9416 = vrot.slane %v9355, %v9415
  %v9418 = vunpack.c.l.s4 1985246804
  %v9419 = vunpack.c.0.s8 %v9418
  %v9420 = vlaneseq
  %v9421 = vshrl.u32 %v9420, 7
  %v9422 = vsub.s32 %v9419, %v9421
  %v9423 = vrot.slane %v9355, %v9422
  %v9425 = vunpack.c.l.s4 839922192
  %v9426 = vunpack.c.0.s8 %v9425
  %v9427 = vlaneseq
  %v9428 = vshrl.u32 %v9427, 7
  %v9429 = vsub.s32 %v9426, %v9428
  %v9430 = vrot.slane %v9356, %v9429
  %v9432 = vunpack.c.l.s4 1985246804
  %v9433 = vunpack.c.0.s8 %v9432
  %v9434 = vlaneseq
  %v9435 = vshrl.u32 %v9434, 7
  %v9436 = vsub.s32 %v9433, %v9435
  %v9437 = vrot.slane %v9356, %v9436
  %v9439 = vunpack.c.l.s4 839922192
  %v9440 = vunpack.c.0.s8 %v9439
  %v9441 = vlaneseq
  %v9442 = vshrl.u32 %v9441, 7
  %v9443 = vsub.s32 %v9440, %v9442
  %v9444 = vrot.slane %v9357, %v9443
  %v9446 = vunpack.c.l.s4 1985246804
  %v9447 = vunpack.c.0.s8 %v9446
  %v9448 = vlaneseq
  %v9449 = vshrl.u32 %v9448, 7
  %v9450 = vsub.s32 %v9447, %v9449
  %v9451 = vrot.slane %v9357, %v9450
  %v9453 = vunpack.c.l.s4 839922192
  %v9454 = vunpack.c.0.s8 %v9453
  %v9455 = vlaneseq
  %v9456 = vshrl.u32 %v9455, 7
  %v9457 = vsub.s32 %v9454, %v9456
  %v9458 = vrot.slane %v9358, %v9457
  %v9460 = vunpack.c.l.s4 1985246804
  %v9461 = vunpack.c.0.s8 %v9460
  %v9462 = vlaneseq
  %v9463 = vshrl.u32 %v9462, 7
  %v9464 = vsub.s32 %v9461, %v9463
  %v9465 = vrot.slane %v9358, %v9464
  %v9467 = vunpack.c.l.s4 839922192
  %v9468 = vunpack.c.0.s8 %v9467
  %v9469 = vlaneseq
  %v9470 = vshrl.u32 %v9469, 7
  %v9471 = vsub.s32 %v9468, %v9470
  %v9472 = vrot.slane %v9359, %v9471
  %v9474 = vunpack.c.l.s4 1985246804
  %v9475 = vunpack.c.0.s8 %v9474
  %v9476 = vlaneseq
  %v9477 = vshrl.u32 %v9476, 7
  %v9478 = vsub.s32 %v9475, %v9477
  %v9479 = vrot.slane %v9359, %v9478
  %v9496 = vmul.bf16 %v9336, %v9374
  %v9497 = vmul.bf16 %v9337, %v9381
  %v9498 = vmul.bf16 %v9338, %v9388
  %v9499 = vmul.bf16 %v9339, %v9395
  %v9500 = vmul.bf16 %v9340, %v9402
  %v9501 = vmul.bf16 %v9341, %v9409
  %v9502 = vmul.bf16 %v9342, %v9416
  %v9503 = vmul.bf16 %v9343, %v9423
  %v9504 = vmul.bf16 %v9344, %v9430
  %v9505 = vmul.bf16 %v9345, %v9437
  %v9506 = vmul.bf16 %v9346, %v9444
  %v9507 = vmul.bf16 %v9347, %v9451
  %v9508 = vmul.bf16 %v9348, %v9458
  %v9509 = vmul.bf16 %v9349, %v9465
  %v9510 = vmul.bf16 %v9350, %v9472
  %v9511 = vmul.bf16 %v9351, %v9479
  %v9528 = vunpack.c.l.b16 %v9496
  %v9529 = vunpack.c.l.b16 %v9497
  %v9530 = vunpack.c.l.b16 %v9498
  %v9531 = vunpack.c.l.b16 %v9499
  %v9532 = vunpack.c.l.b16 %v9500
  %v9533 = vunpack.c.l.b16 %v9501
  %v9534 = vunpack.c.l.b16 %v9502
  %v9535 = vunpack.c.l.b16 %v9503
  %v9536 = vunpack.c.l.b16 %v9504
  %v9537 = vunpack.c.l.b16 %v9505
  %v9538 = vunpack.c.l.b16 %v9506
  %v9539 = vunpack.c.l.b16 %v9507
  %v9540 = vunpack.c.l.b16 %v9508
  %v9541 = vunpack.c.l.b16 %v9509
  %v9542 = vunpack.c.l.b16 %v9510
  %v9543 = vunpack.c.l.b16 %v9511
  %v9544 = vpack.c.b16 %v9529, %v9528
  %v9545 = vpack.c.b16 %v9531, %v9530
  %v9546 = vpack.c.b16 %v9533, %v9532
  %v9547 = vpack.c.b16 %v9535, %v9534
  %v9548 = vpack.c.b16 %v9537, %v9536
  %v9549 = vpack.c.b16 %v9539, %v9538
  %v9550 = vpack.c.b16 %v9541, %v9540
  %v9551 = vpack.c.b16 %v9543, %v9542
  %9560 = vmatprep.subr.bf16.mxu0 0
  %9561 = vmatpush1.bf16.msra.mxu0 %v9551
  %9562 = vmatprep.subr.bf16.mxu0 0
  %9563 = vmatpush1.bf16.msra.mxu0 %v9550
  %9564 = vmatprep.subr.bf16.mxu0 0
  %9565 = vmatpush1.bf16.msra.mxu0 %v9549
  %9566 = vmatprep.subr.bf16.mxu0 0
  %9567 = vmatpush1.bf16.msra.mxu0 %v9548
  %9568 = vmatprep.subr.bf16.mxu0 0
  %9569 = vmatpush1.bf16.msra.mxu0 %v9547
  %9570 = vmatprep.subr.bf16.mxu0 0
  %9571 = vmatpush1.bf16.msra.mxu0 %v9546
  %9572 = vmatprep.subr.bf16.mxu0 0
  %9573 = vmatpush1.bf16.msra.mxu0 %v9545
  %9574 = vmatprep.subr.bf16.mxu0 0
  %9575 = vmatpush1.bf16.msra.mxu0 %v9544
  %9576 = vmatprep.subr.bf16.mxu0 0
  %9577 = vmatpush2.bf16.msra.mxu0 0
  %9578 = vmatprep.subr.bf16.mxu0 0
  %9579 = vmatpush2.bf16.msra.mxu0 0
  %9580 = vmatprep.subr.bf16.mxu0 0
  %9581 = vmatpush2.bf16.msra.mxu0 0
  %9582 = vmatprep.subr.bf16.mxu0 0
  %9583 = vmatpush2.bf16.msra.mxu0 0
  %9584 = vmatprep.subr.bf16.mxu0 0
  %9585 = vmatpush2.bf16.msra.mxu0 0
  %9586 = vmatprep.subr.bf16.mxu0 0
  %9587 = vmatpush2.bf16.msra.mxu0 0
  %9588 = vmatprep.subr.bf16.mxu0 0
  %9589 = vmatpush2.bf16.msra.mxu0 0
  %9590 = vmatprep.subr.bf16.mxu0 0
  %9591 = vmatpush2.bf16.msra.mxu0 0
  %9592 = vmatprep.mubr.bf16.mxu0 0
  %9593 = vmatmul.mubr.bf16.gmra.mxu0 %v9335
  %v9594 = vpop.f32.mrf.mxu0
  %v9595 = vadd.f32 0.0, %v9594
  %v9596 = vpop.f32.mrf.mxu0
  %v9597 = vpop.f32.mrf.mxu0
  %v9598 = vpop.f32.mrf.mxu0
  %9599 = vdwg.mxu0
  %v9600 = vmul.f32 %v8857, %v9595
  %v9601 = vpack.c.bf16 %v791, %v791
  %v9602 = vpack.c.bf16 %v9600, %v9600
  %v9603 = vld [vmem:[%s14] sm:$0xff]
  %v9604 = vld [vmem:[%s14 + $0x8] sm:$0xff]
  %v9605 = vld [vmem:[%s14 + $0x10] sm:$0xff]
  %v9606 = vld [vmem:[%s14 + $0x18] sm:$0xff]
  %v9607 = vld [vmem:[%s14 + $0x20] sm:$0xff]
  %v9608 = vld [vmem:[%s14 + $0x28] sm:$0xff]
  %v9609 = vld [vmem:[%s14 + $0x30] sm:$0xff]
  %v9610 = vld [vmem:[%s14 + $0x38] sm:$0xff]
  %v9611 = vld [vmem:[%s14 + $0x40] sm:$0xff]
  %v9612 = vld [vmem:[%s14 + $0x48] sm:$0xff]
  %v9613 = vld [vmem:[%s14 + $0x50] sm:$0xff]
  %v9614 = vld [vmem:[%s14 + $0x58] sm:$0xff]
  %v9615 = vld [vmem:[%s14 + $0x60] sm:$0xff]
  %v9616 = vld [vmem:[%s14 + $0x68] sm:$0xff]
  %v9617 = vld [vmem:[%s14 + $0x70] sm:$0xff]
  %v9618 = vld [vmem:[%s14 + $0x78] sm:$0xff]
  %v9619 = vld [vmem:[%s14 + $0x80] sm:$0xff]
  %v9620 = vld [vmem:[%s14 + $0x88] sm:$0xff]
  %v9621 = vld [vmem:[%s14 + $0x90] sm:$0xff]
  %v9622 = vld [vmem:[%s14 + $0x98] sm:$0xff]
  %v9623 = vld [vmem:[%s14 + $0xa0] sm:$0xff]
  %v9624 = vld [vmem:[%s14 + $0xa8] sm:$0xff]
  %v9625 = vld [vmem:[%s14 + $0xb0] sm:$0xff]
  %v9626 = vld [vmem:[%s14 + $0xb8] sm:$0xff]
  %v9627 = vld [vmem:[%s14 + $0xc0] sm:$0xff]
  %v9628 = vld [vmem:[%s14 + $0xc8] sm:$0xff]
  %v9629 = vld [vmem:[%s14 + $0xd0] sm:$0xff]
  %v9630 = vld [vmem:[%s14 + $0xd8] sm:$0xff]
  %v9631 = vld [vmem:[%s14 + $0xe0] sm:$0xff]
  %v9632 = vld [vmem:[%s14 + $0xe8] sm:$0xff]
  %v9633 = vld [vmem:[%s14 + $0xf0] sm:$0xff]
  %v9634 = vld [vmem:[%s14 + $0xf8] sm:$0xff]
  %v9635 = vld [vmem:[%s14 + $0x100] sm:$0xff]
  %v9636 = vld [vmem:[%s14 + $0x108] sm:$0xff]
  %v9637 = vld [vmem:[%s14 + $0x110] sm:$0xff]
  %v9638 = vld [vmem:[%s14 + $0x118] sm:$0xff]
  %v9639 = vld [vmem:[%s14 + $0x120] sm:$0xff]
  %v9640 = vld [vmem:[%s14 + $0x128] sm:$0xff]
  %v9641 = vld [vmem:[%s14 + $0x130] sm:$0xff]
  %v9642 = vld [vmem:[%s14 + $0x138] sm:$0xff]
  %v9643 = vld [vmem:[%s14 + $0x140] sm:$0xff]
  %v9644 = vld [vmem:[%s14 + $0x148] sm:$0xff]
  %v9645 = vld [vmem:[%s14 + $0x150] sm:$0xff]
  %v9646 = vld [vmem:[%s14 + $0x158] sm:$0xff]
  %v9647 = vld [vmem:[%s14 + $0x160] sm:$0xff]
  %v9648 = vld [vmem:[%s14 + $0x168] sm:$0xff]
  %v9649 = vld [vmem:[%s14 + $0x170] sm:$0xff]
  %v9650 = vld [vmem:[%s14 + $0x178] sm:$0xff]
  %v9651 = vld [vmem:[%s14 + $0x180] sm:$0xff]
  %v9652 = vld [vmem:[%s14 + $0x188] sm:$0xff]
  %v9653 = vld [vmem:[%s14 + $0x190] sm:$0xff]
  %v9654 = vld [vmem:[%s14 + $0x198] sm:$0xff]
  %v9655 = vld [vmem:[%s14 + $0x1a0] sm:$0xff]
  %v9656 = vld [vmem:[%s14 + $0x1a8] sm:$0xff]
  %v9657 = vld [vmem:[%s14 + $0x1b0] sm:$0xff]
  %v9658 = vld [vmem:[%s14 + $0x1b8] sm:$0xff]
  %v9659 = vld [vmem:[%s14 + $0x1c0] sm:$0xff]
  %v9660 = vld [vmem:[%s14 + $0x1c8] sm:$0xff]
  %v9661 = vld [vmem:[%s14 + $0x1d0] sm:$0xff]
  %v9662 = vld [vmem:[%s14 + $0x1d8] sm:$0xff]
  %v9663 = vld [vmem:[%s14 + $0x1e0] sm:$0xff]
  %v9664 = vld [vmem:[%s14 + $0x1e8] sm:$0xff]
  %v9665 = vld [vmem:[%s14 + $0x1f0] sm:$0xff]
  %v9666 = vld [vmem:[%s14 + $0x1f8] sm:$0xff]
  %v9731 = vunpack.c.l.b16 %v9603
  %v9732 = vunpack.c.h.b16 %v9603
  %v9733 = vunpack.c.l.b16 %v9604
  %v9734 = vunpack.c.h.b16 %v9604
  %v9735 = vunpack.c.l.b16 %v9605
  %v9736 = vunpack.c.h.b16 %v9605
  %v9737 = vunpack.c.l.b16 %v9606
  %v9738 = vunpack.c.h.b16 %v9606
  %v9739 = vunpack.c.l.b16 %v9607
  %v9740 = vunpack.c.h.b16 %v9607
  %v9741 = vunpack.c.l.b16 %v9608
  %v9742 = vunpack.c.h.b16 %v9608
  %v9743 = vunpack.c.l.b16 %v9609
  %v9744 = vunpack.c.h.b16 %v9609
  %v9745 = vunpack.c.l.b16 %v9610
  %v9746 = vunpack.c.h.b16 %v9610
  %v9747 = vunpack.c.l.b16 %v9611
  %v9748 = vunpack.c.h.b16 %v9611
  %v9749 = vunpack.c.l.b16 %v9612
  %v9750 = vunpack.c.h.b16 %v9612
  %v9751 = vunpack.c.l.b16 %v9613
  %v9752 = vunpack.c.h.b16 %v9613
  %v9753 = vunpack.c.l.b16 %v9614
  %v9754 = vunpack.c.h.b16 %v9614
  %v9755 = vunpack.c.l.b16 %v9615
  %v9756 = vunpack.c.h.b16 %v9615
  %v9757 = vunpack.c.l.b16 %v9616
  %v9758 = vunpack.c.h.b16 %v9616
  %v9759 = vunpack.c.l.b16 %v9617
  %v9760 = vunpack.c.h.b16 %v9617
  %v9761 = vunpack.c.l.b16 %v9618
  %v9762 = vunpack.c.h.b16 %v9618
  %v9763 = vunpack.c.l.b16 %v9619
  %v9764 = vunpack.c.h.b16 %v9619
  %v9765 = vunpack.c.l.b16 %v9620
  %v9766 = vunpack.c.h.b16 %v9620
  %v9767 = vunpack.c.l.b16 %v9621
  %v9768 = vunpack.c.h.b16 %v9621
  %v9769 = vunpack.c.l.b16 %v9622
  %v9770 = vunpack.c.h.b16 %v9622
  %v9771 = vunpack.c.l.b16 %v9623
  %v9772 = vunpack.c.h.b16 %v9623
  %v9773 = vunpack.c.l.b16 %v9624
  %v9774 = vunpack.c.h.b16 %v9624
  %v9775 = vunpack.c.l.b16 %v9625
  %v9776 = vunpack.c.h.b16 %v9625
  %v9777 = vunpack.c.l.b16 %v9626
  %v9778 = vunpack.c.h.b16 %v9626
  %v9779 = vunpack.c.l.b16 %v9627
  %v9780 = vunpack.c.h.b16 %v9627
  %v9781 = vunpack.c.l.b16 %v9628
  %v9782 = vunpack.c.h.b16 %v9628
  %v9783 = vunpack.c.l.b16 %v9629
  %v9784 = vunpack.c.h.b16 %v9629
  %v9785 = vunpack.c.l.b16 %v9630
  %v9786 = vunpack.c.h.b16 %v9630
  %v9787 = vunpack.c.l.b16 %v9631
  %v9788 = vunpack.c.h.b16 %v9631
  %v9789 = vunpack.c.l.b16 %v9632
  %v9790 = vunpack.c.h.b16 %v9632
  %v9791 = vunpack.c.l.b16 %v9633
  %v9792 = vunpack.c.h.b16 %v9633
  %v9793 = vunpack.c.l.b16 %v9634
  %v9794 = vunpack.c.h.b16 %v9634
  %v9795 = vunpack.c.l.b16 %v9635
  %v9796 = vunpack.c.h.b16 %v9635
  %v9797 = vunpack.c.l.b16 %v9636
  %v9798 = vunpack.c.h.b16 %v9636
  %v9799 = vunpack.c.l.b16 %v9637
  %v9800 = vunpack.c.h.b16 %v9637
  %v9801 = vunpack.c.l.b16 %v9638
  %v9802 = vunpack.c.h.b16 %v9638
  %v9803 = vunpack.c.l.b16 %v9639
  %v9804 = vunpack.c.h.b16 %v9639
  %v9805 = vunpack.c.l.b16 %v9640
  %v9806 = vunpack.c.h.b16 %v9640
  %v9807 = vunpack.c.l.b16 %v9641
  %v9808 = vunpack.c.h.b16 %v9641
  %v9809 = vunpack.c.l.b16 %v9642
  %v9810 = vunpack.c.h.b16 %v9642
  %v9811 = vunpack.c.l.b16 %v9643
  %v9812 = vunpack.c.h.b16 %v9643
  %v9813 = vunpack.c.l.b16 %v9644
  %v9814 = vunpack.c.h.b16 %v9644
  %v9815 = vunpack.c.l.b16 %v9645
  %v9816 = vunpack.c.h.b16 %v9645
  %v9817 = vunpack.c.l.b16 %v9646
  %v9818 = vunpack.c.h.b16 %v9646
  %v9819 = vunpack.c.l.b16 %v9647
  %v9820 = vunpack.c.h.b16 %v9647
  %v9821 = vunpack.c.l.b16 %v9648
  %v9822 = vunpack.c.h.b16 %v9648
  %v9823 = vunpack.c.l.b16 %v9649
  %v9824 = vunpack.c.h.b16 %v9649
  %v9825 = vunpack.c.l.b16 %v9650
  %v9826 = vunpack.c.h.b16 %v9650
  %v9827 = vunpack.c.l.b16 %v9651
  %v9828 = vunpack.c.h.b16 %v9651
  %v9829 = vunpack.c.l.b16 %v9652
  %v9830 = vunpack.c.h.b16 %v9652
  %v9831 = vunpack.c.l.b16 %v9653
  %v9832 = vunpack.c.h.b16 %v9653
  %v9833 = vunpack.c.l.b16 %v9654
  %v9834 = vunpack.c.h.b16 %v9654
  %v9835 = vunpack.c.l.b16 %v9655
  %v9836 = vunpack.c.h.b16 %v9655
  %v9837 = vunpack.c.l.b16 %v9656
  %v9838 = vunpack.c.h.b16 %v9656
  %v9839 = vunpack.c.l.b16 %v9657
  %v9840 = vunpack.c.h.b16 %v9657
  %v9841 = vunpack.c.l.b16 %v9658
  %v9842 = vunpack.c.h.b16 %v9658
  %v9843 = vunpack.c.l.b16 %v9659
  %v9844 = vunpack.c.h.b16 %v9659
  %v9845 = vunpack.c.l.b16 %v9660
  %v9846 = vunpack.c.h.b16 %v9660
  %v9847 = vunpack.c.l.b16 %v9661
  %v9848 = vunpack.c.h.b16 %v9661
  %v9849 = vunpack.c.l.b16 %v9662
  %v9850 = vunpack.c.h.b16 %v9662
  %v9851 = vunpack.c.l.b16 %v9663
  %v9852 = vunpack.c.h.b16 %v9663
  %v9853 = vunpack.c.l.b16 %v9664
  %v9854 = vunpack.c.h.b16 %v9664
  %v9855 = vunpack.c.l.b16 %v9665
  %v9856 = vunpack.c.h.b16 %v9665
  %v9857 = vunpack.c.l.b16 %v9666
  %v9858 = vunpack.c.h.b16 %v9666
  %v9859 = vpack.c.b16 %v9735, %v9731
  %v9860 = vpack.c.b16 %v9736, %v9732
  %v9861 = vpack.c.b16 %v9737, %v9733
  %v9862 = vpack.c.b16 %v9738, %v9734
  %v9863 = vpack.c.b16 %v9743, %v9739
  %v9864 = vpack.c.b16 %v9744, %v9740
  %v9865 = vpack.c.b16 %v9745, %v9741
  %v9866 = vpack.c.b16 %v9746, %v9742
  %v9867 = vpack.c.b16 %v9751, %v9747
  %v9868 = vpack.c.b16 %v9752, %v9748
  %v9869 = vpack.c.b16 %v9753, %v9749
  %v9870 = vpack.c.b16 %v9754, %v9750
  %v9871 = vpack.c.b16 %v9759, %v9755
  %v9872 = vpack.c.b16 %v9760, %v9756
  %v9873 = vpack.c.b16 %v9761, %v9757
  %v9874 = vpack.c.b16 %v9762, %v9758
  %v9875 = vpack.c.b16 %v9767, %v9763
  %v9876 = vpack.c.b16 %v9768, %v9764
  %v9877 = vpack.c.b16 %v9769, %v9765
  %v9878 = vpack.c.b16 %v9770, %v9766
  %v9879 = vpack.c.b16 %v9775, %v9771
  %v9880 = vpack.c.b16 %v9776, %v9772
  %v9881 = vpack.c.b16 %v9777, %v9773
  %v9882 = vpack.c.b16 %v9778, %v9774
  %v9883 = vpack.c.b16 %v9783, %v9779
  %v9884 = vpack.c.b16 %v9784, %v9780
  %v9885 = vpack.c.b16 %v9785, %v9781
  %v9886 = vpack.c.b16 %v9786, %v9782
  %v9887 = vpack.c.b16 %v9791, %v9787
  %v9888 = vpack.c.b16 %v9792, %v9788
  %v9889 = vpack.c.b16 %v9793, %v9789
  %v9890 = vpack.c.b16 %v9794, %v9790
  %v9891 = vpack.c.b16 %v9799, %v9795
  %v9892 = vpack.c.b16 %v9800, %v9796
  %v9893 = vpack.c.b16 %v9801, %v9797
  %v9894 = vpack.c.b16 %v9802, %v9798
  %v9895 = vpack.c.b16 %v9807, %v9803
  %v9896 = vpack.c.b16 %v9808, %v9804
  %v9897 = vpack.c.b16 %v9809, %v9805
  %v9898 = vpack.c.b16 %v9810, %v9806
  %v9899 = vpack.c.b16 %v9815, %v9811
  %v9900 = vpack.c.b16 %v9816, %v9812
  %v9901 = vpack.c.b16 %v9817, %v9813
  %v9902 = vpack.c.b16 %v9818, %v9814
  %v9903 = vpack.c.b16 %v9823, %v9819
  %v9904 = vpack.c.b16 %v9824, %v9820
  %v9905 = vpack.c.b16 %v9825, %v9821
  %v9906 = vpack.c.b16 %v9826, %v9822
  %v9907 = vpack.c.b16 %v9831, %v9827
  %v9908 = vpack.c.b16 %v9832, %v9828
  %v9909 = vpack.c.b16 %v9833, %v9829
  %v9910 = vpack.c.b16 %v9834, %v9830
  %v9911 = vpack.c.b16 %v9839, %v9835
  %v9912 = vpack.c.b16 %v9840, %v9836
  %v9913 = vpack.c.b16 %v9841, %v9837
  %v9914 = vpack.c.b16 %v9842, %v9838
  %v9915 = vpack.c.b16 %v9847, %v9843
  %v9916 = vpack.c.b16 %v9848, %v9844
  %v9917 = vpack.c.b16 %v9849, %v9845
  %v9918 = vpack.c.b16 %v9850, %v9846
  %v9919 = vpack.c.b16 %v9855, %v9851
  %v9920 = vpack.c.b16 %v9856, %v9852
  %v9921 = vpack.c.b16 %v9857, %v9853
  %v9922 = vpack.c.b16 %v9858, %v9854
  %9987 = vmatprep.subr.bf16.mxu0 %v9888
  %9988 = vmatpush1.bf16.msra.mxu0 %v9887
  %9989 = vmatprep.subr.bf16.mxu0 %v9884
  %9990 = vmatpush1.bf16.msra.mxu0 %v9883
  %9991 = vmatprep.subr.bf16.mxu0 %v9880
  %9992 = vmatpush1.bf16.msra.mxu0 %v9879
  %9993 = vmatprep.subr.bf16.mxu0 %v9876
  %9994 = vmatpush1.bf16.msra.mxu0 %v9875
  %9995 = vmatprep.subr.bf16.mxu0 %v9872
  %9996 = vmatpush1.bf16.msra.mxu0 %v9871
  %9997 = vmatprep.subr.bf16.mxu0 %v9868
  %9998 = vmatpush1.bf16.msra.mxu0 %v9867
  %9999 = vmatprep.subr.bf16.mxu0 %v9864
  %10000 = vmatpush1.bf16.msra.mxu0 %v9863
  %10001 = vmatprep.subr.bf16.mxu0 %v9860
  %10002 = vmatpush1.bf16.msra.mxu0 %v9859
  %10003 = vmatprep.subr.bf16.mxu0 %v9920
  %10004 = vmatpush2.bf16.msra.mxu0 %v9919
  %10005 = vmatprep.subr.bf16.mxu0 %v9916
  %10006 = vmatpush2.bf16.msra.mxu0 %v9915
  %10007 = vmatprep.subr.bf16.mxu0 %v9912
  %10008 = vmatpush2.bf16.msra.mxu0 %v9911
  %10009 = vmatprep.subr.bf16.mxu0 %v9908
  %10010 = vmatpush2.bf16.msra.mxu0 %v9907
  %10011 = vmatprep.subr.bf16.mxu0 %v9904
  %10012 = vmatpush2.bf16.msra.mxu0 %v9903
  %10013 = vmatprep.subr.bf16.mxu0 %v9900
  %10014 = vmatpush2.bf16.msra.mxu0 %v9899
  %10015 = vmatprep.subr.bf16.mxu0 %v9896
  %10016 = vmatpush2.bf16.msra.mxu0 %v9895
  %10017 = vmatprep.subr.bf16.mxu0 %v9892
  %10018 = vmatpush2.bf16.msra.mxu0 %v9891
  %10019 = vmatprep.mubr.bf16.mxu0 %v9602
  %10020 = vmatmul.mubr.bf16.gmra.mxu0 %v9601
  %v10021 = vpop.f32.mrf.mxu0
  %v10022 = vadd.f32 %v8805, %v10021
  %v10023 = vpop.f32.mrf.mxu0
  %v10024 = vadd.f32 %v8807, %v10023
  %v10025 = vpop.f32.mrf.mxu0
  %v10026 = vpop.f32.mrf.mxu0
  %10027 = vdwg.mxu0
  %10028 = vmatprep.subr.bf16.mxu0 %v9890
  %10029 = vmatpush1.bf16.msra.mxu0 %v9889
  %10030 = vmatprep.subr.bf16.mxu0 %v9886
  %10031 = vmatpush1.bf16.msra.mxu0 %v9885
  %10032 = vmatprep.subr.bf16.mxu0 %v9882
  %10033 = vmatpush1.bf16.msra.mxu0 %v9881
  %10034 = vmatprep.subr.bf16.mxu0 %v9878
  %10035 = vmatpush1.bf16.msra.mxu0 %v9877
  %10036 = vmatprep.subr.bf16.mxu0 %v9874
  %10037 = vmatpush1.bf16.msra.mxu0 %v9873
  %10038 = vmatprep.subr.bf16.mxu0 %v9870
  %10039 = vmatpush1.bf16.msra.mxu0 %v9869
  %10040 = vmatprep.subr.bf16.mxu0 %v9866
  %10041 = vmatpush1.bf16.msra.mxu0 %v9865
  %10042 = vmatprep.subr.bf16.mxu0 %v9862
  %10043 = vmatpush1.bf16.msra.mxu0 %v9861
  %10044 = vmatprep.subr.bf16.mxu0 %v9922
  %10045 = vmatpush2.bf16.msra.mxu0 %v9921
  %10046 = vmatprep.subr.bf16.mxu0 %v9918
  %10047 = vmatpush2.bf16.msra.mxu0 %v9917
  %10048 = vmatprep.subr.bf16.mxu0 %v9914
  %10049 = vmatpush2.bf16.msra.mxu0 %v9913
  %10050 = vmatprep.subr.bf16.mxu0 %v9910
  %10051 = vmatpush2.bf16.msra.mxu0 %v9909
  %10052 = vmatprep.subr.bf16.mxu0 %v9906
  %10053 = vmatpush2.bf16.msra.mxu0 %v9905
  %10054 = vmatprep.subr.bf16.mxu0 %v9902
  %10055 = vmatpush2.bf16.msra.mxu0 %v9901
  %10056 = vmatprep.subr.bf16.mxu0 %v9898
  %10057 = vmatpush2.bf16.msra.mxu0 %v9897
  %10058 = vmatprep.subr.bf16.mxu0 %v9894
  %10059 = vmatpush2.bf16.msra.mxu0 %v9893
  %10060 = vmatprep.mubr.bf16.mxu0 %v9602
  %10061 = vmatmul.mubr.bf16.gmra.mxu0 %v9601
  %v10062 = vpop.f32.mrf.mxu0
  %v10063 = vadd.f32 %v8846, %v10062
  %v10064 = vpop.f32.mrf.mxu0
  %v10065 = vadd.f32 %v8848, %v10064
  %v10066 = vpop.f32.mrf.mxu0
  %v10067 = vpop.f32.mrf.mxu0
  %10068 = vdwg.mxu0
  %v10069 = vxor.u32 %v10022, 2147483648
  %v10070 = vmul.f32 %v10069, 1.442695
  %v10071 = vpow.pop %v10070
  %v10072 = vadd.f32 %v10071, 1.0
  %v10073 = vrcp.pop %v10072
  %v10074 = vmul.f32 1.0, %v10073
  %v10075 = vxor.u32 %v10024, 2147483648
  %v10076 = vmul.f32 %v10075, 1.442695
  %v10077 = vpow.pop %v10076
  %v10078 = vadd.f32 %v10077, 1.0
  %v10079 = vrcp.pop %v10078
  %v10080 = vmul.f32 1.0, %v10079
  %v10081 = vtanh.pop %v10063
  %v10082 = vxor.u32 %v10065, 2147483648
  %v10083 = vmul.f32 %v10082, 1.442695
  %v10084 = vpow.pop %v10083
  %v10085 = vadd.f32 %v10084, 1.0
  %v10086 = vrcp.pop %v10085
  %v10087 = vmul.f32 1.0, %v10086
  %v10088 = vmul.f32 %v10080, %v8432
  %v10089 = vmul.f32 %v10074, %v10081
  %v10090 = vadd.f32 %v10088, %v10089
  %v10091 = vtanh.pop %v10090
  %v10092 = vmul.f32 %v10087, %v10091
  %v10093 = vpack.c.bf16 %v10092, %v10092
  %v10094 = vld [vmem:[%s15] sm:$0xff]
  %v10095 = vld [vmem:[%s15 + $0x8] sm:$0xff]
  %v10096 = vld [vmem:[%s15 + $0x10] sm:$0xff]
  %v10097 = vld [vmem:[%s15 + $0x18] sm:$0xff]
  %v10098 = vld [vmem:[%s15 + $0x20] sm:$0xff]
  %v10099 = vld [vmem:[%s15 + $0x28] sm:$0xff]
  %v10100 = vld [vmem:[%s15 + $0x30] sm:$0xff]
  %v10101 = vld [vmem:[%s15 + $0x38] sm:$0xff]
  %v10102 = vld [vmem:[%s15 + $0x40] sm:$0xff]
  %v10103 = vld [vmem:[%s15 + $0x48] sm:$0xff]
  %v10104 = vld [vmem:[%s15 + $0x50] sm:$0xff]
  %v10105 = vld [vmem:[%s15 + $0x58] sm:$0xff]
  %v10106 = vld [vmem:[%s15 + $0x60] sm:$0xff]
  %v10107 = vld [vmem:[%s15 + $0x68] sm:$0xff]
  %v10108 = vld [vmem:[%s15 + $0x70] sm:$0xff]
  %v10109 = vld [vmem:[%s15 + $0x78] sm:$0xff]
  %v10110 = vld [vmem:[%s16] sm:$0xff]
  %v10111 = vld [vmem:[%s16 + $0x8] sm:$0xff]
  %v10128 = vunpack.c.l.b16 %v10094
  %v10129 = vunpack.c.h.b16 %v10094
  %v10130 = vunpack.c.l.b16 %v10095
  %v10131 = vunpack.c.h.b16 %v10095
  %v10132 = vunpack.c.l.b16 %v10096
  %v10133 = vunpack.c.h.b16 %v10096
  %v10134 = vunpack.c.l.b16 %v10097
  %v10135 = vunpack.c.h.b16 %v10097
  %v10136 = vunpack.c.l.b16 %v10098
  %v10137 = vunpack.c.h.b16 %v10098
  %v10138 = vunpack.c.l.b16 %v10099
  %v10139 = vunpack.c.h.b16 %v10099
  %v10140 = vunpack.c.l.b16 %v10100
  %v10141 = vunpack.c.h.b16 %v10100
  %v10142 = vunpack.c.l.b16 %v10101
  %v10143 = vunpack.c.h.b16 %v10101
  %v10144 = vunpack.c.l.b16 %v10102
  %v10145 = vunpack.c.h.b16 %v10102
  %v10146 = vunpack.c.l.b16 %v10103
  %v10147 = vunpack.c.h.b16 %v10103
  %v10148 = vunpack.c.l.b16 %v10104
  %v10149 = vunpack.c.h.b16 %v10104
  %v10150 = vunpack.c.l.b16 %v10105
  %v10151 = vunpack.c.h.b16 %v10105
  %v10152 = vunpack.c.l.b16 %v10106
  %v10153 = vunpack.c.h.b16 %v10106
  %v10154 = vunpack.c.l.b16 %v10107
  %v10155 = vunpack.c.h.b16 %v10107
  %v10156 = vunpack.c.l.b16 %v10108
  %v10157 = vunpack.c.h.b16 %v10108
  %v10158 = vunpack.c.l.b16 %v10109
  %v10159 = vunpack.c.h.b16 %v10109
  %v10160 = vpack.c.b16 %v10130, %v10128
  %v10161 = vpack.c.b16 %v10131, %v10129
  %v10162 = vpack.c.b16 %v10134, %v10132
  %v10163 = vpack.c.b16 %v10135, %v10133
  %v10164 = vpack.c.b16 %v10138, %v10136
  %v10165 = vpack.c.b16 %v10139, %v10137
  %v10166 = vpack.c.b16 %v10142, %v10140
  %v10167 = vpack.c.b16 %v10143, %v10141
  %v10168 = vpack.c.b16 %v10146, %v10144
  %v10169 = vpack.c.b16 %v10147, %v10145
  %v10170 = vpack.c.b16 %v10150, %v10148
  %v10171 = vpack.c.b16 %v10151, %v10149
  %v10172 = vpack.c.b16 %v10154, %v10152
  %v10173 = vpack.c.b16 %v10155, %v10153
  %v10174 = vpack.c.b16 %v10158, %v10156
  %v10175 = vpack.c.b16 %v10159, %v10157
  %10192 = vmatprep.subr.bf16.mxu0 %v10175
  %10193 = vmatpush1.bf16.msra.mxu0 %v10174
  %10194 = vmatprep.subr.bf16.mxu0 %v10173
  %10195 = vmatpush1.bf16.msra.mxu0 %v10172
  %10196 = vmatprep.subr.bf16.mxu0 %v10171
  %10197 = vmatpush1.bf16.msra.mxu0 %v10170
  %10198 = vmatprep.subr.bf16.mxu0 %v10169
  %10199 = vmatpush1.bf16.msra.mxu0 %v10168
  %10200 = vmatprep.subr.bf16.mxu0 %v10167
  %10201 = vmatpush1.bf16.msra.mxu0 %v10166
  %10202 = vmatprep.subr.bf16.mxu0 %v10165
  %10203 = vmatpush1.bf16.msra.mxu0 %v10164
  %10204 = vmatprep.subr.bf16.mxu0 %v10163
  %10205 = vmatpush1.bf16.msra.mxu0 %v10162
  %10206 = vmatprep.subr.bf16.mxu0 %v10161
  %10207 = vmatpush1.bf16.msra.mxu0 %v10160
  %10208 = vmatprep.subr.bf16.mxu0 0
  %10209 = vmatpush2.bf16.msra.mxu0 0
  %10210 = vmatprep.subr.bf16.mxu0 0
  %10211 = vmatpush2.bf16.msra.mxu0 0
  %10212 = vmatprep.subr.bf16.mxu0 0
  %10213 = vmatpush2.bf16.msra.mxu0 0
  %10214 = vmatprep.subr.bf16.mxu0 0
  %10215 = vmatpush2.bf16.msra.mxu0 0
  %10216 = vmatprep.subr.bf16.mxu0 0
  %10217 = vmatpush2.bf16.msra.mxu0 0
  %10218 = vmatprep.subr.bf16.mxu0 0
  %10219 = vmatpush2.bf16.msra.mxu0 0
  %10220 = vmatprep.subr.bf16.mxu0 0
  %10221 = vmatpush2.bf16.msra.mxu0 0
  %10222 = vmatprep.subr.bf16.mxu0 0
  %10223 = vmatpush2.bf16.msra.mxu0 0
  %10224 = vmatprep.mubr.bf16.mxu0 0
  %10225 = vmatmul.mubr.bf16.gmra.mxu0 %v10093
  %v10226 = vpop.f32.mrf.mxu0
  %v10227 = vadd.f32 %v10110, %v10226
  %v10228 = vpop.f32.mrf.mxu0
  %v10229 = vadd.f32 %v10111, %v10228
  %v10230 = vpop.f32.mrf.mxu0
  %v10231 = vpop.f32.mrf.mxu0
  %10232 = vdwg.mxu0
  %v10233 = vsel %vm8433, 1, 0
  %10234 = vset.pattern.permute.xlu0 0
  %10235 = vperm.xlu0 %10234, %v10233
  %v10236 = vpop.permute.xlu0 %10235
  %vm10237 = vcmp.eq.s32.totalorder %v10236, 1
  %v10238 = vsel %vm10237, %v10227, 0.0
  %v10239 = vsel %vm10237, %v10229, 0.0
  %s10240 = scalar_lea.vmem %s17, 64
  %10241 = vst [vmem:[%s10240] sm:$0xff] %v10238
  %10242 = vst [vmem:[%s10240 + $0x8] sm:$0xff] %v10239
  %vm10243 = vcmp.gt.s32.totalorder %v797, 4
  %vm10244 = vcmp.gt.s32.totalorder %v798, 4
  %vm10245 = vcmp.gt.s32.totalorder %v799, 4
  %vm10246 = vcmp.gt.s32.totalorder %v800, 4
  %vm10247 = vcmp.gt.s32.totalorder %v801, 4
  %vm10248 = vcmp.gt.s32.totalorder %v802, 4
  %vm10249 = vcmp.gt.s32.totalorder %v803, 4
  %vm10250 = vcmp.gt.s32.totalorder %v804, 4
  %vm10251 = vcmp.gt.s32.totalorder %v805, 4
  %vm10252 = vcmp.gt.s32.totalorder %v806, 4
  %vm10253 = vcmp.gt.s32.totalorder %v807, 4
  %vm10254 = vcmp.gt.s32.totalorder %v808, 4
  %vm10255 = vcmp.gt.s32.totalorder %v809, 4
  %vm10256 = vcmp.gt.s32.totalorder %v810, 4
  %vm10257 = vcmp.gt.s32.totalorder %v811, 4
  %vm10258 = vcmp.gt.s32.totalorder %v812, 4
  %v10259 = vsel %vm10243, %v9319, 0.0
  %v10260 = vsel %vm10244, %v9320, 0.0
  %v10261 = vsel %vm10245, %v9321, 0.0
  %v10262 = vsel %vm10246, %v9322, 0.0
  %v10263 = vsel %vm10247, %v9323, 0.0
  %v10264 = vsel %vm10248, %v9324, 0.0
  %v10265 = vsel %vm10249, %v9325, 0.0
  %v10266 = vsel %vm10250, %v9326, 0.0
  %v10267 = vsel %vm10251, %v9327, 0.0
  %v10268 = vsel %vm10252, %v9328, 0.0
  %v10269 = vsel %vm10253, %v9329, 0.0
  %v10270 = vsel %vm10254, %v9330, 0.0
  %v10271 = vsel %vm10255, %v9331, 0.0
  %v10272 = vsel %vm10256, %v9332, 0.0
  %v10273 = vsel %vm10257, %v9333, 0.0
  %v10274 = vsel %vm10258, %v9334, 0.0
  %10291 = vrot.lane.b32.xlu0 %v10259, 4
  %v10292 = vpop.permute.xlu0 %10291
  %10293 = vrot.lane.b32.xlu0 %v10260, 4
  %v10294 = vpop.permute.xlu0 %10293
  %10295 = vrot.lane.b32.xlu0 %v10261, 4
  %v10296 = vpop.permute.xlu0 %10295
  %10297 = vrot.lane.b32.xlu0 %v10262, 4
  %v10298 = vpop.permute.xlu0 %10297
  %10299 = vrot.lane.b32.xlu0 %v10263, 4
  %v10300 = vpop.permute.xlu0 %10299
  %10301 = vrot.lane.b32.xlu0 %v10264, 4
  %v10302 = vpop.permute.xlu0 %10301
  %10303 = vrot.lane.b32.xlu0 %v10265, 4
  %v10304 = vpop.permute.xlu0 %10303
  %10305 = vrot.lane.b32.xlu0 %v10266, 4
  %v10306 = vpop.permute.xlu0 %10305
  %10307 = vrot.lane.b32.xlu0 %v10267, 4
  %v10308 = vpop.permute.xlu0 %10307
  %10309 = vrot.lane.b32.xlu0 %v10268, 4
  %v10310 = vpop.permute.xlu0 %10309
  %10311 = vrot.lane.b32.xlu0 %v10269, 4
  %v10312 = vpop.permute.xlu0 %10311
  %10313 = vrot.lane.b32.xlu0 %v10270, 4
  %v10314 = vpop.permute.xlu0 %10313
  %10315 = vrot.lane.b32.xlu0 %v10271, 4
  %v10316 = vpop.permute.xlu0 %10315
  %10317 = vrot.lane.b32.xlu0 %v10272, 4
  %v10318 = vpop.permute.xlu0 %10317
  %10319 = vrot.lane.b32.xlu0 %v10273, 4
  %v10320 = vpop.permute.xlu0 %10319
  %10321 = vrot.lane.b32.xlu0 %v10274, 4
  %v10322 = vpop.permute.xlu0 %10321
  %vm10339 = vcmask 39968
  %10340 = vst.msk [vmem:[%s18] sm:$0xff] %vm10339, %v10292
  %10341 = vst.msk [vmem:[%s18 + $0x8] sm:$0xff] %vm10339, %v10294
  %10342 = vst.msk [vmem:[%s18 + $0x10] sm:$0xff] %vm10339, %v10296
  %10343 = vst.msk [vmem:[%s18 + $0x18] sm:$0xff] %vm10339, %v10298
  %10344 = vst.msk [vmem:[%s18 + $0x20] sm:$0xff] %vm10339, %v10300
  %10345 = vst.msk [vmem:[%s18 + $0x28] sm:$0xff] %vm10339, %v10302
  %10346 = vst.msk [vmem:[%s18 + $0x30] sm:$0xff] %vm10339, %v10304
  %10347 = vst.msk [vmem:[%s18 + $0x38] sm:$0xff] %vm10339, %v10306
  %10348 = vst.msk [vmem:[%s18 + $0x40] sm:$0xff] %vm10339, %v10308
  %10349 = vst.msk [vmem:[%s18 + $0x48] sm:$0xff] %vm10339, %v10310
  %10350 = vst.msk [vmem:[%s18 + $0x50] sm:$0xff] %vm10339, %v10312
  %10351 = vst.msk [vmem:[%s18 + $0x58] sm:$0xff] %vm10339, %v10314
  %10352 = vst.msk [vmem:[%s18 + $0x60] sm:$0xff] %vm10339, %v10316
  %10353 = vst.msk [vmem:[%s18 + $0x68] sm:$0xff] %vm10339, %v10318
  %10354 = vst.msk [vmem:[%s18 + $0x70] sm:$0xff] %vm10339, %v10320
  %10355 = vst.msk [vmem:[%s18 + $0x78] sm:$0xff] %vm10339, %v10322
  // Predicated region
  $region70: #{decoder_forward.1} parent=0 // pred_check
    _
  $region71: #{decoder_forward.1} parent=0 // pred_check_branch
    %10357 = sbr.rel (0) target = $region73
  $region72: #{decoder_forward.1} parent=0 // pred_region
    _
  $region73: #{decoder_forward.1} parent=0 // pred_fallthru
    _
  // Predicated region
  $region74: #{decoder_forward.1} parent=0 // pred_check
    _
  $region75: #{decoder_forward.1} parent=0 // pred_check_branch
    %10359 = sbr.rel (0) target = $region77
  $region76: #{decoder_forward.1} parent=0 // pred_region
    _
  $region77: #{decoder_forward.1} parent=0 // pred_fallthru
    _
  // Predicated region
  $region78: #{decoder_forward.1} parent=0 // pred_check
    _
  $region79: #{decoder_forward.1} parent=0 // pred_check_branch
    %10361 = sbr.rel (0) target = $region81
  $region80: #{decoder_forward.1} parent=0 // pred_region
    _
  $region81: #{decoder_forward.1} parent=0 // pred_fallthru
    _
  // Predicated region
  $region82: #{decoder_forward.1} parent=0 // pred_check
    _
  $region83: #{decoder_forward.1} parent=0 // pred_check_branch
    %10363 = sbr.rel (0) target = $region85
  $region84: #{decoder_forward.1} parent=0 // pred_region
    _
  $region85: #{decoder_forward.1} parent=0 // pred_fallthru
    _

</llo_original>
